<compile_context>
chip_gen: v6e
topology: v6e:2x2x1
jax: 0.10.0
libtpu: 0.0.40
codegen_flags: <defaults>
</compile_context>

<pallas_src>
import functools
import math

import jax
import jax.numpy as jnp
from jax import lax
from jax.experimental import pallas as pl
from jax.experimental.pallas import tpu as pltpu

# ----- scaled-down BERT config (original uses hidden=768, 12 layers) -----
VOCAB = 100
MAX_POS = 32
HIDDEN = 128
HEADS = 4
HEAD_DIM = HIDDEN // HEADS
FFN = 4 * HIDDEN
LAYERS = 2
NUM_LABELS = 4
CLS_PAD = 128          # classifier head padded to 128 lanes (sliced outside)
LN_EPS = 1e-12


# ---------------- in-kernel helpers ----------------

def _ln(x, g, b):
    mean = jnp.mean(x, axis=-1, keepdims=True)
    var = jnp.mean((x - mean) ** 2, axis=-1, keepdims=True)
    return (x - mean) * lax.rsqrt(var + LN_EPS) * g + b


def _gelu(y):
    # TODO(synk): HF BERT uses exact erf GELU; tanh approximation used here for
    # robust EUP lowering (small numeric difference).
    return 0.5 * y * (1.0 + jnp.tanh(0.7978845608028654 * (y + 0.044715 * y * y * y)))


# ---------------- the fused model kernel ----------------
# grid = (LAYERS,), sequential ("arbitrary").  x_vmem carries the activation
# across layers.  All weights arrive as bf16; accumulation is f32.

def _bert_kernel(emb_ref, bias_ref, emb_g_ref, emb_b_ref,
                 wqkv_ref, bqkv_ref, wo_ref, bo_ref,
                 ln1_g_ref, ln1_b_ref, w1_ref, b1_ref, w2_ref, b2_ref,
                 ln2_g_ref, ln2_b_ref,
                 pool_w_ref, pool_b_ref, cls_w_ref, cls_b_ref,
                 logits_ref,
                 x_vmem,
                 *, batch, seq):
    layer = pl.program_id(0)

    @pl.when(layer == 0)
    def _():
        # embedding LayerNorm (tok+pos+type sum done by the caller; dropout is
        # identity at inference)
        x_vmem[...] = _ln(emb_ref[...], emb_g_ref[...], emb_b_ref[...])

    x = x_vmem[...]                                               # (B*S, H) f32

    # ---- self-attention: fused QKV projection (N = 3H, lane-dense) ----
    # 1/sqrt(HEAD_DIM) is pre-folded into the Q block of wqkv/bqkv at init.
    qkv = jnp.dot(x.astype(jnp.bfloat16), wqkv_ref[...],
                  preferred_element_type=jnp.float32) + bqkv_ref[...]
    qkv_b = qkv.astype(jnp.bfloat16)

    ctx_blocks = []
    for b in range(batch):                        # static, unrolled
        r0 = b * seq
        bias = bias_ref[b:b + 1, :]               # (1, S) additive mask bias
        heads = []
        for h in range(HEADS):                    # static, unrolled
            c0 = h * HEAD_DIM
            q = qkv_b[r0:r0 + seq, c0:c0 + HEAD_DIM]                      # (S, D)
            k = qkv_b[r0:r0 + seq, HIDDEN + c0:HIDDEN + c0 + HEAD_DIM]    # (S, D)
            v = qkv_b[r0:r0 + seq, 2 * HIDDEN + c0:2 * HIDDEN + c0 + HEAD_DIM]
            # contract the last axis of both operands: no explicit transpose,
            # the MXU consumes the "transposed" RHS directly.
            s = lax.dot_general(q, k, (((1,), (1,)), ((), ())),
                                preferred_element_type=jnp.float32) + bias
            s = s - jnp.max(s, axis=-1, keepdims=True)
            p = jnp.exp(s)
            p = p * pl.reciprocal(jnp.sum(p, axis=-1, keepdims=True), approx=True)
            heads.append(jnp.dot(p.astype(jnp.bfloat16), v,
                                 preferred_element_type=jnp.float32))
        ctx_blocks.append(jnp.concatenate(heads, axis=1))          # (S, H)
    ctx = jnp.concatenate(ctx_blocks, axis=0)                      # (B*S, H), registers

    # ---- attention output projection + residual + LN1 (fused) ----
    attn = jnp.dot(ctx.astype(jnp.bfloat16), wo_ref[...],
                   preferred_element_type=jnp.float32) + bo_ref[...]
    x = _ln(attn + x, ln1_g_ref[...], ln1_b_ref[...])

    # ---- feed-forward + residual + LN2 (fused) ----
    h1 = jnp.dot(x.astype(jnp.bfloat16), w1_ref[...],
                 preferred_element_type=jnp.float32) + b1_ref[...]
    h1 = _gelu(h1)
    ffn = jnp.dot(h1.astype(jnp.bfloat16), w2_ref[...],
                  preferred_element_type=jnp.float32) + b2_ref[...]
    x = _ln(ffn + x, ln2_g_ref[...], ln2_b_ref[...])
    x_vmem[...] = x

    # ---- pooler + classifier head, fused, only on the final layer ----
    @pl.when(layer == pl.num_programs(0) - 1)
    def _():
        # CLS token rows are 0, S, 2S, ... -> one strided sublane read
        cls = x_vmem[pl.ds(0, batch, stride=seq), :]               # (B, H)
        pooled = jnp.tanh(
            jnp.dot(cls.astype(jnp.bfloat16), pool_w_ref[...],
                    preferred_element_type=jnp.float32) + pool_b_ref[...])
        # classifier dropout: identity (inference / model.eval()).
        # TODO(synk): training-mode nn.Dropout(0.5) would need pltpu.prng_* masking.
        logits = jnp.dot(pooled.astype(jnp.bfloat16), cls_w_ref[...],
                         preferred_element_type=jnp.float32) + cls_b_ref[...]
        logits_ref[...] = jnp.maximum(logits, 0.0)                 # ReLU


# ---------------- deterministic parameter init (stacked per-layer, bf16 weights) ----------------

def init_params(key):
    keys = iter(jax.random.split(key, 64))

    def dense(fan_in, fan_out):
        w = jax.random.normal(next(keys), (fan_in, fan_out), jnp.float32) * 0.02
        b = jax.random.normal(next(keys), (1, fan_out), jnp.float32) * 0.02
        return w, b

    params = {
        "word_emb": jax.random.normal(next(keys), (VOCAB, HIDDEN), jnp.float32) * 0.02,
        "pos_emb": jax.random.normal(next(keys), (MAX_POS, HIDDEN), jnp.float32) * 0.02,
        "type_emb": jax.random.normal(next(keys), (2, HIDDEN), jnp.float32) * 0.02,
        "emb_ln_g": jnp.ones((1, HIDDEN), jnp.float32),
        "emb_ln_b": jnp.zeros((1, HIDDEN), jnp.float32),
    }

    scale = 1.0 / math.sqrt(HEAD_DIM)
    wqkv, bqkv, wo, bo, w1, b1, w2, b2 = ([] for _ in range(8))
    for _ in range(LAYERS):
        wq, bq = dense(HIDDEN, HIDDEN)
        wk, bk = dense(HIDDEN, HIDDEN)
        wv, bv = dense(HIDDEN, HIDDEN)
        # fold the 1/sqrt(D) attention scale into the Q projection
        wqkv.append(jnp.concatenate([wq * scale, wk, wv], axis=1))   # [H, 3H]
        bqkv.append(jnp.concatenate([bq * scale, bk, bv], axis=1))   # [1, 3H]
        w, b = dense(HIDDEN, HIDDEN); wo.append(w); bo.append(b)
        w, b = dense(HIDDEN, FFN);    w1.append(w); b1.append(b)
        w, b = dense(FFN, HIDDEN);    w2.append(w); b2.append(b)

    params.update({
        # matmul weights in bf16 (f32 accumulation in-kernel); biases stay f32
        "wqkv": jnp.stack(wqkv).astype(jnp.bfloat16),
        "bqkv": jnp.stack(bqkv),
        "wo": jnp.stack(wo).astype(jnp.bfloat16), "bo": jnp.stack(bo),
        "w1": jnp.stack(w1).astype(jnp.bfloat16), "b1": jnp.stack(b1),
        "w2": jnp.stack(w2).astype(jnp.bfloat16), "b2": jnp.stack(b2),
        "ln1_g": jnp.ones((LAYERS, 1, HIDDEN), jnp.float32),
        "ln1_b": jnp.zeros((LAYERS, 1, HIDDEN), jnp.float32),
        "ln2_g": jnp.ones((LAYERS, 1, HIDDEN), jnp.float32),
        "ln2_b": jnp.zeros((LAYERS, 1, HIDDEN), jnp.float32),
    })

    pool_w, pool_b = dense(HIDDEN, HIDDEN)
    params["pool_w"] = pool_w.astype(jnp.bfloat16)
    params["pool_b"] = pool_b
    cls_w, cls_b = dense(HIDDEN, NUM_LABELS)
    # pad classifier to 128 lanes for unmasked lane-dense stores
    params["cls_w_pad"] = jnp.pad(cls_w, ((0, 0), (0, CLS_PAD - NUM_LABELS))).astype(jnp.bfloat16)
    params["cls_b_pad"] = jnp.pad(cls_b, ((0, 0), (0, CLS_PAD - NUM_LABELS)))
    return params


# ---------------- forward pass: one pallas_call for the whole model ----------------

def forward(params, ids, mask):
    B, S = ids.shape
    # embedding gather + sum (tiny, fused by XLA into one op); LN happens in-kernel
    tok = jnp.take(params["word_emb"], ids.reshape(-1), axis=0)            # (B*S, H)
    # TODO(synk): token_type_ids assumed all-zero (type 0 embedding only)
    pos_typ = params["pos_emb"][:S] + params["type_emb"][0][None, :]       # (S, H)
    emb = (tok.reshape(B, S, HIDDEN) + pos_typ[None]).reshape(B * S, HIDDEN)
    mask_bias = (1.0 - mask.astype(jnp.float32)) * (-1e9)                  # (B, S)

    kernel = functools.partial(_bert_kernel, batch=B, seq=S)

    def const_spec(shape):            # same block every layer step
        return pl.BlockSpec(shape, lambda l: (0, 0))

    def layer_spec(shape):            # leading L axis squeezed, indexed by layer
        return pl.BlockSpec((None,) + shape, lambda l: (l, 0, 0))

    in_specs = [
        const_spec((B * S, HIDDEN)),          # emb
        const_spec((B, S)),                   # mask additive bias
        const_spec((1, HIDDEN)),              # emb_ln_g
        const_spec((1, HIDDEN)),              # emb_ln_b
        layer_spec((HIDDEN, 3 * HIDDEN)),     # wqkv (bf16)
        layer_spec((1, 3 * HIDDEN)),          # bqkv
        layer_spec((HIDDEN, HIDDEN)),         # wo (bf16)
        layer_spec((1, HIDDEN)),              # bo
        layer_spec((1, HIDDEN)),              # ln1_g
        layer_spec((1, HIDDEN)),              # ln1_b
        layer_spec((HIDDEN, FFN)),            # w1 (bf16)
        layer_spec((1, FFN)),                 # b1
        layer_spec((FFN, HIDDEN)),            # w2 (bf16)
        layer_spec((1, HIDDEN)),              # b2
        layer_spec((1, HIDDEN)),              # ln2_g
        layer_spec((1, HIDDEN)),              # ln2_b
        const_spec((HIDDEN, HIDDEN)),         # pool_w (bf16)
        const_spec((1, HIDDEN)),              # pool_b
        const_spec((HIDDEN, CLS_PAD)),        # cls_w_pad (bf16)
        const_spec((1, CLS_PAD)),             # cls_b_pad
    ]
    out_spec = pl.BlockSpec((B, CLS_PAD), lambda l: (0, 0))

    logits_pad = pl.pallas_call(
        kernel,
        out_shape=jax.ShapeDtypeStruct((B, CLS_PAD), jnp.float32),
        grid_spec=pltpu.PrefetchScalarGridSpec(
            num_scalar_prefetch=0,
            grid=(LAYERS,),
            in_specs=in_specs,
            out_specs=out_spec,
            scratch_shapes=[
                pltpu.VMEM((B * S, HIDDEN), jnp.float32),   # x carry across layers
            ],
        ),
        compiler_params=pltpu.CompilerParams(
            dimension_semantics=("arbitrary",)),
    )(emb, mask_bias, params["emb_ln_g"], params["emb_ln_b"],
      params["wqkv"], params["bqkv"], params["wo"], params["bo"],
      params["ln1_g"], params["ln1_b"], params["w1"], params["b1"],
      params["w2"], params["b2"], params["ln2_g"], params["ln2_b"],
      params["pool_w"], params["pool_b"], params["cls_w_pad"], params["cls_b_pad"])

    return logits_pad[:, :NUM_LABELS]


if __name__ == "__main__":
    root = jax.random.PRNGKey(0)
    k_param, k_ids = jax.random.split(root)

    params = init_params(k_param)

    # B*S = 128 rows -> every GEMM fills the v5e MXU rows (and ~half of v6e/v7x)
    B, S = 4, 32
    ids = jax.random.randint(k_ids, (B, S), 0, VOCAB, dtype=jnp.int32)
    mask = jnp.ones((B, S), dtype=jnp.int32)

    out = jax.jit(forward)(params, ids, mask)
    out = jax.block_until_ready(out)
    assert out.shape == (B, NUM_LABELS)
    assert bool(jnp.all(out >= 0.0))   # ReLU output
    print("KERNEL_OK")
</pallas_src>

<mosaic_0001>
module attributes {stable_mosaic.version = 11 : i64} {
  func.func @_bert_kernel(%arg0: i32, %arg1: memref<128x128xf32, #tpu.memory_space<vmem>>, %arg2: memref<4x32xf32, #tpu.memory_space<vmem>>, %arg3: memref<1x128xf32, #tpu.memory_space<vmem>>, %arg4: memref<1x128xf32, #tpu.memory_space<vmem>>, %arg5: memref<1x128x384xbf16, #tpu.memory_space<vmem>>, %arg6: memref<1x1x384xf32, #tpu.memory_space<vmem>>, %arg7: memref<1x128x128xbf16, #tpu.memory_space<vmem>>, %arg8: memref<1x1x128xf32, #tpu.memory_space<vmem>>, %arg9: memref<1x1x128xf32, #tpu.memory_space<vmem>>, %arg10: memref<1x1x128xf32, #tpu.memory_space<vmem>>, %arg11: memref<1x128x512xbf16, #tpu.memory_space<vmem>>, %arg12: memref<1x1x512xf32, #tpu.memory_space<vmem>>, %arg13: memref<1x512x128xbf16, #tpu.memory_space<vmem>>, %arg14: memref<1x1x128xf32, #tpu.memory_space<vmem>>, %arg15: memref<1x1x128xf32, #tpu.memory_space<vmem>>, %arg16: memref<1x1x128xf32, #tpu.memory_space<vmem>>, %arg17: memref<128x128xbf16, #tpu.memory_space<vmem>>, %arg18: memref<1x128xf32, #tpu.memory_space<vmem>>, %arg19: memref<128x128xbf16, #tpu.memory_space<vmem>>, %arg20: memref<1x128xf32, #tpu.memory_space<vmem>>, %arg21: memref<4x128xf32, #tpu.memory_space<vmem>>, %arg22: memref<128x128xf32, #tpu.memory_space<vmem>>) attributes {dimension_semantics = [#tpu.dimension_semantics<arbitrary>], iteration_bounds = array<i64: 2>, scalar_prefetch = 0 : i64, scratch_operands = 1 : i64, tpu.core_type = #tpu.core_type<tc>, window_params = [{pipeline_mode = #tpu.pipeline_mode<synchronous>, transform_indices = @transform_0, window_bounds = array<i64: 128, 128>}, {pipeline_mode = #tpu.pipeline_mode<synchronous>, transform_indices = @transform_1, window_bounds = array<i64: 4, 32>}, {pipeline_mode = #tpu.pipeline_mode<synchronous>, transform_indices = @transform_2, window_bounds = array<i64: 1, 128>}, {pipeline_mode = #tpu.pipeline_mode<synchronous>, transform_indices = @transform_3, window_bounds = array<i64: 1, 128>}, {transform_indices = @transform_4, window_bounds = array<i64: 1, 128, 384>}, {transform_indices = @transform_5, window_bounds = array<i64: 1, 1, 384>}, {transform_indices = @transform_6, window_bounds = array<i64: 1, 128, 128>}, {transform_indices = @transform_7, window_bounds = array<i64: 1, 1, 128>}, {transform_indices = @transform_8, window_bounds = array<i64: 1, 1, 128>}, {transform_indices = @transform_9, window_bounds = array<i64: 1, 1, 128>}, {transform_indices = @transform_10, window_bounds = array<i64: 1, 128, 512>}, {transform_indices = @transform_11, window_bounds = array<i64: 1, 1, 512>}, {transform_indices = @transform_12, window_bounds = array<i64: 1, 512, 128>}, {transform_indices = @transform_13, window_bounds = array<i64: 1, 1, 128>}, {transform_indices = @transform_14, window_bounds = array<i64: 1, 1, 128>}, {transform_indices = @transform_15, window_bounds = array<i64: 1, 1, 128>}, {pipeline_mode = #tpu.pipeline_mode<synchronous>, transform_indices = @transform_16, window_bounds = array<i64: 128, 128>}, {pipeline_mode = #tpu.pipeline_mode<synchronous>, transform_indices = @transform_17, window_bounds = array<i64: 1, 128>}, {pipeline_mode = #tpu.pipeline_mode<synchronous>, transform_indices = @transform_18, window_bounds = array<i64: 128, 128>}, {pipeline_mode = #tpu.pipeline_mode<synchronous>, transform_indices = @transform_19, window_bounds = array<i64: 1, 128>}, {pipeline_mode = #tpu.pipeline_mode<synchronous>, transform_indices = @transform_20, window_bounds = array<i64: 4, 128>}]} {
    %c0_i32 = arith.constant 0 : i32
    %0 = arith.cmpi eq, %arg0, %c0_i32 : i32
    %1 = arith.extui %0 : i1 to i32
    %c0_i32_0 = arith.constant 0 : i32
    %2 = arith.cmpi ne, %1, %c0_i32_0 : i32
    scf.if %2 {
      %c0_127 = arith.constant 0 : index
      %c0_128 = arith.constant 0 : index
      %405 = vector.load %arg1[%c0_127, %c0_128] : memref<128x128xf32, #tpu.memory_space<vmem>>, vector<128x128xf32>
      %c0_129 = arith.constant 0 : index
      %c0_130 = arith.constant 0 : index
      %406 = vector.load %arg3[%c0_129, %c0_130] : memref<1x128xf32, #tpu.memory_space<vmem>>, vector<1x128xf32>
      %c0_131 = arith.constant 0 : index
      %c0_132 = arith.constant 0 : index
      %407 = vector.load %arg4[%c0_131, %c0_132] : memref<1x128xf32, #tpu.memory_space<vmem>>, vector<1x128xf32>
      %cst_133 = arith.constant dense<0.000000e+00> : vector<128xf32>
      %408 = vector.multi_reduction <add>, %405, %cst_133 [1] : vector<128x128xf32> to vector<128xf32>
      %409 = vector.shape_cast %408 : vector<128xf32> to vector<128x1xf32>
      %cst_134 = arith.constant 1.280000e+02 : f32
      %410 = vector.broadcast %cst_134 : f32 to vector<128x1xf32>
      %411 = arith.divf %409, %410 : vector<128x1xf32>
      %412 = vector.broadcast %411 : vector<128x1xf32> to vector<128x128xf32>
      %413 = arith.subf %405, %412 : vector<128x128xf32>
      %414 = arith.mulf %413, %413 : vector<128x128xf32>
      %cst_135 = arith.constant dense<0.000000e+00> : vector<128xf32>
      %415 = vector.multi_reduction <add>, %414, %cst_135 [1] : vector<128x128xf32> to vector<128xf32>
      %416 = vector.shape_cast %415 : vector<128xf32> to vector<128x1xf32>
      %cst_136 = arith.constant 1.280000e+02 : f32
      %417 = vector.broadcast %cst_136 : f32 to vector<128x1xf32>
      %418 = arith.divf %416, %417 : vector<128x1xf32>
      %419 = vector.broadcast %411 : vector<128x1xf32> to vector<128x128xf32>
      %420 = arith.subf %405, %419 : vector<128x128xf32>
      %cst_137 = arith.constant 9.99999996E-13 : f32
      %421 = vector.broadcast %cst_137 : f32 to vector<128x1xf32>
      %422 = arith.addf %418, %421 : vector<128x1xf32>
      %423 = math.rsqrt %422 : vector<128x1xf32>
      %424 = vector.broadcast %423 : vector<128x1xf32> to vector<128x128xf32>
      %425 = arith.mulf %420, %424 : vector<128x128xf32>
      %426 = vector.broadcast %406 : vector<1x128xf32> to vector<128x128xf32>
      %427 = arith.mulf %425, %426 : vector<128x128xf32>
      %428 = vector.broadcast %407 : vector<1x128xf32> to vector<128x128xf32>
      %429 = arith.addf %427, %428 : vector<128x128xf32>
      %c0_138 = arith.constant 0 : index
      %c0_139 = arith.constant 0 : index
      %430 = vector.load %arg22[%c0_138, %c0_139] : memref<128x128xf32, #tpu.memory_space<vmem>>, vector<128x128xf32>
      tpu.vector_store %arg22[%c0_138, %c0_139], %429 {strides = array<i32>} : memref<128x128xf32, #tpu.memory_space<vmem>>, vector<128x128xf32>,
    } else {
    }
    %c0 = arith.constant 0 : index
    %c0_1 = arith.constant 0 : index
    %3 = vector.load %arg22[%c0, %c0_1] : memref<128x128xf32, #tpu.memory_space<vmem>>, vector<128x128xf32>
    %4 = arith.truncf %3 : vector<128x128xf32> to vector<128x128xbf16>
    %c0_2 = arith.constant 0 : index
    %c0_3 = arith.constant 0 : index
    %c0_4 = arith.constant 0 : index
    %5 = vector.load %arg5[%c0_2, %c0_3, %c0_4] : memref<1x128x384xbf16, #tpu.memory_space<vmem>>, vector<1x128x384xbf16>
    %6 = vector.shape_cast %5 : vector<1x128x384xbf16> to vector<128x384xbf16>
    %cst = arith.constant dense<0.000000e+00> : vector<128x384xf32>
    %7 = tpu.matmul %4, %6, %cst {dimension_numbers = #tpu.dot_dimension_numbers<[1], [0], [0], [1], [0, 0, 1, 1], [], []>} : vector<128x128xbf16>, vector<128x384xbf16>, vector<128x384xf32> -> vector<128x384xf32>
    %c0_5 = arith.constant 0 : index
    %c0_6 = arith.constant 0 : index
    %c0_7 = arith.constant 0 : index
    %8 = vector.load %arg6[%c0_5, %c0_6, %c0_7] : memref<1x1x384xf32, #tpu.memory_space<vmem>>, vector<1x1x384xf32>
    %9 = vector.shape_cast %8 : vector<1x1x384xf32> to vector<1x384xf32>
    %10 = vector.broadcast %9 : vector<1x384xf32> to vector<128x384xf32>
    %11 = arith.addf %7, %10 : vector<128x384xf32>
    %12 = arith.truncf %11 : vector<128x384xf32> to vector<128x384xbf16>
    %c0_8 = arith.constant 0 : index
    %c0_9 = arith.constant 0 : index
    %13 = vector.load %arg2[%c0_8, %c0_9] : memref<4x32xf32, #tpu.memory_space<vmem>>, vector<1x32xf32>
    %14 = vector.extract_strided_slice %12 {offsets = [0, 0], sizes = [32, 32], strides = [1, 1]} : vector<128x384xbf16> to vector<32x32xbf16>
    %15 = vector.extract_strided_slice %12 {offsets = [0, 128], sizes = [32, 32], strides = [1, 1]} : vector<128x384xbf16> to vector<32x32xbf16>
    %16 = vector.extract_strided_slice %12 {offsets = [0, 256], sizes = [32, 32], strides = [1, 1]} : vector<128x384xbf16> to vector<32x32xbf16>
    %cst_10 = arith.constant dense<0.000000e+00> : vector<32x32xf32>
    %17 = tpu.matmul %14, %15, %cst_10 {dimension_numbers = #tpu.dot_dimension_numbers<[1], [1], [0], [0], [0, 0, 1, 0], [], []>} : vector<32x32xbf16>, vector<32x32xbf16>, vector<32x32xf32> -> vector<32x32xf32>
    %18 = vector.broadcast %13 : vector<1x32xf32> to vector<32x32xf32>
    %19 = arith.addf %17, %18 : vector<32x32xf32>
    %cst_11 = arith.constant dense<0xFF800000> : vector<32xf32>
    %20 = vector.multi_reduction <maximumf>, %19, %cst_11 [1] : vector<32x32xf32> to vector<32xf32>
    %21 = vector.shape_cast %20 : vector<32xf32> to vector<32x1xf32>
    %22 = vector.broadcast %21 : vector<32x1xf32> to vector<32x32xf32>
    %23 = arith.subf %19, %22 : vector<32x32xf32>
    %24 = math.exp %23 : vector<32x32xf32>
    %cst_12 = arith.constant dense<0.000000e+00> : vector<32xf32>
    %25 = vector.multi_reduction <add>, %24, %cst_12 [1] : vector<32x32xf32> to vector<32xf32>
    %26 = vector.shape_cast %25 : vector<32xf32> to vector<32x1xf32>
    %27 = tpu.reciprocal %26 {approx = true} : vector<32x1xf32> -> vector<32x1xf32>
    %28 = vector.broadcast %27 : vector<32x1xf32> to vector<32x32xf32>
    %29 = arith.mulf %24, %28 : vector<32x32xf32>
    %30 = arith.truncf %29 : vector<32x32xf32> to vector<32x32xbf16>
    %cst_13 = arith.constant dense<0.000000e+00> : vector<32x32xf32>
    %31 = tpu.matmul %30, %16, %cst_13 {dimension_numbers = #tpu.dot_dimension_numbers<[1], [0], [0], [1], [0, 0, 1, 1], [], []>} : vector<32x32xbf16>, vector<32x32xbf16>, vector<32x32xf32> -> vector<32x32xf32>
    %32 = vector.extract_strided_slice %12 {offsets = [0, 32], sizes = [32, 32], strides = [1, 1]} : vector<128x384xbf16> to vector<32x32xbf16>
    %33 = vector.extract_strided_slice %12 {offsets = [0, 160], sizes = [32, 32], strides = [1, 1]} : vector<128x384xbf16> to vector<32x32xbf16>
    %34 = vector.extract_strided_slice %12 {offsets = [0, 288], sizes = [32, 32], strides = [1, 1]} : vector<128x384xbf16> to vector<32x32xbf16>
    %cst_14 = arith.constant dense<0.000000e+00> : vector<32x32xf32>
    %35 = tpu.matmul %32, %33, %cst_14 {dimension_numbers = #tpu.dot_dimension_numbers<[1], [1], [0], [0], [0, 0, 1, 0], [], []>} : vector<32x32xbf16>, vector<32x32xbf16>, vector<32x32xf32> -> vector<32x32xf32>
    %36 = vector.broadcast %13 : vector<1x32xf32> to vector<32x32xf32>
    %37 = arith.addf %35, %36 : vector<32x32xf32>
    %cst_15 = arith.constant dense<0xFF800000> : vector<32xf32>
    %38 = vector.multi_reduction <maximumf>, %37, %cst_15 [1] : vector<32x32xf32> to vector<32xf32>
    %39 = vector.shape_cast %38 : vector<32xf32> to vector<32x1xf32>
    %40 = vector.broadcast %39 : vector<32x1xf32> to vector<32x32xf32>
    %41 = arith.subf %37, %40 : vector<32x32xf32>
    %42 = math.exp %41 : vector<32x32xf32>
    %cst_16 = arith.constant dense<0.000000e+00> : vector<32xf32>
    %43 = vector.multi_reduction <add>, %42, %cst_16 [1] : vector<32x32xf32> to vector<32xf32>
    %44 = vector.shape_cast %43 : vector<32xf32> to vector<32x1xf32>
    %45 = tpu.reciprocal %44 {approx = true} : vector<32x1xf32> -> vector<32x1xf32>
    %46 = vector.broadcast %45 : vector<32x1xf32> to vector<32x32xf32>
    %47 = arith.mulf %42, %46 : vector<32x32xf32>
    %48 = arith.truncf %47 : vector<32x32xf32> to vector<32x32xbf16>
    %cst_17 = arith.constant dense<0.000000e+00> : vector<32x32xf32>
    %49 = tpu.matmul %48, %34, %cst_17 {dimension_numbers = #tpu.dot_dimension_numbers<[1], [0], [0], [1], [0, 0, 1, 1], [], []>} : vector<32x32xbf16>, vector<32x32xbf16>, vector<32x32xf32> -> vector<32x32xf32>
    %50 = vector.extract_strided_slice %12 {offsets = [0, 64], sizes = [32, 32], strides = [1, 1]} : vector<128x384xbf16> to vector<32x32xbf16>
    %51 = vector.extract_strided_slice %12 {offsets = [0, 192], sizes = [32, 32], strides = [1, 1]} : vector<128x384xbf16> to vector<32x32xbf16>
    %52 = vector.extract_strided_slice %12 {offsets = [0, 320], sizes = [32, 32], strides = [1, 1]} : vector<128x384xbf16> to vector<32x32xbf16>
    %cst_18 = arith.constant dense<0.000000e+00> : vector<32x32xf32>
    %53 = tpu.matmul %50, %51, %cst_18 {dimension_numbers = #tpu.dot_dimension_numbers<[1], [1], [0], [0], [0, 0, 1, 0], [], []>} : vector<32x32xbf16>, vector<32x32xbf16>, vector<32x32xf32> -> vector<32x32xf32>
    %54 = vector.broadcast %13 : vector<1x32xf32> to vector<32x32xf32>
    %55 = arith.addf %53, %54 : vector<32x32xf32>
    %cst_19 = arith.constant dense<0xFF800000> : vector<32xf32>
    %56 = vector.multi_reduction <maximumf>, %55, %cst_19 [1] : vector<32x32xf32> to vector<32xf32>
    %57 = vector.shape_cast %56 : vector<32xf32> to vector<32x1xf32>
    %58 = vector.broadcast %57 : vector<32x1xf32> to vector<32x32xf32>
    %59 = arith.subf %55, %58 : vector<32x32xf32>
    %60 = math.exp %59 : vector<32x32xf32>
    %cst_20 = arith.constant dense<0.000000e+00> : vector<32xf32>
    %61 = vector.multi_reduction <add>, %60, %cst_20 [1] : vector<32x32xf32> to vector<32xf32>
    %62 = vector.shape_cast %61 : vector<32xf32> to vector<32x1xf32>
    %63 = tpu.reciprocal %62 {approx = true} : vector<32x1xf32> -> vector<32x1xf32>
    %64 = vector.broadcast %63 : vector<32x1xf32> to vector<32x32xf32>
    %65 = arith.mulf %60, %64 : vector<32x32xf32>
    %66 = arith.truncf %65 : vector<32x32xf32> to vector<32x32xbf16>
    %cst_21 = arith.constant dense<0.000000e+00> : vector<32x32xf32>
    %67 = tpu.matmul %66, %52, %cst_21 {dimension_numbers = #tpu.dot_dimension_numbers<[1], [0], [0], [1], [0, 0, 1, 1], [], []>} : vector<32x32xbf16>, vector<32x32xbf16>, vector<32x32xf32> -> vector<32x32xf32>
    %68 = vector.extract_strided_slice %12 {offsets = [0, 96], sizes = [32, 32], strides = [1, 1]} : vector<128x384xbf16> to vector<32x32xbf16>
    %69 = vector.extract_strided_slice %12 {offsets = [0, 224], sizes = [32, 32], strides = [1, 1]} : vector<128x384xbf16> to vector<32x32xbf16>
    %70 = vector.extract_strided_slice %12 {offsets = [0, 352], sizes = [32, 32], strides = [1, 1]} : vector<128x384xbf16> to vector<32x32xbf16>
    %cst_22 = arith.constant dense<0.000000e+00> : vector<32x32xf32>
    %71 = tpu.matmul %68, %69, %cst_22 {dimension_numbers = #tpu.dot_dimension_numbers<[1], [1], [0], [0], [0, 0, 1, 0], [], []>} : vector<32x32xbf16>, vector<32x32xbf16>, vector<32x32xf32> -> vector<32x32xf32>
    %72 = vector.broadcast %13 : vector<1x32xf32> to vector<32x32xf32>
    %73 = arith.addf %71, %72 : vector<32x32xf32>
    %cst_23 = arith.constant dense<0xFF800000> : vector<32xf32>
    %74 = vector.multi_reduction <maximumf>, %73, %cst_23 [1] : vector<32x32xf32> to vector<32xf32>
    %75 = vector.shape_cast %74 : vector<32xf32> to vector<32x1xf32>
    %76 = vector.broadcast %75 : vector<32x1xf32> to vector<32x32xf32>
    %77 = arith.subf %73, %76 : vector<32x32xf32>
    %78 = math.exp %77 : vector<32x32xf32>
    %cst_24 = arith.constant dense<0.000000e+00> : vector<32xf32>
    %79 = vector.multi_reduction <add>, %78, %cst_24 [1] : vector<32x32xf32> to vector<32xf32>
    %80 = vector.shape_cast %79 : vector<32xf32> to vector<32x1xf32>
    %81 = tpu.reciprocal %80 {approx = true} : vector<32x1xf32> -> vector<32x1xf32>
    %82 = vector.broadcast %81 : vector<32x1xf32> to vector<32x32xf32>
    %83 = arith.mulf %78, %82 : vector<32x32xf32>
    %84 = arith.truncf %83 : vector<32x32xf32> to vector<32x32xbf16>
    %cst_25 = arith.constant dense<0.000000e+00> : vector<32x32xf32>
    %85 = tpu.matmul %84, %70, %cst_25 {dimension_numbers = #tpu.dot_dimension_numbers<[1], [0], [0], [1], [0, 0, 1, 1], [], []>} : vector<32x32xbf16>, vector<32x32xbf16>, vector<32x32xf32> -> vector<32x32xf32>
    %86 = tpu.concatenate %31, %49, %67, %85 in 1 : vector<32x32xf32>, vector<32x32xf32>, vector<32x32xf32>, vector<32x32xf32> -> vector<32x128xf32>
    %c1 = arith.constant 1 : index
    %c0_26 = arith.constant 0 : index
    %87 = vector.load %arg2[%c1, %c0_26] : memref<4x32xf32, #tpu.memory_space<vmem>>, vector<1x32xf32>
    %88 = vector.extract_strided_slice %12 {offsets = [32, 0], sizes = [32, 32], strides = [1, 1]} : vector<128x384xbf16> to vector<32x32xbf16>
    %89 = vector.extract_strided_slice %12 {offsets = [32, 128], sizes = [32, 32], strides = [1, 1]} : vector<128x384xbf16> to vector<32x32xbf16>
    %90 = vector.extract_strided_slice %12 {offsets = [32, 256], sizes = [32, 32], strides = [1, 1]} : vector<128x384xbf16> to vector<32x32xbf16>
    %cst_27 = arith.constant dense<0.000000e+00> : vector<32x32xf32>
    %91 = tpu.matmul %88, %89, %cst_27 {dimension_numbers = #tpu.dot_dimension_numbers<[1], [1], [0], [0], [0, 0, 1, 0], [], []>} : vector<32x32xbf16>, vector<32x32xbf16>, vector<32x32xf32> -> vector<32x32xf32>
    %92 = vector.broadcast %87 : vector<1x32xf32> to vector<32x32xf32>
    %93 = arith.addf %91, %92 : vector<32x32xf32>
    %cst_28 = arith.constant dense<0xFF800000> : vector<32xf32>
    %94 = vector.multi_reduction <maximumf>, %93, %cst_28 [1] : vector<32x32xf32> to vector<32xf32>
    %95 = vector.shape_cast %94 : vector<32xf32> to vector<32x1xf32>
    %96 = vector.broadcast %95 : vector<32x1xf32> to vector<32x32xf32>
    %97 = arith.subf %93, %96 : vector<32x32xf32>
    %98 = math.exp %97 : vector<32x32xf32>
    %cst_29 = arith.constant dense<0.000000e+00> : vector<32xf32>
    %99 = vector.multi_reduction <add>, %98, %cst_29 [1] : vector<32x32xf32> to vector<32xf32>
    %100 = vector.shape_cast %99 : vector<32xf32> to vector<32x1xf32>
    %101 = tpu.reciprocal %100 {approx = true} : vector<32x1xf32> -> vector<32x1xf32>
    %102 = vector.broadcast %101 : vector<32x1xf32> to vector<32x32xf32>
    %103 = arith.mulf %98, %102 : vector<32x32xf32>
    %104 = arith.truncf %103 : vector<32x32xf32> to vector<32x32xbf16>
    %cst_30 = arith.constant dense<0.000000e+00> : vector<32x32xf32>
    %105 = tpu.matmul %104, %90, %cst_30 {dimension_numbers = #tpu.dot_dimension_numbers<[1], [0], [0], [1], [0, 0, 1, 1], [], []>} : vector<32x32xbf16>, vector<32x32xbf16>, vector<32x32xf32> -> vector<32x32xf32>
    %106 = vector.extract_strided_slice %12 {offsets = [32, 32], sizes = [32, 32], strides = [1, 1]} : vector<128x384xbf16> to vector<32x32xbf16>
    %107 = vector.extract_strided_slice %12 {offsets = [32, 160], sizes = [32, 32], strides = [1, 1]} : vector<128x384xbf16> to vector<32x32xbf16>
    %108 = vector.extract_strided_slice %12 {offsets = [32, 288], sizes = [32, 32], strides = [1, 1]} : vector<128x384xbf16> to vector<32x32xbf16>
    %cst_31 = arith.constant dense<0.000000e+00> : vector<32x32xf32>
    %109 = tpu.matmul %106, %107, %cst_31 {dimension_numbers = #tpu.dot_dimension_numbers<[1], [1], [0], [0], [0, 0, 1, 0], [], []>} : vector<32x32xbf16>, vector<32x32xbf16>, vector<32x32xf32> -> vector<32x32xf32>
    %110 = vector.broadcast %87 : vector<1x32xf32> to vector<32x32xf32>
    %111 = arith.addf %109, %110 : vector<32x32xf32>
    %cst_32 = arith.constant dense<0xFF800000> : vector<32xf32>
    %112 = vector.multi_reduction <maximumf>, %111, %cst_32 [1] : vector<32x32xf32> to vector<32xf32>
    %113 = vector.shape_cast %112 : vector<32xf32> to vector<32x1xf32>
    %114 = vector.broadcast %113 : vector<32x1xf32> to vector<32x32xf32>
    %115 = arith.subf %111, %114 : vector<32x32xf32>
    %116 = math.exp %115 : vector<32x32xf32>
    %cst_33 = arith.constant dense<0.000000e+00> : vector<32xf32>
    %117 = vector.multi_reduction <add>, %116, %cst_33 [1] : vector<32x32xf32> to vector<32xf32>
    %118 = vector.shape_cast %117 : vector<32xf32> to vector<32x1xf32>
    %119 = tpu.reciprocal %118 {approx = true} : vector<32x1xf32> -> vector<32x1xf32>
    %120 = vector.broadcast %119 : vector<32x1xf32> to vector<32x32xf32>
    %121 = arith.mulf %116, %120 : vector<32x32xf32>
    %122 = arith.truncf %121 : vector<32x32xf32> to vector<32x32xbf16>
    %cst_34 = arith.constant dense<0.000000e+00> : vector<32x32xf32>
    %123 = tpu.matmul %122, %108, %cst_34 {dimension_numbers = #tpu.dot_dimension_numbers<[1], [0], [0], [1], [0, 0, 1, 1], [], []>} : vector<32x32xbf16>, vector<32x32xbf16>, vector<32x32xf32> -> vector<32x32xf32>
    %124 = vector.extract_strided_slice %12 {offsets = [32, 64], sizes = [32, 32], strides = [1, 1]} : vector<128x384xbf16> to vector<32x32xbf16>
    %125 = vector.extract_strided_slice %12 {offsets = [32, 192], sizes = [32, 32], strides = [1, 1]} : vector<128x384xbf16> to vector<32x32xbf16>
    %126 = vector.extract_strided_slice %12 {offsets = [32, 320], sizes = [32, 32], strides = [1, 1]} : vector<128x384xbf16> to vector<32x32xbf16>
    %cst_35 = arith.constant dense<0.000000e+00> : vector<32x32xf32>
    %127 = tpu.matmul %124, %125, %cst_35 {dimension_numbers = #tpu.dot_dimension_numbers<[1], [1], [0], [0], [0, 0, 1, 0], [], []>} : vector<32x32xbf16>, vector<32x32xbf16>, vector<32x32xf32> -> vector<32x32xf32>
    %128 = vector.broadcast %87 : vector<1x32xf32> to vector<32x32xf32>
    %129 = arith.addf %127, %128 : vector<32x32xf32>
    %cst_36 = arith.constant dense<0xFF800000> : vector<32xf32>
    %130 = vector.multi_reduction <maximumf>, %129, %cst_36 [1] : vector<32x32xf32> to vector<32xf32>
    %131 = vector.shape_cast %130 : vector<32xf32> to vector<32x1xf32>
    %132 = vector.broadcast %131 : vector<32x1xf32> to vector<32x32xf32>
    %133 = arith.subf %129, %132 : vector<32x32xf32>
    %134 = math.exp %133 : vector<32x32xf32>
    %cst_37 = arith.constant dense<0.000000e+00> : vector<32xf32>
    %135 = vector.multi_reduction <add>, %134, %cst_37 [1] : vector<32x32xf32> to vector<32xf32>
    %136 = vector.shape_cast %135 : vector<32xf32> to vector<32x1xf32>
    %137 = tpu.reciprocal %136 {approx = true} : vector<32x1xf32> -> vector<32x1xf32>
    %138 = vector.broadcast %137 : vector<32x1xf32> to vector<32x32xf32>
    %139 = arith.mulf %134, %138 : vector<32x32xf32>
    %140 = arith.truncf %139 : vector<32x32xf32> to vector<32x32xbf16>
    %cst_38 = arith.constant dense<0.000000e+00> : vector<32x32xf32>
    %141 = tpu.matmul %140, %126, %cst_38 {dimension_numbers = #tpu.dot_dimension_numbers<[1], [0], [0], [1], [0, 0, 1, 1], [], []>} : vector<32x32xbf16>, vector<32x32xbf16>, vector<32x32xf32> -> vector<32x32xf32>
    %142 = vector.extract_strided_slice %12 {offsets = [32, 96], sizes = [32, 32], strides = [1, 1]} : vector<128x384xbf16> to vector<32x32xbf16>
    %143 = vector.extract_strided_slice %12 {offsets = [32, 224], sizes = [32, 32], strides = [1, 1]} : vector<128x384xbf16> to vector<32x32xbf16>
    %144 = vector.extract_strided_slice %12 {offsets = [32, 352], sizes = [32, 32], strides = [1, 1]} : vector<128x384xbf16> to vector<32x32xbf16>
    %cst_39 = arith.constant dense<0.000000e+00> : vector<32x32xf32>
    %145 = tpu.matmul %142, %143, %cst_39 {dimension_numbers = #tpu.dot_dimension_numbers<[1], [1], [0], [0], [0, 0, 1, 0], [], []>} : vector<32x32xbf16>, vector<32x32xbf16>, vector<32x32xf32> -> vector<32x32xf32>
    %146 = vector.broadcast %87 : vector<1x32xf32> to vector<32x32xf32>
    %147 = arith.addf %145, %146 : vector<32x32xf32>
    %cst_40 = arith.constant dense<0xFF800000> : vector<32xf32>
    %148 = vector.multi_reduction <maximumf>, %147, %cst_40 [1] : vector<32x32xf32> to vector<32xf32>
    %149 = vector.shape_cast %148 : vector<32xf32> to vector<32x1xf32>
    %150 = vector.broadcast %149 : vector<32x1xf32> to vector<32x32xf32>
    %151 = arith.subf %147, %150 : vector<32x32xf32>
    %152 = math.exp %151 : vector<32x32xf32>
    %cst_41 = arith.constant dense<0.000000e+00> : vector<32xf32>
    %153 = vector.multi_reduction <add>, %152, %cst_41 [1] : vector<32x32xf32> to vector<32xf32>
    %154 = vector.shape_cast %153 : vector<32xf32> to vector<32x1xf32>
    %155 = tpu.reciprocal %154 {approx = true} : vector<32x1xf32> -> vector<32x1xf32>
    %156 = vector.broadcast %155 : vector<32x1xf32> to vector<32x32xf32>
    %157 = arith.mulf %152, %156 : vector<32x32xf32>
    %158 = arith.truncf %157 : vector<32x32xf32> to vector<32x32xbf16>
    %cst_42 = arith.constant dense<0.000000e+00> : vector<32x32xf32>
    %159 = tpu.matmul %158, %144, %cst_42 {dimension_numbers = #tpu.dot_dimension_numbers<[1], [0], [0], [1], [0, 0, 1, 1], [], []>} : vector<32x32xbf16>, vector<32x32xbf16>, vector<32x32xf32> -> vector<32x32xf32>
    %160 = tpu.concatenate %105, %123, %141, %159 in 1 : vector<32x32xf32>, vector<32x32xf32>, vector<32x32xf32>, vector<32x32xf32> -> vector<32x128xf32>
    %c2 = arith.constant 2 : index
    %c0_43 = arith.constant 0 : index
    %161 = vector.load %arg2[%c2, %c0_43] : memref<4x32xf32, #tpu.memory_space<vmem>>, vector<1x32xf32>
    %162 = vector.extract_strided_slice %12 {offsets = [64, 0], sizes = [32, 32], strides = [1, 1]} : vector<128x384xbf16> to vector<32x32xbf16>
    %163 = vector.extract_strided_slice %12 {offsets = [64, 128], sizes = [32, 32], strides = [1, 1]} : vector<128x384xbf16> to vector<32x32xbf16>
    %164 = vector.extract_strided_slice %12 {offsets = [64, 256], sizes = [32, 32], strides = [1, 1]} : vector<128x384xbf16> to vector<32x32xbf16>
    %cst_44 = arith.constant dense<0.000000e+00> : vector<32x32xf32>
    %165 = tpu.matmul %162, %163, %cst_44 {dimension_numbers = #tpu.dot_dimension_numbers<[1], [1], [0], [0], [0, 0, 1, 0], [], []>} : vector<32x32xbf16>, vector<32x32xbf16>, vector<32x32xf32> -> vector<32x32xf32>
    %166 = vector.broadcast %161 : vector<1x32xf32> to vector<32x32xf32>
    %167 = arith.addf %165, %166 : vector<32x32xf32>
    %cst_45 = arith.constant dense<0xFF800000> : vector<32xf32>
    %168 = vector.multi_reduction <maximumf>, %167, %cst_45 [1] : vector<32x32xf32> to vector<32xf32>
    %169 = vector.shape_cast %168 : vector<32xf32> to vector<32x1xf32>
    %170 = vector.broadcast %169 : vector<32x1xf32> to vector<32x32xf32>
    %171 = arith.subf %167, %170 : vector<32x32xf32>
    %172 = math.exp %171 : vector<32x32xf32>
    %cst_46 = arith.constant dense<0.000000e+00> : vector<32xf32>
    %173 = vector.multi_reduction <add>, %172, %cst_46 [1] : vector<32x32xf32> to vector<32xf32>
    %174 = vector.shape_cast %173 : vector<32xf32> to vector<32x1xf32>
    %175 = tpu.reciprocal %174 {approx = true} : vector<32x1xf32> -> vector<32x1xf32>
    %176 = vector.broadcast %175 : vector<32x1xf32> to vector<32x32xf32>
    %177 = arith.mulf %172, %176 : vector<32x32xf32>
    %178 = arith.truncf %177 : vector<32x32xf32> to vector<32x32xbf16>
    %cst_47 = arith.constant dense<0.000000e+00> : vector<32x32xf32>
    %179 = tpu.matmul %178, %164, %cst_47 {dimension_numbers = #tpu.dot_dimension_numbers<[1], [0], [0], [1], [0, 0, 1, 1], [], []>} : vector<32x32xbf16>, vector<32x32xbf16>, vector<32x32xf32> -> vector<32x32xf32>
    %180 = vector.extract_strided_slice %12 {offsets = [64, 32], sizes = [32, 32], strides = [1, 1]} : vector<128x384xbf16> to vector<32x32xbf16>
    %181 = vector.extract_strided_slice %12 {offsets = [64, 160], sizes = [32, 32], strides = [1, 1]} : vector<128x384xbf16> to vector<32x32xbf16>
    %182 = vector.extract_strided_slice %12 {offsets = [64, 288], sizes = [32, 32], strides = [1, 1]} : vector<128x384xbf16> to vector<32x32xbf16>
    %cst_48 = arith.constant dense<0.000000e+00> : vector<32x32xf32>
    %183 = tpu.matmul %180, %181, %cst_48 {dimension_numbers = #tpu.dot_dimension_numbers<[1], [1], [0], [0], [0, 0, 1, 0], [], []>} : vector<32x32xbf16>, vector<32x32xbf16>, vector<32x32xf32> -> vector<32x32xf32>
    %184 = vector.broadcast %161 : vector<1x32xf32> to vector<32x32xf32>
    %185 = arith.addf %183, %184 : vector<32x32xf32>
    %cst_49 = arith.constant dense<0xFF800000> : vector<32xf32>
    %186 = vector.multi_reduction <maximumf>, %185, %cst_49 [1] : vector<32x32xf32> to vector<32xf32>
    %187 = vector.shape_cast %186 : vector<32xf32> to vector<32x1xf32>
    %188 = vector.broadcast %187 : vector<32x1xf32> to vector<32x32xf32>
    %189 = arith.subf %185, %188 : vector<32x32xf32>
    %190 = math.exp %189 : vector<32x32xf32>
    %cst_50 = arith.constant dense<0.000000e+00> : vector<32xf32>
    %191 = vector.multi_reduction <add>, %190, %cst_50 [1] : vector<32x32xf32> to vector<32xf32>
    %192 = vector.shape_cast %191 : vector<32xf32> to vector<32x1xf32>
    %193 = tpu.reciprocal %192 {approx = true} : vector<32x1xf32> -> vector<32x1xf32>
    %194 = vector.broadcast %193 : vector<32x1xf32> to vector<32x32xf32>
    %195 = arith.mulf %190, %194 : vector<32x32xf32>
    %196 = arith.truncf %195 : vector<32x32xf32> to vector<32x32xbf16>
    %cst_51 = arith.constant dense<0.000000e+00> : vector<32x32xf32>
    %197 = tpu.matmul %196, %182, %cst_51 {dimension_numbers = #tpu.dot_dimension_numbers<[1], [0], [0], [1], [0, 0, 1, 1], [], []>} : vector<32x32xbf16>, vector<32x32xbf16>, vector<32x32xf32> -> vector<32x32xf32>
    %198 = vector.extract_strided_slice %12 {offsets = [64, 64], sizes = [32, 32], strides = [1, 1]} : vector<128x384xbf16> to vector<32x32xbf16>
    %199 = vector.extract_strided_slice %12 {offsets = [64, 192], sizes = [32, 32], strides = [1, 1]} : vector<128x384xbf16> to vector<32x32xbf16>
    %200 = vector.extract_strided_slice %12 {offsets = [64, 320], sizes = [32, 32], strides = [1, 1]} : vector<128x384xbf16> to vector<32x32xbf16>
    %cst_52 = arith.constant dense<0.000000e+00> : vector<32x32xf32>
    %201 = tpu.matmul %198, %199, %cst_52 {dimension_numbers = #tpu.dot_dimension_numbers<[1], [1], [0], [0], [0, 0, 1, 0], [], []>} : vector<32x32xbf16>, vector<32x32xbf16>, vector<32x32xf32> -> vector<32x32xf32>
    %202 = vector.broadcast %161 : vector<1x32xf32> to vector<32x32xf32>
    %203 = arith.addf %201, %202 : vector<32x32xf32>
    %cst_53 = arith.constant dense<0xFF800000> : vector<32xf32>
    %204 = vector.multi_reduction <maximumf>, %203, %cst_53 [1] : vector<32x32xf32> to vector<32xf32>
    %205 = vector.shape_cast %204 : vector<32xf32> to vector<32x1xf32>
    %206 = vector.broadcast %205 : vector<32x1xf32> to vector<32x32xf32>
    %207 = arith.subf %203, %206 : vector<32x32xf32>
    %208 = math.exp %207 : vector<32x32xf32>
    %cst_54 = arith.constant dense<0.000000e+00> : vector<32xf32>
    %209 = vector.multi_reduction <add>, %208, %cst_54 [1] : vector<32x32xf32> to vector<32xf32>
    %210 = vector.shape_cast %209 : vector<32xf32> to vector<32x1xf32>
    %211 = tpu.reciprocal %210 {approx = true} : vector<32x1xf32> -> vector<32x1xf32>
    %212 = vector.broadcast %211 : vector<32x1xf32> to vector<32x32xf32>
    %213 = arith.mulf %208, %212 : vector<32x32xf32>
    %214 = arith.truncf %213 : vector<32x32xf32> to vector<32x32xbf16>
    %cst_55 = arith.constant dense<0.000000e+00> : vector<32x32xf32>
    %215 = tpu.matmul %214, %200, %cst_55 {dimension_numbers = #tpu.dot_dimension_numbers<[1], [0], [0], [1], [0, 0, 1, 1], [], []>} : vector<32x32xbf16>, vector<32x32xbf16>, vector<32x32xf32> -> vector<32x32xf32>
    %216 = vector.extract_strided_slice %12 {offsets = [64, 96], sizes = [32, 32], strides = [1, 1]} : vector<128x384xbf16> to vector<32x32xbf16>
    %217 = vector.extract_strided_slice %12 {offsets = [64, 224], sizes = [32, 32], strides = [1, 1]} : vector<128x384xbf16> to vector<32x32xbf16>
    %218 = vector.extract_strided_slice %12 {offsets = [64, 352], sizes = [32, 32], strides = [1, 1]} : vector<128x384xbf16> to vector<32x32xbf16>
    %cst_56 = arith.constant dense<0.000000e+00> : vector<32x32xf32>
    %219 = tpu.matmul %216, %217, %cst_56 {dimension_numbers = #tpu.dot_dimension_numbers<[1], [1], [0], [0], [0, 0, 1, 0], [], []>} : vector<32x32xbf16>, vector<32x32xbf16>, vector<32x32xf32> -> vector<32x32xf32>
    %220 = vector.broadcast %161 : vector<1x32xf32> to vector<32x32xf32>
    %221 = arith.addf %219, %220 : vector<32x32xf32>
    %cst_57 = arith.constant dense<0xFF800000> : vector<32xf32>
    %222 = vector.multi_reduction <maximumf>, %221, %cst_57 [1] : vector<32x32xf32> to vector<32xf32>
    %223 = vector.shape_cast %222 : vector<32xf32> to vector<32x1xf32>
    %224 = vector.broadcast %223 : vector<32x1xf32> to vector<32x32xf32>
    %225 = arith.subf %221, %224 : vector<32x32xf32>
    %226 = math.exp %225 : vector<32x32xf32>
    %cst_58 = arith.constant dense<0.000000e+00> : vector<32xf32>
    %227 = vector.multi_reduction <add>, %226, %cst_58 [1] : vector<32x32xf32> to vector<32xf32>
    %228 = vector.shape_cast %227 : vector<32xf32> to vector<32x1xf32>
    %229 = tpu.reciprocal %228 {approx = true} : vector<32x1xf32> -> vector<32x1xf32>
    %230 = vector.broadcast %229 : vector<32x1xf32> to vector<32x32xf32>
    %231 = arith.mulf %226, %230 : vector<32x32xf32>
    %232 = arith.truncf %231 : vector<32x32xf32> to vector<32x32xbf16>
    %cst_59 = arith.constant dense<0.000000e+00> : vector<32x32xf32>
    %233 = tpu.matmul %232, %218, %cst_59 {dimension_numbers = #tpu.dot_dimension_numbers<[1], [0], [0], [1], [0, 0, 1, 1], [], []>} : vector<32x32xbf16>, vector<32x32xbf16>, vector<32x32xf32> -> vector<32x32xf32>
    %234 = tpu.concatenate %179, %197, %215, %233 in 1 : vector<32x32xf32>, vector<32x32xf32>, vector<32x32xf32>, vector<32x32xf32> -> vector<32x128xf32>
    %c3 = arith.constant 3 : index
    %c0_60 = arith.constant 0 : index
    %235 = vector.load %arg2[%c3, %c0_60] : memref<4x32xf32, #tpu.memory_space<vmem>>, vector<1x32xf32>
    %236 = vector.extract_strided_slice %12 {offsets = [96, 0], sizes = [32, 32], strides = [1, 1]} : vector<128x384xbf16> to vector<32x32xbf16>
    %237 = vector.extract_strided_slice %12 {offsets = [96, 128], sizes = [32, 32], strides = [1, 1]} : vector<128x384xbf16> to vector<32x32xbf16>
    %238 = vector.extract_strided_slice %12 {offsets = [96, 256], sizes = [32, 32], strides = [1, 1]} : vector<128x384xbf16> to vector<32x32xbf16>
    %cst_61 = arith.constant dense<0.000000e+00> : vector<32x32xf32>
    %239 = tpu.matmul %236, %237, %cst_61 {dimension_numbers = #tpu.dot_dimension_numbers<[1], [1], [0], [0], [0, 0, 1, 0], [], []>} : vector<32x32xbf16>, vector<32x32xbf16>, vector<32x32xf32> -> vector<32x32xf32>
    %240 = vector.broadcast %235 : vector<1x32xf32> to vector<32x32xf32>
    %241 = arith.addf %239, %240 : vector<32x32xf32>
    %cst_62 = arith.constant dense<0xFF800000> : vector<32xf32>
    %242 = vector.multi_reduction <maximumf>, %241, %cst_62 [1] : vector<32x32xf32> to vector<32xf32>
    %243 = vector.shape_cast %242 : vector<32xf32> to vector<32x1xf32>
    %244 = vector.broadcast %243 : vector<32x1xf32> to vector<32x32xf32>
    %245 = arith.subf %241, %244 : vector<32x32xf32>
    %246 = math.exp %245 : vector<32x32xf32>
    %cst_63 = arith.constant dense<0.000000e+00> : vector<32xf32>
    %247 = vector.multi_reduction <add>, %246, %cst_63 [1] : vector<32x32xf32> to vector<32xf32>
    %248 = vector.shape_cast %247 : vector<32xf32> to vector<32x1xf32>
    %249 = tpu.reciprocal %248 {approx = true} : vector<32x1xf32> -> vector<32x1xf32>
    %250 = vector.broadcast %249 : vector<32x1xf32> to vector<32x32xf32>
    %251 = arith.mulf %246, %250 : vector<32x32xf32>
    %252 = arith.truncf %251 : vector<32x32xf32> to vector<32x32xbf16>
    %cst_64 = arith.constant dense<0.000000e+00> : vector<32x32xf32>
    %253 = tpu.matmul %252, %238, %cst_64 {dimension_numbers = #tpu.dot_dimension_numbers<[1], [0], [0], [1], [0, 0, 1, 1], [], []>} : vector<32x32xbf16>, vector<32x32xbf16>, vector<32x32xf32> -> vector<32x32xf32>
    %254 = vector.extract_strided_slice %12 {offsets = [96, 32], sizes = [32, 32], strides = [1, 1]} : vector<128x384xbf16> to vector<32x32xbf16>
    %255 = vector.extract_strided_slice %12 {offsets = [96, 160], sizes = [32, 32], strides = [1, 1]} : vector<128x384xbf16> to vector<32x32xbf16>
    %256 = vector.extract_strided_slice %12 {offsets = [96, 288], sizes = [32, 32], strides = [1, 1]} : vector<128x384xbf16> to vector<32x32xbf16>
    %cst_65 = arith.constant dense<0.000000e+00> : vector<32x32xf32>
    %257 = tpu.matmul %254, %255, %cst_65 {dimension_numbers = #tpu.dot_dimension_numbers<[1], [1], [0], [0], [0, 0, 1, 0], [], []>} : vector<32x32xbf16>, vector<32x32xbf16>, vector<32x32xf32> -> vector<32x32xf32>
    %258 = vector.broadcast %235 : vector<1x32xf32> to vector<32x32xf32>
    %259 = arith.addf %257, %258 : vector<32x32xf32>
    %cst_66 = arith.constant dense<0xFF800000> : vector<32xf32>
    %260 = vector.multi_reduction <maximumf>, %259, %cst_66 [1] : vector<32x32xf32> to vector<32xf32>
    %261 = vector.shape_cast %260 : vector<32xf32> to vector<32x1xf32>
    %262 = vector.broadcast %261 : vector<32x1xf32> to vector<32x32xf32>
    %263 = arith.subf %259, %262 : vector<32x32xf32>
    %264 = math.exp %263 : vector<32x32xf32>
    %cst_67 = arith.constant dense<0.000000e+00> : vector<32xf32>
    %265 = vector.multi_reduction <add>, %264, %cst_67 [1] : vector<32x32xf32> to vector<32xf32>
    %266 = vector.shape_cast %265 : vector<32xf32> to vector<32x1xf32>
    %267 = tpu.reciprocal %266 {approx = true} : vector<32x1xf32> -> vector<32x1xf32>
    %268 = vector.broadcast %267 : vector<32x1xf32> to vector<32x32xf32>
    %269 = arith.mulf %264, %268 : vector<32x32xf32>
    %270 = arith.truncf %269 : vector<32x32xf32> to vector<32x32xbf16>
    %cst_68 = arith.constant dense<0.000000e+00> : vector<32x32xf32>
    %271 = tpu.matmul %270, %256, %cst_68 {dimension_numbers = #tpu.dot_dimension_numbers<[1], [0], [0], [1], [0, 0, 1, 1], [], []>} : vector<32x32xbf16>, vector<32x32xbf16>, vector<32x32xf32> -> vector<32x32xf32>
    %272 = vector.extract_strided_slice %12 {offsets = [96, 64], sizes = [32, 32], strides = [1, 1]} : vector<128x384xbf16> to vector<32x32xbf16>
    %273 = vector.extract_strided_slice %12 {offsets = [96, 192], sizes = [32, 32], strides = [1, 1]} : vector<128x384xbf16> to vector<32x32xbf16>
    %274 = vector.extract_strided_slice %12 {offsets = [96, 320], sizes = [32, 32], strides = [1, 1]} : vector<128x384xbf16> to vector<32x32xbf16>
    %cst_69 = arith.constant dense<0.000000e+00> : vector<32x32xf32>
    %275 = tpu.matmul %272, %273, %cst_69 {dimension_numbers = #tpu.dot_dimension_numbers<[1], [1], [0], [0], [0, 0, 1, 0], [], []>} : vector<32x32xbf16>, vector<32x32xbf16>, vector<32x32xf32> -> vector<32x32xf32>
    %276 = vector.broadcast %235 : vector<1x32xf32> to vector<32x32xf32>
    %277 = arith.addf %275, %276 : vector<32x32xf32>
    %cst_70 = arith.constant dense<0xFF800000> : vector<32xf32>
    %278 = vector.multi_reduction <maximumf>, %277, %cst_70 [1] : vector<32x32xf32> to vector<32xf32>
    %279 = vector.shape_cast %278 : vector<32xf32> to vector<32x1xf32>
    %280 = vector.broadcast %279 : vector<32x1xf32> to vector<32x32xf32>
    %281 = arith.subf %277, %280 : vector<32x32xf32>
    %282 = math.exp %281 : vector<32x32xf32>
    %cst_71 = arith.constant dense<0.000000e+00> : vector<32xf32>
    %283 = vector.multi_reduction <add>, %282, %cst_71 [1] : vector<32x32xf32> to vector<32xf32>
    %284 = vector.shape_cast %283 : vector<32xf32> to vector<32x1xf32>
    %285 = tpu.reciprocal %284 {approx = true} : vector<32x1xf32> -> vector<32x1xf32>
    %286 = vector.broadcast %285 : vector<32x1xf32> to vector<32x32xf32>
    %287 = arith.mulf %282, %286 : vector<32x32xf32>
    %288 = arith.truncf %287 : vector<32x32xf32> to vector<32x32xbf16>
    %cst_72 = arith.constant dense<0.000000e+00> : vector<32x32xf32>
    %289 = tpu.matmul %288, %274, %cst_72 {dimension_numbers = #tpu.dot_dimension_numbers<[1], [0], [0], [1], [0, 0, 1, 1], [], []>} : vector<32x32xbf16>, vector<32x32xbf16>, vector<32x32xf32> -> vector<32x32xf32>
    %290 = vector.extract_strided_slice %12 {offsets = [96, 96], sizes = [32, 32], strides = [1, 1]} : vector<128x384xbf16> to vector<32x32xbf16>
    %291 = vector.extract_strided_slice %12 {offsets = [96, 224], sizes = [32, 32], strides = [1, 1]} : vector<128x384xbf16> to vector<32x32xbf16>
    %292 = vector.extract_strided_slice %12 {offsets = [96, 352], sizes = [32, 32], strides = [1, 1]} : vector<128x384xbf16> to vector<32x32xbf16>
    %cst_73 = arith.constant dense<0.000000e+00> : vector<32x32xf32>
    %293 = tpu.matmul %290, %291, %cst_73 {dimension_numbers = #tpu.dot_dimension_numbers<[1], [1], [0], [0], [0, 0, 1, 0], [], []>} : vector<32x32xbf16>, vector<32x32xbf16>, vector<32x32xf32> -> vector<32x32xf32>
    %294 = vector.broadcast %235 : vector<1x32xf32> to vector<32x32xf32>
    %295 = arith.addf %293, %294 : vector<32x32xf32>
    %cst_74 = arith.constant dense<0xFF800000> : vector<32xf32>
    %296 = vector.multi_reduction <maximumf>, %295, %cst_74 [1] : vector<32x32xf32> to vector<32xf32>
    %297 = vector.shape_cast %296 : vector<32xf32> to vector<32x1xf32>
    %298 = vector.broadcast %297 : vector<32x1xf32> to vector<32x32xf32>
    %299 = arith.subf %295, %298 : vector<32x32xf32>
    %300 = math.exp %299 : vector<32x32xf32>
    %cst_75 = arith.constant dense<0.000000e+00> : vector<32xf32>
    %301 = vector.multi_reduction <add>, %300, %cst_75 [1] : vector<32x32xf32> to vector<32xf32>
    %302 = vector.shape_cast %301 : vector<32xf32> to vector<32x1xf32>
    %303 = tpu.reciprocal %302 {approx = true} : vector<32x1xf32> -> vector<32x1xf32>
    %304 = vector.broadcast %303 : vector<32x1xf32> to vector<32x32xf32>
    %305 = arith.mulf %300, %304 : vector<32x32xf32>
    %306 = arith.truncf %305 : vector<32x32xf32> to vector<32x32xbf16>
    %cst_76 = arith.constant dense<0.000000e+00> : vector<32x32xf32>
    %307 = tpu.matmul %306, %292, %cst_76 {dimension_numbers = #tpu.dot_dimension_numbers<[1], [0], [0], [1], [0, 0, 1, 1], [], []>} : vector<32x32xbf16>, vector<32x32xbf16>, vector<32x32xf32> -> vector<32x32xf32>
    %308 = tpu.concatenate %253, %271, %289, %307 in 1 : vector<32x32xf32>, vector<32x32xf32>, vector<32x32xf32>, vector<32x32xf32> -> vector<32x128xf32>
    %309 = tpu.concatenate %86, %160, %234, %308 in 0 : vector<32x128xf32>, vector<32x128xf32>, vector<32x128xf32>, vector<32x128xf32> -> vector<128x128xf32>
    %310 = arith.truncf %309 : vector<128x128xf32> to vector<128x128xbf16>
    %c0_77 = arith.constant 0 : index
    %c0_78 = arith.constant 0 : index
    %c0_79 = arith.constant 0 : index
    %311 = vector.load %arg7[%c0_77, %c0_78, %c0_79] : memref<1x128x128xbf16, #tpu.memory_space<vmem>>, vector<1x128x128xbf16>
    %312 = vector.shape_cast %311 : vector<1x128x128xbf16> to vector<128x128xbf16>
    %cst_80 = arith.constant dense<0.000000e+00> : vector<128x128xf32>
    %313 = tpu.matmul %310, %312, %cst_80 {dimension_numbers = #tpu.dot_dimension_numbers<[1], [0], [0], [1], [0, 0, 1, 1], [], []>} : vector<128x128xbf16>, vector<128x128xbf16>, vector<128x128xf32> -> vector<128x128xf32>
    %c0_81 = arith.constant 0 : index
    %c0_82 = arith.constant 0 : index
    %c0_83 = arith.constant 0 : index
    %314 = vector.load %arg8[%c0_81, %c0_82, %c0_83] : memref<1x1x128xf32, #tpu.memory_space<vmem>>, vector<1x1x128xf32>
    %315 = vector.shape_cast %314 : vector<1x1x128xf32> to vector<1x128xf32>
    %316 = vector.broadcast %315 : vector<1x128xf32> to vector<128x128xf32>
    %317 = arith.addf %313, %316 : vector<128x128xf32>
    %318 = arith.addf %317, %3 : vector<128x128xf32>
    %c0_84 = arith.constant 0 : index
    %c0_85 = arith.constant 0 : index
    %c0_86 = arith.constant 0 : index
    %319 = vector.load %arg9[%c0_84, %c0_85, %c0_86] : memref<1x1x128xf32, #tpu.memory_space<vmem>>, vector<1x1x128xf32>
    %320 = vector.shape_cast %319 : vector<1x1x128xf32> to vector<1x128xf32>
    %c0_87 = arith.constant 0 : index
    %c0_88 = arith.constant 0 : index
    %c0_89 = arith.constant 0 : index
    %321 = vector.load %arg10[%c0_87, %c0_88, %c0_89] : memref<1x1x128xf32, #tpu.memory_space<vmem>>, vector<1x1x128xf32>
    %322 = vector.shape_cast %321 : vector<1x1x128xf32> to vector<1x128xf32>
    %cst_90 = arith.constant dense<0.000000e+00> : vector<128xf32>
    %323 = vector.multi_reduction <add>, %318, %cst_90 [1] : vector<128x128xf32> to vector<128xf32>
    %324 = vector.shape_cast %323 : vector<128xf32> to vector<128x1xf32>
    %cst_91 = arith.constant 1.280000e+02 : f32
    %325 = vector.broadcast %cst_91 : f32 to vector<128x1xf32>
    %326 = arith.divf %324, %325 : vector<128x1xf32>
    %327 = vector.broadcast %326 : vector<128x1xf32> to vector<128x128xf32>
    %328 = arith.subf %318, %327 : vector<128x128xf32>
    %329 = arith.mulf %328, %328 : vector<128x128xf32>
    %cst_92 = arith.constant dense<0.000000e+00> : vector<128xf32>
    %330 = vector.multi_reduction <add>, %329, %cst_92 [1] : vector<128x128xf32> to vector<128xf32>
    %331 = vector.shape_cast %330 : vector<128xf32> to vector<128x1xf32>
    %cst_93 = arith.constant 1.280000e+02 : f32
    %332 = vector.broadcast %cst_93 : f32 to vector<128x1xf32>
    %333 = arith.divf %331, %332 : vector<128x1xf32>
    %334 = vector.broadcast %326 : vector<128x1xf32> to vector<128x128xf32>
    %335 = arith.subf %318, %334 : vector<128x128xf32>
    %cst_94 = arith.constant 9.99999996E-13 : f32
    %336 = vector.broadcast %cst_94 : f32 to vector<128x1xf32>
    %337 = arith.addf %333, %336 : vector<128x1xf32>
    %338 = math.rsqrt %337 : vector<128x1xf32>
    %339 = vector.broadcast %338 : vector<128x1xf32> to vector<128x128xf32>
    %340 = arith.mulf %335, %339 : vector<128x128xf32>
    %341 = vector.broadcast %320 : vector<1x128xf32> to vector<128x128xf32>
    %342 = arith.mulf %340, %341 : vector<128x128xf32>
    %343 = vector.broadcast %322 : vector<1x128xf32> to vector<128x128xf32>
    %344 = arith.addf %342, %343 : vector<128x128xf32>
    %345 = arith.truncf %344 : vector<128x128xf32> to vector<128x128xbf16>
    %c0_95 = arith.constant 0 : index
    %c0_96 = arith.constant 0 : index
    %c0_97 = arith.constant 0 : index
    %346 = vector.load %arg11[%c0_95, %c0_96, %c0_97] : memref<1x128x512xbf16, #tpu.memory_space<vmem>>, vector<1x128x512xbf16>
    %347 = vector.shape_cast %346 : vector<1x128x512xbf16> to vector<128x512xbf16>
    %cst_98 = arith.constant dense<0.000000e+00> : vector<128x512xf32>
    %348 = tpu.matmul %345, %347, %cst_98 {dimension_numbers = #tpu.dot_dimension_numbers<[1], [0], [0], [1], [0, 0, 1, 1], [], []>} : vector<128x128xbf16>, vector<128x512xbf16>, vector<128x512xf32> -> vector<128x512xf32>
    %c0_99 = arith.constant 0 : index
    %c0_100 = arith.constant 0 : index
    %c0_101 = arith.constant 0 : index
    %349 = vector.load %arg12[%c0_99, %c0_100, %c0_101] : memref<1x1x512xf32, #tpu.memory_space<vmem>>, vector<1x1x512xf32>
    %350 = vector.shape_cast %349 : vector<1x1x512xf32> to vector<1x512xf32>
    %351 = vector.broadcast %350 : vector<1x512xf32> to vector<128x512xf32>
    %352 = arith.addf %348, %351 : vector<128x512xf32>
    %cst_102 = arith.constant 5.000000e-01 : f32
    %353 = vector.broadcast %cst_102 : f32 to vector<128x512xf32>
    %354 = arith.mulf %353, %352 : vector<128x512xf32>
    %cst_103 = arith.constant 4.471500e-02 : f32
    %355 = vector.broadcast %cst_103 : f32 to vector<128x512xf32>
    %356 = arith.mulf %355, %352 : vector<128x512xf32>
    %357 = arith.mulf %356, %352 : vector<128x512xf32>
    %358 = arith.mulf %357, %352 : vector<128x512xf32>
    %359 = arith.addf %352, %358 : vector<128x512xf32>
    %cst_104 = arith.constant 0.797884583 : f32
    %360 = vector.broadcast %cst_104 : f32 to vector<128x512xf32>
    %361 = arith.mulf %360, %359 : vector<128x512xf32>
    %362 = math.tanh %361 : vector<128x512xf32>
    %cst_105 = arith.constant 1.000000e+00 : f32
    %363 = vector.broadcast %cst_105 : f32 to vector<128x512xf32>
    %364 = arith.addf %363, %362 : vector<128x512xf32>
    %365 = arith.mulf %354, %364 : vector<128x512xf32>
    %366 = arith.truncf %365 : vector<128x512xf32> to vector<128x512xbf16>
    %c0_106 = arith.constant 0 : index
    %c0_107 = arith.constant 0 : index
    %c0_108 = arith.constant 0 : index
    %367 = vector.load %arg13[%c0_106, %c0_107, %c0_108] : memref<1x512x128xbf16, #tpu.memory_space<vmem>>, vector<1x512x128xbf16>
    %368 = vector.shape_cast %367 : vector<1x512x128xbf16> to vector<512x128xbf16>
    %cst_109 = arith.constant dense<0.000000e+00> : vector<128x128xf32>
    %369 = tpu.matmul %366, %368, %cst_109 {dimension_numbers = #tpu.dot_dimension_numbers<[1], [0], [0], [1], [0, 0, 1, 1], [], []>} : vector<128x512xbf16>, vector<512x128xbf16>, vector<128x128xf32> -> vector<128x128xf32>
    %c0_110 = arith.constant 0 : index
    %c0_111 = arith.constant 0 : index
    %c0_112 = arith.constant 0 : index
    %370 = vector.load %arg14[%c0_110, %c0_111, %c0_112] : memref<1x1x128xf32, #tpu.memory_space<vmem>>, vector<1x1x128xf32>
    %371 = vector.shape_cast %370 : vector<1x1x128xf32> to vector<1x128xf32>
    %372 = vector.broadcast %371 : vector<1x128xf32> to vector<128x128xf32>
    %373 = arith.addf %369, %372 : vector<128x128xf32>
    %374 = arith.addf %373, %344 : vector<128x128xf32>
    %c0_113 = arith.constant 0 : index
    %c0_114 = arith.constant 0 : index
    %c0_115 = arith.constant 0 : index
    %375 = vector.load %arg15[%c0_113, %c0_114, %c0_115] : memref<1x1x128xf32, #tpu.memory_space<vmem>>, vector<1x1x128xf32>
    %376 = vector.shape_cast %375 : vector<1x1x128xf32> to vector<1x128xf32>
    %c0_116 = arith.constant 0 : index
    %c0_117 = arith.constant 0 : index
    %c0_118 = arith.constant 0 : index
    %377 = vector.load %arg16[%c0_116, %c0_117, %c0_118] : memref<1x1x128xf32, #tpu.memory_space<vmem>>, vector<1x1x128xf32>
    %378 = vector.shape_cast %377 : vector<1x1x128xf32> to vector<1x128xf32>
    %cst_119 = arith.constant dense<0.000000e+00> : vector<128xf32>
    %379 = vector.multi_reduction <add>, %374, %cst_119 [1] : vector<128x128xf32> to vector<128xf32>
    %380 = vector.shape_cast %379 : vector<128xf32> to vector<128x1xf32>
    %cst_120 = arith.constant 1.280000e+02 : f32
    %381 = vector.broadcast %cst_120 : f32 to vector<128x1xf32>
    %382 = arith.divf %380, %381 : vector<128x1xf32>
    %383 = vector.broadcast %382 : vector<128x1xf32> to vector<128x128xf32>
    %384 = arith.subf %374, %383 : vector<128x128xf32>
    %385 = arith.mulf %384, %384 : vector<128x128xf32>
    %cst_121 = arith.constant dense<0.000000e+00> : vector<128xf32>
    %386 = vector.multi_reduction <add>, %385, %cst_121 [1] : vector<128x128xf32> to vector<128xf32>
    %387 = vector.shape_cast %386 : vector<128xf32> to vector<128x1xf32>
    %cst_122 = arith.constant 1.280000e+02 : f32
    %388 = vector.broadcast %cst_122 : f32 to vector<128x1xf32>
    %389 = arith.divf %387, %388 : vector<128x1xf32>
    %390 = vector.broadcast %382 : vector<128x1xf32> to vector<128x128xf32>
    %391 = arith.subf %374, %390 : vector<128x128xf32>
    %cst_123 = arith.constant 9.99999996E-13 : f32
    %392 = vector.broadcast %cst_123 : f32 to vector<128x1xf32>
    %393 = arith.addf %389, %392 : vector<128x1xf32>
    %394 = math.rsqrt %393 : vector<128x1xf32>
    %395 = vector.broadcast %394 : vector<128x1xf32> to vector<128x128xf32>
    %396 = arith.mulf %391, %395 : vector<128x128xf32>
    %397 = vector.broadcast %376 : vector<1x128xf32> to vector<128x128xf32>
    %398 = arith.mulf %396, %397 : vector<128x128xf32>
    %399 = vector.broadcast %378 : vector<1x128xf32> to vector<128x128xf32>
    %400 = arith.addf %398, %399 : vector<128x128xf32>
    %c0_124 = arith.constant 0 : index
    %c0_125 = arith.constant 0 : index
    %401 = vector.load %arg22[%c0_124, %c0_125] : memref<128x128xf32, #tpu.memory_space<vmem>>, vector<128x128xf32>
    tpu.vector_store %arg22[%c0_124, %c0_125], %400 {strides = array<i32>} : memref<128x128xf32, #tpu.memory_space<vmem>>, vector<128x128xf32>,
    %c1_i32 = arith.constant 1 : i32
    %402 = arith.cmpi eq, %arg0, %c1_i32 : i32
    %403 = arith.extui %402 : i1 to i32
    %c0_i32_126 = arith.constant 0 : i32
    %404 = arith.cmpi ne, %403, %c0_i32_126 : i32
    scf.if %404 {
      %c0_127 = arith.constant 0 : index
      %c0_128 = arith.constant 0 : index
      %405 = tpu.strided_load %arg22[%c0_127, %c0_128] {strides = array<i32: 32, 1>} : memref<128x128xf32, #tpu.memory_space<vmem>>, vector<4x128xf32>
      %406 = arith.truncf %405 : vector<4x128xf32> to vector<4x128xbf16>
      %c0_129 = arith.constant 0 : index
      %c0_130 = arith.constant 0 : index
      %407 = vector.load %arg17[%c0_129, %c0_130] : memref<128x128xbf16, #tpu.memory_space<vmem>>, vector<128x128xbf16>
      %cst_131 = arith.constant dense<0.000000e+00> : vector<4x128xf32>
      %408 = tpu.matmul %406, %407, %cst_131 {dimension_numbers = #tpu.dot_dimension_numbers<[1], [0], [0], [1], [0, 0, 1, 1], [], []>} : vector<4x128xbf16>, vector<128x128xbf16>, vector<4x128xf32> -> vector<4x128xf32>
      %c0_132 = arith.constant 0 : index
      %c0_133 = arith.constant 0 : index
      %409 = vector.load %arg18[%c0_132, %c0_133] : memref<1x128xf32, #tpu.memory_space<vmem>>, vector<1x128xf32>
      %410 = vector.broadcast %409 : vector<1x128xf32> to vector<4x128xf32>
      %411 = arith.addf %408, %410 : vector<4x128xf32>
      %412 = math.tanh %411 : vector<4x128xf32>
      %413 = arith.truncf %412 : vector<4x128xf32> to vector<4x128xbf16>
      %c0_134 = arith.constant 0 : index
      %c0_135 = arith.constant 0 : index
      %414 = vector.load %arg19[%c0_134, %c0_135] : memref<128x128xbf16, #tpu.memory_space<vmem>>, vector<128x128xbf16>
      %cst_136 = arith.constant dense<0.000000e+00> : vector<4x128xf32>
      %415 = tpu.matmul %413, %414, %cst_136 {dimension_numbers = #tpu.dot_dimension_numbers<[1], [0], [0], [1], [0, 0, 1, 1], [], []>} : vector<4x128xbf16>, vector<128x128xbf16>, vector<4x128xf32> -> vector<4x128xf32>
      %c0_137 = arith.constant 0 : index
      %c0_138 = arith.constant 0 : index
      %416 = vector.load %arg20[%c0_137, %c0_138] : memref<1x128xf32, #tpu.memory_space<vmem>>, vector<1x128xf32>
      %417 = vector.broadcast %416 : vector<1x128xf32> to vector<4x128xf32>
      %418 = arith.addf %415, %417 : vector<4x128xf32>
      %cst_139 = arith.constant 0.000000e+00 : f32
      %419 = vector.broadcast %cst_139 : f32 to vector<4x128xf32>
      %420 = arith.maximumf %418, %419 : vector<4x128xf32>
      %c0_140 = arith.constant 0 : index
      %c0_141 = arith.constant 0 : index
      %421 = vector.load %arg21[%c0_140, %c0_141] : memref<4x128xf32, #tpu.memory_space<vmem>>, vector<4x128xf32>
      tpu.vector_store %arg21[%c0_140, %c0_141], %420 {strides = array<i32>} : memref<4x128xf32, #tpu.memory_space<vmem>>, vector<4x128xf32>,
    } else {
    }
    return
  }
  func.func @transform_0(%arg0: i32) -> (i32, i32) {
    %c0_i32 = arith.constant 0 : i32
    %c0_i32_0 = arith.constant 0 : i32
    %c0_i32_1 = arith.constant 0 : i32
    return %c0_i32, %c0_i32_0 : i32, i32
  }
  func.func @transform_1(%arg0: i32) -> (i32, i32) {
    %c0_i32 = arith.constant 0 : i32
    %c0_i32_0 = arith.constant 0 : i32
    %c0_i32_1 = arith.constant 0 : i32
    return %c0_i32, %c0_i32_0 : i32, i32
  }
  func.func @transform_2(%arg0: i32) -> (i32, i32) {
    %c0_i32 = arith.constant 0 : i32
    %c0_i32_0 = arith.constant 0 : i32
    %c0_i32_1 = arith.constant 0 : i32
    return %c0_i32, %c0_i32_0 : i32, i32
  }
  func.func @transform_3(%arg0: i32) -> (i32, i32) {
    %c0_i32 = arith.constant 0 : i32
    %c0_i32_0 = arith.constant 0 : i32
    %c0_i32_1 = arith.constant 0 : i32
    return %c0_i32, %c0_i32_0 : i32, i32
  }
  func.func @transform_4(%arg0: i32) -> (i32, i32, i32) {
    %c0_i32 = arith.constant 0 : i32
    %c0_i32_0 = arith.constant 0 : i32
    %c0_i32_1 = arith.constant 0 : i32
    return %arg0, %c0_i32, %c0_i32_0 : i32, i32, i32
  }
  func.func @transform_5(%arg0: i32) -> (i32, i32, i32) {
    %c0_i32 = arith.constant 0 : i32
    %c0_i32_0 = arith.constant 0 : i32
    %c0_i32_1 = arith.constant 0 : i32
    return %arg0, %c0_i32, %c0_i32_0 : i32, i32, i32
  }
  func.func @transform_6(%arg0: i32) -> (i32, i32, i32) {
    %c0_i32 = arith.constant 0 : i32
    %c0_i32_0 = arith.constant 0 : i32
    %c0_i32_1 = arith.constant 0 : i32
    return %arg0, %c0_i32, %c0_i32_0 : i32, i32, i32
  }
  func.func @transform_7(%arg0: i32) -> (i32, i32, i32) {
    %c0_i32 = arith.constant 0 : i32
    %c0_i32_0 = arith.constant 0 : i32
    %c0_i32_1 = arith.constant 0 : i32
    return %arg0, %c0_i32, %c0_i32_0 : i32, i32, i32
  }
  func.func @transform_8(%arg0: i32) -> (i32, i32, i32) {
    %c0_i32 = arith.constant 0 : i32
    %c0_i32_0 = arith.constant 0 : i32
    %c0_i32_1 = arith.constant 0 : i32
    return %arg0, %c0_i32, %c0_i32_0 : i32, i32, i32
  }
  func.func @transform_9(%arg0: i32) -> (i32, i32, i32) {
    %c0_i32 = arith.constant 0 : i32
    %c0_i32_0 = arith.constant 0 : i32
    %c0_i32_1 = arith.constant 0 : i32
    return %arg0, %c0_i32, %c0_i32_0 : i32, i32, i32
  }
  func.func @transform_10(%arg0: i32) -> (i32, i32, i32) {
    %c0_i32 = arith.constant 0 : i32
    %c0_i32_0 = arith.constant 0 : i32
    %c0_i32_1 = arith.constant 0 : i32
    return %arg0, %c0_i32, %c0_i32_0 : i32, i32, i32
  }
  func.func @transform_11(%arg0: i32) -> (i32, i32, i32) {
    %c0_i32 = arith.constant 0 : i32
    %c0_i32_0 = arith.constant 0 : i32
    %c0_i32_1 = arith.constant 0 : i32
    return %arg0, %c0_i32, %c0_i32_0 : i32, i32, i32
  }
  func.func @transform_12(%arg0: i32) -> (i32, i32, i32) {
    %c0_i32 = arith.constant 0 : i32
    %c0_i32_0 = arith.constant 0 : i32
    %c0_i32_1 = arith.constant 0 : i32
    return %arg0, %c0_i32, %c0_i32_0 : i32, i32, i32
  }
  func.func @transform_13(%arg0: i32) -> (i32, i32, i32) {
    %c0_i32 = arith.constant 0 : i32
    %c0_i32_0 = arith.constant 0 : i32
    %c0_i32_1 = arith.constant 0 : i32
    return %arg0, %c0_i32, %c0_i32_0 : i32, i32, i32
  }
  func.func @transform_14(%arg0: i32) -> (i32, i32, i32) {
    %c0_i32 = arith.constant 0 : i32
    %c0_i32_0 = arith.constant 0 : i32
    %c0_i32_1 = arith.constant 0 : i32
    return %arg0, %c0_i32, %c0_i32_0 : i32, i32, i32
  }
  func.func @transform_15(%arg0: i32) -> (i32, i32, i32) {
    %c0_i32 = arith.constant 0 : i32
    %c0_i32_0 = arith.constant 0 : i32
    %c0_i32_1 = arith.constant 0 : i32
    return %arg0, %c0_i32, %c0_i32_0 : i32, i32, i32
  }
  func.func @transform_16(%arg0: i32) -> (i32, i32) {
    %c0_i32 = arith.constant 0 : i32
    %c0_i32_0 = arith.constant 0 : i32
    %c0_i32_1 = arith.constant 0 : i32
    return %c0_i32, %c0_i32_0 : i32, i32
  }
  func.func @transform_17(%arg0: i32) -> (i32, i32) {
    %c0_i32 = arith.constant 0 : i32
    %c0_i32_0 = arith.constant 0 : i32
    %c0_i32_1 = arith.constant 0 : i32
    return %c0_i32, %c0_i32_0 : i32, i32
  }
  func.func @transform_18(%arg0: i32) -> (i32, i32) {
    %c0_i32 = arith.constant 0 : i32
    %c0_i32_0 = arith.constant 0 : i32
    %c0_i32_1 = arith.constant 0 : i32
    return %c0_i32, %c0_i32_0 : i32, i32
  }
  func.func @transform_19(%arg0: i32) -> (i32, i32) {
    %c0_i32 = arith.constant 0 : i32
    %c0_i32_0 = arith.constant 0 : i32
    %c0_i32_1 = arith.constant 0 : i32
    return %c0_i32, %c0_i32_0 : i32, i32
  }
  func.func @transform_20(%arg0: i32) -> (i32, i32) {
    %c0_i32 = arith.constant 0 : i32
    %c0_i32_0 = arith.constant 0 : i32
    %c0_i32_1 = arith.constant 0 : i32
    return %c0_i32, %c0_i32_0 : i32, i32
  }
}

</mosaic_0001>

<llo_original>
// kernel: forward.1
$region0: #{forward.1}
  #allocation0 [shape = 'u32[]', space=smem, size = 0x4, offset = 0x4, fixed_abs, tag = 'smem constant byte address 0x4 - core index']
  #allocation1 [shape = 'u32[144,128]{1,0:T(1,128)}', space=vmem, size = 0x12000, scoped, tag = 'internal scratch']
  #allocation2 [shape = 'f32[128,128]{1,0:T(8,128)}', space=vmem, size = 0x10000, scoped, tag = 'scratch operand']
  %s0 = inlined_call_operand.vmem [shape: f32[128,128], index: 0, kind: input, shape index: {}]
  %s1 = inlined_call_operand.vmem [shape: f32[4,32], index: 1, kind: input, shape index: {}]
  %s2 = inlined_call_operand.vmem [shape: f32[1,128], index: 2, kind: input, shape index: {}]
  %s3 = inlined_call_operand.vmem [shape: f32[1,128], index: 3, kind: input, shape index: {}]
  %s4 = inlined_call_operand.vmem [shape: bf16[2,128,384], index: 4, kind: input, shape index: {}]
  %s5 = inlined_call_operand.vmem [shape: f32[2,1,384], index: 5, kind: input, shape index: {}]
  %s6 = inlined_call_operand.vmem [shape: bf16[2,128,128], index: 6, kind: input, shape index: {}]
  %s7 = inlined_call_operand.vmem [shape: f32[2,1,128], index: 7, kind: input, shape index: {}]
  %s8 = inlined_call_operand.vmem [shape: f32[2,1,128], index: 8, kind: input, shape index: {}]
  %s9 = inlined_call_operand.vmem [shape: f32[2,1,128], index: 9, kind: input, shape index: {}]
  %s10 = inlined_call_operand.vmem [shape: bf16[2,128,512], index: 10, kind: input, shape index: {}]
  %s11 = inlined_call_operand.vmem [shape: f32[2,1,512], index: 11, kind: input, shape index: {}]
  %s12 = inlined_call_operand.vmem [shape: bf16[2,512,128], index: 12, kind: input, shape index: {}]
  %s13 = inlined_call_operand.vmem [shape: f32[2,1,128], index: 13, kind: input, shape index: {}]
  %s14 = inlined_call_operand.vmem [shape: f32[2,1,128], index: 14, kind: input, shape index: {}]
  %s15 = inlined_call_operand.vmem [shape: f32[2,1,128], index: 15, kind: input, shape index: {}]
  %s16 = inlined_call_operand.vmem [shape: bf16[128,128], index: 16, kind: input, shape index: {}]
  %s17 = inlined_call_operand.vmem [shape: f32[1,128], index: 17, kind: input, shape index: {}]
  %s18 = inlined_call_operand.vmem [shape: bf16[128,128], index: 18, kind: input, shape index: {}]
  %s19 = inlined_call_operand.vmem [shape: f32[1,128], index: 19, kind: input, shape index: {}]
  %s20 = inlined_call_operand.hbm [shape: f32[4,128], index: 20, kind: output, shape index: {}]
  %s21 = sld [smem:[#allocation0]]
  $region121: #{forward.1} parent=0
    _
  %s23 = ssub.s32 1, %s21
  %s24 = scalar_select 0, %s23, %s21
  $region1: #{forward.1} parent=0
    #allocation3 [shape = 'u8[2048]{0}', space=vmem, size = 0x800, scoped, tag = 'output window, operand 0, single buffered']
    #allocation4 [shape = 's32[2]{0}', space=sflag, size = 0x8, scoped, tag = 'scoped memory for forward.1']
    %25 = vsyncpa [#allocation4], 0
    loop: start=0, step=1, limit=4
    $region2: #{forward.1} parent=1 // loop_pre_header
      _
    $region3: #{forward.1} parent=1 // loop_header
      %s27 = sphi 0, %s31
      %p28 = scmp.ge.s32.totalorder %s27, 4
      %s35 = sphi 0, %s35
      %s37 = sphi 0, %s35
      %s38 = sphi 0, %s37
      %s52 = sphi 0, %s38
      %s56 = sphi 0, %s56
      %s58 = sphi 0, %s56
      %s59 = sphi 0, %s58
      %s73 = sphi 0, %s59
      %s77 = sphi 0, %s77
      %s79 = sphi 0, %s77
      %s80 = sphi 0, %s79
      %s94 = sphi 0, %s80
      %s98 = sphi 0, %s98
      %s100 = sphi 0, %s98
      %s101 = sphi 0, %s100
      %s115 = sphi 0, %s101
      %s121 = sphi 0, %s123
      %s124 = sphi 0, %s121
      %s125 = sphi 0, %s124
      %s141 = sphi 0, %s125
      %s147 = sphi 0, %s149
      %s150 = sphi 0, %s147
      %s151 = sphi 0, %s150
      %s167 = sphi 0, %s151
      %s173 = sphi 0, %s175
      %s176 = sphi 0, %s173
      %s177 = sphi 0, %s176
      %s193 = sphi 0, %s177
      %s199 = sphi 0, %s201
      %s202 = sphi 0, %s199
      %s203 = sphi 0, %s202
      %s219 = sphi 0, %s203
      %s225 = sphi 0, %s227
      %s228 = sphi 0, %s225
      %s229 = sphi 0, %s228
      %s245 = sphi 0, %s229
      %s251 = sphi 0, %s253
      %s254 = sphi 0, %s251
      %s255 = sphi 0, %s254
      %s271 = sphi 0, %s255
      %s277 = sphi 0, %s279
      %s280 = sphi 0, %s277
      %s281 = sphi 0, %s280
      %s297 = sphi 0, %s281
      %s303 = sphi 0, %s305
      %s306 = sphi 0, %s303
      %s307 = sphi 0, %s306
      %s323 = sphi 0, %s307
      %s329 = sphi 0, %s331
      %s332 = sphi 0, %s329
      %s333 = sphi 0, %s332
      %s349 = sphi 0, %s333
      %s355 = sphi 0, %s357
      %s358 = sphi 0, %s355
      %s359 = sphi 0, %s358
      %s375 = sphi 0, %s359
      %s381 = sphi 0, %s383
      %s384 = sphi 0, %s381
      %s385 = sphi 0, %s384
      %s401 = sphi 0, %s385
      %s407 = sphi 0, %s409
      %s410 = sphi 0, %s407
      %s411 = sphi 0, %s410
      %s427 = sphi 0, %s411
      %s431 = sphi 0, %s431
      %s433 = sphi 0, %s431
      %s434 = sphi 0, %s433
      %s448 = sphi 0, %s434
      %s452 = sphi 0, %s452
      %s454 = sphi 0, %s452
      %s455 = sphi 0, %s454
      %s469 = sphi 0, %s455
      %s473 = sphi 0, %s473
      %s475 = sphi 0, %s473
      %s476 = sphi 0, %s475
      %s490 = sphi 0, %s476
      %s494 = sphi 0, %s494
      %s496 = sphi 0, %s494
      %s497 = sphi 0, %s496
      %s511 = sphi 0, %s497
      %s515 = sphi 0, %s515
      %s517 = sphi 0, %s515
      %s518 = sphi 0, %s517
      %s532 = sphi 0, %s518
    $region4: #{forward.1} parent=1 // loop_header_branch
      %30 = sbr.rel (%p28) target = $region8
    $region5: #{forward.1} parent=1 // loop_body
      %s32 = ssub.s32 %s27, 1
      %s33 = ssub.s32 %s27, 2
      %s34 = sadd.s32 %s27, 1
      %s36 = sadd.s32 %s35, 1
      %p39 = scmp.eq.s32.totalorder %s27, 1
      %p40 = scmp.ne.s32.totalorder %s35, %s37
      %p41 = scmp.eq.s32.totalorder %s27, 0
      %p42 = por %p40, %p41
      %p43 = scmp.ne.s32.totalorder %s35, %s37
      %p44 = scmp.eq.s32.totalorder %s32, 1
      %p45 = por %p43, %p44
      %p46 = scmp.ne.s32.totalorder %s37, %s38
      %p47 = scmp.eq.s32.totalorder %s32, 0
      %p48 = por %p46, %p47
      %p49 = scmp.ne.s32.totalorder %s37, %s38
      %p50 = scmp.eq.s32.totalorder %s33, 1
      %p51 = por %p49, %p50
      %p53 = scmp.ne.s32.totalorder %s38, %s52
      %p54 = scmp.eq.s32.totalorder %s33, 0
      %p55 = por %p53, %p54
      %s57 = sadd.s32 %s56, 1
      %p60 = scmp.eq.s32.totalorder %s27, 1
      %p61 = scmp.ne.s32.totalorder %s56, %s58
      %p62 = scmp.eq.s32.totalorder %s27, 0
      %p63 = por %p61, %p62
      %p64 = scmp.ne.s32.totalorder %s56, %s58
      %p65 = scmp.eq.s32.totalorder %s32, 1
      %p66 = por %p64, %p65
      %p67 = scmp.ne.s32.totalorder %s58, %s59
      %p68 = scmp.eq.s32.totalorder %s32, 0
      %p69 = por %p67, %p68
      %p70 = scmp.ne.s32.totalorder %s58, %s59
      %p71 = scmp.eq.s32.totalorder %s33, 1
      %p72 = por %p70, %p71
      %p74 = scmp.ne.s32.totalorder %s59, %s73
      %p75 = scmp.eq.s32.totalorder %s33, 0
      %p76 = por %p74, %p75
      %s78 = sadd.s32 %s77, 1
      %p81 = scmp.eq.s32.totalorder %s27, 1
      %p82 = scmp.ne.s32.totalorder %s77, %s79
      %p83 = scmp.eq.s32.totalorder %s27, 0
      %p84 = por %p82, %p83
      %p85 = scmp.ne.s32.totalorder %s77, %s79
      %p86 = scmp.eq.s32.totalorder %s32, 1
      %p87 = por %p85, %p86
      %p88 = scmp.ne.s32.totalorder %s79, %s80
      %p89 = scmp.eq.s32.totalorder %s32, 0
      %p90 = por %p88, %p89
      %p91 = scmp.ne.s32.totalorder %s79, %s80
      %p92 = scmp.eq.s32.totalorder %s33, 1
      %p93 = por %p91, %p92
      %p95 = scmp.ne.s32.totalorder %s80, %s94
      %p96 = scmp.eq.s32.totalorder %s33, 0
      %p97 = por %p95, %p96
      %s99 = sadd.s32 %s98, 1
      %p102 = scmp.eq.s32.totalorder %s27, 1
      %p103 = scmp.ne.s32.totalorder %s98, %s100
      %p104 = scmp.eq.s32.totalorder %s27, 0
      %p105 = por %p103, %p104
      %p106 = scmp.ne.s32.totalorder %s98, %s100
      %p107 = scmp.eq.s32.totalorder %s32, 1
      %p108 = por %p106, %p107
      %p109 = scmp.ne.s32.totalorder %s100, %s101
      %p110 = scmp.eq.s32.totalorder %s32, 0
      %p111 = por %p109, %p110
      %p112 = scmp.ne.s32.totalorder %s100, %s101
      %p113 = scmp.eq.s32.totalorder %s33, 1
      %p114 = por %p112, %p113
      %p116 = scmp.ne.s32.totalorder %s101, %s115
      %p117 = scmp.eq.s32.totalorder %s33, 0
      %p118 = por %p116, %p117
      %s119 = ssub.s32 %s27, %s34
      %p120 = scmp.eq.s32.totalorder %s119, 0
      %s122 = sadd.s32 %s121, 1
      %s123 = scalar_select %p120, %s121, %s122
      %p126 = pneg %p120
      %p127 = scmp.eq.s32.totalorder %s27, 1
      %p128 = por %p126, %p127
      %p129 = scmp.ne.s32.totalorder %s121, %s124
      %p130 = scmp.eq.s32.totalorder %s27, 0
      %p131 = por %p129, %p130
      %p132 = scmp.ne.s32.totalorder %s121, %s124
      %p133 = scmp.eq.s32.totalorder %s32, 1
      %p134 = por %p132, %p133
      %p135 = scmp.ne.s32.totalorder %s124, %s125
      %p136 = scmp.eq.s32.totalorder %s32, 0
      %p137 = por %p135, %p136
      %p138 = scmp.ne.s32.totalorder %s124, %s125
      %p139 = scmp.eq.s32.totalorder %s33, 1
      %p140 = por %p138, %p139
      %p142 = scmp.ne.s32.totalorder %s125, %s141
      %p143 = scmp.eq.s32.totalorder %s33, 0
      %p144 = por %p142, %p143
      %s145 = ssub.s32 %s27, %s34
      %p146 = scmp.eq.s32.totalorder %s145, 0
      %s148 = sadd.s32 %s147, 1
      %s149 = scalar_select %p146, %s147, %s148
      %p152 = pneg %p146
      %p153 = scmp.eq.s32.totalorder %s27, 1
      %p154 = por %p152, %p153
      %p155 = scmp.ne.s32.totalorder %s147, %s150
      %p156 = scmp.eq.s32.totalorder %s27, 0
      %p157 = por %p155, %p156
      %p158 = scmp.ne.s32.totalorder %s147, %s150
      %p159 = scmp.eq.s32.totalorder %s32, 1
      %p160 = por %p158, %p159
      %p161 = scmp.ne.s32.totalorder %s150, %s151
      %p162 = scmp.eq.s32.totalorder %s32, 0
      %p163 = por %p161, %p162
      %p164 = scmp.ne.s32.totalorder %s150, %s151
      %p165 = scmp.eq.s32.totalorder %s33, 1
      %p166 = por %p164, %p165
      %p168 = scmp.ne.s32.totalorder %s151, %s167
      %p169 = scmp.eq.s32.totalorder %s33, 0
      %p170 = por %p168, %p169
      %s171 = ssub.s32 %s27, %s34
      %p172 = scmp.eq.s32.totalorder %s171, 0
      %s174 = sadd.s32 %s173, 1
      %s175 = scalar_select %p172, %s173, %s174
      %p178 = pneg %p172
      %p179 = scmp.eq.s32.totalorder %s27, 1
      %p180 = por %p178, %p179
      %p181 = scmp.ne.s32.totalorder %s173, %s176
      %p182 = scmp.eq.s32.totalorder %s27, 0
      %p183 = por %p181, %p182
      %p184 = scmp.ne.s32.totalorder %s173, %s176
      %p185 = scmp.eq.s32.totalorder %s32, 1
      %p186 = por %p184, %p185
      %p187 = scmp.ne.s32.totalorder %s176, %s177
      %p188 = scmp.eq.s32.totalorder %s32, 0
      %p189 = por %p187, %p188
      %p190 = scmp.ne.s32.totalorder %s176, %s177
      %p191 = scmp.eq.s32.totalorder %s33, 1
      %p192 = por %p190, %p191
      %p194 = scmp.ne.s32.totalorder %s177, %s193
      %p195 = scmp.eq.s32.totalorder %s33, 0
      %p196 = por %p194, %p195
      %s197 = ssub.s32 %s27, %s34
      %p198 = scmp.eq.s32.totalorder %s197, 0
      %s200 = sadd.s32 %s199, 1
      %s201 = scalar_select %p198, %s199, %s200
      %p204 = pneg %p198
      %p205 = scmp.eq.s32.totalorder %s27, 1
      %p206 = por %p204, %p205
      %p207 = scmp.ne.s32.totalorder %s199, %s202
      %p208 = scmp.eq.s32.totalorder %s27, 0
      %p209 = por %p207, %p208
      %p210 = scmp.ne.s32.totalorder %s199, %s202
      %p211 = scmp.eq.s32.totalorder %s32, 1
      %p212 = por %p210, %p211
      %p213 = scmp.ne.s32.totalorder %s202, %s203
      %p214 = scmp.eq.s32.totalorder %s32, 0
      %p215 = por %p213, %p214
      %p216 = scmp.ne.s32.totalorder %s202, %s203
      %p217 = scmp.eq.s32.totalorder %s33, 1
      %p218 = por %p216, %p217
      %p220 = scmp.ne.s32.totalorder %s203, %s219
      %p221 = scmp.eq.s32.totalorder %s33, 0
      %p222 = por %p220, %p221
      %s223 = ssub.s32 %s27, %s34
      %p224 = scmp.eq.s32.totalorder %s223, 0
      %s226 = sadd.s32 %s225, 1
      %s227 = scalar_select %p224, %s225, %s226
      %p230 = pneg %p224
      %p231 = scmp.eq.s32.totalorder %s27, 1
      %p232 = por %p230, %p231
      %p233 = scmp.ne.s32.totalorder %s225, %s228
      %p234 = scmp.eq.s32.totalorder %s27, 0
      %p235 = por %p233, %p234
      %p236 = scmp.ne.s32.totalorder %s225, %s228
      %p237 = scmp.eq.s32.totalorder %s32, 1
      %p238 = por %p236, %p237
      %p239 = scmp.ne.s32.totalorder %s228, %s229
      %p240 = scmp.eq.s32.totalorder %s32, 0
      %p241 = por %p239, %p240
      %p242 = scmp.ne.s32.totalorder %s228, %s229
      %p243 = scmp.eq.s32.totalorder %s33, 1
      %p244 = por %p242, %p243
      %p246 = scmp.ne.s32.totalorder %s229, %s245
      %p247 = scmp.eq.s32.totalorder %s33, 0
      %p248 = por %p246, %p247
      %s249 = ssub.s32 %s27, %s34
      %p250 = scmp.eq.s32.totalorder %s249, 0
      %s252 = sadd.s32 %s251, 1
      %s253 = scalar_select %p250, %s251, %s252
      %p256 = pneg %p250
      %p257 = scmp.eq.s32.totalorder %s27, 1
      %p258 = por %p256, %p257
      %p259 = scmp.ne.s32.totalorder %s251, %s254
      %p260 = scmp.eq.s32.totalorder %s27, 0
      %p261 = por %p259, %p260
      %p262 = scmp.ne.s32.totalorder %s251, %s254
      %p263 = scmp.eq.s32.totalorder %s32, 1
      %p264 = por %p262, %p263
      %p265 = scmp.ne.s32.totalorder %s254, %s255
      %p266 = scmp.eq.s32.totalorder %s32, 0
      %p267 = por %p265, %p266
      %p268 = scmp.ne.s32.totalorder %s254, %s255
      %p269 = scmp.eq.s32.totalorder %s33, 1
      %p270 = por %p268, %p269
      %p272 = scmp.ne.s32.totalorder %s255, %s271
      %p273 = scmp.eq.s32.totalorder %s33, 0
      %p274 = por %p272, %p273
      %s275 = ssub.s32 %s27, %s34
      %p276 = scmp.eq.s32.totalorder %s275, 0
      %s278 = sadd.s32 %s277, 1
      %s279 = scalar_select %p276, %s277, %s278
      %p282 = pneg %p276
      %p283 = scmp.eq.s32.totalorder %s27, 1
      %p284 = por %p282, %p283
      %p285 = scmp.ne.s32.totalorder %s277, %s280
      %p286 = scmp.eq.s32.totalorder %s27, 0
      %p287 = por %p285, %p286
      %p288 = scmp.ne.s32.totalorder %s277, %s280
      %p289 = scmp.eq.s32.totalorder %s32, 1
      %p290 = por %p288, %p289
      %p291 = scmp.ne.s32.totalorder %s280, %s281
      %p292 = scmp.eq.s32.totalorder %s32, 0
      %p293 = por %p291, %p292
      %p294 = scmp.ne.s32.totalorder %s280, %s281
      %p295 = scmp.eq.s32.totalorder %s33, 1
      %p296 = por %p294, %p295
      %p298 = scmp.ne.s32.totalorder %s281, %s297
      %p299 = scmp.eq.s32.totalorder %s33, 0
      %p300 = por %p298, %p299
      %s301 = ssub.s32 %s27, %s34
      %p302 = scmp.eq.s32.totalorder %s301, 0
      %s304 = sadd.s32 %s303, 1
      %s305 = scalar_select %p302, %s303, %s304
      %p308 = pneg %p302
      %p309 = scmp.eq.s32.totalorder %s27, 1
      %p310 = por %p308, %p309
      %p311 = scmp.ne.s32.totalorder %s303, %s306
      %p312 = scmp.eq.s32.totalorder %s27, 0
      %p313 = por %p311, %p312
      %p314 = scmp.ne.s32.totalorder %s303, %s306
      %p315 = scmp.eq.s32.totalorder %s32, 1
      %p316 = por %p314, %p315
      %p317 = scmp.ne.s32.totalorder %s306, %s307
      %p318 = scmp.eq.s32.totalorder %s32, 0
      %p319 = por %p317, %p318
      %p320 = scmp.ne.s32.totalorder %s306, %s307
      %p321 = scmp.eq.s32.totalorder %s33, 1
      %p322 = por %p320, %p321
      %p324 = scmp.ne.s32.totalorder %s307, %s323
      %p325 = scmp.eq.s32.totalorder %s33, 0
      %p326 = por %p324, %p325
      %s327 = ssub.s32 %s27, %s34
      %p328 = scmp.eq.s32.totalorder %s327, 0
      %s330 = sadd.s32 %s329, 1
      %s331 = scalar_select %p328, %s329, %s330
      %p334 = pneg %p328
      %p335 = scmp.eq.s32.totalorder %s27, 1
      %p336 = por %p334, %p335
      %p337 = scmp.ne.s32.totalorder %s329, %s332
      %p338 = scmp.eq.s32.totalorder %s27, 0
      %p339 = por %p337, %p338
      %p340 = scmp.ne.s32.totalorder %s329, %s332
      %p341 = scmp.eq.s32.totalorder %s32, 1
      %p342 = por %p340, %p341
      %p343 = scmp.ne.s32.totalorder %s332, %s333
      %p344 = scmp.eq.s32.totalorder %s32, 0
      %p345 = por %p343, %p344
      %p346 = scmp.ne.s32.totalorder %s332, %s333
      %p347 = scmp.eq.s32.totalorder %s33, 1
      %p348 = por %p346, %p347
      %p350 = scmp.ne.s32.totalorder %s333, %s349
      %p351 = scmp.eq.s32.totalorder %s33, 0
      %p352 = por %p350, %p351
      %s353 = ssub.s32 %s27, %s34
      %p354 = scmp.eq.s32.totalorder %s353, 0
      %s356 = sadd.s32 %s355, 1
      %s357 = scalar_select %p354, %s355, %s356
      %p360 = pneg %p354
      %p361 = scmp.eq.s32.totalorder %s27, 1
      %p362 = por %p360, %p361
      %p363 = scmp.ne.s32.totalorder %s355, %s358
      %p364 = scmp.eq.s32.totalorder %s27, 0
      %p365 = por %p363, %p364
      %p366 = scmp.ne.s32.totalorder %s355, %s358
      %p367 = scmp.eq.s32.totalorder %s32, 1
      %p368 = por %p366, %p367
      %p369 = scmp.ne.s32.totalorder %s358, %s359
      %p370 = scmp.eq.s32.totalorder %s32, 0
      %p371 = por %p369, %p370
      %p372 = scmp.ne.s32.totalorder %s358, %s359
      %p373 = scmp.eq.s32.totalorder %s33, 1
      %p374 = por %p372, %p373
      %p376 = scmp.ne.s32.totalorder %s359, %s375
      %p377 = scmp.eq.s32.totalorder %s33, 0
      %p378 = por %p376, %p377
      %s379 = ssub.s32 %s27, %s34
      %p380 = scmp.eq.s32.totalorder %s379, 0
      %s382 = sadd.s32 %s381, 1
      %s383 = scalar_select %p380, %s381, %s382
      %p386 = pneg %p380
      %p387 = scmp.eq.s32.totalorder %s27, 1
      %p388 = por %p386, %p387
      %p389 = scmp.ne.s32.totalorder %s381, %s384
      %p390 = scmp.eq.s32.totalorder %s27, 0
      %p391 = por %p389, %p390
      %p392 = scmp.ne.s32.totalorder %s381, %s384
      %p393 = scmp.eq.s32.totalorder %s32, 1
      %p394 = por %p392, %p393
      %p395 = scmp.ne.s32.totalorder %s384, %s385
      %p396 = scmp.eq.s32.totalorder %s32, 0
      %p397 = por %p395, %p396
      %p398 = scmp.ne.s32.totalorder %s384, %s385
      %p399 = scmp.eq.s32.totalorder %s33, 1
      %p400 = por %p398, %p399
      %p402 = scmp.ne.s32.totalorder %s385, %s401
      %p403 = scmp.eq.s32.totalorder %s33, 0
      %p404 = por %p402, %p403
      %s405 = ssub.s32 %s27, %s34
      %p406 = scmp.eq.s32.totalorder %s405, 0
      %s408 = sadd.s32 %s407, 1
      %s409 = scalar_select %p406, %s407, %s408
      %p412 = pneg %p406
      %p413 = scmp.eq.s32.totalorder %s27, 1
      %p414 = por %p412, %p413
      %p415 = scmp.ne.s32.totalorder %s407, %s410
      %p416 = scmp.eq.s32.totalorder %s27, 0
      %p417 = por %p415, %p416
      %p418 = scmp.ne.s32.totalorder %s407, %s410
      %p419 = scmp.eq.s32.totalorder %s32, 1
      %p420 = por %p418, %p419
      %p421 = scmp.ne.s32.totalorder %s410, %s411
      %p422 = scmp.eq.s32.totalorder %s32, 0
      %p423 = por %p421, %p422
      %p424 = scmp.ne.s32.totalorder %s410, %s411
      %p425 = scmp.eq.s32.totalorder %s33, 1
      %p426 = por %p424, %p425
      %p428 = scmp.ne.s32.totalorder %s411, %s427
      %p429 = scmp.eq.s32.totalorder %s33, 0
      %p430 = por %p428, %p429
      %s432 = sadd.s32 %s431, 1
      %p435 = scmp.eq.s32.totalorder %s27, 1
      %p436 = scmp.ne.s32.totalorder %s431, %s433
      %p437 = scmp.eq.s32.totalorder %s27, 0
      %p438 = por %p436, %p437
      %p439 = scmp.ne.s32.totalorder %s431, %s433
      %p440 = scmp.eq.s32.totalorder %s32, 1
      %p441 = por %p439, %p440
      %p442 = scmp.ne.s32.totalorder %s433, %s434
      %p443 = scmp.eq.s32.totalorder %s32, 0
      %p444 = por %p442, %p443
      %p445 = scmp.ne.s32.totalorder %s433, %s434
      %p446 = scmp.eq.s32.totalorder %s33, 1
      %p447 = por %p445, %p446
      %p449 = scmp.ne.s32.totalorder %s434, %s448
      %p450 = scmp.eq.s32.totalorder %s33, 0
      %p451 = por %p449, %p450
      %s453 = sadd.s32 %s452, 1
      %p456 = scmp.eq.s32.totalorder %s27, 1
      %p457 = scmp.ne.s32.totalorder %s452, %s454
      %p458 = scmp.eq.s32.totalorder %s27, 0
      %p459 = por %p457, %p458
      %p460 = scmp.ne.s32.totalorder %s452, %s454
      %p461 = scmp.eq.s32.totalorder %s32, 1
      %p462 = por %p460, %p461
      %p463 = scmp.ne.s32.totalorder %s454, %s455
      %p464 = scmp.eq.s32.totalorder %s32, 0
      %p465 = por %p463, %p464
      %p466 = scmp.ne.s32.totalorder %s454, %s455
      %p467 = scmp.eq.s32.totalorder %s33, 1
      %p468 = por %p466, %p467
      %p470 = scmp.ne.s32.totalorder %s455, %s469
      %p471 = scmp.eq.s32.totalorder %s33, 0
      %p472 = por %p470, %p471
      %s474 = sadd.s32 %s473, 1
      %p477 = scmp.eq.s32.totalorder %s27, 1
      %p478 = scmp.ne.s32.totalorder %s473, %s475
      %p479 = scmp.eq.s32.totalorder %s27, 0
      %p480 = por %p478, %p479
      %p481 = scmp.ne.s32.totalorder %s473, %s475
      %p482 = scmp.eq.s32.totalorder %s32, 1
      %p483 = por %p481, %p482
      %p484 = scmp.ne.s32.totalorder %s475, %s476
      %p485 = scmp.eq.s32.totalorder %s32, 0
      %p486 = por %p484, %p485
      %p487 = scmp.ne.s32.totalorder %s475, %s476
      %p488 = scmp.eq.s32.totalorder %s33, 1
      %p489 = por %p487, %p488
      %p491 = scmp.ne.s32.totalorder %s476, %s490
      %p492 = scmp.eq.s32.totalorder %s33, 0
      %p493 = por %p491, %p492
      %s495 = sadd.s32 %s494, 1
      %p498 = scmp.eq.s32.totalorder %s27, 1
      %p499 = scmp.ne.s32.totalorder %s494, %s496
      %p500 = scmp.eq.s32.totalorder %s27, 0
      %p501 = por %p499, %p500
      %p502 = scmp.ne.s32.totalorder %s494, %s496
      %p503 = scmp.eq.s32.totalorder %s32, 1
      %p504 = por %p502, %p503
      %p505 = scmp.ne.s32.totalorder %s496, %s497
      %p506 = scmp.eq.s32.totalorder %s32, 0
      %p507 = por %p505, %p506
      %p508 = scmp.ne.s32.totalorder %s496, %s497
      %p509 = scmp.eq.s32.totalorder %s33, 1
      %p510 = por %p508, %p509
      %p512 = scmp.ne.s32.totalorder %s497, %s511
      %p513 = scmp.eq.s32.totalorder %s33, 0
      %p514 = por %p512, %p513
      %s516 = sadd.s32 %s515, 1
      %p519 = scmp.eq.s32.totalorder %s27, 1
      %p520 = scmp.ne.s32.totalorder %s515, %s517
      %p521 = scmp.eq.s32.totalorder %s27, 0
      %p522 = por %p520, %p521
      %p523 = scmp.ne.s32.totalorder %s515, %s517
      %p524 = scmp.eq.s32.totalorder %s32, 1
      %p525 = por %p523, %p524
      %p526 = scmp.ne.s32.totalorder %s517, %s518
      %p527 = scmp.eq.s32.totalorder %s32, 0
      %p528 = por %p526, %p527
      %p529 = scmp.ne.s32.totalorder %s517, %s518
      %p530 = scmp.eq.s32.totalorder %s33, 1
      %p531 = por %p529, %p530
      %p533 = scmp.ne.s32.totalorder %s518, %s532
      %p534 = scmp.eq.s32.totalorder %s33, 0
      %p535 = por %p533, %p534
      %p536 = scmp.le.s32.totalorder 1, %s27
      %p537 = scmp.lt.s32.totalorder %s27, 3
      %p538 = pnand %p536, %p537
      %p539 = pneg %p538
      // Predicated region
      $region9: #{forward.1} parent=5 // pred_check
        _
      $region10: #{forward.1} parent=5 // pred_check_branch
        %541 = sbr.rel (%p538) target = $region12
      $region11: #{forward.1} parent=5 // pred_region
        %s542 = ssub.s32 %s27, 1
        // Predicated region
        $region13: #{forward.1} parent=11 // pred_check
          %p543 = pneg %p48
        $region14: #{forward.1} parent=11 // pred_check_branch
          %545 = sbr.rel (%p543) target = $region16
        $region15: #{forward.1} parent=11 // pred_region
          _
        $region16: #{forward.1} parent=11 // pred_fallthru
          _
        // Predicated region
        $region17: #{forward.1} parent=11 // pred_check
          %p546 = pneg %p69
        $region18: #{forward.1} parent=11 // pred_check_branch
          %548 = sbr.rel (%p546) target = $region20
        $region19: #{forward.1} parent=11 // pred_region
          _
        $region20: #{forward.1} parent=11 // pred_fallthru
          _
        // Predicated region
        $region21: #{forward.1} parent=11 // pred_check
          %p549 = pneg %p90
        $region22: #{forward.1} parent=11 // pred_check_branch
          %551 = sbr.rel (%p549) target = $region24
        $region23: #{forward.1} parent=11 // pred_region
          _
        $region24: #{forward.1} parent=11 // pred_fallthru
          _
        // Predicated region
        $region25: #{forward.1} parent=11 // pred_check
          %p552 = pneg %p111
        $region26: #{forward.1} parent=11 // pred_check_branch
          %554 = sbr.rel (%p552) target = $region28
        $region27: #{forward.1} parent=11 // pred_region
          _
        $region28: #{forward.1} parent=11 // pred_fallthru
          _
        // Predicated region
        $region29: #{forward.1} parent=11 // pred_check
          %p555 = pneg %p444
        $region30: #{forward.1} parent=11 // pred_check_branch
          %557 = sbr.rel (%p555) target = $region32
        $region31: #{forward.1} parent=11 // pred_region
          _
        $region32: #{forward.1} parent=11 // pred_fallthru
          _
        // Predicated region
        $region33: #{forward.1} parent=11 // pred_check
          %p558 = pneg %p465
        $region34: #{forward.1} parent=11 // pred_check_branch
          %560 = sbr.rel (%p558) target = $region36
        $region35: #{forward.1} parent=11 // pred_region
          _
        $region36: #{forward.1} parent=11 // pred_fallthru
          _
        // Predicated region
        $region37: #{forward.1} parent=11 // pred_check
          %p561 = pneg %p486
        $region38: #{forward.1} parent=11 // pred_check_branch
          %563 = sbr.rel (%p561) target = $region40
        $region39: #{forward.1} parent=11 // pred_region
          _
        $region40: #{forward.1} parent=11 // pred_fallthru
          _
        // Predicated region
        $region41: #{forward.1} parent=11 // pred_check
          %p564 = pneg %p507
        $region42: #{forward.1} parent=11 // pred_check_branch
          %566 = sbr.rel (%p564) target = $region44
        $region43: #{forward.1} parent=11 // pred_region
          _
        $region44: #{forward.1} parent=11 // pred_fallthru
          _
      $region12: #{forward.1} parent=5 // pred_fallthru
        _
      %p567 = scmp.lt.s32.totalorder %s27, 2
      // Predicated region
      $region45: #{forward.1} parent=5 // pred_check
        %p568 = pneg %p567
      $region46: #{forward.1} parent=5 // pred_check_branch
        %570 = sbr.rel (%p568) target = $region48
      $region47: #{forward.1} parent=5 // pred_region
        // Predicated region
        $region49: #{forward.1} parent=47 // pred_check
          %p571 = pneg %p131
        $region50: #{forward.1} parent=47 // pred_check_branch
          %573 = sbr.rel (%p571) target = $region52
        $region51: #{forward.1} parent=47 // pred_region
          %p574 = scmp.lt.s32.totalorder %s27, 1
          %s575 = scalar_select %p574, %s27, 1
          %s576 = smul.addr %s575, 48
          %s577 = smul.addr %s576, 4
          %s578 = scalar_lea.vmem %s4, %s577
        $region52: #{forward.1} parent=47 // pred_fallthru
          _
        // Predicated region
        $region53: #{forward.1} parent=47 // pred_check
          %p579 = pneg %p157
        $region54: #{forward.1} parent=47 // pred_check_branch
          %581 = sbr.rel (%p579) target = $region56
        $region55: #{forward.1} parent=47 // pred_region
          %p582 = scmp.lt.s32.totalorder %s27, 1
          %s583 = scalar_select %p582, %s27, 1
          %s584 = smul.addr %s583, 3
          %s585 = scalar_lea.vmem %s5, %s584
        $region56: #{forward.1} parent=47 // pred_fallthru
          _
        // Predicated region
        $region57: #{forward.1} parent=47 // pred_check
          %p586 = pneg %p183
        $region58: #{forward.1} parent=47 // pred_check_branch
          %588 = sbr.rel (%p586) target = $region60
        $region59: #{forward.1} parent=47 // pred_region
          %p589 = scmp.lt.s32.totalorder %s27, 1
          %s590 = scalar_select %p589, %s27, 1
          %s591 = smul.addr %s590, 16
          %s592 = smul.addr %s591, 4
          %s593 = scalar_lea.vmem %s6, %s592
        $region60: #{forward.1} parent=47 // pred_fallthru
          _
        // Predicated region
        $region61: #{forward.1} parent=47 // pred_check
          %p594 = pneg %p209
        $region62: #{forward.1} parent=47 // pred_check_branch
          %596 = sbr.rel (%p594) target = $region64
        $region63: #{forward.1} parent=47 // pred_region
          %p597 = scmp.lt.s32.totalorder %s27, 1
          %s598 = scalar_select %p597, %s27, 1
          %s599 = scalar_lea.vmem %s7, %s598
        $region64: #{forward.1} parent=47 // pred_fallthru
          _
        // Predicated region
        $region65: #{forward.1} parent=47 // pred_check
          %p600 = pneg %p235
        $region66: #{forward.1} parent=47 // pred_check_branch
          %602 = sbr.rel (%p600) target = $region68
        $region67: #{forward.1} parent=47 // pred_region
          %p603 = scmp.lt.s32.totalorder %s27, 1
          %s604 = scalar_select %p603, %s27, 1
          %s605 = scalar_lea.vmem %s8, %s604
        $region68: #{forward.1} parent=47 // pred_fallthru
          _
        // Predicated region
        $region69: #{forward.1} parent=47 // pred_check
          %p606 = pneg %p261
        $region70: #{forward.1} parent=47 // pred_check_branch
          %608 = sbr.rel (%p606) target = $region72
        $region71: #{forward.1} parent=47 // pred_region
          %p609 = scmp.lt.s32.totalorder %s27, 1
          %s610 = scalar_select %p609, %s27, 1
          %s611 = scalar_lea.vmem %s9, %s610
        $region72: #{forward.1} parent=47 // pred_fallthru
          _
        // Predicated region
        $region73: #{forward.1} parent=47 // pred_check
          %p612 = pneg %p287
        $region74: #{forward.1} parent=47 // pred_check_branch
          %614 = sbr.rel (%p612) target = $region76
        $region75: #{forward.1} parent=47 // pred_region
          %p615 = scmp.lt.s32.totalorder %s27, 1
          %s616 = scalar_select %p615, %s27, 1
          %s617 = smul.addr %s616, 64
          %s618 = smul.addr %s617, 4
          %s619 = scalar_lea.vmem %s10, %s618
        $region76: #{forward.1} parent=47 // pred_fallthru
          _
        // Predicated region
        $region77: #{forward.1} parent=47 // pred_check
          %p620 = pneg %p313
        $region78: #{forward.1} parent=47 // pred_check_branch
          %622 = sbr.rel (%p620) target = $region80
        $region79: #{forward.1} parent=47 // pred_region
          %p623 = scmp.lt.s32.totalorder %s27, 1
          %s624 = scalar_select %p623, %s27, 1
          %s625 = smul.addr %s624, 4
          %s626 = scalar_lea.vmem %s11, %s625
        $region80: #{forward.1} parent=47 // pred_fallthru
          _
        // Predicated region
        $region81: #{forward.1} parent=47 // pred_check
          %p627 = pneg %p339
        $region82: #{forward.1} parent=47 // pred_check_branch
          %629 = sbr.rel (%p627) target = $region84
        $region83: #{forward.1} parent=47 // pred_region
          %p630 = scmp.lt.s32.totalorder %s27, 1
          %s631 = scalar_select %p630, %s27, 1
          %s632 = smul.addr %s631, 64
          %s633 = smul.addr %s632, 4
          %s634 = scalar_lea.vmem %s12, %s633
        $region84: #{forward.1} parent=47 // pred_fallthru
          _
        // Predicated region
        $region85: #{forward.1} parent=47 // pred_check
          %p635 = pneg %p365
        $region86: #{forward.1} parent=47 // pred_check_branch
          %637 = sbr.rel (%p635) target = $region88
        $region87: #{forward.1} parent=47 // pred_region
          %p638 = scmp.lt.s32.totalorder %s27, 1
          %s639 = scalar_select %p638, %s27, 1
          %s640 = scalar_lea.vmem %s13, %s639
        $region88: #{forward.1} parent=47 // pred_fallthru
          _
        // Predicated region
        $region89: #{forward.1} parent=47 // pred_check
          %p641 = pneg %p391
        $region90: #{forward.1} parent=47 // pred_check_branch
          %643 = sbr.rel (%p641) target = $region92
        $region91: #{forward.1} parent=47 // pred_region
          %p644 = scmp.lt.s32.totalorder %s27, 1
          %s645 = scalar_select %p644, %s27, 1
          %s646 = scalar_lea.vmem %s14, %s645
        $region92: #{forward.1} parent=47 // pred_fallthru
          _
        // Predicated region
        $region93: #{forward.1} parent=47 // pred_check
          %p647 = pneg %p417
        $region94: #{forward.1} parent=47 // pred_check_branch
          %649 = sbr.rel (%p647) target = $region96
        $region95: #{forward.1} parent=47 // pred_region
          %p650 = scmp.lt.s32.totalorder %s27, 1
          %s651 = scalar_select %p650, %s27, 1
          %s652 = scalar_lea.vmem %s15, %s651
        $region96: #{forward.1} parent=47 // pred_fallthru
          _
      $region48: #{forward.1} parent=5 // pred_fallthru
        _
      %p653 = scmp.le.s32.totalorder 1, %s27
      %p654 = scmp.lt.s32.totalorder %s27, 3
      %p655 = pnand %p653, %p654
      %p656 = pneg %p655
      // Predicated region
      $region97: #{forward.1} parent=5 // pred_check
        _
      $region98: #{forward.1} parent=5 // pred_check_branch
        %658 = sbr.rel (%p655) target = $region100
      $region99: #{forward.1} parent=5 // pred_region
        %s659 = ssub.s32 %s27, 1
        %p660 = pneg %p48
        %p661 = pneg %p45
        %p662 = pneg %p69
        %p663 = pneg %p66
        %p664 = pneg %p90
        %p665 = pneg %p87
        %p666 = pneg %p111
        %p667 = pneg %p108
        %p668 = scmp.lt.s32.totalorder %s32, 1
        %s669 = scalar_select %p668, %s32, 1
        %s670 = smul.addr %s669, 48
        %s671 = smul.addr %s670, 4
        %s672 = scalar_lea.vmem %s4, %s671
        %p673 = pneg %p137
        %p674 = pneg %p134
        %p675 = scmp.lt.s32.totalorder %s32, 1
        %s676 = scalar_select %p675, %s32, 1
        %s677 = smul.addr %s676, 3
        %s678 = scalar_lea.vmem %s5, %s677
        %p679 = pneg %p163
        %p680 = pneg %p160
        %p681 = scmp.lt.s32.totalorder %s32, 1
        %s682 = scalar_select %p681, %s32, 1
        %s683 = smul.addr %s682, 16
        %s684 = smul.addr %s683, 4
        %s685 = scalar_lea.vmem %s6, %s684
        %p686 = pneg %p189
        %p687 = pneg %p186
        %p688 = scmp.lt.s32.totalorder %s32, 1
        %s689 = scalar_select %p688, %s32, 1
        %s690 = scalar_lea.vmem %s7, %s689
        %p691 = pneg %p215
        %p692 = pneg %p212
        %p693 = scmp.lt.s32.totalorder %s32, 1
        %s694 = scalar_select %p693, %s32, 1
        %s695 = scalar_lea.vmem %s8, %s694
        %p696 = pneg %p241
        %p697 = pneg %p238
        %p698 = scmp.lt.s32.totalorder %s32, 1
        %s699 = scalar_select %p698, %s32, 1
        %s700 = scalar_lea.vmem %s9, %s699
        %p701 = pneg %p267
        %p702 = pneg %p264
        %p703 = scmp.lt.s32.totalorder %s32, 1
        %s704 = scalar_select %p703, %s32, 1
        %s705 = smul.addr %s704, 64
        %s706 = smul.addr %s705, 4
        %s707 = scalar_lea.vmem %s10, %s706
        %p708 = pneg %p293
        %p709 = pneg %p290
        %p710 = scmp.lt.s32.totalorder %s32, 1
        %s711 = scalar_select %p710, %s32, 1
        %s712 = smul.addr %s711, 4
        %s713 = scalar_lea.vmem %s11, %s712
        %p714 = pneg %p319
        %p715 = pneg %p316
        %p716 = scmp.lt.s32.totalorder %s32, 1
        %s717 = scalar_select %p716, %s32, 1
        %s718 = smul.addr %s717, 64
        %s719 = smul.addr %s718, 4
        %s720 = scalar_lea.vmem %s12, %s719
        %p721 = pneg %p345
        %p722 = pneg %p342
        %p723 = scmp.lt.s32.totalorder %s32, 1
        %s724 = scalar_select %p723, %s32, 1
        %s725 = scalar_lea.vmem %s13, %s724
        %p726 = pneg %p371
        %p727 = pneg %p368
        %p728 = scmp.lt.s32.totalorder %s32, 1
        %s729 = scalar_select %p728, %s32, 1
        %s730 = scalar_lea.vmem %s14, %s729
        %p731 = pneg %p397
        %p732 = pneg %p394
        %p733 = scmp.lt.s32.totalorder %s32, 1
        %s734 = scalar_select %p733, %s32, 1
        %s735 = scalar_lea.vmem %s15, %s734
        %p736 = pneg %p423
        %p737 = pneg %p420
        %p738 = pneg %p444
        %p739 = pneg %p441
        %p740 = pneg %p465
        %p741 = pneg %p462
        %p742 = pneg %p486
        %p743 = pneg %p483
        %p744 = pneg %p507
        %p745 = pneg %p504
        %p746 = pneg %p528
        %p747 = pneg %p525
        %p748 = scmp.lt.s32.totalorder %s32, 1
        %s749 = scalar_select %p748, %s32, 1
        %s750 = smul.addr %s749, 48
        %s751 = smul.addr %s750, 4
        %s752 = scalar_lea.vmem %s4, %s751
        %p753 = scmp.lt.s32.totalorder %s32, 1
        %s754 = scalar_select %p753, %s32, 1
        %s755 = smul.addr %s754, 3
        %s756 = scalar_lea.vmem %s5, %s755
        %p757 = scmp.lt.s32.totalorder %s32, 1
        %s758 = scalar_select %p757, %s32, 1
        %s759 = smul.addr %s758, 16
        %s760 = smul.addr %s759, 4
        %s761 = scalar_lea.vmem %s6, %s760
        %p762 = scmp.lt.s32.totalorder %s32, 1
        %s763 = scalar_select %p762, %s32, 1
        %s764 = scalar_lea.vmem %s7, %s763
        %p765 = scmp.lt.s32.totalorder %s32, 1
        %s766 = scalar_select %p765, %s32, 1
        %s767 = scalar_lea.vmem %s8, %s766
        %p768 = scmp.lt.s32.totalorder %s32, 1
        %s769 = scalar_select %p768, %s32, 1
        %s770 = scalar_lea.vmem %s9, %s769
        %p771 = scmp.lt.s32.totalorder %s32, 1
        %s772 = scalar_select %p771, %s32, 1
        %s773 = smul.addr %s772, 64
        %s774 = smul.addr %s773, 4
        %s775 = scalar_lea.vmem %s10, %s774
        %p776 = scmp.lt.s32.totalorder %s32, 1
        %s777 = scalar_select %p776, %s32, 1
        %s778 = smul.addr %s777, 4
        %s779 = scalar_lea.vmem %s11, %s778
        %p780 = scmp.lt.s32.totalorder %s32, 1
        %s781 = scalar_select %p780, %s32, 1
        %s782 = smul.addr %s781, 64
        %s783 = smul.addr %s782, 4
        %s784 = scalar_lea.vmem %s12, %s783
        %p785 = scmp.lt.s32.totalorder %s32, 1
        %s786 = scalar_select %p785, %s32, 1
        %s787 = scalar_lea.vmem %s13, %s786
        %p788 = scmp.lt.s32.totalorder %s32, 1
        %s789 = scalar_select %p788, %s32, 1
        %s790 = scalar_lea.vmem %s14, %s789
        %p791 = scmp.lt.s32.totalorder %s32, 1
        %s792 = scalar_select %p791, %s32, 1
        %s793 = scalar_lea.vmem %s15, %s792
        %p795 = scmp.eq.s32.totalorder %s32, 0
        // Predicated region
        $region101: #{forward.1} parent=99 // pred_check
          %p796 = pneg %p795
        $region102: #{forward.1} parent=99 // pred_check_branch
          %798 = sbr.rel (%p796) target = $region104
        $region103: #{forward.1} parent=99 // pred_region
          %v799 = vld [vmem:[%s0] sm:$0xff]
          %v800 = vld [vmem:[%s0 + $0x8] sm:$0xff]
          %v801 = vld [vmem:[%s0 + $0x10] sm:$0xff]
          %v802 = vld [vmem:[%s0 + $0x18] sm:$0xff]
          %v803 = vld [vmem:[%s0 + $0x20] sm:$0xff]
          %v804 = vld [vmem:[%s0 + $0x28] sm:$0xff]
          %v805 = vld [vmem:[%s0 + $0x30] sm:$0xff]
          %v806 = vld [vmem:[%s0 + $0x38] sm:$0xff]
          %v807 = vld [vmem:[%s0 + $0x40] sm:$0xff]
          %v808 = vld [vmem:[%s0 + $0x48] sm:$0xff]
          %v809 = vld [vmem:[%s0 + $0x50] sm:$0xff]
          %v810 = vld [vmem:[%s0 + $0x58] sm:$0xff]
          %v811 = vld [vmem:[%s0 + $0x60] sm:$0xff]
          %v812 = vld [vmem:[%s0 + $0x68] sm:$0xff]
          %v813 = vld [vmem:[%s0 + $0x70] sm:$0xff]
          %v814 = vld [vmem:[%s0 + $0x78] sm:$0xff]
          %v815 = vld [vmem:[%s2] sm:$0x1]
          %v816 = vld [vmem:[%s3] sm:$0x1]
          %817 = vadd.xlane.f32.xlu0 %v799
          %v818 = vpop.xlane.xlu0 %817
          %819 = vadd.xlane.f32.xlu0 %v800
          %v820 = vpop.xlane.xlu0 %819
          %821 = vadd.xlane.f32.xlu0 %v801
          %v822 = vpop.xlane.xlu0 %821
          %823 = vadd.xlane.f32.xlu0 %v802
          %v824 = vpop.xlane.xlu0 %823
          %825 = vadd.xlane.f32.xlu0 %v803
          %v826 = vpop.xlane.xlu0 %825
          %827 = vadd.xlane.f32.xlu0 %v804
          %v828 = vpop.xlane.xlu0 %827
          %829 = vadd.xlane.f32.xlu0 %v805
          %v830 = vpop.xlane.xlu0 %829
          %831 = vadd.xlane.f32.xlu0 %v806
          %v832 = vpop.xlane.xlu0 %831
          %833 = vadd.xlane.f32.xlu0 %v807
          %v834 = vpop.xlane.xlu0 %833
          %835 = vadd.xlane.f32.xlu0 %v808
          %v836 = vpop.xlane.xlu0 %835
          %837 = vadd.xlane.f32.xlu0 %v809
          %v838 = vpop.xlane.xlu0 %837
          %839 = vadd.xlane.f32.xlu0 %v810
          %v840 = vpop.xlane.xlu0 %839
          %841 = vadd.xlane.f32.xlu0 %v811
          %v842 = vpop.xlane.xlu0 %841
          %843 = vadd.xlane.f32.xlu0 %v812
          %v844 = vpop.xlane.xlu0 %843
          %845 = vadd.xlane.f32.xlu0 %v813
          %v846 = vpop.xlane.xlu0 %845
          %847 = vadd.xlane.f32.xlu0 %v814
          %v848 = vpop.xlane.xlu0 %847
          %v849 = vrcp.pop 128.0
          %v850 = vmul.f32 %v818, %v849
          %v851 = vmul.f32 %v820, %v849
          %v852 = vmul.f32 %v822, %v849
          %v853 = vmul.f32 %v824, %v849
          %v854 = vmul.f32 %v826, %v849
          %v855 = vmul.f32 %v828, %v849
          %v856 = vmul.f32 %v830, %v849
          %v857 = vmul.f32 %v832, %v849
          %v858 = vmul.f32 %v834, %v849
          %v859 = vmul.f32 %v836, %v849
          %v860 = vmul.f32 %v838, %v849
          %v861 = vmul.f32 %v840, %v849
          %v862 = vmul.f32 %v842, %v849
          %v863 = vmul.f32 %v844, %v849
          %v864 = vmul.f32 %v846, %v849
          %v865 = vmul.f32 %v848, %v849
          %v866 = vsub.f32 %v799, %v850
          %v867 = vsub.f32 %v800, %v851
          %v868 = vsub.f32 %v801, %v852
          %v869 = vsub.f32 %v802, %v853
          %v870 = vsub.f32 %v803, %v854
          %v871 = vsub.f32 %v804, %v855
          %v872 = vsub.f32 %v805, %v856
          %v873 = vsub.f32 %v806, %v857
          %v874 = vsub.f32 %v807, %v858
          %v875 = vsub.f32 %v808, %v859
          %v876 = vsub.f32 %v809, %v860
          %v877 = vsub.f32 %v810, %v861
          %v878 = vsub.f32 %v811, %v862
          %v879 = vsub.f32 %v812, %v863
          %v880 = vsub.f32 %v813, %v864
          %v881 = vsub.f32 %v814, %v865
          %v882 = vmul.f32 %v866, %v866
          %v883 = vmul.f32 %v867, %v867
          %v884 = vmul.f32 %v868, %v868
          %v885 = vmul.f32 %v869, %v869
          %v886 = vmul.f32 %v870, %v870
          %v887 = vmul.f32 %v871, %v871
          %v888 = vmul.f32 %v872, %v872
          %v889 = vmul.f32 %v873, %v873
          %v890 = vmul.f32 %v874, %v874
          %v891 = vmul.f32 %v875, %v875
          %v892 = vmul.f32 %v876, %v876
          %v893 = vmul.f32 %v877, %v877
          %v894 = vmul.f32 %v878, %v878
          %v895 = vmul.f32 %v879, %v879
          %v896 = vmul.f32 %v880, %v880
          %v897 = vmul.f32 %v881, %v881
          %898 = vadd.xlane.f32.xlu0 %v882
          %v899 = vpop.xlane.xlu0 %898
          %900 = vadd.xlane.f32.xlu0 %v883
          %v901 = vpop.xlane.xlu0 %900
          %902 = vadd.xlane.f32.xlu0 %v884
          %v903 = vpop.xlane.xlu0 %902
          %904 = vadd.xlane.f32.xlu0 %v885
          %v905 = vpop.xlane.xlu0 %904
          %906 = vadd.xlane.f32.xlu0 %v886
          %v907 = vpop.xlane.xlu0 %906
          %908 = vadd.xlane.f32.xlu0 %v887
          %v909 = vpop.xlane.xlu0 %908
          %910 = vadd.xlane.f32.xlu0 %v888
          %v911 = vpop.xlane.xlu0 %910
          %912 = vadd.xlane.f32.xlu0 %v889
          %v913 = vpop.xlane.xlu0 %912
          %914 = vadd.xlane.f32.xlu0 %v890
          %v915 = vpop.xlane.xlu0 %914
          %916 = vadd.xlane.f32.xlu0 %v891
          %v917 = vpop.xlane.xlu0 %916
          %918 = vadd.xlane.f32.xlu0 %v892
          %v919 = vpop.xlane.xlu0 %918
          %920 = vadd.xlane.f32.xlu0 %v893
          %v921 = vpop.xlane.xlu0 %920
          %922 = vadd.xlane.f32.xlu0 %v894
          %v923 = vpop.xlane.xlu0 %922
          %924 = vadd.xlane.f32.xlu0 %v895
          %v925 = vpop.xlane.xlu0 %924
          %926 = vadd.xlane.f32.xlu0 %v896
          %v927 = vpop.xlane.xlu0 %926
          %928 = vadd.xlane.f32.xlu0 %v897
          %v929 = vpop.xlane.xlu0 %928
          %v930 = vmul.f32 %v899, %v849
          %v931 = vmul.f32 %v901, %v849
          %v932 = vmul.f32 %v903, %v849
          %v933 = vmul.f32 %v905, %v849
          %v934 = vmul.f32 %v907, %v849
          %v935 = vmul.f32 %v909, %v849
          %v936 = vmul.f32 %v911, %v849
          %v937 = vmul.f32 %v913, %v849
          %v938 = vmul.f32 %v915, %v849
          %v939 = vmul.f32 %v917, %v849
          %v940 = vmul.f32 %v919, %v849
          %v941 = vmul.f32 %v921, %v849
          %v942 = vmul.f32 %v923, %v849
          %v943 = vmul.f32 %v925, %v849
          %v944 = vmul.f32 %v927, %v849
          %v945 = vmul.f32 %v929, %v849
          %v946 = vadd.f32 %v930, 1e-12
          %v947 = vadd.f32 %v931, 1e-12
          %v948 = vadd.f32 %v932, 1e-12
          %v949 = vadd.f32 %v933, 1e-12
          %v950 = vadd.f32 %v934, 1e-12
          %v951 = vadd.f32 %v935, 1e-12
          %v952 = vadd.f32 %v936, 1e-12
          %v953 = vadd.f32 %v937, 1e-12
          %v954 = vadd.f32 %v938, 1e-12
          %v955 = vadd.f32 %v939, 1e-12
          %v956 = vadd.f32 %v940, 1e-12
          %v957 = vadd.f32 %v941, 1e-12
          %v958 = vadd.f32 %v942, 1e-12
          %v959 = vadd.f32 %v943, 1e-12
          %v960 = vadd.f32 %v944, 1e-12
          %v961 = vadd.f32 %v945, 1e-12
          %v962 = vrsqrt.pop %v946
          %v963 = vrsqrt.pop %v947
          %v964 = vrsqrt.pop %v948
          %v965 = vrsqrt.pop %v949
          %v966 = vrsqrt.pop %v950
          %v967 = vrsqrt.pop %v951
          %v968 = vrsqrt.pop %v952
          %v969 = vrsqrt.pop %v953
          %v970 = vrsqrt.pop %v954
          %v971 = vrsqrt.pop %v955
          %v972 = vrsqrt.pop %v956
          %v973 = vrsqrt.pop %v957
          %v974 = vrsqrt.pop %v958
          %v975 = vrsqrt.pop %v959
          %v976 = vrsqrt.pop %v960
          %v977 = vrsqrt.pop %v961
          %v978 = vmul.f32 %v866, %v962
          %v979 = vmul.f32 %v867, %v963
          %v980 = vmul.f32 %v868, %v964
          %v981 = vmul.f32 %v869, %v965
          %v982 = vmul.f32 %v870, %v966
          %v983 = vmul.f32 %v871, %v967
          %v984 = vmul.f32 %v872, %v968
          %v985 = vmul.f32 %v873, %v969
          %v986 = vmul.f32 %v874, %v970
          %v987 = vmul.f32 %v875, %v971
          %v988 = vmul.f32 %v876, %v972
          %v989 = vmul.f32 %v877, %v973
          %v990 = vmul.f32 %v878, %v974
          %v991 = vmul.f32 %v879, %v975
          %v992 = vmul.f32 %v880, %v976
          %v993 = vmul.f32 %v881, %v977
          %v995 = vlaneseq
          %v996 = vshrl.u32 %v995, 7
          %v997 = vsub.s32 0, %v996
          %v998 = vrot.slane %v815, %v997
          %v1000 = vmul.f32 %v978, %v998
          %v1001 = vmul.f32 %v979, %v998
          %v1002 = vmul.f32 %v980, %v998
          %v1003 = vmul.f32 %v981, %v998
          %v1004 = vmul.f32 %v982, %v998
          %v1005 = vmul.f32 %v983, %v998
          %v1006 = vmul.f32 %v984, %v998
          %v1007 = vmul.f32 %v985, %v998
          %v1008 = vmul.f32 %v986, %v998
          %v1009 = vmul.f32 %v987, %v998
          %v1010 = vmul.f32 %v988, %v998
          %v1011 = vmul.f32 %v989, %v998
          %v1012 = vmul.f32 %v990, %v998
          %v1013 = vmul.f32 %v991, %v998
          %v1014 = vmul.f32 %v992, %v998
          %v1015 = vmul.f32 %v993, %v998
          %v1017 = vlaneseq
          %v1018 = vshrl.u32 %v1017, 7
          %v1019 = vsub.s32 0, %v1018
          %v1020 = vrot.slane %v816, %v1019
          %v1022 = vadd.f32 %v1000, %v1020
          %v1023 = vadd.f32 %v1001, %v1020
          %v1024 = vadd.f32 %v1002, %v1020
          %v1025 = vadd.f32 %v1003, %v1020
          %v1026 = vadd.f32 %v1004, %v1020
          %v1027 = vadd.f32 %v1005, %v1020
          %v1028 = vadd.f32 %v1006, %v1020
          %v1029 = vadd.f32 %v1007, %v1020
          %v1030 = vadd.f32 %v1008, %v1020
          %v1031 = vadd.f32 %v1009, %v1020
          %v1032 = vadd.f32 %v1010, %v1020
          %v1033 = vadd.f32 %v1011, %v1020
          %v1034 = vadd.f32 %v1012, %v1020
          %v1035 = vadd.f32 %v1013, %v1020
          %v1036 = vadd.f32 %v1014, %v1020
          %v1037 = vadd.f32 %v1015, %v1020
          %1038 = vst [vmem:[#allocation2] sm:$0xff] %v1022
          %1039 = vst [vmem:[#allocation2 + $0x8] sm:$0xff] %v1023
          %1040 = vst [vmem:[#allocation2 + $0x10] sm:$0xff] %v1024
          %1041 = vst [vmem:[#allocation2 + $0x18] sm:$0xff] %v1025
          %1042 = vst [vmem:[#allocation2 + $0x20] sm:$0xff] %v1026
          %1043 = vst [vmem:[#allocation2 + $0x28] sm:$0xff] %v1027
          %1044 = vst [vmem:[#allocation2 + $0x30] sm:$0xff] %v1028
          %1045 = vst [vmem:[#allocation2 + $0x38] sm:$0xff] %v1029
          %1046 = vst [vmem:[#allocation2 + $0x40] sm:$0xff] %v1030
          %1047 = vst [vmem:[#allocation2 + $0x48] sm:$0xff] %v1031
          %1048 = vst [vmem:[#allocation2 + $0x50] sm:$0xff] %v1032
          %1049 = vst [vmem:[#allocation2 + $0x58] sm:$0xff] %v1033
          %1050 = vst [vmem:[#allocation2 + $0x60] sm:$0xff] %v1034
          %1051 = vst [vmem:[#allocation2 + $0x68] sm:$0xff] %v1035
          %1052 = vst [vmem:[#allocation2 + $0x70] sm:$0xff] %v1036
          %1053 = vst [vmem:[#allocation2 + $0x78] sm:$0xff] %v1037
        $region104: #{forward.1} parent=99 // pred_fallthru
          _
        %v1054 = vld [vmem:[#allocation2] sm:$0xff]
        %v1055 = vld [vmem:[#allocation2 + $0x8] sm:$0xff]
        %v1056 = vld [vmem:[#allocation2 + $0x10] sm:$0xff]
        %v1057 = vld [vmem:[#allocation2 + $0x18] sm:$0xff]
        %v1058 = vld [vmem:[#allocation2 + $0x20] sm:$0xff]
        %v1059 = vld [vmem:[#allocation2 + $0x28] sm:$0xff]
        %v1060 = vld [vmem:[#allocation2 + $0x30] sm:$0xff]
        %v1061 = vld [vmem:[#allocation2 + $0x38] sm:$0xff]
        %v1062 = vld [vmem:[#allocation2 + $0x40] sm:$0xff]
        %v1063 = vld [vmem:[#allocation2 + $0x48] sm:$0xff]
        %v1064 = vld [vmem:[#allocation2 + $0x50] sm:$0xff]
        %v1065 = vld [vmem:[#allocation2 + $0x58] sm:$0xff]
        %v1066 = vld [vmem:[#allocation2 + $0x60] sm:$0xff]
        %v1067 = vld [vmem:[#allocation2 + $0x68] sm:$0xff]
        %v1068 = vld [vmem:[#allocation2 + $0x70] sm:$0xff]
        %v1069 = vld [vmem:[#allocation2 + $0x78] sm:$0xff]
        %v1070 = vpack.c.bf16 %v1055, %v1054
        %v1071 = vpack.c.bf16 %v1057, %v1056
        %v1072 = vpack.c.bf16 %v1059, %v1058
        %v1073 = vpack.c.bf16 %v1061, %v1060
        %v1074 = vpack.c.bf16 %v1063, %v1062
        %v1075 = vpack.c.bf16 %v1065, %v1064
        %v1076 = vpack.c.bf16 %v1067, %v1066
        %v1077 = vpack.c.bf16 %v1069, %v1068
        %v1078 = vld [vmem:[%s752] sm:$0xff]
        %v1079 = vld [vmem:[%s752 + $0x8] sm:$0xf]
        %v1080 = vld [vmem:[%s752 + $0xc] sm:$0xff]
        %v1081 = vld [vmem:[%s752 + $0x14] sm:$0xf]
        %v1082 = vld [vmem:[%s752 + $0x18] sm:$0xff]
        %v1083 = vld [vmem:[%s752 + $0x20] sm:$0xf]
        %v1084 = vld [vmem:[%s752 + $0x24] sm:$0xff]
        %v1085 = vld [vmem:[%s752 + $0x2c] sm:$0xf]
        %v1086 = vld [vmem:[%s752 + $0x30] sm:$0xff]
        %v1087 = vld [vmem:[%s752 + $0x38] sm:$0xf]
        %v1088 = vld [vmem:[%s752 + $0x3c] sm:$0xff]
        %v1089 = vld [vmem:[%s752 + $0x44] sm:$0xf]
        %v1090 = vld [vmem:[%s752 + $0x48] sm:$0xff]
        %v1091 = vld [vmem:[%s752 + $0x50] sm:$0xf]
        %v1092 = vld [vmem:[%s752 + $0x54] sm:$0xff]
        %v1093 = vld [vmem:[%s752 + $0x5c] sm:$0xf]
        %v1094 = vld [vmem:[%s752 + $0x60] sm:$0xff]
        %v1095 = vld [vmem:[%s752 + $0x68] sm:$0xf]
        %v1096 = vld [vmem:[%s752 + $0x6c] sm:$0xff]
        %v1097 = vld [vmem:[%s752 + $0x74] sm:$0xf]
        %v1098 = vld [vmem:[%s752 + $0x78] sm:$0xff]
        %v1099 = vld [vmem:[%s752 + $0x80] sm:$0xf]
        %v1100 = vld [vmem:[%s752 + $0x84] sm:$0xff]
        %v1101 = vld [vmem:[%s752 + $0x8c] sm:$0xf]
        %v1102 = vld [vmem:[%s752 + $0x90] sm:$0xff]
        %v1103 = vld [vmem:[%s752 + $0x98] sm:$0xf]
        %v1104 = vld [vmem:[%s752 + $0x9c] sm:$0xff]
        %v1105 = vld [vmem:[%s752 + $0xa4] sm:$0xf]
        %v1106 = vld [vmem:[%s752 + $0xa8] sm:$0xff]
        %v1107 = vld [vmem:[%s752 + $0xb0] sm:$0xf]
        %v1108 = vld [vmem:[%s752 + $0xb4] sm:$0xff]
        %v1109 = vld [vmem:[%s752 + $0xbc] sm:$0xf]
        %v1110 = vld [vmem:[%s756] sm:$0x7]
        %v1112 = vlaneseq
        %v1113 = vshrl.u32 %v1112, 7
        %v1114 = vsub.s32 0, %v1113
        %v1115 = vrot.slane %v1110, %v1114
        %v1116 = vlaneseq
        %v1117 = vshrl.u32 %v1116, 7
        %v1118 = vsub.s32 1, %v1117
        %v1119 = vrot.slane %v1110, %v1118
        %v1120 = vlaneseq
        %v1121 = vshrl.u32 %v1120, 7
        %v1122 = vsub.s32 2, %v1121
        %v1123 = vrot.slane %v1110, %v1122
        %v1159 = vunpack.c.l.b16 %v1078
        %v1160 = vunpack.c.h.b16 %v1078
        %v1161 = vunpack.c.l.b16 %v1079
        %v1162 = vunpack.c.l.b16 %v1080
        %v1163 = vunpack.c.h.b16 %v1080
        %v1164 = vunpack.c.l.b16 %v1081
        %v1165 = vunpack.c.l.b16 %v1082
        %v1166 = vunpack.c.h.b16 %v1082
        %v1167 = vunpack.c.l.b16 %v1083
        %v1168 = vunpack.c.l.b16 %v1084
        %v1169 = vunpack.c.h.b16 %v1084
        %v1170 = vunpack.c.l.b16 %v1085
        %v1171 = vunpack.c.l.b16 %v1086
        %v1172 = vunpack.c.h.b16 %v1086
        %v1173 = vunpack.c.l.b16 %v1087
        %v1174 = vunpack.c.l.b16 %v1088
        %v1175 = vunpack.c.h.b16 %v1088
        %v1176 = vunpack.c.l.b16 %v1089
        %v1177 = vunpack.c.l.b16 %v1090
        %v1178 = vunpack.c.h.b16 %v1090
        %v1179 = vunpack.c.l.b16 %v1091
        %v1180 = vunpack.c.l.b16 %v1092
        %v1181 = vunpack.c.h.b16 %v1092
        %v1182 = vunpack.c.l.b16 %v1093
        %v1183 = vunpack.c.l.b16 %v1094
        %v1184 = vunpack.c.h.b16 %v1094
        %v1185 = vunpack.c.l.b16 %v1095
        %v1186 = vunpack.c.l.b16 %v1096
        %v1187 = vunpack.c.h.b16 %v1096
        %v1188 = vunpack.c.l.b16 %v1097
        %v1189 = vunpack.c.l.b16 %v1098
        %v1190 = vunpack.c.h.b16 %v1098
        %v1191 = vunpack.c.l.b16 %v1099
        %v1192 = vunpack.c.l.b16 %v1100
        %v1193 = vunpack.c.h.b16 %v1100
        %v1194 = vunpack.c.l.b16 %v1101
        %v1195 = vunpack.c.l.b16 %v1102
        %v1196 = vunpack.c.h.b16 %v1102
        %v1197 = vunpack.c.l.b16 %v1103
        %v1198 = vunpack.c.l.b16 %v1104
        %v1199 = vunpack.c.h.b16 %v1104
        %v1200 = vunpack.c.l.b16 %v1105
        %v1201 = vunpack.c.l.b16 %v1106
        %v1202 = vunpack.c.h.b16 %v1106
        %v1203 = vunpack.c.l.b16 %v1107
        %v1204 = vunpack.c.l.b16 %v1108
        %v1205 = vunpack.c.h.b16 %v1108
        %v1206 = vunpack.c.l.b16 %v1109
        %v1207 = vpack.c.b16 %v1162, %v1159
        %v1208 = vpack.c.b16 %v1163, %v1160
        %v1209 = vpack.c.b16 %v1164, %v1161
        %v1210 = vpack.c.b16 %v1168, %v1165
        %v1211 = vpack.c.b16 %v1169, %v1166
        %v1212 = vpack.c.b16 %v1170, %v1167
        %v1213 = vpack.c.b16 %v1174, %v1171
        %v1214 = vpack.c.b16 %v1175, %v1172
        %v1215 = vpack.c.b16 %v1176, %v1173
        %v1216 = vpack.c.b16 %v1180, %v1177
        %v1217 = vpack.c.b16 %v1181, %v1178
        %v1218 = vpack.c.b16 %v1182, %v1179
        %v1219 = vpack.c.b16 %v1186, %v1183
        %v1220 = vpack.c.b16 %v1187, %v1184
        %v1221 = vpack.c.b16 %v1188, %v1185
        %v1222 = vpack.c.b16 %v1192, %v1189
        %v1223 = vpack.c.b16 %v1193, %v1190
        %v1224 = vpack.c.b16 %v1194, %v1191
        %v1225 = vpack.c.b16 %v1198, %v1195
        %v1226 = vpack.c.b16 %v1199, %v1196
        %v1227 = vpack.c.b16 %v1200, %v1197
        %v1228 = vpack.c.b16 %v1204, %v1201
        %v1229 = vpack.c.b16 %v1205, %v1202
        %v1230 = vpack.c.b16 %v1206, %v1203
        %1255 = vmatprep.subr.bf16.mxu0 %v1229
        %1256 = vmatpush1.bf16.msra.mxu0 %v1228
        %1257 = vmatprep.subr.bf16.mxu0 %v1226
        %1258 = vmatpush1.bf16.msra.mxu0 %v1225
        %1259 = vmatprep.subr.bf16.mxu0 %v1223
        %1260 = vmatpush1.bf16.msra.mxu0 %v1222
        %1261 = vmatprep.subr.bf16.mxu0 %v1220
        %1262 = vmatpush1.bf16.msra.mxu0 %v1219
        %1263 = vmatprep.subr.bf16.mxu0 %v1217
        %1264 = vmatpush1.bf16.msra.mxu0 %v1216
        %1265 = vmatprep.subr.bf16.mxu0 %v1214
        %1266 = vmatpush1.bf16.msra.mxu0 %v1213
        %1267 = vmatprep.subr.bf16.mxu0 %v1211
        %1268 = vmatpush1.bf16.msra.mxu0 %v1210
        %1269 = vmatprep.subr.bf16.mxu0 %v1208
        %1270 = vmatpush1.bf16.msra.mxu0 %v1207
        %1271 = vmatprep.subr.bf16.mxu0 0
        %1272 = vmatpush2.bf16.msra.mxu0 0
        %1273 = vmatprep.subr.bf16.mxu0 0
        %1274 = vmatpush2.bf16.msra.mxu0 0
        %1275 = vmatprep.subr.bf16.mxu0 0
        %1276 = vmatpush2.bf16.msra.mxu0 0
        %1277 = vmatprep.subr.bf16.mxu0 0
        %1278 = vmatpush2.bf16.msra.mxu0 0
        %1279 = vmatprep.subr.bf16.mxu0 0
        %1280 = vmatpush2.bf16.msra.mxu0 0
        %1281 = vmatprep.subr.bf16.mxu0 0
        %1282 = vmatpush2.bf16.msra.mxu0 0
        %1283 = vmatprep.subr.bf16.mxu0 0
        %1284 = vmatpush2.bf16.msra.mxu0 0
        %1285 = vmatprep.subr.bf16.mxu0 0
        %1286 = vmatpush2.bf16.msra.mxu0 0
        %1287 = vmatprep.mubr.bf16.mxu0 0
        %1288 = vmatmul.mubr.bf16.gmra.mxu0 %v1070
        %v1289 = vpop.f32.mrf.mxu0
        %v1290 = vadd.f32 %v1115, %v1289
        %v1291 = vpop.f32.mrf.mxu0
        %v1292 = vadd.f32 %v1119, %v1291
        %v1293 = vpop.f32.mrf.mxu0
        %v1294 = vadd.f32 %v1115, %v1293
        %v1295 = vpop.f32.mrf.mxu0
        %v1296 = vadd.f32 %v1119, %v1295
        %1297 = vmatprep.mubr.bf16.mxu0 0
        %1298 = vmatmul.mubr.bf16.gmra.mxu0 %v1071
        %v1299 = vpop.f32.mrf.mxu0
        %v1300 = vadd.f32 %v1115, %v1299
        %v1301 = vpop.f32.mrf.mxu0
        %v1302 = vadd.f32 %v1119, %v1301
        %v1303 = vpop.f32.mrf.mxu0
        %v1304 = vadd.f32 %v1115, %v1303
        %v1305 = vpop.f32.mrf.mxu0
        %v1306 = vadd.f32 %v1119, %v1305
        %1307 = vmatprep.mubr.bf16.mxu0 0
        %1308 = vmatmul.mubr.bf16.gmra.mxu0 %v1072
        %v1309 = vpop.f32.mrf.mxu0
        %v1310 = vadd.f32 %v1115, %v1309
        %v1311 = vpop.f32.mrf.mxu0
        %v1312 = vadd.f32 %v1119, %v1311
        %v1313 = vpop.f32.mrf.mxu0
        %v1314 = vadd.f32 %v1115, %v1313
        %v1315 = vpop.f32.mrf.mxu0
        %v1316 = vadd.f32 %v1119, %v1315
        %1317 = vmatprep.mubr.bf16.mxu0 0
        %1318 = vmatmul.mubr.bf16.gmra.mxu0 %v1073
        %v1319 = vpop.f32.mrf.mxu0
        %v1320 = vadd.f32 %v1115, %v1319
        %v1321 = vpop.f32.mrf.mxu0
        %v1322 = vadd.f32 %v1119, %v1321
        %v1323 = vpop.f32.mrf.mxu0
        %v1324 = vadd.f32 %v1115, %v1323
        %v1325 = vpop.f32.mrf.mxu0
        %v1326 = vadd.f32 %v1119, %v1325
        %1327 = vmatprep.mubr.bf16.mxu0 0
        %1328 = vmatmul.mubr.bf16.gmra.mxu0 %v1074
        %v1329 = vpop.f32.mrf.mxu0
        %v1330 = vadd.f32 %v1115, %v1329
        %v1331 = vpop.f32.mrf.mxu0
        %v1332 = vadd.f32 %v1119, %v1331
        %v1333 = vpop.f32.mrf.mxu0
        %v1334 = vadd.f32 %v1115, %v1333
        %v1335 = vpop.f32.mrf.mxu0
        %v1336 = vadd.f32 %v1119, %v1335
        %1337 = vmatprep.mubr.bf16.mxu0 0
        %1338 = vmatmul.mubr.bf16.gmra.mxu0 %v1075
        %v1339 = vpop.f32.mrf.mxu0
        %v1340 = vadd.f32 %v1115, %v1339
        %v1341 = vpop.f32.mrf.mxu0
        %v1342 = vadd.f32 %v1119, %v1341
        %v1343 = vpop.f32.mrf.mxu0
        %v1344 = vadd.f32 %v1115, %v1343
        %v1345 = vpop.f32.mrf.mxu0
        %v1346 = vadd.f32 %v1119, %v1345
        %1347 = vmatprep.mubr.bf16.mxu0 0
        %1348 = vmatmul.mubr.bf16.gmra.mxu0 %v1076
        %v1349 = vpop.f32.mrf.mxu0
        %v1350 = vadd.f32 %v1115, %v1349
        %v1351 = vpop.f32.mrf.mxu0
        %v1352 = vadd.f32 %v1119, %v1351
        %v1353 = vpop.f32.mrf.mxu0
        %v1354 = vadd.f32 %v1115, %v1353
        %v1355 = vpop.f32.mrf.mxu0
        %v1356 = vadd.f32 %v1119, %v1355
        %1357 = vmatprep.mubr.bf16.mxu0 0
        %1358 = vmatmul.mubr.bf16.gmra.mxu0 %v1077
        %v1359 = vpop.f32.mrf.mxu0
        %v1360 = vadd.f32 %v1115, %v1359
        %v1361 = vpop.f32.mrf.mxu0
        %v1362 = vadd.f32 %v1119, %v1361
        %v1363 = vpop.f32.mrf.mxu0
        %v1364 = vadd.f32 %v1115, %v1363
        %v1365 = vpop.f32.mrf.mxu0
        %v1366 = vadd.f32 %v1119, %v1365
        %1367 = vdwg.mxu0
        %1368 = vmatprep.subr.bf16.mxu0 0
        %1369 = vmatpush1.bf16.msra.mxu0 %v1230
        %1370 = vmatprep.subr.bf16.mxu0 0
        %1371 = vmatpush1.bf16.msra.mxu0 %v1227
        %1372 = vmatprep.subr.bf16.mxu0 0
        %1373 = vmatpush1.bf16.msra.mxu0 %v1224
        %1374 = vmatprep.subr.bf16.mxu0 0
        %1375 = vmatpush1.bf16.msra.mxu0 %v1221
        %1376 = vmatprep.subr.bf16.mxu0 0
        %1377 = vmatpush1.bf16.msra.mxu0 %v1218
        %1378 = vmatprep.subr.bf16.mxu0 0
        %1379 = vmatpush1.bf16.msra.mxu0 %v1215
        %1380 = vmatprep.subr.bf16.mxu0 0
        %1381 = vmatpush1.bf16.msra.mxu0 %v1212
        %1382 = vmatprep.subr.bf16.mxu0 0
        %1383 = vmatpush1.bf16.msra.mxu0 %v1209
        %1384 = vmatprep.subr.bf16.mxu0 0
        %1385 = vmatpush2.bf16.msra.mxu0 0
        %1386 = vmatprep.subr.bf16.mxu0 0
        %1387 = vmatpush2.bf16.msra.mxu0 0
        %1388 = vmatprep.subr.bf16.mxu0 0
        %1389 = vmatpush2.bf16.msra.mxu0 0
        %1390 = vmatprep.subr.bf16.mxu0 0
        %1391 = vmatpush2.bf16.msra.mxu0 0
        %1392 = vmatprep.subr.bf16.mxu0 0
        %1393 = vmatpush2.bf16.msra.mxu0 0
        %1394 = vmatprep.subr.bf16.mxu0 0
        %1395 = vmatpush2.bf16.msra.mxu0 0
        %1396 = vmatprep.subr.bf16.mxu0 0
        %1397 = vmatpush2.bf16.msra.mxu0 0
        %1398 = vmatprep.subr.bf16.mxu0 0
        %1399 = vmatpush2.bf16.msra.mxu0 0
        %1400 = vmatprep.mubr.bf16.mxu0 0
        %1401 = vmatmul.mubr.bf16.gmra.mxu0 %v1070
        %v1402 = vpop.f32.mrf.mxu0
        %v1403 = vadd.f32 %v1123, %v1402
        %v1404 = vpop.f32.mrf.mxu0
        %v1405 = vpop.f32.mrf.mxu0
        %v1406 = vadd.f32 %v1123, %v1405
        %v1407 = vpop.f32.mrf.mxu0
        %1408 = vmatprep.mubr.bf16.mxu0 0
        %1409 = vmatmul.mubr.bf16.gmra.mxu0 %v1071
        %v1410 = vpop.f32.mrf.mxu0
        %v1411 = vadd.f32 %v1123, %v1410
        %v1412 = vpop.f32.mrf.mxu0
        %v1413 = vpop.f32.mrf.mxu0
        %v1414 = vadd.f32 %v1123, %v1413
        %v1415 = vpop.f32.mrf.mxu0
        %1416 = vmatprep.mubr.bf16.mxu0 0
        %1417 = vmatmul.mubr.bf16.gmra.mxu0 %v1072
        %v1418 = vpop.f32.mrf.mxu0
        %v1419 = vadd.f32 %v1123, %v1418
        %v1420 = vpop.f32.mrf.mxu0
        %v1421 = vpop.f32.mrf.mxu0
        %v1422 = vadd.f32 %v1123, %v1421
        %v1423 = vpop.f32.mrf.mxu0
        %1424 = vmatprep.mubr.bf16.mxu0 0
        %1425 = vmatmul.mubr.bf16.gmra.mxu0 %v1073
        %v1426 = vpop.f32.mrf.mxu0
        %v1427 = vadd.f32 %v1123, %v1426
        %v1428 = vpop.f32.mrf.mxu0
        %v1429 = vpop.f32.mrf.mxu0
        %v1430 = vadd.f32 %v1123, %v1429
        %v1431 = vpop.f32.mrf.mxu0
        %1432 = vmatprep.mubr.bf16.mxu0 0
        %1433 = vmatmul.mubr.bf16.gmra.mxu0 %v1074
        %v1434 = vpop.f32.mrf.mxu0
        %v1435 = vadd.f32 %v1123, %v1434
        %v1436 = vpop.f32.mrf.mxu0
        %v1437 = vpop.f32.mrf.mxu0
        %v1438 = vadd.f32 %v1123, %v1437
        %v1439 = vpop.f32.mrf.mxu0
        %1440 = vmatprep.mubr.bf16.mxu0 0
        %1441 = vmatmul.mubr.bf16.gmra.mxu0 %v1075
        %v1442 = vpop.f32.mrf.mxu0
        %v1443 = vadd.f32 %v1123, %v1442
        %v1444 = vpop.f32.mrf.mxu0
        %v1445 = vpop.f32.mrf.mxu0
        %v1446 = vadd.f32 %v1123, %v1445
        %v1447 = vpop.f32.mrf.mxu0
        %1448 = vmatprep.mubr.bf16.mxu0 0
        %1449 = vmatmul.mubr.bf16.gmra.mxu0 %v1076
        %v1450 = vpop.f32.mrf.mxu0
        %v1451 = vadd.f32 %v1123, %v1450
        %v1452 = vpop.f32.mrf.mxu0
        %v1453 = vpop.f32.mrf.mxu0
        %v1454 = vadd.f32 %v1123, %v1453
        %v1455 = vpop.f32.mrf.mxu0
        %1456 = vmatprep.mubr.bf16.mxu0 0
        %1457 = vmatmul.mubr.bf16.gmra.mxu0 %v1077
        %v1458 = vpop.f32.mrf.mxu0
        %v1459 = vadd.f32 %v1123, %v1458
        %v1460 = vpop.f32.mrf.mxu0
        %v1461 = vpop.f32.mrf.mxu0
        %v1462 = vadd.f32 %v1123, %v1461
        %v1463 = vpop.f32.mrf.mxu0
        %1464 = vdwg.mxu0
        %v1465 = vpack.c.bf16 %v1294, %v1290
        %v1466 = vpack.c.bf16 %v1296, %v1292
        %v1467 = vpack.c.bf16 %v1406, %v1403
        %v1468 = vpack.c.bf16 %v1304, %v1300
        %v1469 = vpack.c.bf16 %v1306, %v1302
        %v1470 = vpack.c.bf16 %v1414, %v1411
        %v1471 = vpack.c.bf16 %v1314, %v1310
        %v1472 = vpack.c.bf16 %v1316, %v1312
        %v1473 = vpack.c.bf16 %v1422, %v1419
        %v1474 = vpack.c.bf16 %v1324, %v1320
        %v1475 = vpack.c.bf16 %v1326, %v1322
        %v1476 = vpack.c.bf16 %v1430, %v1427
        %v1477 = vpack.c.bf16 %v1334, %v1330
        %v1478 = vpack.c.bf16 %v1336, %v1332
        %v1479 = vpack.c.bf16 %v1438, %v1435
        %v1480 = vpack.c.bf16 %v1344, %v1340
        %v1481 = vpack.c.bf16 %v1346, %v1342
        %v1482 = vpack.c.bf16 %v1446, %v1443
        %v1483 = vpack.c.bf16 %v1354, %v1350
        %v1484 = vpack.c.bf16 %v1356, %v1352
        %v1485 = vpack.c.bf16 %v1454, %v1451
        %v1486 = vpack.c.bf16 %v1364, %v1360
        %v1487 = vpack.c.bf16 %v1366, %v1362
        %v1488 = vpack.c.bf16 %v1462, %v1459
        %v1489 = vld [vmem:[%s1] sm:$0x1]
        %v1490 = vlaneseq
        %v1491 = vshrl.u32 %v1490, 7
        %v1492 = vsub.s32 0, %v1491
        %v1493 = vrot.slane %v1489, %v1492
        %vm1494 = vcmask 261120
        %v1496 = vsel %vm1494, %v1465, 0
        %v1499 = vsel %vm1494, %v1468, 0
        %v1502 = vsel %vm1494, %v1466, 0
        %v1505 = vsel %vm1494, %v1469, 0
        %1507 = vmatprep.subr.bf16.mxu0 0
        %1508 = vmatpush1.bf16.xpose.msra.mxu0 0
        %1509 = vmatprep.subr.bf16.mxu0 0
        %1510 = vmatpush1.bf16.xpose.msra.mxu0 0
        %1511 = vmatprep.subr.bf16.mxu0 0
        %1512 = vmatpush1.bf16.xpose.msra.mxu0 0
        %1513 = vmatprep.subr.bf16.mxu0 0
        %1514 = vmatpush1.bf16.xpose.msra.mxu0 0
        %1515 = vmatprep.subr.bf16.mxu0 0
        %1516 = vmatpush1.bf16.xpose.msra.mxu0 0
        %1517 = vmatprep.subr.bf16.mxu0 0
        %1518 = vmatpush1.bf16.xpose.msra.mxu0 0
        %1519 = vmatprep.subr.bf16.mxu0 0
        %1520 = vmatpush1.bf16.xpose.msra.mxu0 %v1505
        %1521 = vmatprep.subr.bf16.mxu0 0
        %1522 = vmatpush1.bf16.xpose.msra.mxu0 %v1502
        %1523 = vmatprep.subr.bf16.mxu0 0
        %1524 = vmatpush2.bf16.xpose.msra.mxu0 0
        %1525 = vmatprep.subr.bf16.mxu0 0
        %1526 = vmatpush2.bf16.xpose.msra.mxu0 0
        %1527 = vmatprep.subr.bf16.mxu0 0
        %1528 = vmatpush2.bf16.xpose.msra.mxu0 0
        %1529 = vmatprep.subr.bf16.mxu0 0
        %1530 = vmatpush2.bf16.xpose.msra.mxu0 0
        %1531 = vmatprep.subr.bf16.mxu0 0
        %1532 = vmatpush2.bf16.xpose.msra.mxu0 0
        %1533 = vmatprep.subr.bf16.mxu0 0
        %1534 = vmatpush2.bf16.xpose.msra.mxu0 0
        %1535 = vmatprep.subr.bf16.mxu0 0
        %1536 = vmatpush2.bf16.xpose.msra.mxu0 0
        %1537 = vmatprep.subr.bf16.mxu0 0
        %1538 = vmatpush2.bf16.xpose.msra.mxu0 0
        %1539 = vmatprep.mubr.bf16.mxu0 0
        %1540 = vmatmul.mubr.bf16.gmra.mxu0 %v1496
        %v1541 = vpop.f32.mrf.mxu0
        %v1542 = vadd.f32 %v1493, %v1541
        %v1543 = vpop.f32.mrf.mxu0
        %v1544 = vpop.f32.mrf.mxu0
        %v1545 = vadd.f32 %v1493, %v1544
        %v1546 = vpop.f32.mrf.mxu0
        %1547 = vmatprep.mubr.bf16.mxu0 0
        %1548 = vmatmul.mubr.bf16.gmra.mxu0 %v1499
        %v1549 = vpop.f32.mrf.mxu0
        %v1550 = vadd.f32 %v1493, %v1549
        %v1551 = vpop.f32.mrf.mxu0
        %v1552 = vpop.f32.mrf.mxu0
        %v1553 = vadd.f32 %v1493, %v1552
        %v1554 = vpop.f32.mrf.mxu0
        %1555 = vdwg.mxu0
        %v1556 = vsel %vm1494, %v1542, -inf
        %1557 = vmax.xlane.f32.xlu0 %v1556
        %v1558 = vpop.xlane.xlu0 %1557
        %v1559 = vsel %vm1494, %v1545, -inf
        %1560 = vmax.xlane.f32.xlu0 %v1559
        %v1561 = vpop.xlane.xlu0 %1560
        %v1562 = vsel %vm1494, %v1550, -inf
        %1563 = vmax.xlane.f32.xlu0 %v1562
        %v1564 = vpop.xlane.xlu0 %1563
        %v1565 = vsel %vm1494, %v1553, -inf
        %1566 = vmax.xlane.f32.xlu0 %v1565
        %v1567 = vpop.xlane.xlu0 %1566
        %v1568 = vsub.f32 %v1542, %v1558
        %v1569 = vsub.f32 %v1545, %v1561
        %v1570 = vsub.f32 %v1550, %v1564
        %v1571 = vsub.f32 %v1553, %v1567
        %v1572 = vmul.f32 %v1568, 1.442695
        %v1573 = vpow.pop %v1572
        %v1574 = vmul.f32 %v1569, 1.442695
        %v1575 = vpow.pop %v1574
        %v1576 = vmul.f32 %v1570, 1.442695
        %v1577 = vpow.pop %v1576
        %v1578 = vmul.f32 %v1571, 1.442695
        %v1579 = vpow.pop %v1578
        %v1580 = vsel %vm1494, %v1573, 0.0
        %1581 = vadd.xlane.f32.xlu0 %v1580
        %v1582 = vpop.xlane.xlu0 %1581
        %v1583 = vsel %vm1494, %v1575, 0.0
        %1584 = vadd.xlane.f32.xlu0 %v1583
        %v1585 = vpop.xlane.xlu0 %1584
        %v1586 = vsel %vm1494, %v1577, 0.0
        %1587 = vadd.xlane.f32.xlu0 %v1586
        %v1588 = vpop.xlane.xlu0 %1587
        %v1589 = vsel %vm1494, %v1579, 0.0
        %1590 = vadd.xlane.f32.xlu0 %v1589
        %v1591 = vpop.xlane.xlu0 %1590
        %v1592 = vrcp.pop %v1582
        %v1593 = vrcp.pop %v1585
        %v1594 = vrcp.pop %v1588
        %v1595 = vrcp.pop %v1591
        %v1596 = vmul.f32 %v1573, %v1592
        %v1597 = vmul.f32 %v1575, %v1593
        %v1598 = vmul.f32 %v1577, %v1594
        %v1599 = vmul.f32 %v1579, %v1595
        %v1600 = vpack.c.bf16 %v1597, %v1596
        %v1601 = vpack.c.bf16 %v1599, %v1598
        %v1603 = vsel %vm1494, %v1600, 0
        %v1606 = vsel %vm1494, %v1601, 0
        %1608 = vmatprep.subr.bf16.mxu0 0
        %1609 = vmatpush1.bf16.msra.mxu0 0
        %1610 = vmatprep.subr.bf16.mxu0 0
        %1611 = vmatpush1.bf16.msra.mxu0 0
        %1612 = vmatprep.subr.bf16.mxu0 0
        %1613 = vmatpush1.bf16.msra.mxu0 0
        %1614 = vmatprep.subr.bf16.mxu0 0
        %1615 = vmatpush1.bf16.msra.mxu0 0
        %1616 = vmatprep.subr.bf16.mxu0 0
        %1617 = vmatpush1.bf16.msra.mxu0 0
        %1618 = vmatprep.subr.bf16.mxu0 0
        %1619 = vmatpush1.bf16.msra.mxu0 0
        %1620 = vmatprep.subr.bf16.mxu0 0
        %1621 = vmatpush1.bf16.msra.mxu0 %v1470
        %1622 = vmatprep.subr.bf16.mxu0 0
        %1623 = vmatpush1.bf16.msra.mxu0 %v1467
        %1624 = vmatprep.subr.bf16.mxu0 0
        %1625 = vmatpush2.bf16.msra.mxu0 0
        %1626 = vmatprep.subr.bf16.mxu0 0
        %1627 = vmatpush2.bf16.msra.mxu0 0
        %1628 = vmatprep.subr.bf16.mxu0 0
        %1629 = vmatpush2.bf16.msra.mxu0 0
        %1630 = vmatprep.subr.bf16.mxu0 0
        %1631 = vmatpush2.bf16.msra.mxu0 0
        %1632 = vmatprep.subr.bf16.mxu0 0
        %1633 = vmatpush2.bf16.msra.mxu0 0
        %1634 = vmatprep.subr.bf16.mxu0 0
        %1635 = vmatpush2.bf16.msra.mxu0 0
        %1636 = vmatprep.subr.bf16.mxu0 0
        %1637 = vmatpush2.bf16.msra.mxu0 0
        %1638 = vmatprep.subr.bf16.mxu0 0
        %1639 = vmatpush2.bf16.msra.mxu0 0
        %1640 = vmatprep.mubr.bf16.mxu0 0
        %1641 = vmatmul.mubr.bf16.gmra.mxu0 %v1603
        %v1642 = vpop.f32.mrf.mxu0
        %v1643 = vadd.f32 0.0, %v1642
        %v1644 = vpop.f32.mrf.mxu0
        %v1645 = vpop.f32.mrf.mxu0
        %v1646 = vadd.f32 0.0, %v1645
        %v1647 = vpop.f32.mrf.mxu0
        %1648 = vmatprep.mubr.bf16.mxu0 0
        %1649 = vmatmul.mubr.bf16.gmra.mxu0 %v1606
        %v1650 = vpop.f32.mrf.mxu0
        %v1651 = vadd.f32 0.0, %v1650
        %v1652 = vpop.f32.mrf.mxu0
        %v1653 = vpop.f32.mrf.mxu0
        %v1654 = vadd.f32 0.0, %v1653
        %v1655 = vpop.f32.mrf.mxu0
        %1656 = vdwg.mxu0
        %1659 = vrot.lane.b32.xlu0 %v1465, 96
        %v1660 = vpop.permute.xlu0 %1659
        %1661 = vrot.lane.b32.xlu0 %v1468, 96
        %v1662 = vpop.permute.xlu0 %1661
        %1665 = vrot.lane.b32.xlu0 %v1466, 96
        %v1666 = vpop.permute.xlu0 %1665
        %1667 = vrot.lane.b32.xlu0 %v1469, 96
        %v1668 = vpop.permute.xlu0 %1667
        %v1670 = vsel %vm1494, %v1660, 0
        %v1673 = vsel %vm1494, %v1662, 0
        %v1676 = vsel %vm1494, %v1666, 0
        %v1679 = vsel %vm1494, %v1668, 0
        %1681 = vmatprep.subr.bf16.mxu0 0
        %1682 = vmatpush1.bf16.xpose.msra.mxu0 0
        %1683 = vmatprep.subr.bf16.mxu0 0
        %1684 = vmatpush1.bf16.xpose.msra.mxu0 0
        %1685 = vmatprep.subr.bf16.mxu0 0
        %1686 = vmatpush1.bf16.xpose.msra.mxu0 0
        %1687 = vmatprep.subr.bf16.mxu0 0
        %1688 = vmatpush1.bf16.xpose.msra.mxu0 0
        %1689 = vmatprep.subr.bf16.mxu0 0
        %1690 = vmatpush1.bf16.xpose.msra.mxu0 0
        %1691 = vmatprep.subr.bf16.mxu0 0
        %1692 = vmatpush1.bf16.xpose.msra.mxu0 0
        %1693 = vmatprep.subr.bf16.mxu0 0
        %1694 = vmatpush1.bf16.xpose.msra.mxu0 %v1679
        %1695 = vmatprep.subr.bf16.mxu0 0
        %1696 = vmatpush1.bf16.xpose.msra.mxu0 %v1676
        %1697 = vmatprep.subr.bf16.mxu0 0
        %1698 = vmatpush2.bf16.xpose.msra.mxu0 0
        %1699 = vmatprep.subr.bf16.mxu0 0
        %1700 = vmatpush2.bf16.xpose.msra.mxu0 0
        %1701 = vmatprep.subr.bf16.mxu0 0
        %1702 = vmatpush2.bf16.xpose.msra.mxu0 0
        %1703 = vmatprep.subr.bf16.mxu0 0
        %1704 = vmatpush2.bf16.xpose.msra.mxu0 0
        %1705 = vmatprep.subr.bf16.mxu0 0
        %1706 = vmatpush2.bf16.xpose.msra.mxu0 0
        %1707 = vmatprep.subr.bf16.mxu0 0
        %1708 = vmatpush2.bf16.xpose.msra.mxu0 0
        %1709 = vmatprep.subr.bf16.mxu0 0
        %1710 = vmatpush2.bf16.xpose.msra.mxu0 0
        %1711 = vmatprep.subr.bf16.mxu0 0
        %1712 = vmatpush2.bf16.xpose.msra.mxu0 0
        %1713 = vmatprep.mubr.bf16.mxu0 0
        %1714 = vmatmul.mubr.bf16.gmra.mxu0 %v1670
        %v1715 = vpop.f32.mrf.mxu0
        %v1716 = vadd.f32 %v1493, %v1715
        %v1717 = vpop.f32.mrf.mxu0
        %v1718 = vpop.f32.mrf.mxu0
        %v1719 = vadd.f32 %v1493, %v1718
        %v1720 = vpop.f32.mrf.mxu0
        %1721 = vmatprep.mubr.bf16.mxu0 0
        %1722 = vmatmul.mubr.bf16.gmra.mxu0 %v1673
        %v1723 = vpop.f32.mrf.mxu0
        %v1724 = vadd.f32 %v1493, %v1723
        %v1725 = vpop.f32.mrf.mxu0
        %v1726 = vpop.f32.mrf.mxu0
        %v1727 = vadd.f32 %v1493, %v1726
        %v1728 = vpop.f32.mrf.mxu0
        %1729 = vdwg.mxu0
        %v1730 = vsel %vm1494, %v1716, -inf
        %1731 = vmax.xlane.f32.xlu0 %v1730
        %v1732 = vpop.xlane.xlu0 %1731
        %v1733 = vsel %vm1494, %v1719, -inf
        %1734 = vmax.xlane.f32.xlu0 %v1733
        %v1735 = vpop.xlane.xlu0 %1734
        %v1736 = vsel %vm1494, %v1724, -inf
        %1737 = vmax.xlane.f32.xlu0 %v1736
        %v1738 = vpop.xlane.xlu0 %1737
        %v1739 = vsel %vm1494, %v1727, -inf
        %1740 = vmax.xlane.f32.xlu0 %v1739
        %v1741 = vpop.xlane.xlu0 %1740
        %v1742 = vsub.f32 %v1716, %v1732
        %v1743 = vsub.f32 %v1719, %v1735
        %v1744 = vsub.f32 %v1724, %v1738
        %v1745 = vsub.f32 %v1727, %v1741
        %v1746 = vmul.f32 %v1742, 1.442695
        %v1747 = vpow.pop %v1746
        %v1748 = vmul.f32 %v1743, 1.442695
        %v1749 = vpow.pop %v1748
        %v1750 = vmul.f32 %v1744, 1.442695
        %v1751 = vpow.pop %v1750
        %v1752 = vmul.f32 %v1745, 1.442695
        %v1753 = vpow.pop %v1752
        %v1754 = vsel %vm1494, %v1747, 0.0
        %1755 = vadd.xlane.f32.xlu0 %v1754
        %v1756 = vpop.xlane.xlu0 %1755
        %v1757 = vsel %vm1494, %v1749, 0.0
        %1758 = vadd.xlane.f32.xlu0 %v1757
        %v1759 = vpop.xlane.xlu0 %1758
        %v1760 = vsel %vm1494, %v1751, 0.0
        %1761 = vadd.xlane.f32.xlu0 %v1760
        %v1762 = vpop.xlane.xlu0 %1761
        %v1763 = vsel %vm1494, %v1753, 0.0
        %1764 = vadd.xlane.f32.xlu0 %v1763
        %v1765 = vpop.xlane.xlu0 %1764
        %v1766 = vrcp.pop %v1756
        %v1767 = vrcp.pop %v1759
        %v1768 = vrcp.pop %v1762
        %v1769 = vrcp.pop %v1765
        %v1770 = vmul.f32 %v1747, %v1766
        %v1771 = vmul.f32 %v1749, %v1767
        %v1772 = vmul.f32 %v1751, %v1768
        %v1773 = vmul.f32 %v1753, %v1769
        %v1774 = vpack.c.bf16 %v1771, %v1770
        %v1775 = vpack.c.bf16 %v1773, %v1772
        %1778 = vrot.lane.b32.xlu0 %v1467, 96
        %v1779 = vpop.permute.xlu0 %1778
        %1780 = vrot.lane.b32.xlu0 %v1470, 96
        %v1781 = vpop.permute.xlu0 %1780
        %v1785 = vsel %vm1494, %v1774, 0
        %v1788 = vsel %vm1494, %v1775, 0
        %1790 = vmatprep.subr.bf16.mxu0 0
        %1791 = vmatpush1.bf16.msra.mxu0 0
        %1792 = vmatprep.subr.bf16.mxu0 0
        %1793 = vmatpush1.bf16.msra.mxu0 0
        %1794 = vmatprep.subr.bf16.mxu0 0
        %1795 = vmatpush1.bf16.msra.mxu0 0
        %1796 = vmatprep.subr.bf16.mxu0 0
        %1797 = vmatpush1.bf16.msra.mxu0 0
        %1798 = vmatprep.subr.bf16.mxu0 0
        %1799 = vmatpush1.bf16.msra.mxu0 0
        %1800 = vmatprep.subr.bf16.mxu0 0
        %1801 = vmatpush1.bf16.msra.mxu0 0
        %1802 = vmatprep.subr.bf16.mxu0 0
        %1803 = vmatpush1.bf16.msra.mxu0 %v1781
        %1804 = vmatprep.subr.bf16.mxu0 0
        %1805 = vmatpush1.bf16.msra.mxu0 %v1779
        %1806 = vmatprep.subr.bf16.mxu0 0
        %1807 = vmatpush2.bf16.msra.mxu0 0
        %1808 = vmatprep.subr.bf16.mxu0 0
        %1809 = vmatpush2.bf16.msra.mxu0 0
        %1810 = vmatprep.subr.bf16.mxu0 0
        %1811 = vmatpush2.bf16.msra.mxu0 0
        %1812 = vmatprep.subr.bf16.mxu0 0
        %1813 = vmatpush2.bf16.msra.mxu0 0
        %1814 = vmatprep.subr.bf16.mxu0 0
        %1815 = vmatpush2.bf16.msra.mxu0 0
        %1816 = vmatprep.subr.bf16.mxu0 0
        %1817 = vmatpush2.bf16.msra.mxu0 0
        %1818 = vmatprep.subr.bf16.mxu0 0
        %1819 = vmatpush2.bf16.msra.mxu0 0
        %1820 = vmatprep.subr.bf16.mxu0 0
        %1821 = vmatpush2.bf16.msra.mxu0 0
        %1822 = vmatprep.mubr.bf16.mxu0 0
        %1823 = vmatmul.mubr.bf16.gmra.mxu0 %v1785
        %v1824 = vpop.f32.mrf.mxu0
        %v1825 = vadd.f32 0.0, %v1824
        %v1826 = vpop.f32.mrf.mxu0
        %v1827 = vpop.f32.mrf.mxu0
        %v1828 = vadd.f32 0.0, %v1827
        %v1829 = vpop.f32.mrf.mxu0
        %1830 = vmatprep.mubr.bf16.mxu0 0
        %1831 = vmatmul.mubr.bf16.gmra.mxu0 %v1788
        %v1832 = vpop.f32.mrf.mxu0
        %v1833 = vadd.f32 0.0, %v1832
        %v1834 = vpop.f32.mrf.mxu0
        %v1835 = vpop.f32.mrf.mxu0
        %v1836 = vadd.f32 0.0, %v1835
        %v1837 = vpop.f32.mrf.mxu0
        %1838 = vdwg.mxu0
        %1839 = vrot.lane.b32.xlu0 %v1465, 64
        %v1840 = vpop.permute.xlu0 %1839
        %1841 = vrot.lane.b32.xlu0 %v1468, 64
        %v1842 = vpop.permute.xlu0 %1841
        %1843 = vrot.lane.b32.xlu0 %v1466, 64
        %v1844 = vpop.permute.xlu0 %1843
        %1845 = vrot.lane.b32.xlu0 %v1469, 64
        %v1846 = vpop.permute.xlu0 %1845
        %v1848 = vsel %vm1494, %v1840, 0
        %v1851 = vsel %vm1494, %v1842, 0
        %v1854 = vsel %vm1494, %v1844, 0
        %v1857 = vsel %vm1494, %v1846, 0
        %1859 = vmatprep.subr.bf16.mxu0 0
        %1860 = vmatpush1.bf16.xpose.msra.mxu0 0
        %1861 = vmatprep.subr.bf16.mxu0 0
        %1862 = vmatpush1.bf16.xpose.msra.mxu0 0
        %1863 = vmatprep.subr.bf16.mxu0 0
        %1864 = vmatpush1.bf16.xpose.msra.mxu0 0
        %1865 = vmatprep.subr.bf16.mxu0 0
        %1866 = vmatpush1.bf16.xpose.msra.mxu0 0
        %1867 = vmatprep.subr.bf16.mxu0 0
        %1868 = vmatpush1.bf16.xpose.msra.mxu0 0
        %1869 = vmatprep.subr.bf16.mxu0 0
        %1870 = vmatpush1.bf16.xpose.msra.mxu0 0
        %1871 = vmatprep.subr.bf16.mxu0 0
        %1872 = vmatpush1.bf16.xpose.msra.mxu0 %v1857
        %1873 = vmatprep.subr.bf16.mxu0 0
        %1874 = vmatpush1.bf16.xpose.msra.mxu0 %v1854
        %1875 = vmatprep.subr.bf16.mxu0 0
        %1876 = vmatpush2.bf16.xpose.msra.mxu0 0
        %1877 = vmatprep.subr.bf16.mxu0 0
        %1878 = vmatpush2.bf16.xpose.msra.mxu0 0
        %1879 = vmatprep.subr.bf16.mxu0 0
        %1880 = vmatpush2.bf16.xpose.msra.mxu0 0
        %1881 = vmatprep.subr.bf16.mxu0 0
        %1882 = vmatpush2.bf16.xpose.msra.mxu0 0
        %1883 = vmatprep.subr.bf16.mxu0 0
        %1884 = vmatpush2.bf16.xpose.msra.mxu0 0
        %1885 = vmatprep.subr.bf16.mxu0 0
        %1886 = vmatpush2.bf16.xpose.msra.mxu0 0
        %1887 = vmatprep.subr.bf16.mxu0 0
        %1888 = vmatpush2.bf16.xpose.msra.mxu0 0
        %1889 = vmatprep.subr.bf16.mxu0 0
        %1890 = vmatpush2.bf16.xpose.msra.mxu0 0
        %1891 = vmatprep.mubr.bf16.mxu0 0
        %1892 = vmatmul.mubr.bf16.gmra.mxu0 %v1848
        %v1893 = vpop.f32.mrf.mxu0
        %v1894 = vadd.f32 %v1493, %v1893
        %v1895 = vpop.f32.mrf.mxu0
        %v1896 = vpop.f32.mrf.mxu0
        %v1897 = vadd.f32 %v1493, %v1896
        %v1898 = vpop.f32.mrf.mxu0
        %1899 = vmatprep.mubr.bf16.mxu0 0
        %1900 = vmatmul.mubr.bf16.gmra.mxu0 %v1851
        %v1901 = vpop.f32.mrf.mxu0
        %v1902 = vadd.f32 %v1493, %v1901
        %v1903 = vpop.f32.mrf.mxu0
        %v1904 = vpop.f32.mrf.mxu0
        %v1905 = vadd.f32 %v1493, %v1904
        %v1906 = vpop.f32.mrf.mxu0
        %1907 = vdwg.mxu0
        %v1908 = vsel %vm1494, %v1894, -inf
        %1909 = vmax.xlane.f32.xlu0 %v1908
        %v1910 = vpop.xlane.xlu0 %1909
        %v1911 = vsel %vm1494, %v1897, -inf
        %1912 = vmax.xlane.f32.xlu0 %v1911
        %v1913 = vpop.xlane.xlu0 %1912
        %v1914 = vsel %vm1494, %v1902, -inf
        %1915 = vmax.xlane.f32.xlu0 %v1914
        %v1916 = vpop.xlane.xlu0 %1915
        %v1917 = vsel %vm1494, %v1905, -inf
        %1918 = vmax.xlane.f32.xlu0 %v1917
        %v1919 = vpop.xlane.xlu0 %1918
        %v1920 = vsub.f32 %v1894, %v1910
        %v1921 = vsub.f32 %v1897, %v1913
        %v1922 = vsub.f32 %v1902, %v1916
        %v1923 = vsub.f32 %v1905, %v1919
        %v1924 = vmul.f32 %v1920, 1.442695
        %v1925 = vpow.pop %v1924
        %v1926 = vmul.f32 %v1921, 1.442695
        %v1927 = vpow.pop %v1926
        %v1928 = vmul.f32 %v1922, 1.442695
        %v1929 = vpow.pop %v1928
        %v1930 = vmul.f32 %v1923, 1.442695
        %v1931 = vpow.pop %v1930
        %v1932 = vsel %vm1494, %v1925, 0.0
        %1933 = vadd.xlane.f32.xlu0 %v1932
        %v1934 = vpop.xlane.xlu0 %1933
        %v1935 = vsel %vm1494, %v1927, 0.0
        %1936 = vadd.xlane.f32.xlu0 %v1935
        %v1937 = vpop.xlane.xlu0 %1936
        %v1938 = vsel %vm1494, %v1929, 0.0
        %1939 = vadd.xlane.f32.xlu0 %v1938
        %v1940 = vpop.xlane.xlu0 %1939
        %v1941 = vsel %vm1494, %v1931, 0.0
        %1942 = vadd.xlane.f32.xlu0 %v1941
        %v1943 = vpop.xlane.xlu0 %1942
        %v1944 = vrcp.pop %v1934
        %v1945 = vrcp.pop %v1937
        %v1946 = vrcp.pop %v1940
        %v1947 = vrcp.pop %v1943
        %v1948 = vmul.f32 %v1925, %v1944
        %v1949 = vmul.f32 %v1927, %v1945
        %v1950 = vmul.f32 %v1929, %v1946
        %v1951 = vmul.f32 %v1931, %v1947
        %v1952 = vpack.c.bf16 %v1949, %v1948
        %v1953 = vpack.c.bf16 %v1951, %v1950
        %1954 = vrot.lane.b32.xlu0 %v1467, 64
        %v1955 = vpop.permute.xlu0 %1954
        %1956 = vrot.lane.b32.xlu0 %v1470, 64
        %v1957 = vpop.permute.xlu0 %1956
        %v1961 = vsel %vm1494, %v1952, 0
        %v1964 = vsel %vm1494, %v1953, 0
        %1966 = vmatprep.subr.bf16.mxu0 0
        %1967 = vmatpush1.bf16.msra.mxu0 0
        %1968 = vmatprep.subr.bf16.mxu0 0
        %1969 = vmatpush1.bf16.msra.mxu0 0
        %1970 = vmatprep.subr.bf16.mxu0 0
        %1971 = vmatpush1.bf16.msra.mxu0 0
        %1972 = vmatprep.subr.bf16.mxu0 0
        %1973 = vmatpush1.bf16.msra.mxu0 0
        %1974 = vmatprep.subr.bf16.mxu0 0
        %1975 = vmatpush1.bf16.msra.mxu0 0
        %1976 = vmatprep.subr.bf16.mxu0 0
        %1977 = vmatpush1.bf16.msra.mxu0 0
        %1978 = vmatprep.subr.bf16.mxu0 0
        %1979 = vmatpush1.bf16.msra.mxu0 %v1957
        %1980 = vmatprep.subr.bf16.mxu0 0
        %1981 = vmatpush1.bf16.msra.mxu0 %v1955
        %1982 = vmatprep.subr.bf16.mxu0 0
        %1983 = vmatpush2.bf16.msra.mxu0 0
        %1984 = vmatprep.subr.bf16.mxu0 0
        %1985 = vmatpush2.bf16.msra.mxu0 0
        %1986 = vmatprep.subr.bf16.mxu0 0
        %1987 = vmatpush2.bf16.msra.mxu0 0
        %1988 = vmatprep.subr.bf16.mxu0 0
        %1989 = vmatpush2.bf16.msra.mxu0 0
        %1990 = vmatprep.subr.bf16.mxu0 0
        %1991 = vmatpush2.bf16.msra.mxu0 0
        %1992 = vmatprep.subr.bf16.mxu0 0
        %1993 = vmatpush2.bf16.msra.mxu0 0
        %1994 = vmatprep.subr.bf16.mxu0 0
        %1995 = vmatpush2.bf16.msra.mxu0 0
        %1996 = vmatprep.subr.bf16.mxu0 0
        %1997 = vmatpush2.bf16.msra.mxu0 0
        %1998 = vmatprep.mubr.bf16.mxu0 0
        %1999 = vmatmul.mubr.bf16.gmra.mxu0 %v1961
        %v2000 = vpop.f32.mrf.mxu0
        %v2001 = vadd.f32 0.0, %v2000
        %v2002 = vpop.f32.mrf.mxu0
        %v2003 = vpop.f32.mrf.mxu0
        %v2004 = vadd.f32 0.0, %v2003
        %v2005 = vpop.f32.mrf.mxu0
        %2006 = vmatprep.mubr.bf16.mxu0 0
        %2007 = vmatmul.mubr.bf16.gmra.mxu0 %v1964
        %v2008 = vpop.f32.mrf.mxu0
        %v2009 = vadd.f32 0.0, %v2008
        %v2010 = vpop.f32.mrf.mxu0
        %v2011 = vpop.f32.mrf.mxu0
        %v2012 = vadd.f32 0.0, %v2011
        %v2013 = vpop.f32.mrf.mxu0
        %2014 = vdwg.mxu0
        %2015 = vrot.lane.b32.xlu0 %v1465, 32
        %v2016 = vpop.permute.xlu0 %2015
        %2017 = vrot.lane.b32.xlu0 %v1468, 32
        %v2018 = vpop.permute.xlu0 %2017
        %2019 = vrot.lane.b32.xlu0 %v1466, 32
        %v2020 = vpop.permute.xlu0 %2019
        %2021 = vrot.lane.b32.xlu0 %v1469, 32
        %v2022 = vpop.permute.xlu0 %2021
        %v2024 = vsel %vm1494, %v2016, 0
        %v2027 = vsel %vm1494, %v2018, 0
        %v2030 = vsel %vm1494, %v2020, 0
        %v2033 = vsel %vm1494, %v2022, 0
        %2035 = vmatprep.subr.bf16.mxu0 0
        %2036 = vmatpush1.bf16.xpose.msra.mxu0 0
        %2037 = vmatprep.subr.bf16.mxu0 0
        %2038 = vmatpush1.bf16.xpose.msra.mxu0 0
        %2039 = vmatprep.subr.bf16.mxu0 0
        %2040 = vmatpush1.bf16.xpose.msra.mxu0 0
        %2041 = vmatprep.subr.bf16.mxu0 0
        %2042 = vmatpush1.bf16.xpose.msra.mxu0 0
        %2043 = vmatprep.subr.bf16.mxu0 0
        %2044 = vmatpush1.bf16.xpose.msra.mxu0 0
        %2045 = vmatprep.subr.bf16.mxu0 0
        %2046 = vmatpush1.bf16.xpose.msra.mxu0 0
        %2047 = vmatprep.subr.bf16.mxu0 0
        %2048 = vmatpush1.bf16.xpose.msra.mxu0 %v2033
        %2049 = vmatprep.subr.bf16.mxu0 0
        %2050 = vmatpush1.bf16.xpose.msra.mxu0 %v2030
        %2051 = vmatprep.subr.bf16.mxu0 0
        %2052 = vmatpush2.bf16.xpose.msra.mxu0 0
        %2053 = vmatprep.subr.bf16.mxu0 0
        %2054 = vmatpush2.bf16.xpose.msra.mxu0 0
        %2055 = vmatprep.subr.bf16.mxu0 0
        %2056 = vmatpush2.bf16.xpose.msra.mxu0 0
        %2057 = vmatprep.subr.bf16.mxu0 0
        %2058 = vmatpush2.bf16.xpose.msra.mxu0 0
        %2059 = vmatprep.subr.bf16.mxu0 0
        %2060 = vmatpush2.bf16.xpose.msra.mxu0 0
        %2061 = vmatprep.subr.bf16.mxu0 0
        %2062 = vmatpush2.bf16.xpose.msra.mxu0 0
        %2063 = vmatprep.subr.bf16.mxu0 0
        %2064 = vmatpush2.bf16.xpose.msra.mxu0 0
        %2065 = vmatprep.subr.bf16.mxu0 0
        %2066 = vmatpush2.bf16.xpose.msra.mxu0 0
        %2067 = vmatprep.mubr.bf16.mxu0 0
        %2068 = vmatmul.mubr.bf16.gmra.mxu0 %v2024
        %v2069 = vpop.f32.mrf.mxu0
        %v2070 = vadd.f32 %v1493, %v2069
        %v2071 = vpop.f32.mrf.mxu0
        %v2072 = vpop.f32.mrf.mxu0
        %v2073 = vadd.f32 %v1493, %v2072
        %v2074 = vpop.f32.mrf.mxu0
        %2075 = vmatprep.mubr.bf16.mxu0 0
        %2076 = vmatmul.mubr.bf16.gmra.mxu0 %v2027
        %v2077 = vpop.f32.mrf.mxu0
        %v2078 = vadd.f32 %v1493, %v2077
        %v2079 = vpop.f32.mrf.mxu0
        %v2080 = vpop.f32.mrf.mxu0
        %v2081 = vadd.f32 %v1493, %v2080
        %v2082 = vpop.f32.mrf.mxu0
        %2083 = vdwg.mxu0
        %v2084 = vsel %vm1494, %v2070, -inf
        %2085 = vmax.xlane.f32.xlu0 %v2084
        %v2086 = vpop.xlane.xlu0 %2085
        %v2087 = vsel %vm1494, %v2073, -inf
        %2088 = vmax.xlane.f32.xlu0 %v2087
        %v2089 = vpop.xlane.xlu0 %2088
        %v2090 = vsel %vm1494, %v2078, -inf
        %2091 = vmax.xlane.f32.xlu0 %v2090
        %v2092 = vpop.xlane.xlu0 %2091
        %v2093 = vsel %vm1494, %v2081, -inf
        %2094 = vmax.xlane.f32.xlu0 %v2093
        %v2095 = vpop.xlane.xlu0 %2094
        %v2096 = vsub.f32 %v2070, %v2086
        %v2097 = vsub.f32 %v2073, %v2089
        %v2098 = vsub.f32 %v2078, %v2092
        %v2099 = vsub.f32 %v2081, %v2095
        %v2100 = vmul.f32 %v2096, 1.442695
        %v2101 = vpow.pop %v2100
        %v2102 = vmul.f32 %v2097, 1.442695
        %v2103 = vpow.pop %v2102
        %v2104 = vmul.f32 %v2098, 1.442695
        %v2105 = vpow.pop %v2104
        %v2106 = vmul.f32 %v2099, 1.442695
        %v2107 = vpow.pop %v2106
        %v2108 = vsel %vm1494, %v2101, 0.0
        %2109 = vadd.xlane.f32.xlu0 %v2108
        %v2110 = vpop.xlane.xlu0 %2109
        %v2111 = vsel %vm1494, %v2103, 0.0
        %2112 = vadd.xlane.f32.xlu0 %v2111
        %v2113 = vpop.xlane.xlu0 %2112
        %v2114 = vsel %vm1494, %v2105, 0.0
        %2115 = vadd.xlane.f32.xlu0 %v2114
        %v2116 = vpop.xlane.xlu0 %2115
        %v2117 = vsel %vm1494, %v2107, 0.0
        %2118 = vadd.xlane.f32.xlu0 %v2117
        %v2119 = vpop.xlane.xlu0 %2118
        %v2120 = vrcp.pop %v2110
        %v2121 = vrcp.pop %v2113
        %v2122 = vrcp.pop %v2116
        %v2123 = vrcp.pop %v2119
        %v2124 = vmul.f32 %v2101, %v2120
        %v2125 = vmul.f32 %v2103, %v2121
        %v2126 = vmul.f32 %v2105, %v2122
        %v2127 = vmul.f32 %v2107, %v2123
        %v2128 = vpack.c.bf16 %v2125, %v2124
        %v2129 = vpack.c.bf16 %v2127, %v2126
        %2130 = vrot.lane.b32.xlu0 %v1467, 32
        %v2131 = vpop.permute.xlu0 %2130
        %2132 = vrot.lane.b32.xlu0 %v1470, 32
        %v2133 = vpop.permute.xlu0 %2132
        %v2137 = vsel %vm1494, %v2128, 0
        %v2140 = vsel %vm1494, %v2129, 0
        %2142 = vmatprep.subr.bf16.mxu0 0
        %2143 = vmatpush1.bf16.msra.mxu0 0
        %2144 = vmatprep.subr.bf16.mxu0 0
        %2145 = vmatpush1.bf16.msra.mxu0 0
        %2146 = vmatprep.subr.bf16.mxu0 0
        %2147 = vmatpush1.bf16.msra.mxu0 0
        %2148 = vmatprep.subr.bf16.mxu0 0
        %2149 = vmatpush1.bf16.msra.mxu0 0
        %2150 = vmatprep.subr.bf16.mxu0 0
        %2151 = vmatpush1.bf16.msra.mxu0 0
        %2152 = vmatprep.subr.bf16.mxu0 0
        %2153 = vmatpush1.bf16.msra.mxu0 0
        %2154 = vmatprep.subr.bf16.mxu0 0
        %2155 = vmatpush1.bf16.msra.mxu0 %v2133
        %2156 = vmatprep.subr.bf16.mxu0 0
        %2157 = vmatpush1.bf16.msra.mxu0 %v2131
        %2158 = vmatprep.subr.bf16.mxu0 0
        %2159 = vmatpush2.bf16.msra.mxu0 0
        %2160 = vmatprep.subr.bf16.mxu0 0
        %2161 = vmatpush2.bf16.msra.mxu0 0
        %2162 = vmatprep.subr.bf16.mxu0 0
        %2163 = vmatpush2.bf16.msra.mxu0 0
        %2164 = vmatprep.subr.bf16.mxu0 0
        %2165 = vmatpush2.bf16.msra.mxu0 0
        %2166 = vmatprep.subr.bf16.mxu0 0
        %2167 = vmatpush2.bf16.msra.mxu0 0
        %2168 = vmatprep.subr.bf16.mxu0 0
        %2169 = vmatpush2.bf16.msra.mxu0 0
        %2170 = vmatprep.subr.bf16.mxu0 0
        %2171 = vmatpush2.bf16.msra.mxu0 0
        %2172 = vmatprep.subr.bf16.mxu0 0
        %2173 = vmatpush2.bf16.msra.mxu0 0
        %2174 = vmatprep.mubr.bf16.mxu0 0
        %2175 = vmatmul.mubr.bf16.gmra.mxu0 %v2137
        %v2176 = vpop.f32.mrf.mxu0
        %v2177 = vadd.f32 0.0, %v2176
        %v2178 = vpop.f32.mrf.mxu0
        %v2179 = vpop.f32.mrf.mxu0
        %v2180 = vadd.f32 0.0, %v2179
        %v2181 = vpop.f32.mrf.mxu0
        %2182 = vmatprep.mubr.bf16.mxu0 0
        %2183 = vmatmul.mubr.bf16.gmra.mxu0 %v2140
        %v2184 = vpop.f32.mrf.mxu0
        %v2185 = vadd.f32 0.0, %v2184
        %v2186 = vpop.f32.mrf.mxu0
        %v2187 = vpop.f32.mrf.mxu0
        %v2188 = vadd.f32 0.0, %v2187
        %v2189 = vpop.f32.mrf.mxu0
        %2190 = vdwg.mxu0
        %2195 = vrot.lane.b32.xlu0 %v1825, 32
        %v2196 = vpop.permute.xlu0 %2195
        %2197 = vrot.lane.b32.xlu0 %v1828, 32
        %v2198 = vpop.permute.xlu0 %2197
        %2199 = vrot.lane.b32.xlu0 %v1833, 32
        %v2200 = vpop.permute.xlu0 %2199
        %2201 = vrot.lane.b32.xlu0 %v1836, 32
        %v2202 = vpop.permute.xlu0 %2201
        %2211 = vrot.lane.b32.xlu0 %v2001, 64
        %v2212 = vpop.permute.xlu0 %2211
        %2213 = vrot.lane.b32.xlu0 %v2004, 64
        %v2214 = vpop.permute.xlu0 %2213
        %2215 = vrot.lane.b32.xlu0 %v2009, 64
        %v2216 = vpop.permute.xlu0 %2215
        %2217 = vrot.lane.b32.xlu0 %v2012, 64
        %v2218 = vpop.permute.xlu0 %2217
        %2227 = vrot.lane.b32.xlu0 %v2177, 96
        %v2228 = vpop.permute.xlu0 %2227
        %2229 = vrot.lane.b32.xlu0 %v2180, 96
        %v2230 = vpop.permute.xlu0 %2229
        %2231 = vrot.lane.b32.xlu0 %v2185, 96
        %v2232 = vpop.permute.xlu0 %2231
        %2233 = vrot.lane.b32.xlu0 %v2188, 96
        %v2234 = vpop.permute.xlu0 %2233
        %v2239 = vsel %vm1494, %v1643, %v2196
        %v2240 = vsel %vm1494, %v1646, %v2198
        %v2241 = vsel %vm1494, %v1651, %v2200
        %v2242 = vsel %vm1494, %v1654, %v2202
        %vm2243 = vcmask 523264
        %v2244 = vsel %vm2243, %v2239, %v2212
        %v2245 = vsel %vm2243, %v2240, %v2214
        %v2246 = vsel %vm2243, %v2241, %v2216
        %v2247 = vsel %vm2243, %v2242, %v2218
        %vm2248 = vcmask 785408
        %v2249 = vsel %vm2248, %v2244, %v2228
        %v2250 = vsel %vm2248, %v2245, %v2230
        %v2251 = vsel %vm2248, %v2246, %v2232
        %v2252 = vsel %vm2248, %v2247, %v2234
        %v2253 = vld [vmem:[%s1 + $0x1] sm:$0x1]
        %v2254 = vlaneseq
        %v2255 = vshrl.u32 %v2254, 7
        %v2256 = vsub.s32 0, %v2255
        %v2257 = vrot.slane %v2253, %v2256
        %v2259 = vsel %vm1494, %v1471, 0
        %v2262 = vsel %vm1494, %v1474, 0
        %v2265 = vsel %vm1494, %v1472, 0
        %v2268 = vsel %vm1494, %v1475, 0
        %2270 = vmatprep.subr.bf16.mxu0 0
        %2271 = vmatpush1.bf16.xpose.msra.mxu0 0
        %2272 = vmatprep.subr.bf16.mxu0 0
        %2273 = vmatpush1.bf16.xpose.msra.mxu0 0
        %2274 = vmatprep.subr.bf16.mxu0 0
        %2275 = vmatpush1.bf16.xpose.msra.mxu0 0
        %2276 = vmatprep.subr.bf16.mxu0 0
        %2277 = vmatpush1.bf16.xpose.msra.mxu0 0
        %2278 = vmatprep.subr.bf16.mxu0 0
        %2279 = vmatpush1.bf16.xpose.msra.mxu0 0
        %2280 = vmatprep.subr.bf16.mxu0 0
        %2281 = vmatpush1.bf16.xpose.msra.mxu0 0
        %2282 = vmatprep.subr.bf16.mxu0 0
        %2283 = vmatpush1.bf16.xpose.msra.mxu0 %v2268
        %2284 = vmatprep.subr.bf16.mxu0 0
        %2285 = vmatpush1.bf16.xpose.msra.mxu0 %v2265
        %2286 = vmatprep.subr.bf16.mxu0 0
        %2287 = vmatpush2.bf16.xpose.msra.mxu0 0
        %2288 = vmatprep.subr.bf16.mxu0 0
        %2289 = vmatpush2.bf16.xpose.msra.mxu0 0
        %2290 = vmatprep.subr.bf16.mxu0 0
        %2291 = vmatpush2.bf16.xpose.msra.mxu0 0
        %2292 = vmatprep.subr.bf16.mxu0 0
        %2293 = vmatpush2.bf16.xpose.msra.mxu0 0
        %2294 = vmatprep.subr.bf16.mxu0 0
        %2295 = vmatpush2.bf16.xpose.msra.mxu0 0
        %2296 = vmatprep.subr.bf16.mxu0 0
        %2297 = vmatpush2.bf16.xpose.msra.mxu0 0
        %2298 = vmatprep.subr.bf16.mxu0 0
        %2299 = vmatpush2.bf16.xpose.msra.mxu0 0
        %2300 = vmatprep.subr.bf16.mxu0 0
        %2301 = vmatpush2.bf16.xpose.msra.mxu0 0
        %2302 = vmatprep.mubr.bf16.mxu0 0
        %2303 = vmatmul.mubr.bf16.gmra.mxu0 %v2259
        %v2304 = vpop.f32.mrf.mxu0
        %v2305 = vadd.f32 %v2257, %v2304
        %v2306 = vpop.f32.mrf.mxu0
        %v2307 = vpop.f32.mrf.mxu0
        %v2308 = vadd.f32 %v2257, %v2307
        %v2309 = vpop.f32.mrf.mxu0
        %2310 = vmatprep.mubr.bf16.mxu0 0
        %2311 = vmatmul.mubr.bf16.gmra.mxu0 %v2262
        %v2312 = vpop.f32.mrf.mxu0
        %v2313 = vadd.f32 %v2257, %v2312
        %v2314 = vpop.f32.mrf.mxu0
        %v2315 = vpop.f32.mrf.mxu0
        %v2316 = vadd.f32 %v2257, %v2315
        %v2317 = vpop.f32.mrf.mxu0
        %2318 = vdwg.mxu0
        %v2319 = vsel %vm1494, %v2305, -inf
        %2320 = vmax.xlane.f32.xlu0 %v2319
        %v2321 = vpop.xlane.xlu0 %2320
        %v2322 = vsel %vm1494, %v2308, -inf
        %2323 = vmax.xlane.f32.xlu0 %v2322
        %v2324 = vpop.xlane.xlu0 %2323
        %v2325 = vsel %vm1494, %v2313, -inf
        %2326 = vmax.xlane.f32.xlu0 %v2325
        %v2327 = vpop.xlane.xlu0 %2326
        %v2328 = vsel %vm1494, %v2316, -inf
        %2329 = vmax.xlane.f32.xlu0 %v2328
        %v2330 = vpop.xlane.xlu0 %2329
        %v2331 = vsub.f32 %v2305, %v2321
        %v2332 = vsub.f32 %v2308, %v2324
        %v2333 = vsub.f32 %v2313, %v2327
        %v2334 = vsub.f32 %v2316, %v2330
        %v2335 = vmul.f32 %v2331, 1.442695
        %v2336 = vpow.pop %v2335
        %v2337 = vmul.f32 %v2332, 1.442695
        %v2338 = vpow.pop %v2337
        %v2339 = vmul.f32 %v2333, 1.442695
        %v2340 = vpow.pop %v2339
        %v2341 = vmul.f32 %v2334, 1.442695
        %v2342 = vpow.pop %v2341
        %v2343 = vsel %vm1494, %v2336, 0.0
        %2344 = vadd.xlane.f32.xlu0 %v2343
        %v2345 = vpop.xlane.xlu0 %2344
        %v2346 = vsel %vm1494, %v2338, 0.0
        %2347 = vadd.xlane.f32.xlu0 %v2346
        %v2348 = vpop.xlane.xlu0 %2347
        %v2349 = vsel %vm1494, %v2340, 0.0
        %2350 = vadd.xlane.f32.xlu0 %v2349
        %v2351 = vpop.xlane.xlu0 %2350
        %v2352 = vsel %vm1494, %v2342, 0.0
        %2353 = vadd.xlane.f32.xlu0 %v2352
        %v2354 = vpop.xlane.xlu0 %2353
        %v2355 = vrcp.pop %v2345
        %v2356 = vrcp.pop %v2348
        %v2357 = vrcp.pop %v2351
        %v2358 = vrcp.pop %v2354
        %v2359 = vmul.f32 %v2336, %v2355
        %v2360 = vmul.f32 %v2338, %v2356
        %v2361 = vmul.f32 %v2340, %v2357
        %v2362 = vmul.f32 %v2342, %v2358
        %v2363 = vpack.c.bf16 %v2360, %v2359
        %v2364 = vpack.c.bf16 %v2362, %v2361
        %v2366 = vsel %vm1494, %v2363, 0
        %v2369 = vsel %vm1494, %v2364, 0
        %2371 = vmatprep.subr.bf16.mxu0 0
        %2372 = vmatpush1.bf16.msra.mxu0 0
        %2373 = vmatprep.subr.bf16.mxu0 0
        %2374 = vmatpush1.bf16.msra.mxu0 0
        %2375 = vmatprep.subr.bf16.mxu0 0
        %2376 = vmatpush1.bf16.msra.mxu0 0
        %2377 = vmatprep.subr.bf16.mxu0 0
        %2378 = vmatpush1.bf16.msra.mxu0 0
        %2379 = vmatprep.subr.bf16.mxu0 0
        %2380 = vmatpush1.bf16.msra.mxu0 0
        %2381 = vmatprep.subr.bf16.mxu0 0
        %2382 = vmatpush1.bf16.msra.mxu0 0
        %2383 = vmatprep.subr.bf16.mxu0 0
        %2384 = vmatpush1.bf16.msra.mxu0 %v1476
        %2385 = vmatprep.subr.bf16.mxu0 0
        %2386 = vmatpush1.bf16.msra.mxu0 %v1473
        %2387 = vmatprep.subr.bf16.mxu0 0
        %2388 = vmatpush2.bf16.msra.mxu0 0
        %2389 = vmatprep.subr.bf16.mxu0 0
        %2390 = vmatpush2.bf16.msra.mxu0 0
        %2391 = vmatprep.subr.bf16.mxu0 0
        %2392 = vmatpush2.bf16.msra.mxu0 0
        %2393 = vmatprep.subr.bf16.mxu0 0
        %2394 = vmatpush2.bf16.msra.mxu0 0
        %2395 = vmatprep.subr.bf16.mxu0 0
        %2396 = vmatpush2.bf16.msra.mxu0 0
        %2397 = vmatprep.subr.bf16.mxu0 0
        %2398 = vmatpush2.bf16.msra.mxu0 0
        %2399 = vmatprep.subr.bf16.mxu0 0
        %2400 = vmatpush2.bf16.msra.mxu0 0
        %2401 = vmatprep.subr.bf16.mxu0 0
        %2402 = vmatpush2.bf16.msra.mxu0 0
        %2403 = vmatprep.mubr.bf16.mxu0 0
        %2404 = vmatmul.mubr.bf16.gmra.mxu0 %v2366
        %v2405 = vpop.f32.mrf.mxu0
        %v2406 = vadd.f32 0.0, %v2405
        %v2407 = vpop.f32.mrf.mxu0
        %v2408 = vpop.f32.mrf.mxu0
        %v2409 = vadd.f32 0.0, %v2408
        %v2410 = vpop.f32.mrf.mxu0
        %2411 = vmatprep.mubr.bf16.mxu0 0
        %2412 = vmatmul.mubr.bf16.gmra.mxu0 %v2369
        %v2413 = vpop.f32.mrf.mxu0
        %v2414 = vadd.f32 0.0, %v2413
        %v2415 = vpop.f32.mrf.mxu0
        %v2416 = vpop.f32.mrf.mxu0
        %v2417 = vadd.f32 0.0, %v2416
        %v2418 = vpop.f32.mrf.mxu0
        %2419 = vdwg.mxu0
        %2422 = vrot.lane.b32.xlu0 %v1471, 96
        %v2423 = vpop.permute.xlu0 %2422
        %2424 = vrot.lane.b32.xlu0 %v1474, 96
        %v2425 = vpop.permute.xlu0 %2424
        %2428 = vrot.lane.b32.xlu0 %v1472, 96
        %v2429 = vpop.permute.xlu0 %2428
        %2430 = vrot.lane.b32.xlu0 %v1475, 96
        %v2431 = vpop.permute.xlu0 %2430
        %v2433 = vsel %vm1494, %v2423, 0
        %v2436 = vsel %vm1494, %v2425, 0
        %v2439 = vsel %vm1494, %v2429, 0
        %v2442 = vsel %vm1494, %v2431, 0
        %2444 = vmatprep.subr.bf16.mxu0 0
        %2445 = vmatpush1.bf16.xpose.msra.mxu0 0
        %2446 = vmatprep.subr.bf16.mxu0 0
        %2447 = vmatpush1.bf16.xpose.msra.mxu0 0
        %2448 = vmatprep.subr.bf16.mxu0 0
        %2449 = vmatpush1.bf16.xpose.msra.mxu0 0
        %2450 = vmatprep.subr.bf16.mxu0 0
        %2451 = vmatpush1.bf16.xpose.msra.mxu0 0
        %2452 = vmatprep.subr.bf16.mxu0 0
        %2453 = vmatpush1.bf16.xpose.msra.mxu0 0
        %2454 = vmatprep.subr.bf16.mxu0 0
        %2455 = vmatpush1.bf16.xpose.msra.mxu0 0
        %2456 = vmatprep.subr.bf16.mxu0 0
        %2457 = vmatpush1.bf16.xpose.msra.mxu0 %v2442
        %2458 = vmatprep.subr.bf16.mxu0 0
        %2459 = vmatpush1.bf16.xpose.msra.mxu0 %v2439
        %2460 = vmatprep.subr.bf16.mxu0 0
        %2461 = vmatpush2.bf16.xpose.msra.mxu0 0
        %2462 = vmatprep.subr.bf16.mxu0 0
        %2463 = vmatpush2.bf16.xpose.msra.mxu0 0
        %2464 = vmatprep.subr.bf16.mxu0 0
        %2465 = vmatpush2.bf16.xpose.msra.mxu0 0
        %2466 = vmatprep.subr.bf16.mxu0 0
        %2467 = vmatpush2.bf16.xpose.msra.mxu0 0
        %2468 = vmatprep.subr.bf16.mxu0 0
        %2469 = vmatpush2.bf16.xpose.msra.mxu0 0
        %2470 = vmatprep.subr.bf16.mxu0 0
        %2471 = vmatpush2.bf16.xpose.msra.mxu0 0
        %2472 = vmatprep.subr.bf16.mxu0 0
        %2473 = vmatpush2.bf16.xpose.msra.mxu0 0
        %2474 = vmatprep.subr.bf16.mxu0 0
        %2475 = vmatpush2.bf16.xpose.msra.mxu0 0
        %2476 = vmatprep.mubr.bf16.mxu0 0
        %2477 = vmatmul.mubr.bf16.gmra.mxu0 %v2433
        %v2478 = vpop.f32.mrf.mxu0
        %v2479 = vadd.f32 %v2257, %v2478
        %v2480 = vpop.f32.mrf.mxu0
        %v2481 = vpop.f32.mrf.mxu0
        %v2482 = vadd.f32 %v2257, %v2481
        %v2483 = vpop.f32.mrf.mxu0
        %2484 = vmatprep.mubr.bf16.mxu0 0
        %2485 = vmatmul.mubr.bf16.gmra.mxu0 %v2436
        %v2486 = vpop.f32.mrf.mxu0
        %v2487 = vadd.f32 %v2257, %v2486
        %v2488 = vpop.f32.mrf.mxu0
        %v2489 = vpop.f32.mrf.mxu0
        %v2490 = vadd.f32 %v2257, %v2489
        %v2491 = vpop.f32.mrf.mxu0
        %2492 = vdwg.mxu0
        %v2493 = vsel %vm1494, %v2479, -inf
        %2494 = vmax.xlane.f32.xlu0 %v2493
        %v2495 = vpop.xlane.xlu0 %2494
        %v2496 = vsel %vm1494, %v2482, -inf
        %2497 = vmax.xlane.f32.xlu0 %v2496
        %v2498 = vpop.xlane.xlu0 %2497
        %v2499 = vsel %vm1494, %v2487, -inf
        %2500 = vmax.xlane.f32.xlu0 %v2499
        %v2501 = vpop.xlane.xlu0 %2500
        %v2502 = vsel %vm1494, %v2490, -inf
        %2503 = vmax.xlane.f32.xlu0 %v2502
        %v2504 = vpop.xlane.xlu0 %2503
        %v2505 = vsub.f32 %v2479, %v2495
        %v2506 = vsub.f32 %v2482, %v2498
        %v2507 = vsub.f32 %v2487, %v2501
        %v2508 = vsub.f32 %v2490, %v2504
        %v2509 = vmul.f32 %v2505, 1.442695
        %v2510 = vpow.pop %v2509
        %v2511 = vmul.f32 %v2506, 1.442695
        %v2512 = vpow.pop %v2511
        %v2513 = vmul.f32 %v2507, 1.442695
        %v2514 = vpow.pop %v2513
        %v2515 = vmul.f32 %v2508, 1.442695
        %v2516 = vpow.pop %v2515
        %v2517 = vsel %vm1494, %v2510, 0.0
        %2518 = vadd.xlane.f32.xlu0 %v2517
        %v2519 = vpop.xlane.xlu0 %2518
        %v2520 = vsel %vm1494, %v2512, 0.0
        %2521 = vadd.xlane.f32.xlu0 %v2520
        %v2522 = vpop.xlane.xlu0 %2521
        %v2523 = vsel %vm1494, %v2514, 0.0
        %2524 = vadd.xlane.f32.xlu0 %v2523
        %v2525 = vpop.xlane.xlu0 %2524
        %v2526 = vsel %vm1494, %v2516, 0.0
        %2527 = vadd.xlane.f32.xlu0 %v2526
        %v2528 = vpop.xlane.xlu0 %2527
        %v2529 = vrcp.pop %v2519
        %v2530 = vrcp.pop %v2522
        %v2531 = vrcp.pop %v2525
        %v2532 = vrcp.pop %v2528
        %v2533 = vmul.f32 %v2510, %v2529
        %v2534 = vmul.f32 %v2512, %v2530
        %v2535 = vmul.f32 %v2514, %v2531
        %v2536 = vmul.f32 %v2516, %v2532
        %v2537 = vpack.c.bf16 %v2534, %v2533
        %v2538 = vpack.c.bf16 %v2536, %v2535
        %2541 = vrot.lane.b32.xlu0 %v1473, 96
        %v2542 = vpop.permute.xlu0 %2541
        %2543 = vrot.lane.b32.xlu0 %v1476, 96
        %v2544 = vpop.permute.xlu0 %2543
        %v2548 = vsel %vm1494, %v2537, 0
        %v2551 = vsel %vm1494, %v2538, 0
        %2553 = vmatprep.subr.bf16.mxu0 0
        %2554 = vmatpush1.bf16.msra.mxu0 0
        %2555 = vmatprep.subr.bf16.mxu0 0
        %2556 = vmatpush1.bf16.msra.mxu0 0
        %2557 = vmatprep.subr.bf16.mxu0 0
        %2558 = vmatpush1.bf16.msra.mxu0 0
        %2559 = vmatprep.subr.bf16.mxu0 0
        %2560 = vmatpush1.bf16.msra.mxu0 0
        %2561 = vmatprep.subr.bf16.mxu0 0
        %2562 = vmatpush1.bf16.msra.mxu0 0
        %2563 = vmatprep.subr.bf16.mxu0 0
        %2564 = vmatpush1.bf16.msra.mxu0 0
        %2565 = vmatprep.subr.bf16.mxu0 0
        %2566 = vmatpush1.bf16.msra.mxu0 %v2544
        %2567 = vmatprep.subr.bf16.mxu0 0
        %2568 = vmatpush1.bf16.msra.mxu0 %v2542
        %2569 = vmatprep.subr.bf16.mxu0 0
        %2570 = vmatpush2.bf16.msra.mxu0 0
        %2571 = vmatprep.subr.bf16.mxu0 0
        %2572 = vmatpush2.bf16.msra.mxu0 0
        %2573 = vmatprep.subr.bf16.mxu0 0
        %2574 = vmatpush2.bf16.msra.mxu0 0
        %2575 = vmatprep.subr.bf16.mxu0 0
        %2576 = vmatpush2.bf16.msra.mxu0 0
        %2577 = vmatprep.subr.bf16.mxu0 0
        %2578 = vmatpush2.bf16.msra.mxu0 0
        %2579 = vmatprep.subr.bf16.mxu0 0
        %2580 = vmatpush2.bf16.msra.mxu0 0
        %2581 = vmatprep.subr.bf16.mxu0 0
        %2582 = vmatpush2.bf16.msra.mxu0 0
        %2583 = vmatprep.subr.bf16.mxu0 0
        %2584 = vmatpush2.bf16.msra.mxu0 0
        %2585 = vmatprep.mubr.bf16.mxu0 0
        %2586 = vmatmul.mubr.bf16.gmra.mxu0 %v2548
        %v2587 = vpop.f32.mrf.mxu0
        %v2588 = vadd.f32 0.0, %v2587
        %v2589 = vpop.f32.mrf.mxu0
        %v2590 = vpop.f32.mrf.mxu0
        %v2591 = vadd.f32 0.0, %v2590
        %v2592 = vpop.f32.mrf.mxu0
        %2593 = vmatprep.mubr.bf16.mxu0 0
        %2594 = vmatmul.mubr.bf16.gmra.mxu0 %v2551
        %v2595 = vpop.f32.mrf.mxu0
        %v2596 = vadd.f32 0.0, %v2595
        %v2597 = vpop.f32.mrf.mxu0
        %v2598 = vpop.f32.mrf.mxu0
        %v2599 = vadd.f32 0.0, %v2598
        %v2600 = vpop.f32.mrf.mxu0
        %2601 = vdwg.mxu0
        %2602 = vrot.lane.b32.xlu0 %v1471, 64
        %v2603 = vpop.permute.xlu0 %2602
        %2604 = vrot.lane.b32.xlu0 %v1474, 64
        %v2605 = vpop.permute.xlu0 %2604
        %2606 = vrot.lane.b32.xlu0 %v1472, 64
        %v2607 = vpop.permute.xlu0 %2606
        %2608 = vrot.lane.b32.xlu0 %v1475, 64
        %v2609 = vpop.permute.xlu0 %2608
        %v2611 = vsel %vm1494, %v2603, 0
        %v2614 = vsel %vm1494, %v2605, 0
        %v2617 = vsel %vm1494, %v2607, 0
        %v2620 = vsel %vm1494, %v2609, 0
        %2622 = vmatprep.subr.bf16.mxu0 0
        %2623 = vmatpush1.bf16.xpose.msra.mxu0 0
        %2624 = vmatprep.subr.bf16.mxu0 0
        %2625 = vmatpush1.bf16.xpose.msra.mxu0 0
        %2626 = vmatprep.subr.bf16.mxu0 0
        %2627 = vmatpush1.bf16.xpose.msra.mxu0 0
        %2628 = vmatprep.subr.bf16.mxu0 0
        %2629 = vmatpush1.bf16.xpose.msra.mxu0 0
        %2630 = vmatprep.subr.bf16.mxu0 0
        %2631 = vmatpush1.bf16.xpose.msra.mxu0 0
        %2632 = vmatprep.subr.bf16.mxu0 0
        %2633 = vmatpush1.bf16.xpose.msra.mxu0 0
        %2634 = vmatprep.subr.bf16.mxu0 0
        %2635 = vmatpush1.bf16.xpose.msra.mxu0 %v2620
        %2636 = vmatprep.subr.bf16.mxu0 0
        %2637 = vmatpush1.bf16.xpose.msra.mxu0 %v2617
        %2638 = vmatprep.subr.bf16.mxu0 0
        %2639 = vmatpush2.bf16.xpose.msra.mxu0 0
        %2640 = vmatprep.subr.bf16.mxu0 0
        %2641 = vmatpush2.bf16.xpose.msra.mxu0 0
        %2642 = vmatprep.subr.bf16.mxu0 0
        %2643 = vmatpush2.bf16.xpose.msra.mxu0 0
        %2644 = vmatprep.subr.bf16.mxu0 0
        %2645 = vmatpush2.bf16.xpose.msra.mxu0 0
        %2646 = vmatprep.subr.bf16.mxu0 0
        %2647 = vmatpush2.bf16.xpose.msra.mxu0 0
        %2648 = vmatprep.subr.bf16.mxu0 0
        %2649 = vmatpush2.bf16.xpose.msra.mxu0 0
        %2650 = vmatprep.subr.bf16.mxu0 0
        %2651 = vmatpush2.bf16.xpose.msra.mxu0 0
        %2652 = vmatprep.subr.bf16.mxu0 0
        %2653 = vmatpush2.bf16.xpose.msra.mxu0 0
        %2654 = vmatprep.mubr.bf16.mxu0 0
        %2655 = vmatmul.mubr.bf16.gmra.mxu0 %v2611
        %v2656 = vpop.f32.mrf.mxu0
        %v2657 = vadd.f32 %v2257, %v2656
        %v2658 = vpop.f32.mrf.mxu0
        %v2659 = vpop.f32.mrf.mxu0
        %v2660 = vadd.f32 %v2257, %v2659
        %v2661 = vpop.f32.mrf.mxu0
        %2662 = vmatprep.mubr.bf16.mxu0 0
        %2663 = vmatmul.mubr.bf16.gmra.mxu0 %v2614
        %v2664 = vpop.f32.mrf.mxu0
        %v2665 = vadd.f32 %v2257, %v2664
        %v2666 = vpop.f32.mrf.mxu0
        %v2667 = vpop.f32.mrf.mxu0
        %v2668 = vadd.f32 %v2257, %v2667
        %v2669 = vpop.f32.mrf.mxu0
        %2670 = vdwg.mxu0
        %v2671 = vsel %vm1494, %v2657, -inf
        %2672 = vmax.xlane.f32.xlu0 %v2671
        %v2673 = vpop.xlane.xlu0 %2672
        %v2674 = vsel %vm1494, %v2660, -inf
        %2675 = vmax.xlane.f32.xlu0 %v2674
        %v2676 = vpop.xlane.xlu0 %2675
        %v2677 = vsel %vm1494, %v2665, -inf
        %2678 = vmax.xlane.f32.xlu0 %v2677
        %v2679 = vpop.xlane.xlu0 %2678
        %v2680 = vsel %vm1494, %v2668, -inf
        %2681 = vmax.xlane.f32.xlu0 %v2680
        %v2682 = vpop.xlane.xlu0 %2681
        %v2683 = vsub.f32 %v2657, %v2673
        %v2684 = vsub.f32 %v2660, %v2676
        %v2685 = vsub.f32 %v2665, %v2679
        %v2686 = vsub.f32 %v2668, %v2682
        %v2687 = vmul.f32 %v2683, 1.442695
        %v2688 = vpow.pop %v2687
        %v2689 = vmul.f32 %v2684, 1.442695
        %v2690 = vpow.pop %v2689
        %v2691 = vmul.f32 %v2685, 1.442695
        %v2692 = vpow.pop %v2691
        %v2693 = vmul.f32 %v2686, 1.442695
        %v2694 = vpow.pop %v2693
        %v2695 = vsel %vm1494, %v2688, 0.0
        %2696 = vadd.xlane.f32.xlu0 %v2695
        %v2697 = vpop.xlane.xlu0 %2696
        %v2698 = vsel %vm1494, %v2690, 0.0
        %2699 = vadd.xlane.f32.xlu0 %v2698
        %v2700 = vpop.xlane.xlu0 %2699
        %v2701 = vsel %vm1494, %v2692, 0.0
        %2702 = vadd.xlane.f32.xlu0 %v2701
        %v2703 = vpop.xlane.xlu0 %2702
        %v2704 = vsel %vm1494, %v2694, 0.0
        %2705 = vadd.xlane.f32.xlu0 %v2704
        %v2706 = vpop.xlane.xlu0 %2705
        %v2707 = vrcp.pop %v2697
        %v2708 = vrcp.pop %v2700
        %v2709 = vrcp.pop %v2703
        %v2710 = vrcp.pop %v2706
        %v2711 = vmul.f32 %v2688, %v2707
        %v2712 = vmul.f32 %v2690, %v2708
        %v2713 = vmul.f32 %v2692, %v2709
        %v2714 = vmul.f32 %v2694, %v2710
        %v2715 = vpack.c.bf16 %v2712, %v2711
        %v2716 = vpack.c.bf16 %v2714, %v2713
        %2717 = vrot.lane.b32.xlu0 %v1473, 64
        %v2718 = vpop.permute.xlu0 %2717
        %2719 = vrot.lane.b32.xlu0 %v1476, 64
        %v2720 = vpop.permute.xlu0 %2719
        %v2724 = vsel %vm1494, %v2715, 0
        %v2727 = vsel %vm1494, %v2716, 0
        %2729 = vmatprep.subr.bf16.mxu0 0
        %2730 = vmatpush1.bf16.msra.mxu0 0
        %2731 = vmatprep.subr.bf16.mxu0 0
        %2732 = vmatpush1.bf16.msra.mxu0 0
        %2733 = vmatprep.subr.bf16.mxu0 0
        %2734 = vmatpush1.bf16.msra.mxu0 0
        %2735 = vmatprep.subr.bf16.mxu0 0
        %2736 = vmatpush1.bf16.msra.mxu0 0
        %2737 = vmatprep.subr.bf16.mxu0 0
        %2738 = vmatpush1.bf16.msra.mxu0 0
        %2739 = vmatprep.subr.bf16.mxu0 0
        %2740 = vmatpush1.bf16.msra.mxu0 0
        %2741 = vmatprep.subr.bf16.mxu0 0
        %2742 = vmatpush1.bf16.msra.mxu0 %v2720
        %2743 = vmatprep.subr.bf16.mxu0 0
        %2744 = vmatpush1.bf16.msra.mxu0 %v2718
        %2745 = vmatprep.subr.bf16.mxu0 0
        %2746 = vmatpush2.bf16.msra.mxu0 0
        %2747 = vmatprep.subr.bf16.mxu0 0
        %2748 = vmatpush2.bf16.msra.mxu0 0
        %2749 = vmatprep.subr.bf16.mxu0 0
        %2750 = vmatpush2.bf16.msra.mxu0 0
        %2751 = vmatprep.subr.bf16.mxu0 0
        %2752 = vmatpush2.bf16.msra.mxu0 0
        %2753 = vmatprep.subr.bf16.mxu0 0
        %2754 = vmatpush2.bf16.msra.mxu0 0
        %2755 = vmatprep.subr.bf16.mxu0 0
        %2756 = vmatpush2.bf16.msra.mxu0 0
        %2757 = vmatprep.subr.bf16.mxu0 0
        %2758 = vmatpush2.bf16.msra.mxu0 0
        %2759 = vmatprep.subr.bf16.mxu0 0
        %2760 = vmatpush2.bf16.msra.mxu0 0
        %2761 = vmatprep.mubr.bf16.mxu0 0
        %2762 = vmatmul.mubr.bf16.gmra.mxu0 %v2724
        %v2763 = vpop.f32.mrf.mxu0
        %v2764 = vadd.f32 0.0, %v2763
        %v2765 = vpop.f32.mrf.mxu0
        %v2766 = vpop.f32.mrf.mxu0
        %v2767 = vadd.f32 0.0, %v2766
        %v2768 = vpop.f32.mrf.mxu0
        %2769 = vmatprep.mubr.bf16.mxu0 0
        %2770 = vmatmul.mubr.bf16.gmra.mxu0 %v2727
        %v2771 = vpop.f32.mrf.mxu0
        %v2772 = vadd.f32 0.0, %v2771
        %v2773 = vpop.f32.mrf.mxu0
        %v2774 = vpop.f32.mrf.mxu0
        %v2775 = vadd.f32 0.0, %v2774
        %v2776 = vpop.f32.mrf.mxu0
        %2777 = vdwg.mxu0
        %2778 = vrot.lane.b32.xlu0 %v1471, 32
        %v2779 = vpop.permute.xlu0 %2778
        %2780 = vrot.lane.b32.xlu0 %v1474, 32
        %v2781 = vpop.permute.xlu0 %2780
        %2782 = vrot.lane.b32.xlu0 %v1472, 32
        %v2783 = vpop.permute.xlu0 %2782
        %2784 = vrot.lane.b32.xlu0 %v1475, 32
        %v2785 = vpop.permute.xlu0 %2784
        %v2787 = vsel %vm1494, %v2779, 0
        %v2790 = vsel %vm1494, %v2781, 0
        %v2793 = vsel %vm1494, %v2783, 0
        %v2796 = vsel %vm1494, %v2785, 0
        %2798 = vmatprep.subr.bf16.mxu0 0
        %2799 = vmatpush1.bf16.xpose.msra.mxu0 0
        %2800 = vmatprep.subr.bf16.mxu0 0
        %2801 = vmatpush1.bf16.xpose.msra.mxu0 0
        %2802 = vmatprep.subr.bf16.mxu0 0
        %2803 = vmatpush1.bf16.xpose.msra.mxu0 0
        %2804 = vmatprep.subr.bf16.mxu0 0
        %2805 = vmatpush1.bf16.xpose.msra.mxu0 0
        %2806 = vmatprep.subr.bf16.mxu0 0
        %2807 = vmatpush1.bf16.xpose.msra.mxu0 0
        %2808 = vmatprep.subr.bf16.mxu0 0
        %2809 = vmatpush1.bf16.xpose.msra.mxu0 0
        %2810 = vmatprep.subr.bf16.mxu0 0
        %2811 = vmatpush1.bf16.xpose.msra.mxu0 %v2796
        %2812 = vmatprep.subr.bf16.mxu0 0
        %2813 = vmatpush1.bf16.xpose.msra.mxu0 %v2793
        %2814 = vmatprep.subr.bf16.mxu0 0
        %2815 = vmatpush2.bf16.xpose.msra.mxu0 0
        %2816 = vmatprep.subr.bf16.mxu0 0
        %2817 = vmatpush2.bf16.xpose.msra.mxu0 0
        %2818 = vmatprep.subr.bf16.mxu0 0
        %2819 = vmatpush2.bf16.xpose.msra.mxu0 0
        %2820 = vmatprep.subr.bf16.mxu0 0
        %2821 = vmatpush2.bf16.xpose.msra.mxu0 0
        %2822 = vmatprep.subr.bf16.mxu0 0
        %2823 = vmatpush2.bf16.xpose.msra.mxu0 0
        %2824 = vmatprep.subr.bf16.mxu0 0
        %2825 = vmatpush2.bf16.xpose.msra.mxu0 0
        %2826 = vmatprep.subr.bf16.mxu0 0
        %2827 = vmatpush2.bf16.xpose.msra.mxu0 0
        %2828 = vmatprep.subr.bf16.mxu0 0
        %2829 = vmatpush2.bf16.xpose.msra.mxu0 0
        %2830 = vmatprep.mubr.bf16.mxu0 0
        %2831 = vmatmul.mubr.bf16.gmra.mxu0 %v2787
        %v2832 = vpop.f32.mrf.mxu0
        %v2833 = vadd.f32 %v2257, %v2832
        %v2834 = vpop.f32.mrf.mxu0
        %v2835 = vpop.f32.mrf.mxu0
        %v2836 = vadd.f32 %v2257, %v2835
        %v2837 = vpop.f32.mrf.mxu0
        %2838 = vmatprep.mubr.bf16.mxu0 0
        %2839 = vmatmul.mubr.bf16.gmra.mxu0 %v2790
        %v2840 = vpop.f32.mrf.mxu0
        %v2841 = vadd.f32 %v2257, %v2840
        %v2842 = vpop.f32.mrf.mxu0
        %v2843 = vpop.f32.mrf.mxu0
        %v2844 = vadd.f32 %v2257, %v2843
        %v2845 = vpop.f32.mrf.mxu0
        %2846 = vdwg.mxu0
        %v2847 = vsel %vm1494, %v2833, -inf
        %2848 = vmax.xlane.f32.xlu0 %v2847
        %v2849 = vpop.xlane.xlu0 %2848
        %v2850 = vsel %vm1494, %v2836, -inf
        %2851 = vmax.xlane.f32.xlu0 %v2850
        %v2852 = vpop.xlane.xlu0 %2851
        %v2853 = vsel %vm1494, %v2841, -inf
        %2854 = vmax.xlane.f32.xlu0 %v2853
        %v2855 = vpop.xlane.xlu0 %2854
        %v2856 = vsel %vm1494, %v2844, -inf
        %2857 = vmax.xlane.f32.xlu0 %v2856
        %v2858 = vpop.xlane.xlu0 %2857
        %v2859 = vsub.f32 %v2833, %v2849
        %v2860 = vsub.f32 %v2836, %v2852
        %v2861 = vsub.f32 %v2841, %v2855
        %v2862 = vsub.f32 %v2844, %v2858
        %v2863 = vmul.f32 %v2859, 1.442695
        %v2864 = vpow.pop %v2863
        %v2865 = vmul.f32 %v2860, 1.442695
        %v2866 = vpow.pop %v2865
        %v2867 = vmul.f32 %v2861, 1.442695
        %v2868 = vpow.pop %v2867
        %v2869 = vmul.f32 %v2862, 1.442695
        %v2870 = vpow.pop %v2869
        %v2871 = vsel %vm1494, %v2864, 0.0
        %2872 = vadd.xlane.f32.xlu0 %v2871
        %v2873 = vpop.xlane.xlu0 %2872
        %v2874 = vsel %vm1494, %v2866, 0.0
        %2875 = vadd.xlane.f32.xlu0 %v2874
        %v2876 = vpop.xlane.xlu0 %2875
        %v2877 = vsel %vm1494, %v2868, 0.0
        %2878 = vadd.xlane.f32.xlu0 %v2877
        %v2879 = vpop.xlane.xlu0 %2878
        %v2880 = vsel %vm1494, %v2870, 0.0
        %2881 = vadd.xlane.f32.xlu0 %v2880
        %v2882 = vpop.xlane.xlu0 %2881
        %v2883 = vrcp.pop %v2873
        %v2884 = vrcp.pop %v2876
        %v2885 = vrcp.pop %v2879
        %v2886 = vrcp.pop %v2882
        %v2887 = vmul.f32 %v2864, %v2883
        %v2888 = vmul.f32 %v2866, %v2884
        %v2889 = vmul.f32 %v2868, %v2885
        %v2890 = vmul.f32 %v2870, %v2886
        %v2891 = vpack.c.bf16 %v2888, %v2887
        %v2892 = vpack.c.bf16 %v2890, %v2889
        %2893 = vrot.lane.b32.xlu0 %v1473, 32
        %v2894 = vpop.permute.xlu0 %2893
        %2895 = vrot.lane.b32.xlu0 %v1476, 32
        %v2896 = vpop.permute.xlu0 %2895
        %v2900 = vsel %vm1494, %v2891, 0
        %v2903 = vsel %vm1494, %v2892, 0
        %2905 = vmatprep.subr.bf16.mxu0 0
        %2906 = vmatpush1.bf16.msra.mxu0 0
        %2907 = vmatprep.subr.bf16.mxu0 0
        %2908 = vmatpush1.bf16.msra.mxu0 0
        %2909 = vmatprep.subr.bf16.mxu0 0
        %2910 = vmatpush1.bf16.msra.mxu0 0
        %2911 = vmatprep.subr.bf16.mxu0 0
        %2912 = vmatpush1.bf16.msra.mxu0 0
        %2913 = vmatprep.subr.bf16.mxu0 0
        %2914 = vmatpush1.bf16.msra.mxu0 0
        %2915 = vmatprep.subr.bf16.mxu0 0
        %2916 = vmatpush1.bf16.msra.mxu0 0
        %2917 = vmatprep.subr.bf16.mxu0 0
        %2918 = vmatpush1.bf16.msra.mxu0 %v2896
        %2919 = vmatprep.subr.bf16.mxu0 0
        %2920 = vmatpush1.bf16.msra.mxu0 %v2894
        %2921 = vmatprep.subr.bf16.mxu0 0
        %2922 = vmatpush2.bf16.msra.mxu0 0
        %2923 = vmatprep.subr.bf16.mxu0 0
        %2924 = vmatpush2.bf16.msra.mxu0 0
        %2925 = vmatprep.subr.bf16.mxu0 0
        %2926 = vmatpush2.bf16.msra.mxu0 0
        %2927 = vmatprep.subr.bf16.mxu0 0
        %2928 = vmatpush2.bf16.msra.mxu0 0
        %2929 = vmatprep.subr.bf16.mxu0 0
        %2930 = vmatpush2.bf16.msra.mxu0 0
        %2931 = vmatprep.subr.bf16.mxu0 0
        %2932 = vmatpush2.bf16.msra.mxu0 0
        %2933 = vmatprep.subr.bf16.mxu0 0
        %2934 = vmatpush2.bf16.msra.mxu0 0
        %2935 = vmatprep.subr.bf16.mxu0 0
        %2936 = vmatpush2.bf16.msra.mxu0 0
        %2937 = vmatprep.mubr.bf16.mxu0 0
        %2938 = vmatmul.mubr.bf16.gmra.mxu0 %v2900
        %v2939 = vpop.f32.mrf.mxu0
        %v2940 = vadd.f32 0.0, %v2939
        %v2941 = vpop.f32.mrf.mxu0
        %v2942 = vpop.f32.mrf.mxu0
        %v2943 = vadd.f32 0.0, %v2942
        %v2944 = vpop.f32.mrf.mxu0
        %2945 = vmatprep.mubr.bf16.mxu0 0
        %2946 = vmatmul.mubr.bf16.gmra.mxu0 %v2903
        %v2947 = vpop.f32.mrf.mxu0
        %v2948 = vadd.f32 0.0, %v2947
        %v2949 = vpop.f32.mrf.mxu0
        %v2950 = vpop.f32.mrf.mxu0
        %v2951 = vadd.f32 0.0, %v2950
        %v2952 = vpop.f32.mrf.mxu0
        %2953 = vdwg.mxu0
        %2958 = vrot.lane.b32.xlu0 %v2588, 32
        %v2959 = vpop.permute.xlu0 %2958
        %2960 = vrot.lane.b32.xlu0 %v2591, 32
        %v2961 = vpop.permute.xlu0 %2960
        %2962 = vrot.lane.b32.xlu0 %v2596, 32
        %v2963 = vpop.permute.xlu0 %2962
        %2964 = vrot.lane.b32.xlu0 %v2599, 32
        %v2965 = vpop.permute.xlu0 %2964
        %2974 = vrot.lane.b32.xlu0 %v2764, 64
        %v2975 = vpop.permute.xlu0 %2974
        %2976 = vrot.lane.b32.xlu0 %v2767, 64
        %v2977 = vpop.permute.xlu0 %2976
        %2978 = vrot.lane.b32.xlu0 %v2772, 64
        %v2979 = vpop.permute.xlu0 %2978
        %2980 = vrot.lane.b32.xlu0 %v2775, 64
        %v2981 = vpop.permute.xlu0 %2980
        %2990 = vrot.lane.b32.xlu0 %v2940, 96
        %v2991 = vpop.permute.xlu0 %2990
        %2992 = vrot.lane.b32.xlu0 %v2943, 96
        %v2993 = vpop.permute.xlu0 %2992
        %2994 = vrot.lane.b32.xlu0 %v2948, 96
        %v2995 = vpop.permute.xlu0 %2994
        %2996 = vrot.lane.b32.xlu0 %v2951, 96
        %v2997 = vpop.permute.xlu0 %2996
        %v3002 = vsel %vm1494, %v2406, %v2959
        %v3003 = vsel %vm1494, %v2409, %v2961
        %v3004 = vsel %vm1494, %v2414, %v2963
        %v3005 = vsel %vm1494, %v2417, %v2965
        %v3006 = vsel %vm2243, %v3002, %v2975
        %v3007 = vsel %vm2243, %v3003, %v2977
        %v3008 = vsel %vm2243, %v3004, %v2979
        %v3009 = vsel %vm2243, %v3005, %v2981
        %v3010 = vsel %vm2248, %v3006, %v2991
        %v3011 = vsel %vm2248, %v3007, %v2993
        %v3012 = vsel %vm2248, %v3008, %v2995
        %v3013 = vsel %vm2248, %v3009, %v2997
        %v3014 = vld [vmem:[%s1 + $0x2] sm:$0x1]
        %v3015 = vlaneseq
        %v3016 = vshrl.u32 %v3015, 7
        %v3017 = vsub.s32 0, %v3016
        %v3018 = vrot.slane %v3014, %v3017
        %v3020 = vsel %vm1494, %v1477, 0
        %v3023 = vsel %vm1494, %v1480, 0
        %v3026 = vsel %vm1494, %v1478, 0
        %v3029 = vsel %vm1494, %v1481, 0
        %3031 = vmatprep.subr.bf16.mxu0 0
        %3032 = vmatpush1.bf16.xpose.msra.mxu0 0
        %3033 = vmatprep.subr.bf16.mxu0 0
        %3034 = vmatpush1.bf16.xpose.msra.mxu0 0
        %3035 = vmatprep.subr.bf16.mxu0 0
        %3036 = vmatpush1.bf16.xpose.msra.mxu0 0
        %3037 = vmatprep.subr.bf16.mxu0 0
        %3038 = vmatpush1.bf16.xpose.msra.mxu0 0
        %3039 = vmatprep.subr.bf16.mxu0 0
        %3040 = vmatpush1.bf16.xpose.msra.mxu0 0
        %3041 = vmatprep.subr.bf16.mxu0 0
        %3042 = vmatpush1.bf16.xpose.msra.mxu0 0
        %3043 = vmatprep.subr.bf16.mxu0 0
        %3044 = vmatpush1.bf16.xpose.msra.mxu0 %v3029
        %3045 = vmatprep.subr.bf16.mxu0 0
        %3046 = vmatpush1.bf16.xpose.msra.mxu0 %v3026
        %3047 = vmatprep.subr.bf16.mxu0 0
        %3048 = vmatpush2.bf16.xpose.msra.mxu0 0
        %3049 = vmatprep.subr.bf16.mxu0 0
        %3050 = vmatpush2.bf16.xpose.msra.mxu0 0
        %3051 = vmatprep.subr.bf16.mxu0 0
        %3052 = vmatpush2.bf16.xpose.msra.mxu0 0
        %3053 = vmatprep.subr.bf16.mxu0 0
        %3054 = vmatpush2.bf16.xpose.msra.mxu0 0
        %3055 = vmatprep.subr.bf16.mxu0 0
        %3056 = vmatpush2.bf16.xpose.msra.mxu0 0
        %3057 = vmatprep.subr.bf16.mxu0 0
        %3058 = vmatpush2.bf16.xpose.msra.mxu0 0
        %3059 = vmatprep.subr.bf16.mxu0 0
        %3060 = vmatpush2.bf16.xpose.msra.mxu0 0
        %3061 = vmatprep.subr.bf16.mxu0 0
        %3062 = vmatpush2.bf16.xpose.msra.mxu0 0
        %3063 = vmatprep.mubr.bf16.mxu0 0
        %3064 = vmatmul.mubr.bf16.gmra.mxu0 %v3020
        %v3065 = vpop.f32.mrf.mxu0
        %v3066 = vadd.f32 %v3018, %v3065
        %v3067 = vpop.f32.mrf.mxu0
        %v3068 = vpop.f32.mrf.mxu0
        %v3069 = vadd.f32 %v3018, %v3068
        %v3070 = vpop.f32.mrf.mxu0
        %3071 = vmatprep.mubr.bf16.mxu0 0
        %3072 = vmatmul.mubr.bf16.gmra.mxu0 %v3023
        %v3073 = vpop.f32.mrf.mxu0
        %v3074 = vadd.f32 %v3018, %v3073
        %v3075 = vpop.f32.mrf.mxu0
        %v3076 = vpop.f32.mrf.mxu0
        %v3077 = vadd.f32 %v3018, %v3076
        %v3078 = vpop.f32.mrf.mxu0
        %3079 = vdwg.mxu0
        %v3080 = vsel %vm1494, %v3066, -inf
        %3081 = vmax.xlane.f32.xlu0 %v3080
        %v3082 = vpop.xlane.xlu0 %3081
        %v3083 = vsel %vm1494, %v3069, -inf
        %3084 = vmax.xlane.f32.xlu0 %v3083
        %v3085 = vpop.xlane.xlu0 %3084
        %v3086 = vsel %vm1494, %v3074, -inf
        %3087 = vmax.xlane.f32.xlu0 %v3086
        %v3088 = vpop.xlane.xlu0 %3087
        %v3089 = vsel %vm1494, %v3077, -inf
        %3090 = vmax.xlane.f32.xlu0 %v3089
        %v3091 = vpop.xlane.xlu0 %3090
        %v3092 = vsub.f32 %v3066, %v3082
        %v3093 = vsub.f32 %v3069, %v3085
        %v3094 = vsub.f32 %v3074, %v3088
        %v3095 = vsub.f32 %v3077, %v3091
        %v3096 = vmul.f32 %v3092, 1.442695
        %v3097 = vpow.pop %v3096
        %v3098 = vmul.f32 %v3093, 1.442695
        %v3099 = vpow.pop %v3098
        %v3100 = vmul.f32 %v3094, 1.442695
        %v3101 = vpow.pop %v3100
        %v3102 = vmul.f32 %v3095, 1.442695
        %v3103 = vpow.pop %v3102
        %v3104 = vsel %vm1494, %v3097, 0.0
        %3105 = vadd.xlane.f32.xlu0 %v3104
        %v3106 = vpop.xlane.xlu0 %3105
        %v3107 = vsel %vm1494, %v3099, 0.0
        %3108 = vadd.xlane.f32.xlu0 %v3107
        %v3109 = vpop.xlane.xlu0 %3108
        %v3110 = vsel %vm1494, %v3101, 0.0
        %3111 = vadd.xlane.f32.xlu0 %v3110
        %v3112 = vpop.xlane.xlu0 %3111
        %v3113 = vsel %vm1494, %v3103, 0.0
        %3114 = vadd.xlane.f32.xlu0 %v3113
        %v3115 = vpop.xlane.xlu0 %3114
        %v3116 = vrcp.pop %v3106
        %v3117 = vrcp.pop %v3109
        %v3118 = vrcp.pop %v3112
        %v3119 = vrcp.pop %v3115
        %v3120 = vmul.f32 %v3097, %v3116
        %v3121 = vmul.f32 %v3099, %v3117
        %v3122 = vmul.f32 %v3101, %v3118
        %v3123 = vmul.f32 %v3103, %v3119
        %v3124 = vpack.c.bf16 %v3121, %v3120
        %v3125 = vpack.c.bf16 %v3123, %v3122
        %v3127 = vsel %vm1494, %v3124, 0
        %v3130 = vsel %vm1494, %v3125, 0
        %3132 = vmatprep.subr.bf16.mxu0 0
        %3133 = vmatpush1.bf16.msra.mxu0 0
        %3134 = vmatprep.subr.bf16.mxu0 0
        %3135 = vmatpush1.bf16.msra.mxu0 0
        %3136 = vmatprep.subr.bf16.mxu0 0
        %3137 = vmatpush1.bf16.msra.mxu0 0
        %3138 = vmatprep.subr.bf16.mxu0 0
        %3139 = vmatpush1.bf16.msra.mxu0 0
        %3140 = vmatprep.subr.bf16.mxu0 0
        %3141 = vmatpush1.bf16.msra.mxu0 0
        %3142 = vmatprep.subr.bf16.mxu0 0
        %3143 = vmatpush1.bf16.msra.mxu0 0
        %3144 = vmatprep.subr.bf16.mxu0 0
        %3145 = vmatpush1.bf16.msra.mxu0 %v1482
        %3146 = vmatprep.subr.bf16.mxu0 0
        %3147 = vmatpush1.bf16.msra.mxu0 %v1479
        %3148 = vmatprep.subr.bf16.mxu0 0
        %3149 = vmatpush2.bf16.msra.mxu0 0
        %3150 = vmatprep.subr.bf16.mxu0 0
        %3151 = vmatpush2.bf16.msra.mxu0 0
        %3152 = vmatprep.subr.bf16.mxu0 0
        %3153 = vmatpush2.bf16.msra.mxu0 0
        %3154 = vmatprep.subr.bf16.mxu0 0
        %3155 = vmatpush2.bf16.msra.mxu0 0
        %3156 = vmatprep.subr.bf16.mxu0 0
        %3157 = vmatpush2.bf16.msra.mxu0 0
        %3158 = vmatprep.subr.bf16.mxu0 0
        %3159 = vmatpush2.bf16.msra.mxu0 0
        %3160 = vmatprep.subr.bf16.mxu0 0
        %3161 = vmatpush2.bf16.msra.mxu0 0
        %3162 = vmatprep.subr.bf16.mxu0 0
        %3163 = vmatpush2.bf16.msra.mxu0 0
        %3164 = vmatprep.mubr.bf16.mxu0 0
        %3165 = vmatmul.mubr.bf16.gmra.mxu0 %v3127
        %v3166 = vpop.f32.mrf.mxu0
        %v3167 = vadd.f32 0.0, %v3166
        %v3168 = vpop.f32.mrf.mxu0
        %v3169 = vpop.f32.mrf.mxu0
        %v3170 = vadd.f32 0.0, %v3169
        %v3171 = vpop.f32.mrf.mxu0
        %3172 = vmatprep.mubr.bf16.mxu0 0
        %3173 = vmatmul.mubr.bf16.gmra.mxu0 %v3130
        %v3174 = vpop.f32.mrf.mxu0
        %v3175 = vadd.f32 0.0, %v3174
        %v3176 = vpop.f32.mrf.mxu0
        %v3177 = vpop.f32.mrf.mxu0
        %v3178 = vadd.f32 0.0, %v3177
        %v3179 = vpop.f32.mrf.mxu0
        %3180 = vdwg.mxu0
        %3183 = vrot.lane.b32.xlu0 %v1477, 96
        %v3184 = vpop.permute.xlu0 %3183
        %3185 = vrot.lane.b32.xlu0 %v1480, 96
        %v3186 = vpop.permute.xlu0 %3185
        %3189 = vrot.lane.b32.xlu0 %v1478, 96
        %v3190 = vpop.permute.xlu0 %3189
        %3191 = vrot.lane.b32.xlu0 %v1481, 96
        %v3192 = vpop.permute.xlu0 %3191
        %v3194 = vsel %vm1494, %v3184, 0
        %v3197 = vsel %vm1494, %v3186, 0
        %v3200 = vsel %vm1494, %v3190, 0
        %v3203 = vsel %vm1494, %v3192, 0
        %3205 = vmatprep.subr.bf16.mxu0 0
        %3206 = vmatpush1.bf16.xpose.msra.mxu0 0
        %3207 = vmatprep.subr.bf16.mxu0 0
        %3208 = vmatpush1.bf16.xpose.msra.mxu0 0
        %3209 = vmatprep.subr.bf16.mxu0 0
        %3210 = vmatpush1.bf16.xpose.msra.mxu0 0
        %3211 = vmatprep.subr.bf16.mxu0 0
        %3212 = vmatpush1.bf16.xpose.msra.mxu0 0
        %3213 = vmatprep.subr.bf16.mxu0 0
        %3214 = vmatpush1.bf16.xpose.msra.mxu0 0
        %3215 = vmatprep.subr.bf16.mxu0 0
        %3216 = vmatpush1.bf16.xpose.msra.mxu0 0
        %3217 = vmatprep.subr.bf16.mxu0 0
        %3218 = vmatpush1.bf16.xpose.msra.mxu0 %v3203
        %3219 = vmatprep.subr.bf16.mxu0 0
        %3220 = vmatpush1.bf16.xpose.msra.mxu0 %v3200
        %3221 = vmatprep.subr.bf16.mxu0 0
        %3222 = vmatpush2.bf16.xpose.msra.mxu0 0
        %3223 = vmatprep.subr.bf16.mxu0 0
        %3224 = vmatpush2.bf16.xpose.msra.mxu0 0
        %3225 = vmatprep.subr.bf16.mxu0 0
        %3226 = vmatpush2.bf16.xpose.msra.mxu0 0
        %3227 = vmatprep.subr.bf16.mxu0 0
        %3228 = vmatpush2.bf16.xpose.msra.mxu0 0
        %3229 = vmatprep.subr.bf16.mxu0 0
        %3230 = vmatpush2.bf16.xpose.msra.mxu0 0
        %3231 = vmatprep.subr.bf16.mxu0 0
        %3232 = vmatpush2.bf16.xpose.msra.mxu0 0
        %3233 = vmatprep.subr.bf16.mxu0 0
        %3234 = vmatpush2.bf16.xpose.msra.mxu0 0
        %3235 = vmatprep.subr.bf16.mxu0 0
        %3236 = vmatpush2.bf16.xpose.msra.mxu0 0
        %3237 = vmatprep.mubr.bf16.mxu0 0
        %3238 = vmatmul.mubr.bf16.gmra.mxu0 %v3194
        %v3239 = vpop.f32.mrf.mxu0
        %v3240 = vadd.f32 %v3018, %v3239
        %v3241 = vpop.f32.mrf.mxu0
        %v3242 = vpop.f32.mrf.mxu0
        %v3243 = vadd.f32 %v3018, %v3242
        %v3244 = vpop.f32.mrf.mxu0
        %3245 = vmatprep.mubr.bf16.mxu0 0
        %3246 = vmatmul.mubr.bf16.gmra.mxu0 %v3197
        %v3247 = vpop.f32.mrf.mxu0
        %v3248 = vadd.f32 %v3018, %v3247
        %v3249 = vpop.f32.mrf.mxu0
        %v3250 = vpop.f32.mrf.mxu0
        %v3251 = vadd.f32 %v3018, %v3250
        %v3252 = vpop.f32.mrf.mxu0
        %3253 = vdwg.mxu0
        %v3254 = vsel %vm1494, %v3240, -inf
        %3255 = vmax.xlane.f32.xlu0 %v3254
        %v3256 = vpop.xlane.xlu0 %3255
        %v3257 = vsel %vm1494, %v3243, -inf
        %3258 = vmax.xlane.f32.xlu0 %v3257
        %v3259 = vpop.xlane.xlu0 %3258
        %v3260 = vsel %vm1494, %v3248, -inf
        %3261 = vmax.xlane.f32.xlu0 %v3260
        %v3262 = vpop.xlane.xlu0 %3261
        %v3263 = vsel %vm1494, %v3251, -inf
        %3264 = vmax.xlane.f32.xlu0 %v3263
        %v3265 = vpop.xlane.xlu0 %3264
        %v3266 = vsub.f32 %v3240, %v3256
        %v3267 = vsub.f32 %v3243, %v3259
        %v3268 = vsub.f32 %v3248, %v3262
        %v3269 = vsub.f32 %v3251, %v3265
        %v3270 = vmul.f32 %v3266, 1.442695
        %v3271 = vpow.pop %v3270
        %v3272 = vmul.f32 %v3267, 1.442695
        %v3273 = vpow.pop %v3272
        %v3274 = vmul.f32 %v3268, 1.442695
        %v3275 = vpow.pop %v3274
        %v3276 = vmul.f32 %v3269, 1.442695
        %v3277 = vpow.pop %v3276
        %v3278 = vsel %vm1494, %v3271, 0.0
        %3279 = vadd.xlane.f32.xlu0 %v3278
        %v3280 = vpop.xlane.xlu0 %3279
        %v3281 = vsel %vm1494, %v3273, 0.0
        %3282 = vadd.xlane.f32.xlu0 %v3281
        %v3283 = vpop.xlane.xlu0 %3282
        %v3284 = vsel %vm1494, %v3275, 0.0
        %3285 = vadd.xlane.f32.xlu0 %v3284
        %v3286 = vpop.xlane.xlu0 %3285
        %v3287 = vsel %vm1494, %v3277, 0.0
        %3288 = vadd.xlane.f32.xlu0 %v3287
        %v3289 = vpop.xlane.xlu0 %3288
        %v3290 = vrcp.pop %v3280
        %v3291 = vrcp.pop %v3283
        %v3292 = vrcp.pop %v3286
        %v3293 = vrcp.pop %v3289
        %v3294 = vmul.f32 %v3271, %v3290
        %v3295 = vmul.f32 %v3273, %v3291
        %v3296 = vmul.f32 %v3275, %v3292
        %v3297 = vmul.f32 %v3277, %v3293
        %v3298 = vpack.c.bf16 %v3295, %v3294
        %v3299 = vpack.c.bf16 %v3297, %v3296
        %3302 = vrot.lane.b32.xlu0 %v1479, 96
        %v3303 = vpop.permute.xlu0 %3302
        %3304 = vrot.lane.b32.xlu0 %v1482, 96
        %v3305 = vpop.permute.xlu0 %3304
        %v3309 = vsel %vm1494, %v3298, 0
        %v3312 = vsel %vm1494, %v3299, 0
        %3314 = vmatprep.subr.bf16.mxu0 0
        %3315 = vmatpush1.bf16.msra.mxu0 0
        %3316 = vmatprep.subr.bf16.mxu0 0
        %3317 = vmatpush1.bf16.msra.mxu0 0
        %3318 = vmatprep.subr.bf16.mxu0 0
        %3319 = vmatpush1.bf16.msra.mxu0 0
        %3320 = vmatprep.subr.bf16.mxu0 0
        %3321 = vmatpush1.bf16.msra.mxu0 0
        %3322 = vmatprep.subr.bf16.mxu0 0
        %3323 = vmatpush1.bf16.msra.mxu0 0
        %3324 = vmatprep.subr.bf16.mxu0 0
        %3325 = vmatpush1.bf16.msra.mxu0 0
        %3326 = vmatprep.subr.bf16.mxu0 0
        %3327 = vmatpush1.bf16.msra.mxu0 %v3305
        %3328 = vmatprep.subr.bf16.mxu0 0
        %3329 = vmatpush1.bf16.msra.mxu0 %v3303
        %3330 = vmatprep.subr.bf16.mxu0 0
        %3331 = vmatpush2.bf16.msra.mxu0 0
        %3332 = vmatprep.subr.bf16.mxu0 0
        %3333 = vmatpush2.bf16.msra.mxu0 0
        %3334 = vmatprep.subr.bf16.mxu0 0
        %3335 = vmatpush2.bf16.msra.mxu0 0
        %3336 = vmatprep.subr.bf16.mxu0 0
        %3337 = vmatpush2.bf16.msra.mxu0 0
        %3338 = vmatprep.subr.bf16.mxu0 0
        %3339 = vmatpush2.bf16.msra.mxu0 0
        %3340 = vmatprep.subr.bf16.mxu0 0
        %3341 = vmatpush2.bf16.msra.mxu0 0
        %3342 = vmatprep.subr.bf16.mxu0 0
        %3343 = vmatpush2.bf16.msra.mxu0 0
        %3344 = vmatprep.subr.bf16.mxu0 0
        %3345 = vmatpush2.bf16.msra.mxu0 0
        %3346 = vmatprep.mubr.bf16.mxu0 0
        %3347 = vmatmul.mubr.bf16.gmra.mxu0 %v3309
        %v3348 = vpop.f32.mrf.mxu0
        %v3349 = vadd.f32 0.0, %v3348
        %v3350 = vpop.f32.mrf.mxu0
        %v3351 = vpop.f32.mrf.mxu0
        %v3352 = vadd.f32 0.0, %v3351
        %v3353 = vpop.f32.mrf.mxu0
        %3354 = vmatprep.mubr.bf16.mxu0 0
        %3355 = vmatmul.mubr.bf16.gmra.mxu0 %v3312
        %v3356 = vpop.f32.mrf.mxu0
        %v3357 = vadd.f32 0.0, %v3356
        %v3358 = vpop.f32.mrf.mxu0
        %v3359 = vpop.f32.mrf.mxu0
        %v3360 = vadd.f32 0.0, %v3359
        %v3361 = vpop.f32.mrf.mxu0
        %3362 = vdwg.mxu0
        %3363 = vrot.lane.b32.xlu0 %v1477, 64
        %v3364 = vpop.permute.xlu0 %3363
        %3365 = vrot.lane.b32.xlu0 %v1480, 64
        %v3366 = vpop.permute.xlu0 %3365
        %3367 = vrot.lane.b32.xlu0 %v1478, 64
        %v3368 = vpop.permute.xlu0 %3367
        %3369 = vrot.lane.b32.xlu0 %v1481, 64
        %v3370 = vpop.permute.xlu0 %3369
        %v3372 = vsel %vm1494, %v3364, 0
        %v3375 = vsel %vm1494, %v3366, 0
        %v3378 = vsel %vm1494, %v3368, 0
        %v3381 = vsel %vm1494, %v3370, 0
        %3383 = vmatprep.subr.bf16.mxu0 0
        %3384 = vmatpush1.bf16.xpose.msra.mxu0 0
        %3385 = vmatprep.subr.bf16.mxu0 0
        %3386 = vmatpush1.bf16.xpose.msra.mxu0 0
        %3387 = vmatprep.subr.bf16.mxu0 0
        %3388 = vmatpush1.bf16.xpose.msra.mxu0 0
        %3389 = vmatprep.subr.bf16.mxu0 0
        %3390 = vmatpush1.bf16.xpose.msra.mxu0 0
        %3391 = vmatprep.subr.bf16.mxu0 0
        %3392 = vmatpush1.bf16.xpose.msra.mxu0 0
        %3393 = vmatprep.subr.bf16.mxu0 0
        %3394 = vmatpush1.bf16.xpose.msra.mxu0 0
        %3395 = vmatprep.subr.bf16.mxu0 0
        %3396 = vmatpush1.bf16.xpose.msra.mxu0 %v3381
        %3397 = vmatprep.subr.bf16.mxu0 0
        %3398 = vmatpush1.bf16.xpose.msra.mxu0 %v3378
        %3399 = vmatprep.subr.bf16.mxu0 0
        %3400 = vmatpush2.bf16.xpose.msra.mxu0 0
        %3401 = vmatprep.subr.bf16.mxu0 0
        %3402 = vmatpush2.bf16.xpose.msra.mxu0 0
        %3403 = vmatprep.subr.bf16.mxu0 0
        %3404 = vmatpush2.bf16.xpose.msra.mxu0 0
        %3405 = vmatprep.subr.bf16.mxu0 0
        %3406 = vmatpush2.bf16.xpose.msra.mxu0 0
        %3407 = vmatprep.subr.bf16.mxu0 0
        %3408 = vmatpush2.bf16.xpose.msra.mxu0 0
        %3409 = vmatprep.subr.bf16.mxu0 0
        %3410 = vmatpush2.bf16.xpose.msra.mxu0 0
        %3411 = vmatprep.subr.bf16.mxu0 0
        %3412 = vmatpush2.bf16.xpose.msra.mxu0 0
        %3413 = vmatprep.subr.bf16.mxu0 0
        %3414 = vmatpush2.bf16.xpose.msra.mxu0 0
        %3415 = vmatprep.mubr.bf16.mxu0 0
        %3416 = vmatmul.mubr.bf16.gmra.mxu0 %v3372
        %v3417 = vpop.f32.mrf.mxu0
        %v3418 = vadd.f32 %v3018, %v3417
        %v3419 = vpop.f32.mrf.mxu0
        %v3420 = vpop.f32.mrf.mxu0
        %v3421 = vadd.f32 %v3018, %v3420
        %v3422 = vpop.f32.mrf.mxu0
        %3423 = vmatprep.mubr.bf16.mxu0 0
        %3424 = vmatmul.mubr.bf16.gmra.mxu0 %v3375
        %v3425 = vpop.f32.mrf.mxu0
        %v3426 = vadd.f32 %v3018, %v3425
        %v3427 = vpop.f32.mrf.mxu0
        %v3428 = vpop.f32.mrf.mxu0
        %v3429 = vadd.f32 %v3018, %v3428
        %v3430 = vpop.f32.mrf.mxu0
        %3431 = vdwg.mxu0
        %v3432 = vsel %vm1494, %v3418, -inf
        %3433 = vmax.xlane.f32.xlu0 %v3432
        %v3434 = vpop.xlane.xlu0 %3433
        %v3435 = vsel %vm1494, %v3421, -inf
        %3436 = vmax.xlane.f32.xlu0 %v3435
        %v3437 = vpop.xlane.xlu0 %3436
        %v3438 = vsel %vm1494, %v3426, -inf
        %3439 = vmax.xlane.f32.xlu0 %v3438
        %v3440 = vpop.xlane.xlu0 %3439
        %v3441 = vsel %vm1494, %v3429, -inf
        %3442 = vmax.xlane.f32.xlu0 %v3441
        %v3443 = vpop.xlane.xlu0 %3442
        %v3444 = vsub.f32 %v3418, %v3434
        %v3445 = vsub.f32 %v3421, %v3437
        %v3446 = vsub.f32 %v3426, %v3440
        %v3447 = vsub.f32 %v3429, %v3443
        %v3448 = vmul.f32 %v3444, 1.442695
        %v3449 = vpow.pop %v3448
        %v3450 = vmul.f32 %v3445, 1.442695
        %v3451 = vpow.pop %v3450
        %v3452 = vmul.f32 %v3446, 1.442695
        %v3453 = vpow.pop %v3452
        %v3454 = vmul.f32 %v3447, 1.442695
        %v3455 = vpow.pop %v3454
        %v3456 = vsel %vm1494, %v3449, 0.0
        %3457 = vadd.xlane.f32.xlu0 %v3456
        %v3458 = vpop.xlane.xlu0 %3457
        %v3459 = vsel %vm1494, %v3451, 0.0
        %3460 = vadd.xlane.f32.xlu0 %v3459
        %v3461 = vpop.xlane.xlu0 %3460
        %v3462 = vsel %vm1494, %v3453, 0.0
        %3463 = vadd.xlane.f32.xlu0 %v3462
        %v3464 = vpop.xlane.xlu0 %3463
        %v3465 = vsel %vm1494, %v3455, 0.0
        %3466 = vadd.xlane.f32.xlu0 %v3465
        %v3467 = vpop.xlane.xlu0 %3466
        %v3468 = vrcp.pop %v3458
        %v3469 = vrcp.pop %v3461
        %v3470 = vrcp.pop %v3464
        %v3471 = vrcp.pop %v3467
        %v3472 = vmul.f32 %v3449, %v3468
        %v3473 = vmul.f32 %v3451, %v3469
        %v3474 = vmul.f32 %v3453, %v3470
        %v3475 = vmul.f32 %v3455, %v3471
        %v3476 = vpack.c.bf16 %v3473, %v3472
        %v3477 = vpack.c.bf16 %v3475, %v3474
        %3478 = vrot.lane.b32.xlu0 %v1479, 64
        %v3479 = vpop.permute.xlu0 %3478
        %3480 = vrot.lane.b32.xlu0 %v1482, 64
        %v3481 = vpop.permute.xlu0 %3480
        %v3485 = vsel %vm1494, %v3476, 0
        %v3488 = vsel %vm1494, %v3477, 0
        %3490 = vmatprep.subr.bf16.mxu0 0
        %3491 = vmatpush1.bf16.msra.mxu0 0
        %3492 = vmatprep.subr.bf16.mxu0 0
        %3493 = vmatpush1.bf16.msra.mxu0 0
        %3494 = vmatprep.subr.bf16.mxu0 0
        %3495 = vmatpush1.bf16.msra.mxu0 0
        %3496 = vmatprep.subr.bf16.mxu0 0
        %3497 = vmatpush1.bf16.msra.mxu0 0
        %3498 = vmatprep.subr.bf16.mxu0 0
        %3499 = vmatpush1.bf16.msra.mxu0 0
        %3500 = vmatprep.subr.bf16.mxu0 0
        %3501 = vmatpush1.bf16.msra.mxu0 0
        %3502 = vmatprep.subr.bf16.mxu0 0
        %3503 = vmatpush1.bf16.msra.mxu0 %v3481
        %3504 = vmatprep.subr.bf16.mxu0 0
        %3505 = vmatpush1.bf16.msra.mxu0 %v3479
        %3506 = vmatprep.subr.bf16.mxu0 0
        %3507 = vmatpush2.bf16.msra.mxu0 0
        %3508 = vmatprep.subr.bf16.mxu0 0
        %3509 = vmatpush2.bf16.msra.mxu0 0
        %3510 = vmatprep.subr.bf16.mxu0 0
        %3511 = vmatpush2.bf16.msra.mxu0 0
        %3512 = vmatprep.subr.bf16.mxu0 0
        %3513 = vmatpush2.bf16.msra.mxu0 0
        %3514 = vmatprep.subr.bf16.mxu0 0
        %3515 = vmatpush2.bf16.msra.mxu0 0
        %3516 = vmatprep.subr.bf16.mxu0 0
        %3517 = vmatpush2.bf16.msra.mxu0 0
        %3518 = vmatprep.subr.bf16.mxu0 0
        %3519 = vmatpush2.bf16.msra.mxu0 0
        %3520 = vmatprep.subr.bf16.mxu0 0
        %3521 = vmatpush2.bf16.msra.mxu0 0
        %3522 = vmatprep.mubr.bf16.mxu0 0
        %3523 = vmatmul.mubr.bf16.gmra.mxu0 %v3485
        %v3524 = vpop.f32.mrf.mxu0
        %v3525 = vadd.f32 0.0, %v3524
        %v3526 = vpop.f32.mrf.mxu0
        %v3527 = vpop.f32.mrf.mxu0
        %v3528 = vadd.f32 0.0, %v3527
        %v3529 = vpop.f32.mrf.mxu0
        %3530 = vmatprep.mubr.bf16.mxu0 0
        %3531 = vmatmul.mubr.bf16.gmra.mxu0 %v3488
        %v3532 = vpop.f32.mrf.mxu0
        %v3533 = vadd.f32 0.0, %v3532
        %v3534 = vpop.f32.mrf.mxu0
        %v3535 = vpop.f32.mrf.mxu0
        %v3536 = vadd.f32 0.0, %v3535
        %v3537 = vpop.f32.mrf.mxu0
        %3538 = vdwg.mxu0
        %3539 = vrot.lane.b32.xlu0 %v1477, 32
        %v3540 = vpop.permute.xlu0 %3539
        %3541 = vrot.lane.b32.xlu0 %v1480, 32
        %v3542 = vpop.permute.xlu0 %3541
        %3543 = vrot.lane.b32.xlu0 %v1478, 32
        %v3544 = vpop.permute.xlu0 %3543
        %3545 = vrot.lane.b32.xlu0 %v1481, 32
        %v3546 = vpop.permute.xlu0 %3545
        %v3548 = vsel %vm1494, %v3540, 0
        %v3551 = vsel %vm1494, %v3542, 0
        %v3554 = vsel %vm1494, %v3544, 0
        %v3557 = vsel %vm1494, %v3546, 0
        %3559 = vmatprep.subr.bf16.mxu0 0
        %3560 = vmatpush1.bf16.xpose.msra.mxu0 0
        %3561 = vmatprep.subr.bf16.mxu0 0
        %3562 = vmatpush1.bf16.xpose.msra.mxu0 0
        %3563 = vmatprep.subr.bf16.mxu0 0
        %3564 = vmatpush1.bf16.xpose.msra.mxu0 0
        %3565 = vmatprep.subr.bf16.mxu0 0
        %3566 = vmatpush1.bf16.xpose.msra.mxu0 0
        %3567 = vmatprep.subr.bf16.mxu0 0
        %3568 = vmatpush1.bf16.xpose.msra.mxu0 0
        %3569 = vmatprep.subr.bf16.mxu0 0
        %3570 = vmatpush1.bf16.xpose.msra.mxu0 0
        %3571 = vmatprep.subr.bf16.mxu0 0
        %3572 = vmatpush1.bf16.xpose.msra.mxu0 %v3557
        %3573 = vmatprep.subr.bf16.mxu0 0
        %3574 = vmatpush1.bf16.xpose.msra.mxu0 %v3554
        %3575 = vmatprep.subr.bf16.mxu0 0
        %3576 = vmatpush2.bf16.xpose.msra.mxu0 0
        %3577 = vmatprep.subr.bf16.mxu0 0
        %3578 = vmatpush2.bf16.xpose.msra.mxu0 0
        %3579 = vmatprep.subr.bf16.mxu0 0
        %3580 = vmatpush2.bf16.xpose.msra.mxu0 0
        %3581 = vmatprep.subr.bf16.mxu0 0
        %3582 = vmatpush2.bf16.xpose.msra.mxu0 0
        %3583 = vmatprep.subr.bf16.mxu0 0
        %3584 = vmatpush2.bf16.xpose.msra.mxu0 0
        %3585 = vmatprep.subr.bf16.mxu0 0
        %3586 = vmatpush2.bf16.xpose.msra.mxu0 0
        %3587 = vmatprep.subr.bf16.mxu0 0
        %3588 = vmatpush2.bf16.xpose.msra.mxu0 0
        %3589 = vmatprep.subr.bf16.mxu0 0
        %3590 = vmatpush2.bf16.xpose.msra.mxu0 0
        %3591 = vmatprep.mubr.bf16.mxu0 0
        %3592 = vmatmul.mubr.bf16.gmra.mxu0 %v3548
        %v3593 = vpop.f32.mrf.mxu0
        %v3594 = vadd.f32 %v3018, %v3593
        %v3595 = vpop.f32.mrf.mxu0
        %v3596 = vpop.f32.mrf.mxu0
        %v3597 = vadd.f32 %v3018, %v3596
        %v3598 = vpop.f32.mrf.mxu0
        %3599 = vmatprep.mubr.bf16.mxu0 0
        %3600 = vmatmul.mubr.bf16.gmra.mxu0 %v3551
        %v3601 = vpop.f32.mrf.mxu0
        %v3602 = vadd.f32 %v3018, %v3601
        %v3603 = vpop.f32.mrf.mxu0
        %v3604 = vpop.f32.mrf.mxu0
        %v3605 = vadd.f32 %v3018, %v3604
        %v3606 = vpop.f32.mrf.mxu0
        %3607 = vdwg.mxu0
        %v3608 = vsel %vm1494, %v3594, -inf
        %3609 = vmax.xlane.f32.xlu0 %v3608
        %v3610 = vpop.xlane.xlu0 %3609
        %v3611 = vsel %vm1494, %v3597, -inf
        %3612 = vmax.xlane.f32.xlu0 %v3611
        %v3613 = vpop.xlane.xlu0 %3612
        %v3614 = vsel %vm1494, %v3602, -inf
        %3615 = vmax.xlane.f32.xlu0 %v3614
        %v3616 = vpop.xlane.xlu0 %3615
        %v3617 = vsel %vm1494, %v3605, -inf
        %3618 = vmax.xlane.f32.xlu0 %v3617
        %v3619 = vpop.xlane.xlu0 %3618
        %v3620 = vsub.f32 %v3594, %v3610
        %v3621 = vsub.f32 %v3597, %v3613
        %v3622 = vsub.f32 %v3602, %v3616
        %v3623 = vsub.f32 %v3605, %v3619
        %v3624 = vmul.f32 %v3620, 1.442695
        %v3625 = vpow.pop %v3624
        %v3626 = vmul.f32 %v3621, 1.442695
        %v3627 = vpow.pop %v3626
        %v3628 = vmul.f32 %v3622, 1.442695
        %v3629 = vpow.pop %v3628
        %v3630 = vmul.f32 %v3623, 1.442695
        %v3631 = vpow.pop %v3630
        %v3632 = vsel %vm1494, %v3625, 0.0
        %3633 = vadd.xlane.f32.xlu0 %v3632
        %v3634 = vpop.xlane.xlu0 %3633
        %v3635 = vsel %vm1494, %v3627, 0.0
        %3636 = vadd.xlane.f32.xlu0 %v3635
        %v3637 = vpop.xlane.xlu0 %3636
        %v3638 = vsel %vm1494, %v3629, 0.0
        %3639 = vadd.xlane.f32.xlu0 %v3638
        %v3640 = vpop.xlane.xlu0 %3639
        %v3641 = vsel %vm1494, %v3631, 0.0
        %3642 = vadd.xlane.f32.xlu0 %v3641
        %v3643 = vpop.xlane.xlu0 %3642
        %v3644 = vrcp.pop %v3634
        %v3645 = vrcp.pop %v3637
        %v3646 = vrcp.pop %v3640
        %v3647 = vrcp.pop %v3643
        %v3648 = vmul.f32 %v3625, %v3644
        %v3649 = vmul.f32 %v3627, %v3645
        %v3650 = vmul.f32 %v3629, %v3646
        %v3651 = vmul.f32 %v3631, %v3647
        %v3652 = vpack.c.bf16 %v3649, %v3648
        %v3653 = vpack.c.bf16 %v3651, %v3650
        %3654 = vrot.lane.b32.xlu0 %v1479, 32
        %v3655 = vpop.permute.xlu0 %3654
        %3656 = vrot.lane.b32.xlu0 %v1482, 32
        %v3657 = vpop.permute.xlu0 %3656
        %v3661 = vsel %vm1494, %v3652, 0
        %v3664 = vsel %vm1494, %v3653, 0
        %3666 = vmatprep.subr.bf16.mxu0 0
        %3667 = vmatpush1.bf16.msra.mxu0 0
        %3668 = vmatprep.subr.bf16.mxu0 0
        %3669 = vmatpush1.bf16.msra.mxu0 0
        %3670 = vmatprep.subr.bf16.mxu0 0
        %3671 = vmatpush1.bf16.msra.mxu0 0
        %3672 = vmatprep.subr.bf16.mxu0 0
        %3673 = vmatpush1.bf16.msra.mxu0 0
        %3674 = vmatprep.subr.bf16.mxu0 0
        %3675 = vmatpush1.bf16.msra.mxu0 0
        %3676 = vmatprep.subr.bf16.mxu0 0
        %3677 = vmatpush1.bf16.msra.mxu0 0
        %3678 = vmatprep.subr.bf16.mxu0 0
        %3679 = vmatpush1.bf16.msra.mxu0 %v3657
        %3680 = vmatprep.subr.bf16.mxu0 0
        %3681 = vmatpush1.bf16.msra.mxu0 %v3655
        %3682 = vmatprep.subr.bf16.mxu0 0
        %3683 = vmatpush2.bf16.msra.mxu0 0
        %3684 = vmatprep.subr.bf16.mxu0 0
        %3685 = vmatpush2.bf16.msra.mxu0 0
        %3686 = vmatprep.subr.bf16.mxu0 0
        %3687 = vmatpush2.bf16.msra.mxu0 0
        %3688 = vmatprep.subr.bf16.mxu0 0
        %3689 = vmatpush2.bf16.msra.mxu0 0
        %3690 = vmatprep.subr.bf16.mxu0 0
        %3691 = vmatpush2.bf16.msra.mxu0 0
        %3692 = vmatprep.subr.bf16.mxu0 0
        %3693 = vmatpush2.bf16.msra.mxu0 0
        %3694 = vmatprep.subr.bf16.mxu0 0
        %3695 = vmatpush2.bf16.msra.mxu0 0
        %3696 = vmatprep.subr.bf16.mxu0 0
        %3697 = vmatpush2.bf16.msra.mxu0 0
        %3698 = vmatprep.mubr.bf16.mxu0 0
        %3699 = vmatmul.mubr.bf16.gmra.mxu0 %v3661
        %v3700 = vpop.f32.mrf.mxu0
        %v3701 = vadd.f32 0.0, %v3700
        %v3702 = vpop.f32.mrf.mxu0
        %v3703 = vpop.f32.mrf.mxu0
        %v3704 = vadd.f32 0.0, %v3703
        %v3705 = vpop.f32.mrf.mxu0
        %3706 = vmatprep.mubr.bf16.mxu0 0
        %3707 = vmatmul.mubr.bf16.gmra.mxu0 %v3664
        %v3708 = vpop.f32.mrf.mxu0
        %v3709 = vadd.f32 0.0, %v3708
        %v3710 = vpop.f32.mrf.mxu0
        %v3711 = vpop.f32.mrf.mxu0
        %v3712 = vadd.f32 0.0, %v3711
        %v3713 = vpop.f32.mrf.mxu0
        %3714 = vdwg.mxu0
        %3719 = vrot.lane.b32.xlu0 %v3349, 32
        %v3720 = vpop.permute.xlu0 %3719
        %3721 = vrot.lane.b32.xlu0 %v3352, 32
        %v3722 = vpop.permute.xlu0 %3721
        %3723 = vrot.lane.b32.xlu0 %v3357, 32
        %v3724 = vpop.permute.xlu0 %3723
        %3725 = vrot.lane.b32.xlu0 %v3360, 32
        %v3726 = vpop.permute.xlu0 %3725
        %3735 = vrot.lane.b32.xlu0 %v3525, 64
        %v3736 = vpop.permute.xlu0 %3735
        %3737 = vrot.lane.b32.xlu0 %v3528, 64
        %v3738 = vpop.permute.xlu0 %3737
        %3739 = vrot.lane.b32.xlu0 %v3533, 64
        %v3740 = vpop.permute.xlu0 %3739
        %3741 = vrot.lane.b32.xlu0 %v3536, 64
        %v3742 = vpop.permute.xlu0 %3741
        %3751 = vrot.lane.b32.xlu0 %v3701, 96
        %v3752 = vpop.permute.xlu0 %3751
        %3753 = vrot.lane.b32.xlu0 %v3704, 96
        %v3754 = vpop.permute.xlu0 %3753
        %3755 = vrot.lane.b32.xlu0 %v3709, 96
        %v3756 = vpop.permute.xlu0 %3755
        %3757 = vrot.lane.b32.xlu0 %v3712, 96
        %v3758 = vpop.permute.xlu0 %3757
        %v3763 = vsel %vm1494, %v3167, %v3720
        %v3764 = vsel %vm1494, %v3170, %v3722
        %v3765 = vsel %vm1494, %v3175, %v3724
        %v3766 = vsel %vm1494, %v3178, %v3726
        %v3767 = vsel %vm2243, %v3763, %v3736
        %v3768 = vsel %vm2243, %v3764, %v3738
        %v3769 = vsel %vm2243, %v3765, %v3740
        %v3770 = vsel %vm2243, %v3766, %v3742
        %v3771 = vsel %vm2248, %v3767, %v3752
        %v3772 = vsel %vm2248, %v3768, %v3754
        %v3773 = vsel %vm2248, %v3769, %v3756
        %v3774 = vsel %vm2248, %v3770, %v3758
        %v3775 = vld [vmem:[%s1 + $0x3] sm:$0x1]
        %v3776 = vlaneseq
        %v3777 = vshrl.u32 %v3776, 7
        %v3778 = vsub.s32 0, %v3777
        %v3779 = vrot.slane %v3775, %v3778
        %v3781 = vsel %vm1494, %v1483, 0
        %v3784 = vsel %vm1494, %v1486, 0
        %v3787 = vsel %vm1494, %v1484, 0
        %v3790 = vsel %vm1494, %v1487, 0
        %3792 = vmatprep.subr.bf16.mxu0 0
        %3793 = vmatpush1.bf16.xpose.msra.mxu0 0
        %3794 = vmatprep.subr.bf16.mxu0 0
        %3795 = vmatpush1.bf16.xpose.msra.mxu0 0
        %3796 = vmatprep.subr.bf16.mxu0 0
        %3797 = vmatpush1.bf16.xpose.msra.mxu0 0
        %3798 = vmatprep.subr.bf16.mxu0 0
        %3799 = vmatpush1.bf16.xpose.msra.mxu0 0
        %3800 = vmatprep.subr.bf16.mxu0 0
        %3801 = vmatpush1.bf16.xpose.msra.mxu0 0
        %3802 = vmatprep.subr.bf16.mxu0 0
        %3803 = vmatpush1.bf16.xpose.msra.mxu0 0
        %3804 = vmatprep.subr.bf16.mxu0 0
        %3805 = vmatpush1.bf16.xpose.msra.mxu0 %v3790
        %3806 = vmatprep.subr.bf16.mxu0 0
        %3807 = vmatpush1.bf16.xpose.msra.mxu0 %v3787
        %3808 = vmatprep.subr.bf16.mxu0 0
        %3809 = vmatpush2.bf16.xpose.msra.mxu0 0
        %3810 = vmatprep.subr.bf16.mxu0 0
        %3811 = vmatpush2.bf16.xpose.msra.mxu0 0
        %3812 = vmatprep.subr.bf16.mxu0 0
        %3813 = vmatpush2.bf16.xpose.msra.mxu0 0
        %3814 = vmatprep.subr.bf16.mxu0 0
        %3815 = vmatpush2.bf16.xpose.msra.mxu0 0
        %3816 = vmatprep.subr.bf16.mxu0 0
        %3817 = vmatpush2.bf16.xpose.msra.mxu0 0
        %3818 = vmatprep.subr.bf16.mxu0 0
        %3819 = vmatpush2.bf16.xpose.msra.mxu0 0
        %3820 = vmatprep.subr.bf16.mxu0 0
        %3821 = vmatpush2.bf16.xpose.msra.mxu0 0
        %3822 = vmatprep.subr.bf16.mxu0 0
        %3823 = vmatpush2.bf16.xpose.msra.mxu0 0
        %3824 = vmatprep.mubr.bf16.mxu0 0
        %3825 = vmatmul.mubr.bf16.gmra.mxu0 %v3781
        %v3826 = vpop.f32.mrf.mxu0
        %v3827 = vadd.f32 %v3779, %v3826
        %v3828 = vpop.f32.mrf.mxu0
        %v3829 = vpop.f32.mrf.mxu0
        %v3830 = vadd.f32 %v3779, %v3829
        %v3831 = vpop.f32.mrf.mxu0
        %3832 = vmatprep.mubr.bf16.mxu0 0
        %3833 = vmatmul.mubr.bf16.gmra.mxu0 %v3784
        %v3834 = vpop.f32.mrf.mxu0
        %v3835 = vadd.f32 %v3779, %v3834
        %v3836 = vpop.f32.mrf.mxu0
        %v3837 = vpop.f32.mrf.mxu0
        %v3838 = vadd.f32 %v3779, %v3837
        %v3839 = vpop.f32.mrf.mxu0
        %3840 = vdwg.mxu0
        %v3841 = vsel %vm1494, %v3827, -inf
        %3842 = vmax.xlane.f32.xlu0 %v3841
        %v3843 = vpop.xlane.xlu0 %3842
        %v3844 = vsel %vm1494, %v3830, -inf
        %3845 = vmax.xlane.f32.xlu0 %v3844
        %v3846 = vpop.xlane.xlu0 %3845
        %v3847 = vsel %vm1494, %v3835, -inf
        %3848 = vmax.xlane.f32.xlu0 %v3847
        %v3849 = vpop.xlane.xlu0 %3848
        %v3850 = vsel %vm1494, %v3838, -inf
        %3851 = vmax.xlane.f32.xlu0 %v3850
        %v3852 = vpop.xlane.xlu0 %3851
        %v3853 = vsub.f32 %v3827, %v3843
        %v3854 = vsub.f32 %v3830, %v3846
        %v3855 = vsub.f32 %v3835, %v3849
        %v3856 = vsub.f32 %v3838, %v3852
        %v3857 = vmul.f32 %v3853, 1.442695
        %v3858 = vpow.pop %v3857
        %v3859 = vmul.f32 %v3854, 1.442695
        %v3860 = vpow.pop %v3859
        %v3861 = vmul.f32 %v3855, 1.442695
        %v3862 = vpow.pop %v3861
        %v3863 = vmul.f32 %v3856, 1.442695
        %v3864 = vpow.pop %v3863
        %v3865 = vsel %vm1494, %v3858, 0.0
        %3866 = vadd.xlane.f32.xlu0 %v3865
        %v3867 = vpop.xlane.xlu0 %3866
        %v3868 = vsel %vm1494, %v3860, 0.0
        %3869 = vadd.xlane.f32.xlu0 %v3868
        %v3870 = vpop.xlane.xlu0 %3869
        %v3871 = vsel %vm1494, %v3862, 0.0
        %3872 = vadd.xlane.f32.xlu0 %v3871
        %v3873 = vpop.xlane.xlu0 %3872
        %v3874 = vsel %vm1494, %v3864, 0.0
        %3875 = vadd.xlane.f32.xlu0 %v3874
        %v3876 = vpop.xlane.xlu0 %3875
        %v3877 = vrcp.pop %v3867
        %v3878 = vrcp.pop %v3870
        %v3879 = vrcp.pop %v3873
        %v3880 = vrcp.pop %v3876
        %v3881 = vmul.f32 %v3858, %v3877
        %v3882 = vmul.f32 %v3860, %v3878
        %v3883 = vmul.f32 %v3862, %v3879
        %v3884 = vmul.f32 %v3864, %v3880
        %v3885 = vpack.c.bf16 %v3882, %v3881
        %v3886 = vpack.c.bf16 %v3884, %v3883
        %v3888 = vsel %vm1494, %v3885, 0
        %v3891 = vsel %vm1494, %v3886, 0
        %3893 = vmatprep.subr.bf16.mxu0 0
        %3894 = vmatpush1.bf16.msra.mxu0 0
        %3895 = vmatprep.subr.bf16.mxu0 0
        %3896 = vmatpush1.bf16.msra.mxu0 0
        %3897 = vmatprep.subr.bf16.mxu0 0
        %3898 = vmatpush1.bf16.msra.mxu0 0
        %3899 = vmatprep.subr.bf16.mxu0 0
        %3900 = vmatpush1.bf16.msra.mxu0 0
        %3901 = vmatprep.subr.bf16.mxu0 0
        %3902 = vmatpush1.bf16.msra.mxu0 0
        %3903 = vmatprep.subr.bf16.mxu0 0
        %3904 = vmatpush1.bf16.msra.mxu0 0
        %3905 = vmatprep.subr.bf16.mxu0 0
        %3906 = vmatpush1.bf16.msra.mxu0 %v1488
        %3907 = vmatprep.subr.bf16.mxu0 0
        %3908 = vmatpush1.bf16.msra.mxu0 %v1485
        %3909 = vmatprep.subr.bf16.mxu0 0
        %3910 = vmatpush2.bf16.msra.mxu0 0
        %3911 = vmatprep.subr.bf16.mxu0 0
        %3912 = vmatpush2.bf16.msra.mxu0 0
        %3913 = vmatprep.subr.bf16.mxu0 0
        %3914 = vmatpush2.bf16.msra.mxu0 0
        %3915 = vmatprep.subr.bf16.mxu0 0
        %3916 = vmatpush2.bf16.msra.mxu0 0
        %3917 = vmatprep.subr.bf16.mxu0 0
        %3918 = vmatpush2.bf16.msra.mxu0 0
        %3919 = vmatprep.subr.bf16.mxu0 0
        %3920 = vmatpush2.bf16.msra.mxu0 0
        %3921 = vmatprep.subr.bf16.mxu0 0
        %3922 = vmatpush2.bf16.msra.mxu0 0
        %3923 = vmatprep.subr.bf16.mxu0 0
        %3924 = vmatpush2.bf16.msra.mxu0 0
        %3925 = vmatprep.mubr.bf16.mxu0 0
        %3926 = vmatmul.mubr.bf16.gmra.mxu0 %v3888
        %v3927 = vpop.f32.mrf.mxu0
        %v3928 = vadd.f32 0.0, %v3927
        %v3929 = vpop.f32.mrf.mxu0
        %v3930 = vpop.f32.mrf.mxu0
        %v3931 = vadd.f32 0.0, %v3930
        %v3932 = vpop.f32.mrf.mxu0
        %3933 = vmatprep.mubr.bf16.mxu0 0
        %3934 = vmatmul.mubr.bf16.gmra.mxu0 %v3891
        %v3935 = vpop.f32.mrf.mxu0
        %v3936 = vadd.f32 0.0, %v3935
        %v3937 = vpop.f32.mrf.mxu0
        %v3938 = vpop.f32.mrf.mxu0
        %v3939 = vadd.f32 0.0, %v3938
        %v3940 = vpop.f32.mrf.mxu0
        %3941 = vdwg.mxu0
        %3944 = vrot.lane.b32.xlu0 %v1483, 96
        %v3945 = vpop.permute.xlu0 %3944
        %3946 = vrot.lane.b32.xlu0 %v1486, 96
        %v3947 = vpop.permute.xlu0 %3946
        %3950 = vrot.lane.b32.xlu0 %v1484, 96
        %v3951 = vpop.permute.xlu0 %3950
        %3952 = vrot.lane.b32.xlu0 %v1487, 96
        %v3953 = vpop.permute.xlu0 %3952
        %v3955 = vsel %vm1494, %v3945, 0
        %v3958 = vsel %vm1494, %v3947, 0
        %v3961 = vsel %vm1494, %v3951, 0
        %v3964 = vsel %vm1494, %v3953, 0
        %3966 = vmatprep.subr.bf16.mxu0 0
        %3967 = vmatpush1.bf16.xpose.msra.mxu0 0
        %3968 = vmatprep.subr.bf16.mxu0 0
        %3969 = vmatpush1.bf16.xpose.msra.mxu0 0
        %3970 = vmatprep.subr.bf16.mxu0 0
        %3971 = vmatpush1.bf16.xpose.msra.mxu0 0
        %3972 = vmatprep.subr.bf16.mxu0 0
        %3973 = vmatpush1.bf16.xpose.msra.mxu0 0
        %3974 = vmatprep.subr.bf16.mxu0 0
        %3975 = vmatpush1.bf16.xpose.msra.mxu0 0
        %3976 = vmatprep.subr.bf16.mxu0 0
        %3977 = vmatpush1.bf16.xpose.msra.mxu0 0
        %3978 = vmatprep.subr.bf16.mxu0 0
        %3979 = vmatpush1.bf16.xpose.msra.mxu0 %v3964
        %3980 = vmatprep.subr.bf16.mxu0 0
        %3981 = vmatpush1.bf16.xpose.msra.mxu0 %v3961
        %3982 = vmatprep.subr.bf16.mxu0 0
        %3983 = vmatpush2.bf16.xpose.msra.mxu0 0
        %3984 = vmatprep.subr.bf16.mxu0 0
        %3985 = vmatpush2.bf16.xpose.msra.mxu0 0
        %3986 = vmatprep.subr.bf16.mxu0 0
        %3987 = vmatpush2.bf16.xpose.msra.mxu0 0
        %3988 = vmatprep.subr.bf16.mxu0 0
        %3989 = vmatpush2.bf16.xpose.msra.mxu0 0
        %3990 = vmatprep.subr.bf16.mxu0 0
        %3991 = vmatpush2.bf16.xpose.msra.mxu0 0
        %3992 = vmatprep.subr.bf16.mxu0 0
        %3993 = vmatpush2.bf16.xpose.msra.mxu0 0
        %3994 = vmatprep.subr.bf16.mxu0 0
        %3995 = vmatpush2.bf16.xpose.msra.mxu0 0
        %3996 = vmatprep.subr.bf16.mxu0 0
        %3997 = vmatpush2.bf16.xpose.msra.mxu0 0
        %3998 = vmatprep.mubr.bf16.mxu0 0
        %3999 = vmatmul.mubr.bf16.gmra.mxu0 %v3955
        %v4000 = vpop.f32.mrf.mxu0
        %v4001 = vadd.f32 %v3779, %v4000
        %v4002 = vpop.f32.mrf.mxu0
        %v4003 = vpop.f32.mrf.mxu0
        %v4004 = vadd.f32 %v3779, %v4003
        %v4005 = vpop.f32.mrf.mxu0
        %4006 = vmatprep.mubr.bf16.mxu0 0
        %4007 = vmatmul.mubr.bf16.gmra.mxu0 %v3958
        %v4008 = vpop.f32.mrf.mxu0
        %v4009 = vadd.f32 %v3779, %v4008
        %v4010 = vpop.f32.mrf.mxu0
        %v4011 = vpop.f32.mrf.mxu0
        %v4012 = vadd.f32 %v3779, %v4011
        %v4013 = vpop.f32.mrf.mxu0
        %4014 = vdwg.mxu0
        %v4015 = vsel %vm1494, %v4001, -inf
        %4016 = vmax.xlane.f32.xlu0 %v4015
        %v4017 = vpop.xlane.xlu0 %4016
        %v4018 = vsel %vm1494, %v4004, -inf
        %4019 = vmax.xlane.f32.xlu0 %v4018
        %v4020 = vpop.xlane.xlu0 %4019
        %v4021 = vsel %vm1494, %v4009, -inf
        %4022 = vmax.xlane.f32.xlu0 %v4021
        %v4023 = vpop.xlane.xlu0 %4022
        %v4024 = vsel %vm1494, %v4012, -inf
        %4025 = vmax.xlane.f32.xlu0 %v4024
        %v4026 = vpop.xlane.xlu0 %4025
        %v4027 = vsub.f32 %v4001, %v4017
        %v4028 = vsub.f32 %v4004, %v4020
        %v4029 = vsub.f32 %v4009, %v4023
        %v4030 = vsub.f32 %v4012, %v4026
        %v4031 = vmul.f32 %v4027, 1.442695
        %v4032 = vpow.pop %v4031
        %v4033 = vmul.f32 %v4028, 1.442695
        %v4034 = vpow.pop %v4033
        %v4035 = vmul.f32 %v4029, 1.442695
        %v4036 = vpow.pop %v4035
        %v4037 = vmul.f32 %v4030, 1.442695
        %v4038 = vpow.pop %v4037
        %v4039 = vsel %vm1494, %v4032, 0.0
        %4040 = vadd.xlane.f32.xlu0 %v4039
        %v4041 = vpop.xlane.xlu0 %4040
        %v4042 = vsel %vm1494, %v4034, 0.0
        %4043 = vadd.xlane.f32.xlu0 %v4042
        %v4044 = vpop.xlane.xlu0 %4043
        %v4045 = vsel %vm1494, %v4036, 0.0
        %4046 = vadd.xlane.f32.xlu0 %v4045
        %v4047 = vpop.xlane.xlu0 %4046
        %v4048 = vsel %vm1494, %v4038, 0.0
        %4049 = vadd.xlane.f32.xlu0 %v4048
        %v4050 = vpop.xlane.xlu0 %4049
        %v4051 = vrcp.pop %v4041
        %v4052 = vrcp.pop %v4044
        %v4053 = vrcp.pop %v4047
        %v4054 = vrcp.pop %v4050
        %v4055 = vmul.f32 %v4032, %v4051
        %v4056 = vmul.f32 %v4034, %v4052
        %v4057 = vmul.f32 %v4036, %v4053
        %v4058 = vmul.f32 %v4038, %v4054
        %v4059 = vpack.c.bf16 %v4056, %v4055
        %v4060 = vpack.c.bf16 %v4058, %v4057
        %4063 = vrot.lane.b32.xlu0 %v1485, 96
        %v4064 = vpop.permute.xlu0 %4063
        %4065 = vrot.lane.b32.xlu0 %v1488, 96
        %v4066 = vpop.permute.xlu0 %4065
        %v4070 = vsel %vm1494, %v4059, 0
        %v4073 = vsel %vm1494, %v4060, 0
        %4075 = vmatprep.subr.bf16.mxu0 0
        %4076 = vmatpush1.bf16.msra.mxu0 0
        %4077 = vmatprep.subr.bf16.mxu0 0
        %4078 = vmatpush1.bf16.msra.mxu0 0
        %4079 = vmatprep.subr.bf16.mxu0 0
        %4080 = vmatpush1.bf16.msra.mxu0 0
        %4081 = vmatprep.subr.bf16.mxu0 0
        %4082 = vmatpush1.bf16.msra.mxu0 0
        %4083 = vmatprep.subr.bf16.mxu0 0
        %4084 = vmatpush1.bf16.msra.mxu0 0
        %4085 = vmatprep.subr.bf16.mxu0 0
        %4086 = vmatpush1.bf16.msra.mxu0 0
        %4087 = vmatprep.subr.bf16.mxu0 0
        %4088 = vmatpush1.bf16.msra.mxu0 %v4066
        %4089 = vmatprep.subr.bf16.mxu0 0
        %4090 = vmatpush1.bf16.msra.mxu0 %v4064
        %4091 = vmatprep.subr.bf16.mxu0 0
        %4092 = vmatpush2.bf16.msra.mxu0 0
        %4093 = vmatprep.subr.bf16.mxu0 0
        %4094 = vmatpush2.bf16.msra.mxu0 0
        %4095 = vmatprep.subr.bf16.mxu0 0
        %4096 = vmatpush2.bf16.msra.mxu0 0
        %4097 = vmatprep.subr.bf16.mxu0 0
        %4098 = vmatpush2.bf16.msra.mxu0 0
        %4099 = vmatprep.subr.bf16.mxu0 0
        %4100 = vmatpush2.bf16.msra.mxu0 0
        %4101 = vmatprep.subr.bf16.mxu0 0
        %4102 = vmatpush2.bf16.msra.mxu0 0
        %4103 = vmatprep.subr.bf16.mxu0 0
        %4104 = vmatpush2.bf16.msra.mxu0 0
        %4105 = vmatprep.subr.bf16.mxu0 0
        %4106 = vmatpush2.bf16.msra.mxu0 0
        %4107 = vmatprep.mubr.bf16.mxu0 0
        %4108 = vmatmul.mubr.bf16.gmra.mxu0 %v4070
        %v4109 = vpop.f32.mrf.mxu0
        %v4110 = vadd.f32 0.0, %v4109
        %v4111 = vpop.f32.mrf.mxu0
        %v4112 = vpop.f32.mrf.mxu0
        %v4113 = vadd.f32 0.0, %v4112
        %v4114 = vpop.f32.mrf.mxu0
        %4115 = vmatprep.mubr.bf16.mxu0 0
        %4116 = vmatmul.mubr.bf16.gmra.mxu0 %v4073
        %v4117 = vpop.f32.mrf.mxu0
        %v4118 = vadd.f32 0.0, %v4117
        %v4119 = vpop.f32.mrf.mxu0
        %v4120 = vpop.f32.mrf.mxu0
        %v4121 = vadd.f32 0.0, %v4120
        %v4122 = vpop.f32.mrf.mxu0
        %4123 = vdwg.mxu0
        %4124 = vrot.lane.b32.xlu0 %v1483, 64
        %v4125 = vpop.permute.xlu0 %4124
        %4126 = vrot.lane.b32.xlu0 %v1486, 64
        %v4127 = vpop.permute.xlu0 %4126
        %4128 = vrot.lane.b32.xlu0 %v1484, 64
        %v4129 = vpop.permute.xlu0 %4128
        %4130 = vrot.lane.b32.xlu0 %v1487, 64
        %v4131 = vpop.permute.xlu0 %4130
        %v4133 = vsel %vm1494, %v4125, 0
        %v4136 = vsel %vm1494, %v4127, 0
        %v4139 = vsel %vm1494, %v4129, 0
        %v4142 = vsel %vm1494, %v4131, 0
        %4144 = vmatprep.subr.bf16.mxu0 0
        %4145 = vmatpush1.bf16.xpose.msra.mxu0 0
        %4146 = vmatprep.subr.bf16.mxu0 0
        %4147 = vmatpush1.bf16.xpose.msra.mxu0 0
        %4148 = vmatprep.subr.bf16.mxu0 0
        %4149 = vmatpush1.bf16.xpose.msra.mxu0 0
        %4150 = vmatprep.subr.bf16.mxu0 0
        %4151 = vmatpush1.bf16.xpose.msra.mxu0 0
        %4152 = vmatprep.subr.bf16.mxu0 0
        %4153 = vmatpush1.bf16.xpose.msra.mxu0 0
        %4154 = vmatprep.subr.bf16.mxu0 0
        %4155 = vmatpush1.bf16.xpose.msra.mxu0 0
        %4156 = vmatprep.subr.bf16.mxu0 0
        %4157 = vmatpush1.bf16.xpose.msra.mxu0 %v4142
        %4158 = vmatprep.subr.bf16.mxu0 0
        %4159 = vmatpush1.bf16.xpose.msra.mxu0 %v4139
        %4160 = vmatprep.subr.bf16.mxu0 0
        %4161 = vmatpush2.bf16.xpose.msra.mxu0 0
        %4162 = vmatprep.subr.bf16.mxu0 0
        %4163 = vmatpush2.bf16.xpose.msra.mxu0 0
        %4164 = vmatprep.subr.bf16.mxu0 0
        %4165 = vmatpush2.bf16.xpose.msra.mxu0 0
        %4166 = vmatprep.subr.bf16.mxu0 0
        %4167 = vmatpush2.bf16.xpose.msra.mxu0 0
        %4168 = vmatprep.subr.bf16.mxu0 0
        %4169 = vmatpush2.bf16.xpose.msra.mxu0 0
        %4170 = vmatprep.subr.bf16.mxu0 0
        %4171 = vmatpush2.bf16.xpose.msra.mxu0 0
        %4172 = vmatprep.subr.bf16.mxu0 0
        %4173 = vmatpush2.bf16.xpose.msra.mxu0 0
        %4174 = vmatprep.subr.bf16.mxu0 0
        %4175 = vmatpush2.bf16.xpose.msra.mxu0 0
        %4176 = vmatprep.mubr.bf16.mxu0 0
        %4177 = vmatmul.mubr.bf16.gmra.mxu0 %v4133
        %v4178 = vpop.f32.mrf.mxu0
        %v4179 = vadd.f32 %v3779, %v4178
        %v4180 = vpop.f32.mrf.mxu0
        %v4181 = vpop.f32.mrf.mxu0
        %v4182 = vadd.f32 %v3779, %v4181
        %v4183 = vpop.f32.mrf.mxu0
        %4184 = vmatprep.mubr.bf16.mxu0 0
        %4185 = vmatmul.mubr.bf16.gmra.mxu0 %v4136
        %v4186 = vpop.f32.mrf.mxu0
        %v4187 = vadd.f32 %v3779, %v4186
        %v4188 = vpop.f32.mrf.mxu0
        %v4189 = vpop.f32.mrf.mxu0
        %v4190 = vadd.f32 %v3779, %v4189
        %v4191 = vpop.f32.mrf.mxu0
        %4192 = vdwg.mxu0
        %v4193 = vsel %vm1494, %v4179, -inf
        %4194 = vmax.xlane.f32.xlu0 %v4193
        %v4195 = vpop.xlane.xlu0 %4194
        %v4196 = vsel %vm1494, %v4182, -inf
        %4197 = vmax.xlane.f32.xlu0 %v4196
        %v4198 = vpop.xlane.xlu0 %4197
        %v4199 = vsel %vm1494, %v4187, -inf
        %4200 = vmax.xlane.f32.xlu0 %v4199
        %v4201 = vpop.xlane.xlu0 %4200
        %v4202 = vsel %vm1494, %v4190, -inf
        %4203 = vmax.xlane.f32.xlu0 %v4202
        %v4204 = vpop.xlane.xlu0 %4203
        %v4205 = vsub.f32 %v4179, %v4195
        %v4206 = vsub.f32 %v4182, %v4198
        %v4207 = vsub.f32 %v4187, %v4201
        %v4208 = vsub.f32 %v4190, %v4204
        %v4209 = vmul.f32 %v4205, 1.442695
        %v4210 = vpow.pop %v4209
        %v4211 = vmul.f32 %v4206, 1.442695
        %v4212 = vpow.pop %v4211
        %v4213 = vmul.f32 %v4207, 1.442695
        %v4214 = vpow.pop %v4213
        %v4215 = vmul.f32 %v4208, 1.442695
        %v4216 = vpow.pop %v4215
        %v4217 = vsel %vm1494, %v4210, 0.0
        %4218 = vadd.xlane.f32.xlu0 %v4217
        %v4219 = vpop.xlane.xlu0 %4218
        %v4220 = vsel %vm1494, %v4212, 0.0
        %4221 = vadd.xlane.f32.xlu0 %v4220
        %v4222 = vpop.xlane.xlu0 %4221
        %v4223 = vsel %vm1494, %v4214, 0.0
        %4224 = vadd.xlane.f32.xlu0 %v4223
        %v4225 = vpop.xlane.xlu0 %4224
        %v4226 = vsel %vm1494, %v4216, 0.0
        %4227 = vadd.xlane.f32.xlu0 %v4226
        %v4228 = vpop.xlane.xlu0 %4227
        %v4229 = vrcp.pop %v4219
        %v4230 = vrcp.pop %v4222
        %v4231 = vrcp.pop %v4225
        %v4232 = vrcp.pop %v4228
        %v4233 = vmul.f32 %v4210, %v4229
        %v4234 = vmul.f32 %v4212, %v4230
        %v4235 = vmul.f32 %v4214, %v4231
        %v4236 = vmul.f32 %v4216, %v4232
        %v4237 = vpack.c.bf16 %v4234, %v4233
        %v4238 = vpack.c.bf16 %v4236, %v4235
        %4239 = vrot.lane.b32.xlu0 %v1485, 64
        %v4240 = vpop.permute.xlu0 %4239
        %4241 = vrot.lane.b32.xlu0 %v1488, 64
        %v4242 = vpop.permute.xlu0 %4241
        %v4246 = vsel %vm1494, %v4237, 0
        %v4249 = vsel %vm1494, %v4238, 0
        %4251 = vmatprep.subr.bf16.mxu0 0
        %4252 = vmatpush1.bf16.msra.mxu0 0
        %4253 = vmatprep.subr.bf16.mxu0 0
        %4254 = vmatpush1.bf16.msra.mxu0 0
        %4255 = vmatprep.subr.bf16.mxu0 0
        %4256 = vmatpush1.bf16.msra.mxu0 0
        %4257 = vmatprep.subr.bf16.mxu0 0
        %4258 = vmatpush1.bf16.msra.mxu0 0
        %4259 = vmatprep.subr.bf16.mxu0 0
        %4260 = vmatpush1.bf16.msra.mxu0 0
        %4261 = vmatprep.subr.bf16.mxu0 0
        %4262 = vmatpush1.bf16.msra.mxu0 0
        %4263 = vmatprep.subr.bf16.mxu0 0
        %4264 = vmatpush1.bf16.msra.mxu0 %v4242
        %4265 = vmatprep.subr.bf16.mxu0 0
        %4266 = vmatpush1.bf16.msra.mxu0 %v4240
        %4267 = vmatprep.subr.bf16.mxu0 0
        %4268 = vmatpush2.bf16.msra.mxu0 0
        %4269 = vmatprep.subr.bf16.mxu0 0
        %4270 = vmatpush2.bf16.msra.mxu0 0
        %4271 = vmatprep.subr.bf16.mxu0 0
        %4272 = vmatpush2.bf16.msra.mxu0 0
        %4273 = vmatprep.subr.bf16.mxu0 0
        %4274 = vmatpush2.bf16.msra.mxu0 0
        %4275 = vmatprep.subr.bf16.mxu0 0
        %4276 = vmatpush2.bf16.msra.mxu0 0
        %4277 = vmatprep.subr.bf16.mxu0 0
        %4278 = vmatpush2.bf16.msra.mxu0 0
        %4279 = vmatprep.subr.bf16.mxu0 0
        %4280 = vmatpush2.bf16.msra.mxu0 0
        %4281 = vmatprep.subr.bf16.mxu0 0
        %4282 = vmatpush2.bf16.msra.mxu0 0
        %4283 = vmatprep.mubr.bf16.mxu0 0
        %4284 = vmatmul.mubr.bf16.gmra.mxu0 %v4246
        %v4285 = vpop.f32.mrf.mxu0
        %v4286 = vadd.f32 0.0, %v4285
        %v4287 = vpop.f32.mrf.mxu0
        %v4288 = vpop.f32.mrf.mxu0
        %v4289 = vadd.f32 0.0, %v4288
        %v4290 = vpop.f32.mrf.mxu0
        %4291 = vmatprep.mubr.bf16.mxu0 0
        %4292 = vmatmul.mubr.bf16.gmra.mxu0 %v4249
        %v4293 = vpop.f32.mrf.mxu0
        %v4294 = vadd.f32 0.0, %v4293
        %v4295 = vpop.f32.mrf.mxu0
        %v4296 = vpop.f32.mrf.mxu0
        %v4297 = vadd.f32 0.0, %v4296
        %v4298 = vpop.f32.mrf.mxu0
        %4299 = vdwg.mxu0
        %4300 = vrot.lane.b32.xlu0 %v1483, 32
        %v4301 = vpop.permute.xlu0 %4300
        %4302 = vrot.lane.b32.xlu0 %v1486, 32
        %v4303 = vpop.permute.xlu0 %4302
        %4304 = vrot.lane.b32.xlu0 %v1484, 32
        %v4305 = vpop.permute.xlu0 %4304
        %4306 = vrot.lane.b32.xlu0 %v1487, 32
        %v4307 = vpop.permute.xlu0 %4306
        %v4309 = vsel %vm1494, %v4301, 0
        %v4312 = vsel %vm1494, %v4303, 0
        %v4315 = vsel %vm1494, %v4305, 0
        %v4318 = vsel %vm1494, %v4307, 0
        %4320 = vmatprep.subr.bf16.mxu0 0
        %4321 = vmatpush1.bf16.xpose.msra.mxu0 0
        %4322 = vmatprep.subr.bf16.mxu0 0
        %4323 = vmatpush1.bf16.xpose.msra.mxu0 0
        %4324 = vmatprep.subr.bf16.mxu0 0
        %4325 = vmatpush1.bf16.xpose.msra.mxu0 0
        %4326 = vmatprep.subr.bf16.mxu0 0
        %4327 = vmatpush1.bf16.xpose.msra.mxu0 0
        %4328 = vmatprep.subr.bf16.mxu0 0
        %4329 = vmatpush1.bf16.xpose.msra.mxu0 0
        %4330 = vmatprep.subr.bf16.mxu0 0
        %4331 = vmatpush1.bf16.xpose.msra.mxu0 0
        %4332 = vmatprep.subr.bf16.mxu0 0
        %4333 = vmatpush1.bf16.xpose.msra.mxu0 %v4318
        %4334 = vmatprep.subr.bf16.mxu0 0
        %4335 = vmatpush1.bf16.xpose.msra.mxu0 %v4315
        %4336 = vmatprep.subr.bf16.mxu0 0
        %4337 = vmatpush2.bf16.xpose.msra.mxu0 0
        %4338 = vmatprep.subr.bf16.mxu0 0
        %4339 = vmatpush2.bf16.xpose.msra.mxu0 0
        %4340 = vmatprep.subr.bf16.mxu0 0
        %4341 = vmatpush2.bf16.xpose.msra.mxu0 0
        %4342 = vmatprep.subr.bf16.mxu0 0
        %4343 = vmatpush2.bf16.xpose.msra.mxu0 0
        %4344 = vmatprep.subr.bf16.mxu0 0
        %4345 = vmatpush2.bf16.xpose.msra.mxu0 0
        %4346 = vmatprep.subr.bf16.mxu0 0
        %4347 = vmatpush2.bf16.xpose.msra.mxu0 0
        %4348 = vmatprep.subr.bf16.mxu0 0
        %4349 = vmatpush2.bf16.xpose.msra.mxu0 0
        %4350 = vmatprep.subr.bf16.mxu0 0
        %4351 = vmatpush2.bf16.xpose.msra.mxu0 0
        %4352 = vmatprep.mubr.bf16.mxu0 0
        %4353 = vmatmul.mubr.bf16.gmra.mxu0 %v4309
        %v4354 = vpop.f32.mrf.mxu0
        %v4355 = vadd.f32 %v3779, %v4354
        %v4356 = vpop.f32.mrf.mxu0
        %v4357 = vpop.f32.mrf.mxu0
        %v4358 = vadd.f32 %v3779, %v4357
        %v4359 = vpop.f32.mrf.mxu0
        %4360 = vmatprep.mubr.bf16.mxu0 0
        %4361 = vmatmul.mubr.bf16.gmra.mxu0 %v4312
        %v4362 = vpop.f32.mrf.mxu0
        %v4363 = vadd.f32 %v3779, %v4362
        %v4364 = vpop.f32.mrf.mxu0
        %v4365 = vpop.f32.mrf.mxu0
        %v4366 = vadd.f32 %v3779, %v4365
        %v4367 = vpop.f32.mrf.mxu0
        %4368 = vdwg.mxu0
        %v4369 = vsel %vm1494, %v4355, -inf
        %4370 = vmax.xlane.f32.xlu0 %v4369
        %v4371 = vpop.xlane.xlu0 %4370
        %v4372 = vsel %vm1494, %v4358, -inf
        %4373 = vmax.xlane.f32.xlu0 %v4372
        %v4374 = vpop.xlane.xlu0 %4373
        %v4375 = vsel %vm1494, %v4363, -inf
        %4376 = vmax.xlane.f32.xlu0 %v4375
        %v4377 = vpop.xlane.xlu0 %4376
        %v4378 = vsel %vm1494, %v4366, -inf
        %4379 = vmax.xlane.f32.xlu0 %v4378
        %v4380 = vpop.xlane.xlu0 %4379
        %v4381 = vsub.f32 %v4355, %v4371
        %v4382 = vsub.f32 %v4358, %v4374
        %v4383 = vsub.f32 %v4363, %v4377
        %v4384 = vsub.f32 %v4366, %v4380
        %v4385 = vmul.f32 %v4381, 1.442695
        %v4386 = vpow.pop %v4385
        %v4387 = vmul.f32 %v4382, 1.442695
        %v4388 = vpow.pop %v4387
        %v4389 = vmul.f32 %v4383, 1.442695
        %v4390 = vpow.pop %v4389
        %v4391 = vmul.f32 %v4384, 1.442695
        %v4392 = vpow.pop %v4391
        %v4393 = vsel %vm1494, %v4386, 0.0
        %4394 = vadd.xlane.f32.xlu0 %v4393
        %v4395 = vpop.xlane.xlu0 %4394
        %v4396 = vsel %vm1494, %v4388, 0.0
        %4397 = vadd.xlane.f32.xlu0 %v4396
        %v4398 = vpop.xlane.xlu0 %4397
        %v4399 = vsel %vm1494, %v4390, 0.0
        %4400 = vadd.xlane.f32.xlu0 %v4399
        %v4401 = vpop.xlane.xlu0 %4400
        %v4402 = vsel %vm1494, %v4392, 0.0
        %4403 = vadd.xlane.f32.xlu0 %v4402
        %v4404 = vpop.xlane.xlu0 %4403
        %v4405 = vrcp.pop %v4395
        %v4406 = vrcp.pop %v4398
        %v4407 = vrcp.pop %v4401
        %v4408 = vrcp.pop %v4404
        %v4409 = vmul.f32 %v4386, %v4405
        %v4410 = vmul.f32 %v4388, %v4406
        %v4411 = vmul.f32 %v4390, %v4407
        %v4412 = vmul.f32 %v4392, %v4408
        %v4413 = vpack.c.bf16 %v4410, %v4409
        %v4414 = vpack.c.bf16 %v4412, %v4411
        %4415 = vrot.lane.b32.xlu0 %v1485, 32
        %v4416 = vpop.permute.xlu0 %4415
        %4417 = vrot.lane.b32.xlu0 %v1488, 32
        %v4418 = vpop.permute.xlu0 %4417
        %v4422 = vsel %vm1494, %v4413, 0
        %v4425 = vsel %vm1494, %v4414, 0
        %4427 = vmatprep.subr.bf16.mxu0 0
        %4428 = vmatpush1.bf16.msra.mxu0 0
        %4429 = vmatprep.subr.bf16.mxu0 0
        %4430 = vmatpush1.bf16.msra.mxu0 0
        %4431 = vmatprep.subr.bf16.mxu0 0
        %4432 = vmatpush1.bf16.msra.mxu0 0
        %4433 = vmatprep.subr.bf16.mxu0 0
        %4434 = vmatpush1.bf16.msra.mxu0 0
        %4435 = vmatprep.subr.bf16.mxu0 0
        %4436 = vmatpush1.bf16.msra.mxu0 0
        %4437 = vmatprep.subr.bf16.mxu0 0
        %4438 = vmatpush1.bf16.msra.mxu0 0
        %4439 = vmatprep.subr.bf16.mxu0 0
        %4440 = vmatpush1.bf16.msra.mxu0 %v4418
        %4441 = vmatprep.subr.bf16.mxu0 0
        %4442 = vmatpush1.bf16.msra.mxu0 %v4416
        %4443 = vmatprep.subr.bf16.mxu0 0
        %4444 = vmatpush2.bf16.msra.mxu0 0
        %4445 = vmatprep.subr.bf16.mxu0 0
        %4446 = vmatpush2.bf16.msra.mxu0 0
        %4447 = vmatprep.subr.bf16.mxu0 0
        %4448 = vmatpush2.bf16.msra.mxu0 0
        %4449 = vmatprep.subr.bf16.mxu0 0
        %4450 = vmatpush2.bf16.msra.mxu0 0
        %4451 = vmatprep.subr.bf16.mxu0 0
        %4452 = vmatpush2.bf16.msra.mxu0 0
        %4453 = vmatprep.subr.bf16.mxu0 0
        %4454 = vmatpush2.bf16.msra.mxu0 0
        %4455 = vmatprep.subr.bf16.mxu0 0
        %4456 = vmatpush2.bf16.msra.mxu0 0
        %4457 = vmatprep.subr.bf16.mxu0 0
        %4458 = vmatpush2.bf16.msra.mxu0 0
        %4459 = vmatprep.mubr.bf16.mxu0 0
        %4460 = vmatmul.mubr.bf16.gmra.mxu0 %v4422
        %v4461 = vpop.f32.mrf.mxu0
        %v4462 = vadd.f32 0.0, %v4461
        %v4463 = vpop.f32.mrf.mxu0
        %v4464 = vpop.f32.mrf.mxu0
        %v4465 = vadd.f32 0.0, %v4464
        %v4466 = vpop.f32.mrf.mxu0
        %4467 = vmatprep.mubr.bf16.mxu0 0
        %4468 = vmatmul.mubr.bf16.gmra.mxu0 %v4425
        %v4469 = vpop.f32.mrf.mxu0
        %v4470 = vadd.f32 0.0, %v4469
        %v4471 = vpop.f32.mrf.mxu0
        %v4472 = vpop.f32.mrf.mxu0
        %v4473 = vadd.f32 0.0, %v4472
        %v4474 = vpop.f32.mrf.mxu0
        %4475 = vdwg.mxu0
        %4480 = vrot.lane.b32.xlu0 %v4110, 32
        %v4481 = vpop.permute.xlu0 %4480
        %4482 = vrot.lane.b32.xlu0 %v4113, 32
        %v4483 = vpop.permute.xlu0 %4482
        %4484 = vrot.lane.b32.xlu0 %v4118, 32
        %v4485 = vpop.permute.xlu0 %4484
        %4486 = vrot.lane.b32.xlu0 %v4121, 32
        %v4487 = vpop.permute.xlu0 %4486
        %4496 = vrot.lane.b32.xlu0 %v4286, 64
        %v4497 = vpop.permute.xlu0 %4496
        %4498 = vrot.lane.b32.xlu0 %v4289, 64
        %v4499 = vpop.permute.xlu0 %4498
        %4500 = vrot.lane.b32.xlu0 %v4294, 64
        %v4501 = vpop.permute.xlu0 %4500
        %4502 = vrot.lane.b32.xlu0 %v4297, 64
        %v4503 = vpop.permute.xlu0 %4502
        %4512 = vrot.lane.b32.xlu0 %v4462, 96
        %v4513 = vpop.permute.xlu0 %4512
        %4514 = vrot.lane.b32.xlu0 %v4465, 96
        %v4515 = vpop.permute.xlu0 %4514
        %4516 = vrot.lane.b32.xlu0 %v4470, 96
        %v4517 = vpop.permute.xlu0 %4516
        %4518 = vrot.lane.b32.xlu0 %v4473, 96
        %v4519 = vpop.permute.xlu0 %4518
        %v4524 = vsel %vm1494, %v3928, %v4481
        %v4525 = vsel %vm1494, %v3931, %v4483
        %v4526 = vsel %vm1494, %v3936, %v4485
        %v4527 = vsel %vm1494, %v3939, %v4487
        %v4528 = vsel %vm2243, %v4524, %v4497
        %v4529 = vsel %vm2243, %v4525, %v4499
        %v4530 = vsel %vm2243, %v4526, %v4501
        %v4531 = vsel %vm2243, %v4527, %v4503
        %v4532 = vsel %vm2248, %v4528, %v4513
        %v4533 = vsel %vm2248, %v4529, %v4515
        %v4534 = vsel %vm2248, %v4530, %v4517
        %v4535 = vsel %vm2248, %v4531, %v4519
        %v4536 = vpack.c.bf16 %v2250, %v2249
        %v4537 = vpack.c.bf16 %v2252, %v2251
        %v4538 = vpack.c.bf16 %v3011, %v3010
        %v4539 = vpack.c.bf16 %v3013, %v3012
        %v4540 = vpack.c.bf16 %v3772, %v3771
        %v4541 = vpack.c.bf16 %v3774, %v3773
        %v4542 = vpack.c.bf16 %v4533, %v4532
        %v4543 = vpack.c.bf16 %v4535, %v4534
        %v4544 = vld [vmem:[%s761] sm:$0xf]
        %v4545 = vld [vmem:[%s761 + $0x4] sm:$0xf]
        %v4546 = vld [vmem:[%s761 + $0x8] sm:$0xf]
        %v4547 = vld [vmem:[%s761 + $0xc] sm:$0xf]
        %v4548 = vld [vmem:[%s761 + $0x10] sm:$0xf]
        %v4549 = vld [vmem:[%s761 + $0x14] sm:$0xf]
        %v4550 = vld [vmem:[%s761 + $0x18] sm:$0xf]
        %v4551 = vld [vmem:[%s761 + $0x1c] sm:$0xf]
        %v4552 = vld [vmem:[%s761 + $0x20] sm:$0xf]
        %v4553 = vld [vmem:[%s761 + $0x24] sm:$0xf]
        %v4554 = vld [vmem:[%s761 + $0x28] sm:$0xf]
        %v4555 = vld [vmem:[%s761 + $0x2c] sm:$0xf]
        %v4556 = vld [vmem:[%s761 + $0x30] sm:$0xf]
        %v4557 = vld [vmem:[%s761 + $0x34] sm:$0xf]
        %v4558 = vld [vmem:[%s761 + $0x38] sm:$0xf]
        %v4559 = vld [vmem:[%s761 + $0x3c] sm:$0xf]
        %v4560 = vld [vmem:[%s764] sm:$0x1]
        %v4562 = vlaneseq
        %v4563 = vshrl.u32 %v4562, 7
        %v4564 = vsub.s32 0, %v4563
        %v4565 = vrot.slane %v4560, %v4564
        %v4583 = vunpack.c.l.b16 %v4544
        %v4584 = vunpack.c.l.b16 %v4545
        %v4585 = vunpack.c.l.b16 %v4546
        %v4586 = vunpack.c.l.b16 %v4547
        %v4587 = vunpack.c.l.b16 %v4548
        %v4588 = vunpack.c.l.b16 %v4549
        %v4589 = vunpack.c.l.b16 %v4550
        %v4590 = vunpack.c.l.b16 %v4551
        %v4591 = vunpack.c.l.b16 %v4552
        %v4592 = vunpack.c.l.b16 %v4553
        %v4593 = vunpack.c.l.b16 %v4554
        %v4594 = vunpack.c.l.b16 %v4555
        %v4595 = vunpack.c.l.b16 %v4556
        %v4596 = vunpack.c.l.b16 %v4557
        %v4597 = vunpack.c.l.b16 %v4558
        %v4598 = vunpack.c.l.b16 %v4559
        %v4599 = vpack.c.b16 %v4584, %v4583
        %v4600 = vpack.c.b16 %v4586, %v4585
        %v4601 = vpack.c.b16 %v4588, %v4587
        %v4602 = vpack.c.b16 %v4590, %v4589
        %v4603 = vpack.c.b16 %v4592, %v4591
        %v4604 = vpack.c.b16 %v4594, %v4593
        %v4605 = vpack.c.b16 %v4596, %v4595
        %v4606 = vpack.c.b16 %v4598, %v4597
        %4615 = vmatprep.subr.bf16.mxu0 0
        %4616 = vmatpush1.bf16.msra.mxu0 %v4606
        %4617 = vmatprep.subr.bf16.mxu0 0
        %4618 = vmatpush1.bf16.msra.mxu0 %v4605
        %4619 = vmatprep.subr.bf16.mxu0 0
        %4620 = vmatpush1.bf16.msra.mxu0 %v4604
        %4621 = vmatprep.subr.bf16.mxu0 0
        %4622 = vmatpush1.bf16.msra.mxu0 %v4603
        %4623 = vmatprep.subr.bf16.mxu0 0
        %4624 = vmatpush1.bf16.msra.mxu0 %v4602
        %4625 = vmatprep.subr.bf16.mxu0 0
        %4626 = vmatpush1.bf16.msra.mxu0 %v4601
        %4627 = vmatprep.subr.bf16.mxu0 0
        %4628 = vmatpush1.bf16.msra.mxu0 %v4600
        %4629 = vmatprep.subr.bf16.mxu0 0
        %4630 = vmatpush1.bf16.msra.mxu0 %v4599
        %4631 = vmatprep.subr.bf16.mxu0 0
        %4632 = vmatpush2.bf16.msra.mxu0 0
        %4633 = vmatprep.subr.bf16.mxu0 0
        %4634 = vmatpush2.bf16.msra.mxu0 0
        %4635 = vmatprep.subr.bf16.mxu0 0
        %4636 = vmatpush2.bf16.msra.mxu0 0
        %4637 = vmatprep.subr.bf16.mxu0 0
        %4638 = vmatpush2.bf16.msra.mxu0 0
        %4639 = vmatprep.subr.bf16.mxu0 0
        %4640 = vmatpush2.bf16.msra.mxu0 0
        %4641 = vmatprep.subr.bf16.mxu0 0
        %4642 = vmatpush2.bf16.msra.mxu0 0
        %4643 = vmatprep.subr.bf16.mxu0 0
        %4644 = vmatpush2.bf16.msra.mxu0 0
        %4645 = vmatprep.subr.bf16.mxu0 0
        %4646 = vmatpush2.bf16.msra.mxu0 0
        %4647 = vmatprep.mubr.bf16.mxu0 0
        %4648 = vmatmul.mubr.bf16.gmra.mxu0 %v4536
        %v4649 = vpop.f32.mrf.mxu0
        %v4650 = vadd.f32 %v4565, %v4649
        %v4651 = vpop.f32.mrf.mxu0
        %v4652 = vpop.f32.mrf.mxu0
        %v4653 = vadd.f32 %v4565, %v4652
        %v4654 = vpop.f32.mrf.mxu0
        %4655 = vmatprep.mubr.bf16.mxu0 0
        %4656 = vmatmul.mubr.bf16.gmra.mxu0 %v4537
        %v4657 = vpop.f32.mrf.mxu0
        %v4658 = vadd.f32 %v4565, %v4657
        %v4659 = vpop.f32.mrf.mxu0
        %v4660 = vpop.f32.mrf.mxu0
        %v4661 = vadd.f32 %v4565, %v4660
        %v4662 = vpop.f32.mrf.mxu0
        %4663 = vmatprep.mubr.bf16.mxu0 0
        %4664 = vmatmul.mubr.bf16.gmra.mxu0 %v4538
        %v4665 = vpop.f32.mrf.mxu0
        %v4666 = vadd.f32 %v4565, %v4665
        %v4667 = vpop.f32.mrf.mxu0
        %v4668 = vpop.f32.mrf.mxu0
        %v4669 = vadd.f32 %v4565, %v4668
        %v4670 = vpop.f32.mrf.mxu0
        %4671 = vmatprep.mubr.bf16.mxu0 0
        %4672 = vmatmul.mubr.bf16.gmra.mxu0 %v4539
        %v4673 = vpop.f32.mrf.mxu0
        %v4674 = vadd.f32 %v4565, %v4673
        %v4675 = vpop.f32.mrf.mxu0
        %v4676 = vpop.f32.mrf.mxu0
        %v4677 = vadd.f32 %v4565, %v4676
        %v4678 = vpop.f32.mrf.mxu0
        %4679 = vmatprep.mubr.bf16.mxu0 0
        %4680 = vmatmul.mubr.bf16.gmra.mxu0 %v4540
        %v4681 = vpop.f32.mrf.mxu0
        %v4682 = vadd.f32 %v4565, %v4681
        %v4683 = vpop.f32.mrf.mxu0
        %v4684 = vpop.f32.mrf.mxu0
        %v4685 = vadd.f32 %v4565, %v4684
        %v4686 = vpop.f32.mrf.mxu0
        %4687 = vmatprep.mubr.bf16.mxu0 0
        %4688 = vmatmul.mubr.bf16.gmra.mxu0 %v4541
        %v4689 = vpop.f32.mrf.mxu0
        %v4690 = vadd.f32 %v4565, %v4689
        %v4691 = vpop.f32.mrf.mxu0
        %v4692 = vpop.f32.mrf.mxu0
        %v4693 = vadd.f32 %v4565, %v4692
        %v4694 = vpop.f32.mrf.mxu0
        %4695 = vmatprep.mubr.bf16.mxu0 0
        %4696 = vmatmul.mubr.bf16.gmra.mxu0 %v4542
        %v4697 = vpop.f32.mrf.mxu0
        %v4698 = vadd.f32 %v4565, %v4697
        %v4699 = vpop.f32.mrf.mxu0
        %v4700 = vpop.f32.mrf.mxu0
        %v4701 = vadd.f32 %v4565, %v4700
        %v4702 = vpop.f32.mrf.mxu0
        %4703 = vmatprep.mubr.bf16.mxu0 0
        %4704 = vmatmul.mubr.bf16.gmra.mxu0 %v4543
        %v4705 = vpop.f32.mrf.mxu0
        %v4706 = vadd.f32 %v4565, %v4705
        %v4707 = vpop.f32.mrf.mxu0
        %v4708 = vpop.f32.mrf.mxu0
        %v4709 = vadd.f32 %v4565, %v4708
        %v4710 = vpop.f32.mrf.mxu0
        %4711 = vdwg.mxu0
        %v4712 = vadd.f32 %v4650, %v1054
        %v4713 = vadd.f32 %v4653, %v1055
        %v4714 = vadd.f32 %v4658, %v1056
        %v4715 = vadd.f32 %v4661, %v1057
        %v4716 = vadd.f32 %v4666, %v1058
        %v4717 = vadd.f32 %v4669, %v1059
        %v4718 = vadd.f32 %v4674, %v1060
        %v4719 = vadd.f32 %v4677, %v1061
        %v4720 = vadd.f32 %v4682, %v1062
        %v4721 = vadd.f32 %v4685, %v1063
        %v4722 = vadd.f32 %v4690, %v1064
        %v4723 = vadd.f32 %v4693, %v1065
        %v4724 = vadd.f32 %v4698, %v1066
        %v4725 = vadd.f32 %v4701, %v1067
        %v4726 = vadd.f32 %v4706, %v1068
        %v4727 = vadd.f32 %v4709, %v1069
        %v4728 = vld [vmem:[%s767] sm:$0x1]
        %v4729 = vld [vmem:[%s770] sm:$0x1]
        %4730 = vadd.xlane.f32.xlu0 %v4712
        %v4731 = vpop.xlane.xlu0 %4730
        %4732 = vadd.xlane.f32.xlu0 %v4713
        %v4733 = vpop.xlane.xlu0 %4732
        %4734 = vadd.xlane.f32.xlu0 %v4714
        %v4735 = vpop.xlane.xlu0 %4734
        %4736 = vadd.xlane.f32.xlu0 %v4715
        %v4737 = vpop.xlane.xlu0 %4736
        %4738 = vadd.xlane.f32.xlu0 %v4716
        %v4739 = vpop.xlane.xlu0 %4738
        %4740 = vadd.xlane.f32.xlu0 %v4717
        %v4741 = vpop.xlane.xlu0 %4740
        %4742 = vadd.xlane.f32.xlu0 %v4718
        %v4743 = vpop.xlane.xlu0 %4742
        %4744 = vadd.xlane.f32.xlu0 %v4719
        %v4745 = vpop.xlane.xlu0 %4744
        %4746 = vadd.xlane.f32.xlu0 %v4720
        %v4747 = vpop.xlane.xlu0 %4746
        %4748 = vadd.xlane.f32.xlu0 %v4721
        %v4749 = vpop.xlane.xlu0 %4748
        %4750 = vadd.xlane.f32.xlu0 %v4722
        %v4751 = vpop.xlane.xlu0 %4750
        %4752 = vadd.xlane.f32.xlu0 %v4723
        %v4753 = vpop.xlane.xlu0 %4752
        %4754 = vadd.xlane.f32.xlu0 %v4724
        %v4755 = vpop.xlane.xlu0 %4754
        %4756 = vadd.xlane.f32.xlu0 %v4725
        %v4757 = vpop.xlane.xlu0 %4756
        %4758 = vadd.xlane.f32.xlu0 %v4726
        %v4759 = vpop.xlane.xlu0 %4758
        %4760 = vadd.xlane.f32.xlu0 %v4727
        %v4761 = vpop.xlane.xlu0 %4760
        %v4762 = vrcp.pop 128.0
        %v4763 = vmul.f32 %v4731, %v4762
        %v4764 = vmul.f32 %v4733, %v4762
        %v4765 = vmul.f32 %v4735, %v4762
        %v4766 = vmul.f32 %v4737, %v4762
        %v4767 = vmul.f32 %v4739, %v4762
        %v4768 = vmul.f32 %v4741, %v4762
        %v4769 = vmul.f32 %v4743, %v4762
        %v4770 = vmul.f32 %v4745, %v4762
        %v4771 = vmul.f32 %v4747, %v4762
        %v4772 = vmul.f32 %v4749, %v4762
        %v4773 = vmul.f32 %v4751, %v4762
        %v4774 = vmul.f32 %v4753, %v4762
        %v4775 = vmul.f32 %v4755, %v4762
        %v4776 = vmul.f32 %v4757, %v4762
        %v4777 = vmul.f32 %v4759, %v4762
        %v4778 = vmul.f32 %v4761, %v4762
        %v4779 = vsub.f32 %v4712, %v4763
        %v4780 = vsub.f32 %v4713, %v4764
        %v4781 = vsub.f32 %v4714, %v4765
        %v4782 = vsub.f32 %v4715, %v4766
        %v4783 = vsub.f32 %v4716, %v4767
        %v4784 = vsub.f32 %v4717, %v4768
        %v4785 = vsub.f32 %v4718, %v4769
        %v4786 = vsub.f32 %v4719, %v4770
        %v4787 = vsub.f32 %v4720, %v4771
        %v4788 = vsub.f32 %v4721, %v4772
        %v4789 = vsub.f32 %v4722, %v4773
        %v4790 = vsub.f32 %v4723, %v4774
        %v4791 = vsub.f32 %v4724, %v4775
        %v4792 = vsub.f32 %v4725, %v4776
        %v4793 = vsub.f32 %v4726, %v4777
        %v4794 = vsub.f32 %v4727, %v4778
        %v4795 = vmul.f32 %v4779, %v4779
        %v4796 = vmul.f32 %v4780, %v4780
        %v4797 = vmul.f32 %v4781, %v4781
        %v4798 = vmul.f32 %v4782, %v4782
        %v4799 = vmul.f32 %v4783, %v4783
        %v4800 = vmul.f32 %v4784, %v4784
        %v4801 = vmul.f32 %v4785, %v4785
        %v4802 = vmul.f32 %v4786, %v4786
        %v4803 = vmul.f32 %v4787, %v4787
        %v4804 = vmul.f32 %v4788, %v4788
        %v4805 = vmul.f32 %v4789, %v4789
        %v4806 = vmul.f32 %v4790, %v4790
        %v4807 = vmul.f32 %v4791, %v4791
        %v4808 = vmul.f32 %v4792, %v4792
        %v4809 = vmul.f32 %v4793, %v4793
        %v4810 = vmul.f32 %v4794, %v4794
        %4811 = vadd.xlane.f32.xlu0 %v4795
        %v4812 = vpop.xlane.xlu0 %4811
        %4813 = vadd.xlane.f32.xlu0 %v4796
        %v4814 = vpop.xlane.xlu0 %4813
        %4815 = vadd.xlane.f32.xlu0 %v4797
        %v4816 = vpop.xlane.xlu0 %4815
        %4817 = vadd.xlane.f32.xlu0 %v4798
        %v4818 = vpop.xlane.xlu0 %4817
        %4819 = vadd.xlane.f32.xlu0 %v4799
        %v4820 = vpop.xlane.xlu0 %4819
        %4821 = vadd.xlane.f32.xlu0 %v4800
        %v4822 = vpop.xlane.xlu0 %4821
        %4823 = vadd.xlane.f32.xlu0 %v4801
        %v4824 = vpop.xlane.xlu0 %4823
        %4825 = vadd.xlane.f32.xlu0 %v4802
        %v4826 = vpop.xlane.xlu0 %4825
        %4827 = vadd.xlane.f32.xlu0 %v4803
        %v4828 = vpop.xlane.xlu0 %4827
        %4829 = vadd.xlane.f32.xlu0 %v4804
        %v4830 = vpop.xlane.xlu0 %4829
        %4831 = vadd.xlane.f32.xlu0 %v4805
        %v4832 = vpop.xlane.xlu0 %4831
        %4833 = vadd.xlane.f32.xlu0 %v4806
        %v4834 = vpop.xlane.xlu0 %4833
        %4835 = vadd.xlane.f32.xlu0 %v4807
        %v4836 = vpop.xlane.xlu0 %4835
        %4837 = vadd.xlane.f32.xlu0 %v4808
        %v4838 = vpop.xlane.xlu0 %4837
        %4839 = vadd.xlane.f32.xlu0 %v4809
        %v4840 = vpop.xlane.xlu0 %4839
        %4841 = vadd.xlane.f32.xlu0 %v4810
        %v4842 = vpop.xlane.xlu0 %4841
        %v4843 = vmul.f32 %v4812, %v4762
        %v4844 = vmul.f32 %v4814, %v4762
        %v4845 = vmul.f32 %v4816, %v4762
        %v4846 = vmul.f32 %v4818, %v4762
        %v4847 = vmul.f32 %v4820, %v4762
        %v4848 = vmul.f32 %v4822, %v4762
        %v4849 = vmul.f32 %v4824, %v4762
        %v4850 = vmul.f32 %v4826, %v4762
        %v4851 = vmul.f32 %v4828, %v4762
        %v4852 = vmul.f32 %v4830, %v4762
        %v4853 = vmul.f32 %v4832, %v4762
        %v4854 = vmul.f32 %v4834, %v4762
        %v4855 = vmul.f32 %v4836, %v4762
        %v4856 = vmul.f32 %v4838, %v4762
        %v4857 = vmul.f32 %v4840, %v4762
        %v4858 = vmul.f32 %v4842, %v4762
        %v4859 = vadd.f32 %v4843, 1e-12
        %v4860 = vadd.f32 %v4844, 1e-12
        %v4861 = vadd.f32 %v4845, 1e-12
        %v4862 = vadd.f32 %v4846, 1e-12
        %v4863 = vadd.f32 %v4847, 1e-12
        %v4864 = vadd.f32 %v4848, 1e-12
        %v4865 = vadd.f32 %v4849, 1e-12
        %v4866 = vadd.f32 %v4850, 1e-12
        %v4867 = vadd.f32 %v4851, 1e-12
        %v4868 = vadd.f32 %v4852, 1e-12
        %v4869 = vadd.f32 %v4853, 1e-12
        %v4870 = vadd.f32 %v4854, 1e-12
        %v4871 = vadd.f32 %v4855, 1e-12
        %v4872 = vadd.f32 %v4856, 1e-12
        %v4873 = vadd.f32 %v4857, 1e-12
        %v4874 = vadd.f32 %v4858, 1e-12
        %v4875 = vrsqrt.pop %v4859
        %v4876 = vrsqrt.pop %v4860
        %v4877 = vrsqrt.pop %v4861
        %v4878 = vrsqrt.pop %v4862
        %v4879 = vrsqrt.pop %v4863
        %v4880 = vrsqrt.pop %v4864
        %v4881 = vrsqrt.pop %v4865
        %v4882 = vrsqrt.pop %v4866
        %v4883 = vrsqrt.pop %v4867
        %v4884 = vrsqrt.pop %v4868
        %v4885 = vrsqrt.pop %v4869
        %v4886 = vrsqrt.pop %v4870
        %v4887 = vrsqrt.pop %v4871
        %v4888 = vrsqrt.pop %v4872
        %v4889 = vrsqrt.pop %v4873
        %v4890 = vrsqrt.pop %v4874
        %v4891 = vmul.f32 %v4779, %v4875
        %v4892 = vmul.f32 %v4780, %v4876
        %v4893 = vmul.f32 %v4781, %v4877
        %v4894 = vmul.f32 %v4782, %v4878
        %v4895 = vmul.f32 %v4783, %v4879
        %v4896 = vmul.f32 %v4784, %v4880
        %v4897 = vmul.f32 %v4785, %v4881
        %v4898 = vmul.f32 %v4786, %v4882
        %v4899 = vmul.f32 %v4787, %v4883
        %v4900 = vmul.f32 %v4788, %v4884
        %v4901 = vmul.f32 %v4789, %v4885
        %v4902 = vmul.f32 %v4790, %v4886
        %v4903 = vmul.f32 %v4791, %v4887
        %v4904 = vmul.f32 %v4792, %v4888
        %v4905 = vmul.f32 %v4793, %v4889
        %v4906 = vmul.f32 %v4794, %v4890
        %v4908 = vlaneseq
        %v4909 = vshrl.u32 %v4908, 7
        %v4910 = vsub.s32 0, %v4909
        %v4911 = vrot.slane %v4728, %v4910
        %v4913 = vmul.f32 %v4891, %v4911
        %v4914 = vmul.f32 %v4892, %v4911
        %v4915 = vmul.f32 %v4893, %v4911
        %v4916 = vmul.f32 %v4894, %v4911
        %v4917 = vmul.f32 %v4895, %v4911
        %v4918 = vmul.f32 %v4896, %v4911
        %v4919 = vmul.f32 %v4897, %v4911
        %v4920 = vmul.f32 %v4898, %v4911
        %v4921 = vmul.f32 %v4899, %v4911
        %v4922 = vmul.f32 %v4900, %v4911
        %v4923 = vmul.f32 %v4901, %v4911
        %v4924 = vmul.f32 %v4902, %v4911
        %v4925 = vmul.f32 %v4903, %v4911
        %v4926 = vmul.f32 %v4904, %v4911
        %v4927 = vmul.f32 %v4905, %v4911
        %v4928 = vmul.f32 %v4906, %v4911
        %v4930 = vlaneseq
        %v4931 = vshrl.u32 %v4930, 7
        %v4932 = vsub.s32 0, %v4931
        %v4933 = vrot.slane %v4729, %v4932
        %v4935 = vadd.f32 %v4913, %v4933
        %v4936 = vadd.f32 %v4914, %v4933
        %v4937 = vadd.f32 %v4915, %v4933
        %v4938 = vadd.f32 %v4916, %v4933
        %v4939 = vadd.f32 %v4917, %v4933
        %v4940 = vadd.f32 %v4918, %v4933
        %v4941 = vadd.f32 %v4919, %v4933
        %v4942 = vadd.f32 %v4920, %v4933
        %v4943 = vadd.f32 %v4921, %v4933
        %v4944 = vadd.f32 %v4922, %v4933
        %v4945 = vadd.f32 %v4923, %v4933
        %v4946 = vadd.f32 %v4924, %v4933
        %v4947 = vadd.f32 %v4925, %v4933
        %v4948 = vadd.f32 %v4926, %v4933
        %v4949 = vadd.f32 %v4927, %v4933
        %v4950 = vadd.f32 %v4928, %v4933
        %v4951 = vpack.c.bf16 %v4936, %v4935
        %v4952 = vpack.c.bf16 %v4938, %v4937
        %v4953 = vpack.c.bf16 %v4940, %v4939
        %v4954 = vpack.c.bf16 %v4942, %v4941
        %v4955 = vpack.c.bf16 %v4944, %v4943
        %v4956 = vpack.c.bf16 %v4946, %v4945
        %v4957 = vpack.c.bf16 %v4948, %v4947
        %v4958 = vpack.c.bf16 %v4950, %v4949
        %v4959 = vld [vmem:[%s775] sm:$0xff]
        %v4960 = vld [vmem:[%s775 + $0x8] sm:$0xff]
        %v4961 = vld [vmem:[%s775 + $0x10] sm:$0xff]
        %v4962 = vld [vmem:[%s775 + $0x18] sm:$0xff]
        %v4963 = vld [vmem:[%s775 + $0x20] sm:$0xff]
        %v4964 = vld [vmem:[%s775 + $0x28] sm:$0xff]
        %v4965 = vld [vmem:[%s775 + $0x30] sm:$0xff]
        %v4966 = vld [vmem:[%s775 + $0x38] sm:$0xff]
        %v4967 = vld [vmem:[%s775 + $0x40] sm:$0xff]
        %v4968 = vld [vmem:[%s775 + $0x48] sm:$0xff]
        %v4969 = vld [vmem:[%s775 + $0x50] sm:$0xff]
        %v4970 = vld [vmem:[%s775 + $0x58] sm:$0xff]
        %v4971 = vld [vmem:[%s775 + $0x60] sm:$0xff]
        %v4972 = vld [vmem:[%s775 + $0x68] sm:$0xff]
        %v4973 = vld [vmem:[%s775 + $0x70] sm:$0xff]
        %v4974 = vld [vmem:[%s775 + $0x78] sm:$0xff]
        %v4975 = vld [vmem:[%s775 + $0x80] sm:$0xff]
        %v4976 = vld [vmem:[%s775 + $0x88] sm:$0xff]
        %v4977 = vld [vmem:[%s775 + $0x90] sm:$0xff]
        %v4978 = vld [vmem:[%s775 + $0x98] sm:$0xff]
        %v4979 = vld [vmem:[%s775 + $0xa0] sm:$0xff]
        %v4980 = vld [vmem:[%s775 + $0xa8] sm:$0xff]
        %v4981 = vld [vmem:[%s775 + $0xb0] sm:$0xff]
        %v4982 = vld [vmem:[%s775 + $0xb8] sm:$0xff]
        %v4983 = vld [vmem:[%s775 + $0xc0] sm:$0xff]
        %v4984 = vld [vmem:[%s775 + $0xc8] sm:$0xff]
        %v4985 = vld [vmem:[%s775 + $0xd0] sm:$0xff]
        %v4986 = vld [vmem:[%s775 + $0xd8] sm:$0xff]
        %v4987 = vld [vmem:[%s775 + $0xe0] sm:$0xff]
        %v4988 = vld [vmem:[%s775 + $0xe8] sm:$0xff]
        %v4989 = vld [vmem:[%s775 + $0xf0] sm:$0xff]
        %v4990 = vld [vmem:[%s775 + $0xf8] sm:$0xff]
        %v4991 = vld [vmem:[%s779] sm:$0xf]
        %v4993 = vlaneseq
        %v4994 = vshrl.u32 %v4993, 7
        %v4995 = vsub.s32 0, %v4994
        %v4996 = vrot.slane %v4991, %v4995
        %v4997 = vlaneseq
        %v4998 = vshrl.u32 %v4997, 7
        %v4999 = vsub.s32 1, %v4998
        %v5000 = vrot.slane %v4991, %v4999
        %v5001 = vlaneseq
        %v5002 = vshrl.u32 %v5001, 7
        %v5003 = vsub.s32 2, %v5002
        %v5004 = vrot.slane %v4991, %v5003
        %v5005 = vlaneseq
        %v5006 = vshrl.u32 %v5005, 7
        %v5007 = vsub.s32 3, %v5006
        %v5008 = vrot.slane %v4991, %v5007
        %v5045 = vunpack.c.l.b16 %v4959
        %v5046 = vunpack.c.h.b16 %v4959
        %v5047 = vunpack.c.l.b16 %v4960
        %v5048 = vunpack.c.h.b16 %v4960
        %v5049 = vunpack.c.l.b16 %v4961
        %v5050 = vunpack.c.h.b16 %v4961
        %v5051 = vunpack.c.l.b16 %v4962
        %v5052 = vunpack.c.h.b16 %v4962
        %v5053 = vunpack.c.l.b16 %v4963
        %v5054 = vunpack.c.h.b16 %v4963
        %v5055 = vunpack.c.l.b16 %v4964
        %v5056 = vunpack.c.h.b16 %v4964
        %v5057 = vunpack.c.l.b16 %v4965
        %v5058 = vunpack.c.h.b16 %v4965
        %v5059 = vunpack.c.l.b16 %v4966
        %v5060 = vunpack.c.h.b16 %v4966
        %v5061 = vunpack.c.l.b16 %v4967
        %v5062 = vunpack.c.h.b16 %v4967
        %v5063 = vunpack.c.l.b16 %v4968
        %v5064 = vunpack.c.h.b16 %v4968
        %v5065 = vunpack.c.l.b16 %v4969
        %v5066 = vunpack.c.h.b16 %v4969
        %v5067 = vunpack.c.l.b16 %v4970
        %v5068 = vunpack.c.h.b16 %v4970
        %v5069 = vunpack.c.l.b16 %v4971
        %v5070 = vunpack.c.h.b16 %v4971
        %v5071 = vunpack.c.l.b16 %v4972
        %v5072 = vunpack.c.h.b16 %v4972
        %v5073 = vunpack.c.l.b16 %v4973
        %v5074 = vunpack.c.h.b16 %v4973
        %v5075 = vunpack.c.l.b16 %v4974
        %v5076 = vunpack.c.h.b16 %v4974
        %v5077 = vunpack.c.l.b16 %v4975
        %v5078 = vunpack.c.h.b16 %v4975
        %v5079 = vunpack.c.l.b16 %v4976
        %v5080 = vunpack.c.h.b16 %v4976
        %v5081 = vunpack.c.l.b16 %v4977
        %v5082 = vunpack.c.h.b16 %v4977
        %v5083 = vunpack.c.l.b16 %v4978
        %v5084 = vunpack.c.h.b16 %v4978
        %v5085 = vunpack.c.l.b16 %v4979
        %v5086 = vunpack.c.h.b16 %v4979
        %v5087 = vunpack.c.l.b16 %v4980
        %v5088 = vunpack.c.h.b16 %v4980
        %v5089 = vunpack.c.l.b16 %v4981
        %v5090 = vunpack.c.h.b16 %v4981
        %v5091 = vunpack.c.l.b16 %v4982
        %v5092 = vunpack.c.h.b16 %v4982
        %v5093 = vunpack.c.l.b16 %v4983
        %v5094 = vunpack.c.h.b16 %v4983
        %v5095 = vunpack.c.l.b16 %v4984
        %v5096 = vunpack.c.h.b16 %v4984
        %v5097 = vunpack.c.l.b16 %v4985
        %v5098 = vunpack.c.h.b16 %v4985
        %v5099 = vunpack.c.l.b16 %v4986
        %v5100 = vunpack.c.h.b16 %v4986
        %v5101 = vunpack.c.l.b16 %v4987
        %v5102 = vunpack.c.h.b16 %v4987
        %v5103 = vunpack.c.l.b16 %v4988
        %v5104 = vunpack.c.h.b16 %v4988
        %v5105 = vunpack.c.l.b16 %v4989
        %v5106 = vunpack.c.h.b16 %v4989
        %v5107 = vunpack.c.l.b16 %v4990
        %v5108 = vunpack.c.h.b16 %v4990
        %v5109 = vpack.c.b16 %v5049, %v5045
        %v5110 = vpack.c.b16 %v5050, %v5046
        %v5111 = vpack.c.b16 %v5051, %v5047
        %v5112 = vpack.c.b16 %v5052, %v5048
        %v5113 = vpack.c.b16 %v5057, %v5053
        %v5114 = vpack.c.b16 %v5058, %v5054
        %v5115 = vpack.c.b16 %v5059, %v5055
        %v5116 = vpack.c.b16 %v5060, %v5056
        %v5117 = vpack.c.b16 %v5065, %v5061
        %v5118 = vpack.c.b16 %v5066, %v5062
        %v5119 = vpack.c.b16 %v5067, %v5063
        %v5120 = vpack.c.b16 %v5068, %v5064
        %v5121 = vpack.c.b16 %v5073, %v5069
        %v5122 = vpack.c.b16 %v5074, %v5070
        %v5123 = vpack.c.b16 %v5075, %v5071
        %v5124 = vpack.c.b16 %v5076, %v5072
        %v5125 = vpack.c.b16 %v5081, %v5077
        %v5126 = vpack.c.b16 %v5082, %v5078
        %v5127 = vpack.c.b16 %v5083, %v5079
        %v5128 = vpack.c.b16 %v5084, %v5080
        %v5129 = vpack.c.b16 %v5089, %v5085
        %v5130 = vpack.c.b16 %v5090, %v5086
        %v5131 = vpack.c.b16 %v5091, %v5087
        %v5132 = vpack.c.b16 %v5092, %v5088
        %v5133 = vpack.c.b16 %v5097, %v5093
        %v5134 = vpack.c.b16 %v5098, %v5094
        %v5135 = vpack.c.b16 %v5099, %v5095
        %v5136 = vpack.c.b16 %v5100, %v5096
        %v5137 = vpack.c.b16 %v5105, %v5101
        %v5138 = vpack.c.b16 %v5106, %v5102
        %v5139 = vpack.c.b16 %v5107, %v5103
        %v5140 = vpack.c.b16 %v5108, %v5104
        %5173 = vmatprep.subr.bf16.mxu0 %v5138
        %5174 = vmatpush1.bf16.msra.mxu0 %v5137
        %5175 = vmatprep.subr.bf16.mxu0 %v5134
        %5176 = vmatpush1.bf16.msra.mxu0 %v5133
        %5177 = vmatprep.subr.bf16.mxu0 %v5130
        %5178 = vmatpush1.bf16.msra.mxu0 %v5129
        %5179 = vmatprep.subr.bf16.mxu0 %v5126
        %5180 = vmatpush1.bf16.msra.mxu0 %v5125
        %5181 = vmatprep.subr.bf16.mxu0 %v5122
        %5182 = vmatpush1.bf16.msra.mxu0 %v5121
        %5183 = vmatprep.subr.bf16.mxu0 %v5118
        %5184 = vmatpush1.bf16.msra.mxu0 %v5117
        %5185 = vmatprep.subr.bf16.mxu0 %v5114
        %5186 = vmatpush1.bf16.msra.mxu0 %v5113
        %5187 = vmatprep.subr.bf16.mxu0 %v5110
        %5188 = vmatpush1.bf16.msra.mxu0 %v5109
        %5189 = vmatprep.subr.bf16.mxu0 0
        %5190 = vmatpush2.bf16.msra.mxu0 0
        %5191 = vmatprep.subr.bf16.mxu0 0
        %5192 = vmatpush2.bf16.msra.mxu0 0
        %5193 = vmatprep.subr.bf16.mxu0 0
        %5194 = vmatpush2.bf16.msra.mxu0 0
        %5195 = vmatprep.subr.bf16.mxu0 0
        %5196 = vmatpush2.bf16.msra.mxu0 0
        %5197 = vmatprep.subr.bf16.mxu0 0
        %5198 = vmatpush2.bf16.msra.mxu0 0
        %5199 = vmatprep.subr.bf16.mxu0 0
        %5200 = vmatpush2.bf16.msra.mxu0 0
        %5201 = vmatprep.subr.bf16.mxu0 0
        %5202 = vmatpush2.bf16.msra.mxu0 0
        %5203 = vmatprep.subr.bf16.mxu0 0
        %5204 = vmatpush2.bf16.msra.mxu0 0
        %5205 = vmatprep.mubr.bf16.mxu0 0
        %5206 = vmatmul.mubr.bf16.gmra.mxu0 %v4951
        %v5207 = vpop.f32.mrf.mxu0
        %v5208 = vadd.f32 %v4996, %v5207
        %v5209 = vpop.f32.mrf.mxu0
        %v5210 = vadd.f32 %v5000, %v5209
        %v5211 = vpop.f32.mrf.mxu0
        %v5212 = vadd.f32 %v4996, %v5211
        %v5213 = vpop.f32.mrf.mxu0
        %v5214 = vadd.f32 %v5000, %v5213
        %5215 = vmatprep.mubr.bf16.mxu0 0
        %5216 = vmatmul.mubr.bf16.gmra.mxu0 %v4952
        %v5217 = vpop.f32.mrf.mxu0
        %v5218 = vadd.f32 %v4996, %v5217
        %v5219 = vpop.f32.mrf.mxu0
        %v5220 = vadd.f32 %v5000, %v5219
        %v5221 = vpop.f32.mrf.mxu0
        %v5222 = vadd.f32 %v4996, %v5221
        %v5223 = vpop.f32.mrf.mxu0
        %v5224 = vadd.f32 %v5000, %v5223
        %5225 = vmatprep.mubr.bf16.mxu0 0
        %5226 = vmatmul.mubr.bf16.gmra.mxu0 %v4953
        %v5227 = vpop.f32.mrf.mxu0
        %v5228 = vadd.f32 %v4996, %v5227
        %v5229 = vpop.f32.mrf.mxu0
        %v5230 = vadd.f32 %v5000, %v5229
        %v5231 = vpop.f32.mrf.mxu0
        %v5232 = vadd.f32 %v4996, %v5231
        %v5233 = vpop.f32.mrf.mxu0
        %v5234 = vadd.f32 %v5000, %v5233
        %5235 = vmatprep.mubr.bf16.mxu0 0
        %5236 = vmatmul.mubr.bf16.gmra.mxu0 %v4954
        %v5237 = vpop.f32.mrf.mxu0
        %v5238 = vadd.f32 %v4996, %v5237
        %v5239 = vpop.f32.mrf.mxu0
        %v5240 = vadd.f32 %v5000, %v5239
        %v5241 = vpop.f32.mrf.mxu0
        %v5242 = vadd.f32 %v4996, %v5241
        %v5243 = vpop.f32.mrf.mxu0
        %v5244 = vadd.f32 %v5000, %v5243
        %5245 = vmatprep.mubr.bf16.mxu0 0
        %5246 = vmatmul.mubr.bf16.gmra.mxu0 %v4955
        %v5247 = vpop.f32.mrf.mxu0
        %v5248 = vadd.f32 %v4996, %v5247
        %v5249 = vpop.f32.mrf.mxu0
        %v5250 = vadd.f32 %v5000, %v5249
        %v5251 = vpop.f32.mrf.mxu0
        %v5252 = vadd.f32 %v4996, %v5251
        %v5253 = vpop.f32.mrf.mxu0
        %v5254 = vadd.f32 %v5000, %v5253
        %5255 = vmatprep.mubr.bf16.mxu0 0
        %5256 = vmatmul.mubr.bf16.gmra.mxu0 %v4956
        %v5257 = vpop.f32.mrf.mxu0
        %v5258 = vadd.f32 %v4996, %v5257
        %v5259 = vpop.f32.mrf.mxu0
        %v5260 = vadd.f32 %v5000, %v5259
        %v5261 = vpop.f32.mrf.mxu0
        %v5262 = vadd.f32 %v4996, %v5261
        %v5263 = vpop.f32.mrf.mxu0
        %v5264 = vadd.f32 %v5000, %v5263
        %5265 = vmatprep.mubr.bf16.mxu0 0
        %5266 = vmatmul.mubr.bf16.gmra.mxu0 %v4957
        %v5267 = vpop.f32.mrf.mxu0
        %v5268 = vadd.f32 %v4996, %v5267
        %v5269 = vpop.f32.mrf.mxu0
        %v5270 = vadd.f32 %v5000, %v5269
        %v5271 = vpop.f32.mrf.mxu0
        %v5272 = vadd.f32 %v4996, %v5271
        %v5273 = vpop.f32.mrf.mxu0
        %v5274 = vadd.f32 %v5000, %v5273
        %5275 = vmatprep.mubr.bf16.mxu0 0
        %5276 = vmatmul.mubr.bf16.gmra.mxu0 %v4958
        %v5277 = vpop.f32.mrf.mxu0
        %v5278 = vadd.f32 %v4996, %v5277
        %v5279 = vpop.f32.mrf.mxu0
        %v5280 = vadd.f32 %v5000, %v5279
        %v5281 = vpop.f32.mrf.mxu0
        %v5282 = vadd.f32 %v4996, %v5281
        %v5283 = vpop.f32.mrf.mxu0
        %v5284 = vadd.f32 %v5000, %v5283
        %5285 = vdwg.mxu0
        %5286 = vmatprep.subr.bf16.mxu0 %v5140
        %5287 = vmatpush1.bf16.msra.mxu0 %v5139
        %5288 = vmatprep.subr.bf16.mxu0 %v5136
        %5289 = vmatpush1.bf16.msra.mxu0 %v5135
        %5290 = vmatprep.subr.bf16.mxu0 %v5132
        %5291 = vmatpush1.bf16.msra.mxu0 %v5131
        %5292 = vmatprep.subr.bf16.mxu0 %v5128
        %5293 = vmatpush1.bf16.msra.mxu0 %v5127
        %5294 = vmatprep.subr.bf16.mxu0 %v5124
        %5295 = vmatpush1.bf16.msra.mxu0 %v5123
        %5296 = vmatprep.subr.bf16.mxu0 %v5120
        %5297 = vmatpush1.bf16.msra.mxu0 %v5119
        %5298 = vmatprep.subr.bf16.mxu0 %v5116
        %5299 = vmatpush1.bf16.msra.mxu0 %v5115
        %5300 = vmatprep.subr.bf16.mxu0 %v5112
        %5301 = vmatpush1.bf16.msra.mxu0 %v5111
        %5302 = vmatprep.subr.bf16.mxu0 0
        %5303 = vmatpush2.bf16.msra.mxu0 0
        %5304 = vmatprep.subr.bf16.mxu0 0
        %5305 = vmatpush2.bf16.msra.mxu0 0
        %5306 = vmatprep.subr.bf16.mxu0 0
        %5307 = vmatpush2.bf16.msra.mxu0 0
        %5308 = vmatprep.subr.bf16.mxu0 0
        %5309 = vmatpush2.bf16.msra.mxu0 0
        %5310 = vmatprep.subr.bf16.mxu0 0
        %5311 = vmatpush2.bf16.msra.mxu0 0
        %5312 = vmatprep.subr.bf16.mxu0 0
        %5313 = vmatpush2.bf16.msra.mxu0 0
        %5314 = vmatprep.subr.bf16.mxu0 0
        %5315 = vmatpush2.bf16.msra.mxu0 0
        %5316 = vmatprep.subr.bf16.mxu0 0
        %5317 = vmatpush2.bf16.msra.mxu0 0
        %5318 = vmatprep.mubr.bf16.mxu0 0
        %5319 = vmatmul.mubr.bf16.gmra.mxu0 %v4951
        %v5320 = vpop.f32.mrf.mxu0
        %v5321 = vadd.f32 %v5004, %v5320
        %v5322 = vpop.f32.mrf.mxu0
        %v5323 = vadd.f32 %v5008, %v5322
        %v5324 = vpop.f32.mrf.mxu0
        %v5325 = vadd.f32 %v5004, %v5324
        %v5326 = vpop.f32.mrf.mxu0
        %v5327 = vadd.f32 %v5008, %v5326
        %5328 = vmatprep.mubr.bf16.mxu0 0
        %5329 = vmatmul.mubr.bf16.gmra.mxu0 %v4952
        %v5330 = vpop.f32.mrf.mxu0
        %v5331 = vadd.f32 %v5004, %v5330
        %v5332 = vpop.f32.mrf.mxu0
        %v5333 = vadd.f32 %v5008, %v5332
        %v5334 = vpop.f32.mrf.mxu0
        %v5335 = vadd.f32 %v5004, %v5334
        %v5336 = vpop.f32.mrf.mxu0
        %v5337 = vadd.f32 %v5008, %v5336
        %5338 = vmatprep.mubr.bf16.mxu0 0
        %5339 = vmatmul.mubr.bf16.gmra.mxu0 %v4953
        %v5340 = vpop.f32.mrf.mxu0
        %v5341 = vadd.f32 %v5004, %v5340
        %v5342 = vpop.f32.mrf.mxu0
        %v5343 = vadd.f32 %v5008, %v5342
        %v5344 = vpop.f32.mrf.mxu0
        %v5345 = vadd.f32 %v5004, %v5344
        %v5346 = vpop.f32.mrf.mxu0
        %v5347 = vadd.f32 %v5008, %v5346
        %5348 = vmatprep.mubr.bf16.mxu0 0
        %5349 = vmatmul.mubr.bf16.gmra.mxu0 %v4954
        %v5350 = vpop.f32.mrf.mxu0
        %v5351 = vadd.f32 %v5004, %v5350
        %v5352 = vpop.f32.mrf.mxu0
        %v5353 = vadd.f32 %v5008, %v5352
        %v5354 = vpop.f32.mrf.mxu0
        %v5355 = vadd.f32 %v5004, %v5354
        %v5356 = vpop.f32.mrf.mxu0
        %v5357 = vadd.f32 %v5008, %v5356
        %5358 = vmatprep.mubr.bf16.mxu0 0
        %5359 = vmatmul.mubr.bf16.gmra.mxu0 %v4955
        %v5360 = vpop.f32.mrf.mxu0
        %v5361 = vadd.f32 %v5004, %v5360
        %v5362 = vpop.f32.mrf.mxu0
        %v5363 = vadd.f32 %v5008, %v5362
        %v5364 = vpop.f32.mrf.mxu0
        %v5365 = vadd.f32 %v5004, %v5364
        %v5366 = vpop.f32.mrf.mxu0
        %v5367 = vadd.f32 %v5008, %v5366
        %5368 = vmatprep.mubr.bf16.mxu0 0
        %5369 = vmatmul.mubr.bf16.gmra.mxu0 %v4956
        %v5370 = vpop.f32.mrf.mxu0
        %v5371 = vadd.f32 %v5004, %v5370
        %v5372 = vpop.f32.mrf.mxu0
        %v5373 = vadd.f32 %v5008, %v5372
        %v5374 = vpop.f32.mrf.mxu0
        %v5375 = vadd.f32 %v5004, %v5374
        %v5376 = vpop.f32.mrf.mxu0
        %v5377 = vadd.f32 %v5008, %v5376
        %5378 = vmatprep.mubr.bf16.mxu0 0
        %5379 = vmatmul.mubr.bf16.gmra.mxu0 %v4957
        %v5380 = vpop.f32.mrf.mxu0
        %v5381 = vadd.f32 %v5004, %v5380
        %v5382 = vpop.f32.mrf.mxu0
        %v5383 = vadd.f32 %v5008, %v5382
        %v5384 = vpop.f32.mrf.mxu0
        %v5385 = vadd.f32 %v5004, %v5384
        %v5386 = vpop.f32.mrf.mxu0
        %v5387 = vadd.f32 %v5008, %v5386
        %5388 = vmatprep.mubr.bf16.mxu0 0
        %5389 = vmatmul.mubr.bf16.gmra.mxu0 %v4958
        %v5390 = vpop.f32.mrf.mxu0
        %v5391 = vadd.f32 %v5004, %v5390
        %v5392 = vpop.f32.mrf.mxu0
        %v5393 = vadd.f32 %v5008, %v5392
        %v5394 = vpop.f32.mrf.mxu0
        %v5395 = vadd.f32 %v5004, %v5394
        %v5396 = vpop.f32.mrf.mxu0
        %v5397 = vadd.f32 %v5008, %v5396
        %5398 = vdwg.mxu0
        %v5399 = vmul.f32 %v5208, 0.5
        %v5400 = vmul.f32 %v5210, 0.5
        %v5401 = vmul.f32 %v5321, 0.5
        %v5402 = vmul.f32 %v5323, 0.5
        %v5403 = vmul.f32 %v5212, 0.5
        %v5404 = vmul.f32 %v5214, 0.5
        %v5405 = vmul.f32 %v5325, 0.5
        %v5406 = vmul.f32 %v5327, 0.5
        %v5407 = vmul.f32 %v5218, 0.5
        %v5408 = vmul.f32 %v5220, 0.5
        %v5409 = vmul.f32 %v5331, 0.5
        %v5410 = vmul.f32 %v5333, 0.5
        %v5411 = vmul.f32 %v5222, 0.5
        %v5412 = vmul.f32 %v5224, 0.5
        %v5413 = vmul.f32 %v5335, 0.5
        %v5414 = vmul.f32 %v5337, 0.5
        %v5415 = vmul.f32 %v5228, 0.5
        %v5416 = vmul.f32 %v5230, 0.5
        %v5417 = vmul.f32 %v5341, 0.5
        %v5418 = vmul.f32 %v5343, 0.5
        %v5419 = vmul.f32 %v5232, 0.5
        %v5420 = vmul.f32 %v5234, 0.5
        %v5421 = vmul.f32 %v5345, 0.5
        %v5422 = vmul.f32 %v5347, 0.5
        %v5423 = vmul.f32 %v5238, 0.5
        %v5424 = vmul.f32 %v5240, 0.5
        %v5425 = vmul.f32 %v5351, 0.5
        %v5426 = vmul.f32 %v5353, 0.5
        %v5427 = vmul.f32 %v5242, 0.5
        %v5428 = vmul.f32 %v5244, 0.5
        %v5429 = vmul.f32 %v5355, 0.5
        %v5430 = vmul.f32 %v5357, 0.5
        %v5431 = vmul.f32 %v5248, 0.5
        %v5432 = vmul.f32 %v5250, 0.5
        %v5433 = vmul.f32 %v5361, 0.5
        %v5434 = vmul.f32 %v5363, 0.5
        %v5435 = vmul.f32 %v5252, 0.5
        %v5436 = vmul.f32 %v5254, 0.5
        %v5437 = vmul.f32 %v5365, 0.5
        %v5438 = vmul.f32 %v5367, 0.5
        %v5439 = vmul.f32 %v5258, 0.5
        %v5440 = vmul.f32 %v5260, 0.5
        %v5441 = vmul.f32 %v5371, 0.5
        %v5442 = vmul.f32 %v5373, 0.5
        %v5443 = vmul.f32 %v5262, 0.5
        %v5444 = vmul.f32 %v5264, 0.5
        %v5445 = vmul.f32 %v5375, 0.5
        %v5446 = vmul.f32 %v5377, 0.5
        %v5447 = vmul.f32 %v5268, 0.5
        %v5448 = vmul.f32 %v5270, 0.5
        %v5449 = vmul.f32 %v5381, 0.5
        %v5450 = vmul.f32 %v5383, 0.5
        %v5451 = vmul.f32 %v5272, 0.5
        %v5452 = vmul.f32 %v5274, 0.5
        %v5453 = vmul.f32 %v5385, 0.5
        %v5454 = vmul.f32 %v5387, 0.5
        %v5455 = vmul.f32 %v5278, 0.5
        %v5456 = vmul.f32 %v5280, 0.5
        %v5457 = vmul.f32 %v5391, 0.5
        %v5458 = vmul.f32 %v5393, 0.5
        %v5459 = vmul.f32 %v5282, 0.5
        %v5460 = vmul.f32 %v5284, 0.5
        %v5461 = vmul.f32 %v5395, 0.5
        %v5462 = vmul.f32 %v5397, 0.5
        %v5463 = vmul.f32 %v5208, 0.044715
        %v5464 = vmul.f32 %v5210, 0.044715
        %v5465 = vmul.f32 %v5321, 0.044715
        %v5466 = vmul.f32 %v5323, 0.044715
        %v5467 = vmul.f32 %v5212, 0.044715
        %v5468 = vmul.f32 %v5214, 0.044715
        %v5469 = vmul.f32 %v5325, 0.044715
        %v5470 = vmul.f32 %v5327, 0.044715
        %v5471 = vmul.f32 %v5218, 0.044715
        %v5472 = vmul.f32 %v5220, 0.044715
        %v5473 = vmul.f32 %v5331, 0.044715
        %v5474 = vmul.f32 %v5333, 0.044715
        %v5475 = vmul.f32 %v5222, 0.044715
        %v5476 = vmul.f32 %v5224, 0.044715
        %v5477 = vmul.f32 %v5335, 0.044715
        %v5478 = vmul.f32 %v5337, 0.044715
        %v5479 = vmul.f32 %v5228, 0.044715
        %v5480 = vmul.f32 %v5230, 0.044715
        %v5481 = vmul.f32 %v5341, 0.044715
        %v5482 = vmul.f32 %v5343, 0.044715
        %v5483 = vmul.f32 %v5232, 0.044715
        %v5484 = vmul.f32 %v5234, 0.044715
        %v5485 = vmul.f32 %v5345, 0.044715
        %v5486 = vmul.f32 %v5347, 0.044715
        %v5487 = vmul.f32 %v5238, 0.044715
        %v5488 = vmul.f32 %v5240, 0.044715
        %v5489 = vmul.f32 %v5351, 0.044715
        %v5490 = vmul.f32 %v5353, 0.044715
        %v5491 = vmul.f32 %v5242, 0.044715
        %v5492 = vmul.f32 %v5244, 0.044715
        %v5493 = vmul.f32 %v5355, 0.044715
        %v5494 = vmul.f32 %v5357, 0.044715
        %v5495 = vmul.f32 %v5248, 0.044715
        %v5496 = vmul.f32 %v5250, 0.044715
        %v5497 = vmul.f32 %v5361, 0.044715
        %v5498 = vmul.f32 %v5363, 0.044715
        %v5499 = vmul.f32 %v5252, 0.044715
        %v5500 = vmul.f32 %v5254, 0.044715
        %v5501 = vmul.f32 %v5365, 0.044715
        %v5502 = vmul.f32 %v5367, 0.044715
        %v5503 = vmul.f32 %v5258, 0.044715
        %v5504 = vmul.f32 %v5260, 0.044715
        %v5505 = vmul.f32 %v5371, 0.044715
        %v5506 = vmul.f32 %v5373, 0.044715
        %v5507 = vmul.f32 %v5262, 0.044715
        %v5508 = vmul.f32 %v5264, 0.044715
        %v5509 = vmul.f32 %v5375, 0.044715
        %v5510 = vmul.f32 %v5377, 0.044715
        %v5511 = vmul.f32 %v5268, 0.044715
        %v5512 = vmul.f32 %v5270, 0.044715
        %v5513 = vmul.f32 %v5381, 0.044715
        %v5514 = vmul.f32 %v5383, 0.044715
        %v5515 = vmul.f32 %v5272, 0.044715
        %v5516 = vmul.f32 %v5274, 0.044715
        %v5517 = vmul.f32 %v5385, 0.044715
        %v5518 = vmul.f32 %v5387, 0.044715
        %v5519 = vmul.f32 %v5278, 0.044715
        %v5520 = vmul.f32 %v5280, 0.044715
        %v5521 = vmul.f32 %v5391, 0.044715
        %v5522 = vmul.f32 %v5393, 0.044715
        %v5523 = vmul.f32 %v5282, 0.044715
        %v5524 = vmul.f32 %v5284, 0.044715
        %v5525 = vmul.f32 %v5395, 0.044715
        %v5526 = vmul.f32 %v5397, 0.044715
        %v5527 = vmul.f32 %v5463, %v5208
        %v5528 = vmul.f32 %v5464, %v5210
        %v5529 = vmul.f32 %v5465, %v5321
        %v5530 = vmul.f32 %v5466, %v5323
        %v5531 = vmul.f32 %v5467, %v5212
        %v5532 = vmul.f32 %v5468, %v5214
        %v5533 = vmul.f32 %v5469, %v5325
        %v5534 = vmul.f32 %v5470, %v5327
        %v5535 = vmul.f32 %v5471, %v5218
        %v5536 = vmul.f32 %v5472, %v5220
        %v5537 = vmul.f32 %v5473, %v5331
        %v5538 = vmul.f32 %v5474, %v5333
        %v5539 = vmul.f32 %v5475, %v5222
        %v5540 = vmul.f32 %v5476, %v5224
        %v5541 = vmul.f32 %v5477, %v5335
        %v5542 = vmul.f32 %v5478, %v5337
        %v5543 = vmul.f32 %v5479, %v5228
        %v5544 = vmul.f32 %v5480, %v5230
        %v5545 = vmul.f32 %v5481, %v5341
        %v5546 = vmul.f32 %v5482, %v5343
        %v5547 = vmul.f32 %v5483, %v5232
        %v5548 = vmul.f32 %v5484, %v5234
        %v5549 = vmul.f32 %v5485, %v5345
        %v5550 = vmul.f32 %v5486, %v5347
        %v5551 = vmul.f32 %v5487, %v5238
        %v5552 = vmul.f32 %v5488, %v5240
        %v5553 = vmul.f32 %v5489, %v5351
        %v5554 = vmul.f32 %v5490, %v5353
        %v5555 = vmul.f32 %v5491, %v5242
        %v5556 = vmul.f32 %v5492, %v5244
        %v5557 = vmul.f32 %v5493, %v5355
        %v5558 = vmul.f32 %v5494, %v5357
        %v5559 = vmul.f32 %v5495, %v5248
        %v5560 = vmul.f32 %v5496, %v5250
        %v5561 = vmul.f32 %v5497, %v5361
        %v5562 = vmul.f32 %v5498, %v5363
        %v5563 = vmul.f32 %v5499, %v5252
        %v5564 = vmul.f32 %v5500, %v5254
        %v5565 = vmul.f32 %v5501, %v5365
        %v5566 = vmul.f32 %v5502, %v5367
        %v5567 = vmul.f32 %v5503, %v5258
        %v5568 = vmul.f32 %v5504, %v5260
        %v5569 = vmul.f32 %v5505, %v5371
        %v5570 = vmul.f32 %v5506, %v5373
        %v5571 = vmul.f32 %v5507, %v5262
        %v5572 = vmul.f32 %v5508, %v5264
        %v5573 = vmul.f32 %v5509, %v5375
        %v5574 = vmul.f32 %v5510, %v5377
        %v5575 = vmul.f32 %v5511, %v5268
        %v5576 = vmul.f32 %v5512, %v5270
        %v5577 = vmul.f32 %v5513, %v5381
        %v5578 = vmul.f32 %v5514, %v5383
        %v5579 = vmul.f32 %v5515, %v5272
        %v5580 = vmul.f32 %v5516, %v5274
        %v5581 = vmul.f32 %v5517, %v5385
        %v5582 = vmul.f32 %v5518, %v5387
        %v5583 = vmul.f32 %v5519, %v5278
        %v5584 = vmul.f32 %v5520, %v5280
        %v5585 = vmul.f32 %v5521, %v5391
        %v5586 = vmul.f32 %v5522, %v5393
        %v5587 = vmul.f32 %v5523, %v5282
        %v5588 = vmul.f32 %v5524, %v5284
        %v5589 = vmul.f32 %v5525, %v5395
        %v5590 = vmul.f32 %v5526, %v5397
        %v5591 = vmul.f32 %v5527, %v5208
        %v5592 = vmul.f32 %v5528, %v5210
        %v5593 = vmul.f32 %v5529, %v5321
        %v5594 = vmul.f32 %v5530, %v5323
        %v5595 = vmul.f32 %v5531, %v5212
        %v5596 = vmul.f32 %v5532, %v5214
        %v5597 = vmul.f32 %v5533, %v5325
        %v5598 = vmul.f32 %v5534, %v5327
        %v5599 = vmul.f32 %v5535, %v5218
        %v5600 = vmul.f32 %v5536, %v5220
        %v5601 = vmul.f32 %v5537, %v5331
        %v5602 = vmul.f32 %v5538, %v5333
        %v5603 = vmul.f32 %v5539, %v5222
        %v5604 = vmul.f32 %v5540, %v5224
        %v5605 = vmul.f32 %v5541, %v5335
        %v5606 = vmul.f32 %v5542, %v5337
        %v5607 = vmul.f32 %v5543, %v5228
        %v5608 = vmul.f32 %v5544, %v5230
        %v5609 = vmul.f32 %v5545, %v5341
        %v5610 = vmul.f32 %v5546, %v5343
        %v5611 = vmul.f32 %v5547, %v5232
        %v5612 = vmul.f32 %v5548, %v5234
        %v5613 = vmul.f32 %v5549, %v5345
        %v5614 = vmul.f32 %v5550, %v5347
        %v5615 = vmul.f32 %v5551, %v5238
        %v5616 = vmul.f32 %v5552, %v5240
        %v5617 = vmul.f32 %v5553, %v5351
        %v5618 = vmul.f32 %v5554, %v5353
        %v5619 = vmul.f32 %v5555, %v5242
        %v5620 = vmul.f32 %v5556, %v5244
        %v5621 = vmul.f32 %v5557, %v5355
        %v5622 = vmul.f32 %v5558, %v5357
        %v5623 = vmul.f32 %v5559, %v5248
        %v5624 = vmul.f32 %v5560, %v5250
        %v5625 = vmul.f32 %v5561, %v5361
        %v5626 = vmul.f32 %v5562, %v5363
        %v5627 = vmul.f32 %v5563, %v5252
        %v5628 = vmul.f32 %v5564, %v5254
        %v5629 = vmul.f32 %v5565, %v5365
        %v5630 = vmul.f32 %v5566, %v5367
        %v5631 = vmul.f32 %v5567, %v5258
        %v5632 = vmul.f32 %v5568, %v5260
        %v5633 = vmul.f32 %v5569, %v5371
        %v5634 = vmul.f32 %v5570, %v5373
        %v5635 = vmul.f32 %v5571, %v5262
        %v5636 = vmul.f32 %v5572, %v5264
        %v5637 = vmul.f32 %v5573, %v5375
        %v5638 = vmul.f32 %v5574, %v5377
        %v5639 = vmul.f32 %v5575, %v5268
        %v5640 = vmul.f32 %v5576, %v5270
        %v5641 = vmul.f32 %v5577, %v5381
        %v5642 = vmul.f32 %v5578, %v5383
        %v5643 = vmul.f32 %v5579, %v5272
        %v5644 = vmul.f32 %v5580, %v5274
        %v5645 = vmul.f32 %v5581, %v5385
        %v5646 = vmul.f32 %v5582, %v5387
        %v5647 = vmul.f32 %v5583, %v5278
        %v5648 = vmul.f32 %v5584, %v5280
        %v5649 = vmul.f32 %v5585, %v5391
        %v5650 = vmul.f32 %v5586, %v5393
        %v5651 = vmul.f32 %v5587, %v5282
        %v5652 = vmul.f32 %v5588, %v5284
        %v5653 = vmul.f32 %v5589, %v5395
        %v5654 = vmul.f32 %v5590, %v5397
        %v5655 = vadd.f32 %v5208, %v5591
        %v5656 = vadd.f32 %v5210, %v5592
        %v5657 = vadd.f32 %v5321, %v5593
        %v5658 = vadd.f32 %v5323, %v5594
        %v5659 = vadd.f32 %v5212, %v5595
        %v5660 = vadd.f32 %v5214, %v5596
        %v5661 = vadd.f32 %v5325, %v5597
        %v5662 = vadd.f32 %v5327, %v5598
        %v5663 = vadd.f32 %v5218, %v5599
        %v5664 = vadd.f32 %v5220, %v5600
        %v5665 = vadd.f32 %v5331, %v5601
        %v5666 = vadd.f32 %v5333, %v5602
        %v5667 = vadd.f32 %v5222, %v5603
        %v5668 = vadd.f32 %v5224, %v5604
        %v5669 = vadd.f32 %v5335, %v5605
        %v5670 = vadd.f32 %v5337, %v5606
        %v5671 = vadd.f32 %v5228, %v5607
        %v5672 = vadd.f32 %v5230, %v5608
        %v5673 = vadd.f32 %v5341, %v5609
        %v5674 = vadd.f32 %v5343, %v5610
        %v5675 = vadd.f32 %v5232, %v5611
        %v5676 = vadd.f32 %v5234, %v5612
        %v5677 = vadd.f32 %v5345, %v5613
        %v5678 = vadd.f32 %v5347, %v5614
        %v5679 = vadd.f32 %v5238, %v5615
        %v5680 = vadd.f32 %v5240, %v5616
        %v5681 = vadd.f32 %v5351, %v5617
        %v5682 = vadd.f32 %v5353, %v5618
        %v5683 = vadd.f32 %v5242, %v5619
        %v5684 = vadd.f32 %v5244, %v5620
        %v5685 = vadd.f32 %v5355, %v5621
        %v5686 = vadd.f32 %v5357, %v5622
        %v5687 = vadd.f32 %v5248, %v5623
        %v5688 = vadd.f32 %v5250, %v5624
        %v5689 = vadd.f32 %v5361, %v5625
        %v5690 = vadd.f32 %v5363, %v5626
        %v5691 = vadd.f32 %v5252, %v5627
        %v5692 = vadd.f32 %v5254, %v5628
        %v5693 = vadd.f32 %v5365, %v5629
        %v5694 = vadd.f32 %v5367, %v5630
        %v5695 = vadd.f32 %v5258, %v5631
        %v5696 = vadd.f32 %v5260, %v5632
        %v5697 = vadd.f32 %v5371, %v5633
        %v5698 = vadd.f32 %v5373, %v5634
        %v5699 = vadd.f32 %v5262, %v5635
        %v5700 = vadd.f32 %v5264, %v5636
        %v5701 = vadd.f32 %v5375, %v5637
        %v5702 = vadd.f32 %v5377, %v5638
        %v5703 = vadd.f32 %v5268, %v5639
        %v5704 = vadd.f32 %v5270, %v5640
        %v5705 = vadd.f32 %v5381, %v5641
        %v5706 = vadd.f32 %v5383, %v5642
        %v5707 = vadd.f32 %v5272, %v5643
        %v5708 = vadd.f32 %v5274, %v5644
        %v5709 = vadd.f32 %v5385, %v5645
        %v5710 = vadd.f32 %v5387, %v5646
        %v5711 = vadd.f32 %v5278, %v5647
        %v5712 = vadd.f32 %v5280, %v5648
        %v5713 = vadd.f32 %v5391, %v5649
        %v5714 = vadd.f32 %v5393, %v5650
        %v5715 = vadd.f32 %v5282, %v5651
        %v5716 = vadd.f32 %v5284, %v5652
        %v5717 = vadd.f32 %v5395, %v5653
        %v5718 = vadd.f32 %v5397, %v5654
        %v5719 = vmul.f32 %v5655, 0.7978846
        %v5720 = vmul.f32 %v5656, 0.7978846
        %v5721 = vmul.f32 %v5657, 0.7978846
        %v5722 = vmul.f32 %v5658, 0.7978846
        %v5723 = vmul.f32 %v5659, 0.7978846
        %v5724 = vmul.f32 %v5660, 0.7978846
        %v5725 = vmul.f32 %v5661, 0.7978846
        %v5726 = vmul.f32 %v5662, 0.7978846
        %v5727 = vmul.f32 %v5663, 0.7978846
        %v5728 = vmul.f32 %v5664, 0.7978846
        %v5729 = vmul.f32 %v5665, 0.7978846
        %v5730 = vmul.f32 %v5666, 0.7978846
        %v5731 = vmul.f32 %v5667, 0.7978846
        %v5732 = vmul.f32 %v5668, 0.7978846
        %v5733 = vmul.f32 %v5669, 0.7978846
        %v5734 = vmul.f32 %v5670, 0.7978846
        %v5735 = vmul.f32 %v5671, 0.7978846
        %v5736 = vmul.f32 %v5672, 0.7978846
        %v5737 = vmul.f32 %v5673, 0.7978846
        %v5738 = vmul.f32 %v5674, 0.7978846
        %v5739 = vmul.f32 %v5675, 0.7978846
        %v5740 = vmul.f32 %v5676, 0.7978846
        %v5741 = vmul.f32 %v5677, 0.7978846
        %v5742 = vmul.f32 %v5678, 0.7978846
        %v5743 = vmul.f32 %v5679, 0.7978846
        %v5744 = vmul.f32 %v5680, 0.7978846
        %v5745 = vmul.f32 %v5681, 0.7978846
        %v5746 = vmul.f32 %v5682, 0.7978846
        %v5747 = vmul.f32 %v5683, 0.7978846
        %v5748 = vmul.f32 %v5684, 0.7978846
        %v5749 = vmul.f32 %v5685, 0.7978846
        %v5750 = vmul.f32 %v5686, 0.7978846
        %v5751 = vmul.f32 %v5687, 0.7978846
        %v5752 = vmul.f32 %v5688, 0.7978846
        %v5753 = vmul.f32 %v5689, 0.7978846
        %v5754 = vmul.f32 %v5690, 0.7978846
        %v5755 = vmul.f32 %v5691, 0.7978846
        %v5756 = vmul.f32 %v5692, 0.7978846
        %v5757 = vmul.f32 %v5693, 0.7978846
        %v5758 = vmul.f32 %v5694, 0.7978846
        %v5759 = vmul.f32 %v5695, 0.7978846
        %v5760 = vmul.f32 %v5696, 0.7978846
        %v5761 = vmul.f32 %v5697, 0.7978846
        %v5762 = vmul.f32 %v5698, 0.7978846
        %v5763 = vmul.f32 %v5699, 0.7978846
        %v5764 = vmul.f32 %v5700, 0.7978846
        %v5765 = vmul.f32 %v5701, 0.7978846
        %v5766 = vmul.f32 %v5702, 0.7978846
        %v5767 = vmul.f32 %v5703, 0.7978846
        %v5768 = vmul.f32 %v5704, 0.7978846
        %v5769 = vmul.f32 %v5705, 0.7978846
        %v5770 = vmul.f32 %v5706, 0.7978846
        %v5771 = vmul.f32 %v5707, 0.7978846
        %v5772 = vmul.f32 %v5708, 0.7978846
        %v5773 = vmul.f32 %v5709, 0.7978846
        %v5774 = vmul.f32 %v5710, 0.7978846
        %v5775 = vmul.f32 %v5711, 0.7978846
        %v5776 = vmul.f32 %v5712, 0.7978846
        %v5777 = vmul.f32 %v5713, 0.7978846
        %v5778 = vmul.f32 %v5714, 0.7978846
        %v5779 = vmul.f32 %v5715, 0.7978846
        %v5780 = vmul.f32 %v5716, 0.7978846
        %v5781 = vmul.f32 %v5717, 0.7978846
        %v5782 = vmul.f32 %v5718, 0.7978846
        %v5783 = vtanh.pop %v5719
        %v5784 = vtanh.pop %v5720
        %v5785 = vtanh.pop %v5721
        %v5786 = vtanh.pop %v5722
        %v5787 = vtanh.pop %v5723
        %v5788 = vtanh.pop %v5724
        %v5789 = vtanh.pop %v5725
        %v5790 = vtanh.pop %v5726
        %v5791 = vtanh.pop %v5727
        %v5792 = vtanh.pop %v5728
        %v5793 = vtanh.pop %v5729
        %v5794 = vtanh.pop %v5730
        %v5795 = vtanh.pop %v5731
        %v5796 = vtanh.pop %v5732
        %v5797 = vtanh.pop %v5733
        %v5798 = vtanh.pop %v5734
        %v5799 = vtanh.pop %v5735
        %v5800 = vtanh.pop %v5736
        %v5801 = vtanh.pop %v5737
        %v5802 = vtanh.pop %v5738
        %v5803 = vtanh.pop %v5739
        %v5804 = vtanh.pop %v5740
        %v5805 = vtanh.pop %v5741
        %v5806 = vtanh.pop %v5742
        %v5807 = vtanh.pop %v5743
        %v5808 = vtanh.pop %v5744
        %v5809 = vtanh.pop %v5745
        %v5810 = vtanh.pop %v5746
        %v5811 = vtanh.pop %v5747
        %v5812 = vtanh.pop %v5748
        %v5813 = vtanh.pop %v5749
        %v5814 = vtanh.pop %v5750
        %v5815 = vtanh.pop %v5751
        %v5816 = vtanh.pop %v5752
        %v5817 = vtanh.pop %v5753
        %v5818 = vtanh.pop %v5754
        %v5819 = vtanh.pop %v5755
        %v5820 = vtanh.pop %v5756
        %v5821 = vtanh.pop %v5757
        %v5822 = vtanh.pop %v5758
        %v5823 = vtanh.pop %v5759
        %v5824 = vtanh.pop %v5760
        %v5825 = vtanh.pop %v5761
        %v5826 = vtanh.pop %v5762
        %v5827 = vtanh.pop %v5763
        %v5828 = vtanh.pop %v5764
        %v5829 = vtanh.pop %v5765
        %v5830 = vtanh.pop %v5766
        %v5831 = vtanh.pop %v5767
        %v5832 = vtanh.pop %v5768
        %v5833 = vtanh.pop %v5769
        %v5834 = vtanh.pop %v5770
        %v5835 = vtanh.pop %v5771
        %v5836 = vtanh.pop %v5772
        %v5837 = vtanh.pop %v5773
        %v5838 = vtanh.pop %v5774
        %v5839 = vtanh.pop %v5775
        %v5840 = vtanh.pop %v5776
        %v5841 = vtanh.pop %v5777
        %v5842 = vtanh.pop %v5778
        %v5843 = vtanh.pop %v5779
        %v5844 = vtanh.pop %v5780
        %v5845 = vtanh.pop %v5781
        %v5846 = vtanh.pop %v5782
        %v5847 = vadd.f32 %v5783, 1.0
        %v5848 = vadd.f32 %v5784, 1.0
        %v5849 = vadd.f32 %v5785, 1.0
        %v5850 = vadd.f32 %v5786, 1.0
        %v5851 = vadd.f32 %v5787, 1.0
        %v5852 = vadd.f32 %v5788, 1.0
        %v5853 = vadd.f32 %v5789, 1.0
        %v5854 = vadd.f32 %v5790, 1.0
        %v5855 = vadd.f32 %v5791, 1.0
        %v5856 = vadd.f32 %v5792, 1.0
        %v5857 = vadd.f32 %v5793, 1.0
        %v5858 = vadd.f32 %v5794, 1.0
        %v5859 = vadd.f32 %v5795, 1.0
        %v5860 = vadd.f32 %v5796, 1.0
        %v5861 = vadd.f32 %v5797, 1.0
        %v5862 = vadd.f32 %v5798, 1.0
        %v5863 = vadd.f32 %v5799, 1.0
        %v5864 = vadd.f32 %v5800, 1.0
        %v5865 = vadd.f32 %v5801, 1.0
        %v5866 = vadd.f32 %v5802, 1.0
        %v5867 = vadd.f32 %v5803, 1.0
        %v5868 = vadd.f32 %v5804, 1.0
        %v5869 = vadd.f32 %v5805, 1.0
        %v5870 = vadd.f32 %v5806, 1.0
        %v5871 = vadd.f32 %v5807, 1.0
        %v5872 = vadd.f32 %v5808, 1.0
        %v5873 = vadd.f32 %v5809, 1.0
        %v5874 = vadd.f32 %v5810, 1.0
        %v5875 = vadd.f32 %v5811, 1.0
        %v5876 = vadd.f32 %v5812, 1.0
        %v5877 = vadd.f32 %v5813, 1.0
        %v5878 = vadd.f32 %v5814, 1.0
        %v5879 = vadd.f32 %v5815, 1.0
        %v5880 = vadd.f32 %v5816, 1.0
        %v5881 = vadd.f32 %v5817, 1.0
        %v5882 = vadd.f32 %v5818, 1.0
        %v5883 = vadd.f32 %v5819, 1.0
        %v5884 = vadd.f32 %v5820, 1.0
        %v5885 = vadd.f32 %v5821, 1.0
        %v5886 = vadd.f32 %v5822, 1.0
        %v5887 = vadd.f32 %v5823, 1.0
        %v5888 = vadd.f32 %v5824, 1.0
        %v5889 = vadd.f32 %v5825, 1.0
        %v5890 = vadd.f32 %v5826, 1.0
        %v5891 = vadd.f32 %v5827, 1.0
        %v5892 = vadd.f32 %v5828, 1.0
        %v5893 = vadd.f32 %v5829, 1.0
        %v5894 = vadd.f32 %v5830, 1.0
        %v5895 = vadd.f32 %v5831, 1.0
        %v5896 = vadd.f32 %v5832, 1.0
        %v5897 = vadd.f32 %v5833, 1.0
        %v5898 = vadd.f32 %v5834, 1.0
        %v5899 = vadd.f32 %v5835, 1.0
        %v5900 = vadd.f32 %v5836, 1.0
        %v5901 = vadd.f32 %v5837, 1.0
        %v5902 = vadd.f32 %v5838, 1.0
        %v5903 = vadd.f32 %v5839, 1.0
        %v5904 = vadd.f32 %v5840, 1.0
        %v5905 = vadd.f32 %v5841, 1.0
        %v5906 = vadd.f32 %v5842, 1.0
        %v5907 = vadd.f32 %v5843, 1.0
        %v5908 = vadd.f32 %v5844, 1.0
        %v5909 = vadd.f32 %v5845, 1.0
        %v5910 = vadd.f32 %v5846, 1.0
        %v5911 = vmul.f32 %v5399, %v5847
        %v5912 = vmul.f32 %v5400, %v5848
        %v5913 = vmul.f32 %v5401, %v5849
        %v5914 = vmul.f32 %v5402, %v5850
        %v5915 = vmul.f32 %v5403, %v5851
        %v5916 = vmul.f32 %v5404, %v5852
        %v5917 = vmul.f32 %v5405, %v5853
        %v5918 = vmul.f32 %v5406, %v5854
        %v5919 = vmul.f32 %v5407, %v5855
        %v5920 = vmul.f32 %v5408, %v5856
        %v5921 = vmul.f32 %v5409, %v5857
        %v5922 = vmul.f32 %v5410, %v5858
        %v5923 = vmul.f32 %v5411, %v5859
        %v5924 = vmul.f32 %v5412, %v5860
        %v5925 = vmul.f32 %v5413, %v5861
        %v5926 = vmul.f32 %v5414, %v5862
        %v5927 = vmul.f32 %v5415, %v5863
        %v5928 = vmul.f32 %v5416, %v5864
        %v5929 = vmul.f32 %v5417, %v5865
        %v5930 = vmul.f32 %v5418, %v5866
        %v5931 = vmul.f32 %v5419, %v5867
        %v5932 = vmul.f32 %v5420, %v5868
        %v5933 = vmul.f32 %v5421, %v5869
        %v5934 = vmul.f32 %v5422, %v5870
        %v5935 = vmul.f32 %v5423, %v5871
        %v5936 = vmul.f32 %v5424, %v5872
        %v5937 = vmul.f32 %v5425, %v5873
        %v5938 = vmul.f32 %v5426, %v5874
        %v5939 = vmul.f32 %v5427, %v5875
        %v5940 = vmul.f32 %v5428, %v5876
        %v5941 = vmul.f32 %v5429, %v5877
        %v5942 = vmul.f32 %v5430, %v5878
        %v5943 = vmul.f32 %v5431, %v5879
        %v5944 = vmul.f32 %v5432, %v5880
        %v5945 = vmul.f32 %v5433, %v5881
        %v5946 = vmul.f32 %v5434, %v5882
        %v5947 = vmul.f32 %v5435, %v5883
        %v5948 = vmul.f32 %v5436, %v5884
        %v5949 = vmul.f32 %v5437, %v5885
        %v5950 = vmul.f32 %v5438, %v5886
        %v5951 = vmul.f32 %v5439, %v5887
        %v5952 = vmul.f32 %v5440, %v5888
        %v5953 = vmul.f32 %v5441, %v5889
        %v5954 = vmul.f32 %v5442, %v5890
        %v5955 = vmul.f32 %v5443, %v5891
        %v5956 = vmul.f32 %v5444, %v5892
        %v5957 = vmul.f32 %v5445, %v5893
        %v5958 = vmul.f32 %v5446, %v5894
        %v5959 = vmul.f32 %v5447, %v5895
        %v5960 = vmul.f32 %v5448, %v5896
        %v5961 = vmul.f32 %v5449, %v5897
        %v5962 = vmul.f32 %v5450, %v5898
        %v5963 = vmul.f32 %v5451, %v5899
        %v5964 = vmul.f32 %v5452, %v5900
        %v5965 = vmul.f32 %v5453, %v5901
        %v5966 = vmul.f32 %v5454, %v5902
        %v5967 = vmul.f32 %v5455, %v5903
        %v5968 = vmul.f32 %v5456, %v5904
        %v5969 = vmul.f32 %v5457, %v5905
        %v5970 = vmul.f32 %v5458, %v5906
        %v5971 = vmul.f32 %v5459, %v5907
        %v5972 = vmul.f32 %v5460, %v5908
        %v5973 = vmul.f32 %v5461, %v5909
        %v5974 = vmul.f32 %v5462, %v5910
        %v5975 = vpack.c.bf16 %v5915, %v5911
        %v5976 = vpack.c.bf16 %v5916, %v5912
        %v5977 = vpack.c.bf16 %v5917, %v5913
        %v5978 = vpack.c.bf16 %v5918, %v5914
        %v5979 = vpack.c.bf16 %v5923, %v5919
        %v5980 = vpack.c.bf16 %v5924, %v5920
        %v5981 = vpack.c.bf16 %v5925, %v5921
        %v5982 = vpack.c.bf16 %v5926, %v5922
        %v5983 = vpack.c.bf16 %v5931, %v5927
        %v5984 = vpack.c.bf16 %v5932, %v5928
        %v5985 = vpack.c.bf16 %v5933, %v5929
        %v5986 = vpack.c.bf16 %v5934, %v5930
        %v5987 = vpack.c.bf16 %v5939, %v5935
        %v5988 = vpack.c.bf16 %v5940, %v5936
        %v5989 = vpack.c.bf16 %v5941, %v5937
        %v5990 = vpack.c.bf16 %v5942, %v5938
        %v5991 = vpack.c.bf16 %v5947, %v5943
        %v5992 = vpack.c.bf16 %v5948, %v5944
        %v5993 = vpack.c.bf16 %v5949, %v5945
        %v5994 = vpack.c.bf16 %v5950, %v5946
        %v5995 = vpack.c.bf16 %v5955, %v5951
        %v5996 = vpack.c.bf16 %v5956, %v5952
        %v5997 = vpack.c.bf16 %v5957, %v5953
        %v5998 = vpack.c.bf16 %v5958, %v5954
        %v5999 = vpack.c.bf16 %v5963, %v5959
        %v6000 = vpack.c.bf16 %v5964, %v5960
        %v6001 = vpack.c.bf16 %v5965, %v5961
        %v6002 = vpack.c.bf16 %v5966, %v5962
        %v6003 = vpack.c.bf16 %v5971, %v5967
        %v6004 = vpack.c.bf16 %v5972, %v5968
        %v6005 = vpack.c.bf16 %v5973, %v5969
        %v6006 = vpack.c.bf16 %v5974, %v5970
        %v6007 = vld [vmem:[%s784] sm:$0xf]
        %v6008 = vld [vmem:[%s784 + $0x4] sm:$0xf]
        %v6009 = vld [vmem:[%s784 + $0x8] sm:$0xf]
        %v6010 = vld [vmem:[%s784 + $0xc] sm:$0xf]
        %v6011 = vld [vmem:[%s784 + $0x10] sm:$0xf]
        %v6012 = vld [vmem:[%s784 + $0x14] sm:$0xf]
        %v6013 = vld [vmem:[%s784 + $0x18] sm:$0xf]
        %v6014 = vld [vmem:[%s784 + $0x1c] sm:$0xf]
        %v6015 = vld [vmem:[%s784 + $0x20] sm:$0xf]
        %v6016 = vld [vmem:[%s784 + $0x24] sm:$0xf]
        %v6017 = vld [vmem:[%s784 + $0x28] sm:$0xf]
        %v6018 = vld [vmem:[%s784 + $0x2c] sm:$0xf]
        %v6019 = vld [vmem:[%s784 + $0x30] sm:$0xf]
        %v6020 = vld [vmem:[%s784 + $0x34] sm:$0xf]
        %v6021 = vld [vmem:[%s784 + $0x38] sm:$0xf]
        %v6022 = vld [vmem:[%s784 + $0x3c] sm:$0xf]
        %v6023 = vld [vmem:[%s784 + $0x40] sm:$0xf]
        %v6024 = vld [vmem:[%s784 + $0x44] sm:$0xf]
        %v6025 = vld [vmem:[%s784 + $0x48] sm:$0xf]
        %v6026 = vld [vmem:[%s784 + $0x4c] sm:$0xf]
        %v6027 = vld [vmem:[%s784 + $0x50] sm:$0xf]
        %v6028 = vld [vmem:[%s784 + $0x54] sm:$0xf]
        %v6029 = vld [vmem:[%s784 + $0x58] sm:$0xf]
        %v6030 = vld [vmem:[%s784 + $0x5c] sm:$0xf]
        %v6031 = vld [vmem:[%s784 + $0x60] sm:$0xf]
        %v6032 = vld [vmem:[%s784 + $0x64] sm:$0xf]
        %v6033 = vld [vmem:[%s784 + $0x68] sm:$0xf]
        %v6034 = vld [vmem:[%s784 + $0x6c] sm:$0xf]
        %v6035 = vld [vmem:[%s784 + $0x70] sm:$0xf]
        %v6036 = vld [vmem:[%s784 + $0x74] sm:$0xf]
        %v6037 = vld [vmem:[%s784 + $0x78] sm:$0xf]
        %v6038 = vld [vmem:[%s784 + $0x7c] sm:$0xf]
        %v6039 = vld [vmem:[%s784 + $0x80] sm:$0xf]
        %v6040 = vld [vmem:[%s784 + $0x84] sm:$0xf]
        %v6041 = vld [vmem:[%s784 + $0x88] sm:$0xf]
        %v6042 = vld [vmem:[%s784 + $0x8c] sm:$0xf]
        %v6043 = vld [vmem:[%s784 + $0x90] sm:$0xf]
        %v6044 = vld [vmem:[%s784 + $0x94] sm:$0xf]
        %v6045 = vld [vmem:[%s784 + $0x98] sm:$0xf]
        %v6046 = vld [vmem:[%s784 + $0x9c] sm:$0xf]
        %v6047 = vld [vmem:[%s784 + $0xa0] sm:$0xf]
        %v6048 = vld [vmem:[%s784 + $0xa4] sm:$0xf]
        %v6049 = vld [vmem:[%s784 + $0xa8] sm:$0xf]
        %v6050 = vld [vmem:[%s784 + $0xac] sm:$0xf]
        %v6051 = vld [vmem:[%s784 + $0xb0] sm:$0xf]
        %v6052 = vld [vmem:[%s784 + $0xb4] sm:$0xf]
        %v6053 = vld [vmem:[%s784 + $0xb8] sm:$0xf]
        %v6054 = vld [vmem:[%s784 + $0xbc] sm:$0xf]
        %v6055 = vld [vmem:[%s784 + $0xc0] sm:$0xf]
        %v6056 = vld [vmem:[%s784 + $0xc4] sm:$0xf]
        %v6057 = vld [vmem:[%s784 + $0xc8] sm:$0xf]
        %v6058 = vld [vmem:[%s784 + $0xcc] sm:$0xf]
        %v6059 = vld [vmem:[%s784 + $0xd0] sm:$0xf]
        %v6060 = vld [vmem:[%s784 + $0xd4] sm:$0xf]
        %v6061 = vld [vmem:[%s784 + $0xd8] sm:$0xf]
        %v6062 = vld [vmem:[%s784 + $0xdc] sm:$0xf]
        %v6063 = vld [vmem:[%s784 + $0xe0] sm:$0xf]
        %v6064 = vld [vmem:[%s784 + $0xe4] sm:$0xf]
        %v6065 = vld [vmem:[%s784 + $0xe8] sm:$0xf]
        %v6066 = vld [vmem:[%s784 + $0xec] sm:$0xf]
        %v6067 = vld [vmem:[%s784 + $0xf0] sm:$0xf]
        %v6068 = vld [vmem:[%s784 + $0xf4] sm:$0xf]
        %v6069 = vld [vmem:[%s784 + $0xf8] sm:$0xf]
        %v6070 = vld [vmem:[%s784 + $0xfc] sm:$0xf]
        %v6071 = vld [vmem:[%s787] sm:$0x1]
        %v6073 = vlaneseq
        %v6074 = vshrl.u32 %v6073, 7
        %v6075 = vsub.s32 0, %v6074
        %v6076 = vrot.slane %v6071, %v6075
        %v6142 = vunpack.c.l.b16 %v6007
        %v6143 = vunpack.c.l.b16 %v6008
        %v6144 = vunpack.c.l.b16 %v6009
        %v6145 = vunpack.c.l.b16 %v6010
        %v6146 = vunpack.c.l.b16 %v6011
        %v6147 = vunpack.c.l.b16 %v6012
        %v6148 = vunpack.c.l.b16 %v6013
        %v6149 = vunpack.c.l.b16 %v6014
        %v6150 = vunpack.c.l.b16 %v6015
        %v6151 = vunpack.c.l.b16 %v6016
        %v6152 = vunpack.c.l.b16 %v6017
        %v6153 = vunpack.c.l.b16 %v6018
        %v6154 = vunpack.c.l.b16 %v6019
        %v6155 = vunpack.c.l.b16 %v6020
        %v6156 = vunpack.c.l.b16 %v6021
        %v6157 = vunpack.c.l.b16 %v6022
        %v6158 = vunpack.c.l.b16 %v6023
        %v6159 = vunpack.c.l.b16 %v6024
        %v6160 = vunpack.c.l.b16 %v6025
        %v6161 = vunpack.c.l.b16 %v6026
        %v6162 = vunpack.c.l.b16 %v6027
        %v6163 = vunpack.c.l.b16 %v6028
        %v6164 = vunpack.c.l.b16 %v6029
        %v6165 = vunpack.c.l.b16 %v6030
        %v6166 = vunpack.c.l.b16 %v6031
        %v6167 = vunpack.c.l.b16 %v6032
        %v6168 = vunpack.c.l.b16 %v6033
        %v6169 = vunpack.c.l.b16 %v6034
        %v6170 = vunpack.c.l.b16 %v6035
        %v6171 = vunpack.c.l.b16 %v6036
        %v6172 = vunpack.c.l.b16 %v6037
        %v6173 = vunpack.c.l.b16 %v6038
        %v6174 = vunpack.c.l.b16 %v6039
        %v6175 = vunpack.c.l.b16 %v6040
        %v6176 = vunpack.c.l.b16 %v6041
        %v6177 = vunpack.c.l.b16 %v6042
        %v6178 = vunpack.c.l.b16 %v6043
        %v6179 = vunpack.c.l.b16 %v6044
        %v6180 = vunpack.c.l.b16 %v6045
        %v6181 = vunpack.c.l.b16 %v6046
        %v6182 = vunpack.c.l.b16 %v6047
        %v6183 = vunpack.c.l.b16 %v6048
        %v6184 = vunpack.c.l.b16 %v6049
        %v6185 = vunpack.c.l.b16 %v6050
        %v6186 = vunpack.c.l.b16 %v6051
        %v6187 = vunpack.c.l.b16 %v6052
        %v6188 = vunpack.c.l.b16 %v6053
        %v6189 = vunpack.c.l.b16 %v6054
        %v6190 = vunpack.c.l.b16 %v6055
        %v6191 = vunpack.c.l.b16 %v6056
        %v6192 = vunpack.c.l.b16 %v6057
        %v6193 = vunpack.c.l.b16 %v6058
        %v6194 = vunpack.c.l.b16 %v6059
        %v6195 = vunpack.c.l.b16 %v6060
        %v6196 = vunpack.c.l.b16 %v6061
        %v6197 = vunpack.c.l.b16 %v6062
        %v6198 = vunpack.c.l.b16 %v6063
        %v6199 = vunpack.c.l.b16 %v6064
        %v6200 = vunpack.c.l.b16 %v6065
        %v6201 = vunpack.c.l.b16 %v6066
        %v6202 = vunpack.c.l.b16 %v6067
        %v6203 = vunpack.c.l.b16 %v6068
        %v6204 = vunpack.c.l.b16 %v6069
        %v6205 = vunpack.c.l.b16 %v6070
        %v6206 = vpack.c.b16 %v6143, %v6142
        %v6207 = vpack.c.b16 %v6145, %v6144
        %v6208 = vpack.c.b16 %v6147, %v6146
        %v6209 = vpack.c.b16 %v6149, %v6148
        %v6210 = vpack.c.b16 %v6151, %v6150
        %v6211 = vpack.c.b16 %v6153, %v6152
        %v6212 = vpack.c.b16 %v6155, %v6154
        %v6213 = vpack.c.b16 %v6157, %v6156
        %v6214 = vpack.c.b16 %v6159, %v6158
        %v6215 = vpack.c.b16 %v6161, %v6160
        %v6216 = vpack.c.b16 %v6163, %v6162
        %v6217 = vpack.c.b16 %v6165, %v6164
        %v6218 = vpack.c.b16 %v6167, %v6166
        %v6219 = vpack.c.b16 %v6169, %v6168
        %v6220 = vpack.c.b16 %v6171, %v6170
        %v6221 = vpack.c.b16 %v6173, %v6172
        %v6222 = vpack.c.b16 %v6175, %v6174
        %v6223 = vpack.c.b16 %v6177, %v6176
        %v6224 = vpack.c.b16 %v6179, %v6178
        %v6225 = vpack.c.b16 %v6181, %v6180
        %v6226 = vpack.c.b16 %v6183, %v6182
        %v6227 = vpack.c.b16 %v6185, %v6184
        %v6228 = vpack.c.b16 %v6187, %v6186
        %v6229 = vpack.c.b16 %v6189, %v6188
        %v6230 = vpack.c.b16 %v6191, %v6190
        %v6231 = vpack.c.b16 %v6193, %v6192
        %v6232 = vpack.c.b16 %v6195, %v6194
        %v6233 = vpack.c.b16 %v6197, %v6196
        %v6234 = vpack.c.b16 %v6199, %v6198
        %v6235 = vpack.c.b16 %v6201, %v6200
        %v6236 = vpack.c.b16 %v6203, %v6202
        %v6237 = vpack.c.b16 %v6205, %v6204
        %6270 = vmatprep.subr.bf16.mxu0 0
        %6271 = vmatpush1.bf16.msra.mxu0 %v6213
        %6272 = vmatprep.subr.bf16.mxu0 0
        %6273 = vmatpush1.bf16.msra.mxu0 %v6212
        %6274 = vmatprep.subr.bf16.mxu0 0
        %6275 = vmatpush1.bf16.msra.mxu0 %v6211
        %6276 = vmatprep.subr.bf16.mxu0 0
        %6277 = vmatpush1.bf16.msra.mxu0 %v6210
        %6278 = vmatprep.subr.bf16.mxu0 0
        %6279 = vmatpush1.bf16.msra.mxu0 %v6209
        %6280 = vmatprep.subr.bf16.mxu0 0
        %6281 = vmatpush1.bf16.msra.mxu0 %v6208
        %6282 = vmatprep.subr.bf16.mxu0 0
        %6283 = vmatpush1.bf16.msra.mxu0 %v6207
        %6284 = vmatprep.subr.bf16.mxu0 0
        %6285 = vmatpush1.bf16.msra.mxu0 %v6206
        %6286 = vmatprep.subr.bf16.mxu0 0
        %6287 = vmatpush2.bf16.msra.mxu0 %v6221
        %6288 = vmatprep.subr.bf16.mxu0 0
        %6289 = vmatpush2.bf16.msra.mxu0 %v6220
        %6290 = vmatprep.subr.bf16.mxu0 0
        %6291 = vmatpush2.bf16.msra.mxu0 %v6219
        %6292 = vmatprep.subr.bf16.mxu0 0
        %6293 = vmatpush2.bf16.msra.mxu0 %v6218
        %6294 = vmatprep.subr.bf16.mxu0 0
        %6295 = vmatpush2.bf16.msra.mxu0 %v6217
        %6296 = vmatprep.subr.bf16.mxu0 0
        %6297 = vmatpush2.bf16.msra.mxu0 %v6216
        %6298 = vmatprep.subr.bf16.mxu0 0
        %6299 = vmatpush2.bf16.msra.mxu0 %v6215
        %6300 = vmatprep.subr.bf16.mxu0 0
        %6301 = vmatpush2.bf16.msra.mxu0 %v6214
        %6302 = vmatprep.mubr.bf16.mxu0 %v5976
        %6303 = vmatmul.mubr.bf16.gmra.mxu0 %v5975
        %v6304 = vpop.f32.mrf.mxu0
        %v6305 = vadd.f32 %v6076, %v6304
        %v6306 = vpop.f32.mrf.mxu0
        %v6307 = vpop.f32.mrf.mxu0
        %v6308 = vadd.f32 %v6076, %v6307
        %v6309 = vpop.f32.mrf.mxu0
        %6310 = vmatprep.mubr.bf16.mxu0 %v5980
        %6311 = vmatmul.mubr.bf16.gmra.mxu0 %v5979
        %v6312 = vpop.f32.mrf.mxu0
        %v6313 = vadd.f32 %v6076, %v6312
        %v6314 = vpop.f32.mrf.mxu0
        %v6315 = vpop.f32.mrf.mxu0
        %v6316 = vadd.f32 %v6076, %v6315
        %v6317 = vpop.f32.mrf.mxu0
        %6318 = vmatprep.mubr.bf16.mxu0 %v5984
        %6319 = vmatmul.mubr.bf16.gmra.mxu0 %v5983
        %v6320 = vpop.f32.mrf.mxu0
        %v6321 = vadd.f32 %v6076, %v6320
        %v6322 = vpop.f32.mrf.mxu0
        %v6323 = vpop.f32.mrf.mxu0
        %v6324 = vadd.f32 %v6076, %v6323
        %v6325 = vpop.f32.mrf.mxu0
        %6326 = vmatprep.mubr.bf16.mxu0 %v5988
        %6327 = vmatmul.mubr.bf16.gmra.mxu0 %v5987
        %v6328 = vpop.f32.mrf.mxu0
        %v6329 = vadd.f32 %v6076, %v6328
        %v6330 = vpop.f32.mrf.mxu0
        %v6331 = vpop.f32.mrf.mxu0
        %v6332 = vadd.f32 %v6076, %v6331
        %v6333 = vpop.f32.mrf.mxu0
        %6334 = vmatprep.mubr.bf16.mxu0 %v5992
        %6335 = vmatmul.mubr.bf16.gmra.mxu0 %v5991
        %v6336 = vpop.f32.mrf.mxu0
        %v6337 = vadd.f32 %v6076, %v6336
        %v6338 = vpop.f32.mrf.mxu0
        %v6339 = vpop.f32.mrf.mxu0
        %v6340 = vadd.f32 %v6076, %v6339
        %v6341 = vpop.f32.mrf.mxu0
        %6342 = vmatprep.mubr.bf16.mxu0 %v5996
        %6343 = vmatmul.mubr.bf16.gmra.mxu0 %v5995
        %v6344 = vpop.f32.mrf.mxu0
        %v6345 = vadd.f32 %v6076, %v6344
        %v6346 = vpop.f32.mrf.mxu0
        %v6347 = vpop.f32.mrf.mxu0
        %v6348 = vadd.f32 %v6076, %v6347
        %v6349 = vpop.f32.mrf.mxu0
        %6350 = vmatprep.mubr.bf16.mxu0 %v6000
        %6351 = vmatmul.mubr.bf16.gmra.mxu0 %v5999
        %v6352 = vpop.f32.mrf.mxu0
        %v6353 = vadd.f32 %v6076, %v6352
        %v6354 = vpop.f32.mrf.mxu0
        %v6355 = vpop.f32.mrf.mxu0
        %v6356 = vadd.f32 %v6076, %v6355
        %v6357 = vpop.f32.mrf.mxu0
        %6358 = vmatprep.mubr.bf16.mxu0 %v6004
        %6359 = vmatmul.mubr.bf16.gmra.mxu0 %v6003
        %v6360 = vpop.f32.mrf.mxu0
        %v6361 = vadd.f32 %v6076, %v6360
        %v6362 = vpop.f32.mrf.mxu0
        %v6363 = vpop.f32.mrf.mxu0
        %v6364 = vadd.f32 %v6076, %v6363
        %v6365 = vpop.f32.mrf.mxu0
        %6366 = vdwg.mxu0
        %6367 = vmatprep.subr.bf16.mxu0 0
        %6368 = vmatpush1.bf16.msra.mxu0 %v6229
        %6369 = vmatprep.subr.bf16.mxu0 0
        %6370 = vmatpush1.bf16.msra.mxu0 %v6228
        %6371 = vmatprep.subr.bf16.mxu0 0
        %6372 = vmatpush1.bf16.msra.mxu0 %v6227
        %6373 = vmatprep.subr.bf16.mxu0 0
        %6374 = vmatpush1.bf16.msra.mxu0 %v6226
        %6375 = vmatprep.subr.bf16.mxu0 0
        %6376 = vmatpush1.bf16.msra.mxu0 %v6225
        %6377 = vmatprep.subr.bf16.mxu0 0
        %6378 = vmatpush1.bf16.msra.mxu0 %v6224
        %6379 = vmatprep.subr.bf16.mxu0 0
        %6380 = vmatpush1.bf16.msra.mxu0 %v6223
        %6381 = vmatprep.subr.bf16.mxu0 0
        %6382 = vmatpush1.bf16.msra.mxu0 %v6222
        %6383 = vmatprep.subr.bf16.mxu0 0
        %6384 = vmatpush2.bf16.msra.mxu0 %v6237
        %6385 = vmatprep.subr.bf16.mxu0 0
        %6386 = vmatpush2.bf16.msra.mxu0 %v6236
        %6387 = vmatprep.subr.bf16.mxu0 0
        %6388 = vmatpush2.bf16.msra.mxu0 %v6235
        %6389 = vmatprep.subr.bf16.mxu0 0
        %6390 = vmatpush2.bf16.msra.mxu0 %v6234
        %6391 = vmatprep.subr.bf16.mxu0 0
        %6392 = vmatpush2.bf16.msra.mxu0 %v6233
        %6393 = vmatprep.subr.bf16.mxu0 0
        %6394 = vmatpush2.bf16.msra.mxu0 %v6232
        %6395 = vmatprep.subr.bf16.mxu0 0
        %6396 = vmatpush2.bf16.msra.mxu0 %v6231
        %6397 = vmatprep.subr.bf16.mxu0 0
        %6398 = vmatpush2.bf16.msra.mxu0 %v6230
        %6399 = vmatprep.mubr.bf16.mxu0 %v5978
        %6400 = vmatmul.mubr.bf16.gmra.mxu0 %v5977
        %v6401 = vpop.f32.mrf.mxu0
        %v6402 = vadd.f32 %v6305, %v6401
        %v6403 = vpop.f32.mrf.mxu0
        %v6404 = vpop.f32.mrf.mxu0
        %v6405 = vadd.f32 %v6308, %v6404
        %v6406 = vpop.f32.mrf.mxu0
        %6407 = vmatprep.mubr.bf16.mxu0 %v5982
        %6408 = vmatmul.mubr.bf16.gmra.mxu0 %v5981
        %v6409 = vpop.f32.mrf.mxu0
        %v6410 = vadd.f32 %v6313, %v6409
        %v6411 = vpop.f32.mrf.mxu0
        %v6412 = vpop.f32.mrf.mxu0
        %v6413 = vadd.f32 %v6316, %v6412
        %v6414 = vpop.f32.mrf.mxu0
        %6415 = vmatprep.mubr.bf16.mxu0 %v5986
        %6416 = vmatmul.mubr.bf16.gmra.mxu0 %v5985
        %v6417 = vpop.f32.mrf.mxu0
        %v6418 = vadd.f32 %v6321, %v6417
        %v6419 = vpop.f32.mrf.mxu0
        %v6420 = vpop.f32.mrf.mxu0
        %v6421 = vadd.f32 %v6324, %v6420
        %v6422 = vpop.f32.mrf.mxu0
        %6423 = vmatprep.mubr.bf16.mxu0 %v5990
        %6424 = vmatmul.mubr.bf16.gmra.mxu0 %v5989
        %v6425 = vpop.f32.mrf.mxu0
        %v6426 = vadd.f32 %v6329, %v6425
        %v6427 = vpop.f32.mrf.mxu0
        %v6428 = vpop.f32.mrf.mxu0
        %v6429 = vadd.f32 %v6332, %v6428
        %v6430 = vpop.f32.mrf.mxu0
        %6431 = vmatprep.mubr.bf16.mxu0 %v5994
        %6432 = vmatmul.mubr.bf16.gmra.mxu0 %v5993
        %v6433 = vpop.f32.mrf.mxu0
        %v6434 = vadd.f32 %v6337, %v6433
        %v6435 = vpop.f32.mrf.mxu0
        %v6436 = vpop.f32.mrf.mxu0
        %v6437 = vadd.f32 %v6340, %v6436
        %v6438 = vpop.f32.mrf.mxu0
        %6439 = vmatprep.mubr.bf16.mxu0 %v5998
        %6440 = vmatmul.mubr.bf16.gmra.mxu0 %v5997
        %v6441 = vpop.f32.mrf.mxu0
        %v6442 = vadd.f32 %v6345, %v6441
        %v6443 = vpop.f32.mrf.mxu0
        %v6444 = vpop.f32.mrf.mxu0
        %v6445 = vadd.f32 %v6348, %v6444
        %v6446 = vpop.f32.mrf.mxu0
        %6447 = vmatprep.mubr.bf16.mxu0 %v6002
        %6448 = vmatmul.mubr.bf16.gmra.mxu0 %v6001
        %v6449 = vpop.f32.mrf.mxu0
        %v6450 = vadd.f32 %v6353, %v6449
        %v6451 = vpop.f32.mrf.mxu0
        %v6452 = vpop.f32.mrf.mxu0
        %v6453 = vadd.f32 %v6356, %v6452
        %v6454 = vpop.f32.mrf.mxu0
        %6455 = vmatprep.mubr.bf16.mxu0 %v6006
        %6456 = vmatmul.mubr.bf16.gmra.mxu0 %v6005
        %v6457 = vpop.f32.mrf.mxu0
        %v6458 = vadd.f32 %v6361, %v6457
        %v6459 = vpop.f32.mrf.mxu0
        %v6460 = vpop.f32.mrf.mxu0
        %v6461 = vadd.f32 %v6364, %v6460
        %v6462 = vpop.f32.mrf.mxu0
        %6463 = vdwg.mxu0
        %v6464 = vadd.f32 %v6402, %v4935
        %v6465 = vadd.f32 %v6405, %v4936
        %v6466 = vadd.f32 %v6410, %v4937
        %v6467 = vadd.f32 %v6413, %v4938
        %v6468 = vadd.f32 %v6418, %v4939
        %v6469 = vadd.f32 %v6421, %v4940
        %v6470 = vadd.f32 %v6426, %v4941
        %v6471 = vadd.f32 %v6429, %v4942
        %v6472 = vadd.f32 %v6434, %v4943
        %v6473 = vadd.f32 %v6437, %v4944
        %v6474 = vadd.f32 %v6442, %v4945
        %v6475 = vadd.f32 %v6445, %v4946
        %v6476 = vadd.f32 %v6450, %v4947
        %v6477 = vadd.f32 %v6453, %v4948
        %v6478 = vadd.f32 %v6458, %v4949
        %v6479 = vadd.f32 %v6461, %v4950
        %v6480 = vld [vmem:[%s790] sm:$0x1]
        %v6481 = vld [vmem:[%s793] sm:$0x1]
        %6482 = vadd.xlane.f32.xlu0 %v6464
        %v6483 = vpop.xlane.xlu0 %6482
        %6484 = vadd.xlane.f32.xlu0 %v6465
        %v6485 = vpop.xlane.xlu0 %6484
        %6486 = vadd.xlane.f32.xlu0 %v6466
        %v6487 = vpop.xlane.xlu0 %6486
        %6488 = vadd.xlane.f32.xlu0 %v6467
        %v6489 = vpop.xlane.xlu0 %6488
        %6490 = vadd.xlane.f32.xlu0 %v6468
        %v6491 = vpop.xlane.xlu0 %6490
        %6492 = vadd.xlane.f32.xlu0 %v6469
        %v6493 = vpop.xlane.xlu0 %6492
        %6494 = vadd.xlane.f32.xlu0 %v6470
        %v6495 = vpop.xlane.xlu0 %6494
        %6496 = vadd.xlane.f32.xlu0 %v6471
        %v6497 = vpop.xlane.xlu0 %6496
        %6498 = vadd.xlane.f32.xlu0 %v6472
        %v6499 = vpop.xlane.xlu0 %6498
        %6500 = vadd.xlane.f32.xlu0 %v6473
        %v6501 = vpop.xlane.xlu0 %6500
        %6502 = vadd.xlane.f32.xlu0 %v6474
        %v6503 = vpop.xlane.xlu0 %6502
        %6504 = vadd.xlane.f32.xlu0 %v6475
        %v6505 = vpop.xlane.xlu0 %6504
        %6506 = vadd.xlane.f32.xlu0 %v6476
        %v6507 = vpop.xlane.xlu0 %6506
        %6508 = vadd.xlane.f32.xlu0 %v6477
        %v6509 = vpop.xlane.xlu0 %6508
        %6510 = vadd.xlane.f32.xlu0 %v6478
        %v6511 = vpop.xlane.xlu0 %6510
        %6512 = vadd.xlane.f32.xlu0 %v6479
        %v6513 = vpop.xlane.xlu0 %6512
        %v6514 = vmul.f32 %v6483, %v4762
        %v6515 = vmul.f32 %v6485, %v4762
        %v6516 = vmul.f32 %v6487, %v4762
        %v6517 = vmul.f32 %v6489, %v4762
        %v6518 = vmul.f32 %v6491, %v4762
        %v6519 = vmul.f32 %v6493, %v4762
        %v6520 = vmul.f32 %v6495, %v4762
        %v6521 = vmul.f32 %v6497, %v4762
        %v6522 = vmul.f32 %v6499, %v4762
        %v6523 = vmul.f32 %v6501, %v4762
        %v6524 = vmul.f32 %v6503, %v4762
        %v6525 = vmul.f32 %v6505, %v4762
        %v6526 = vmul.f32 %v6507, %v4762
        %v6527 = vmul.f32 %v6509, %v4762
        %v6528 = vmul.f32 %v6511, %v4762
        %v6529 = vmul.f32 %v6513, %v4762
        %v6530 = vsub.f32 %v6464, %v6514
        %v6531 = vsub.f32 %v6465, %v6515
        %v6532 = vsub.f32 %v6466, %v6516
        %v6533 = vsub.f32 %v6467, %v6517
        %v6534 = vsub.f32 %v6468, %v6518
        %v6535 = vsub.f32 %v6469, %v6519
        %v6536 = vsub.f32 %v6470, %v6520
        %v6537 = vsub.f32 %v6471, %v6521
        %v6538 = vsub.f32 %v6472, %v6522
        %v6539 = vsub.f32 %v6473, %v6523
        %v6540 = vsub.f32 %v6474, %v6524
        %v6541 = vsub.f32 %v6475, %v6525
        %v6542 = vsub.f32 %v6476, %v6526
        %v6543 = vsub.f32 %v6477, %v6527
        %v6544 = vsub.f32 %v6478, %v6528
        %v6545 = vsub.f32 %v6479, %v6529
        %v6546 = vmul.f32 %v6530, %v6530
        %v6547 = vmul.f32 %v6531, %v6531
        %v6548 = vmul.f32 %v6532, %v6532
        %v6549 = vmul.f32 %v6533, %v6533
        %v6550 = vmul.f32 %v6534, %v6534
        %v6551 = vmul.f32 %v6535, %v6535
        %v6552 = vmul.f32 %v6536, %v6536
        %v6553 = vmul.f32 %v6537, %v6537
        %v6554 = vmul.f32 %v6538, %v6538
        %v6555 = vmul.f32 %v6539, %v6539
        %v6556 = vmul.f32 %v6540, %v6540
        %v6557 = vmul.f32 %v6541, %v6541
        %v6558 = vmul.f32 %v6542, %v6542
        %v6559 = vmul.f32 %v6543, %v6543
        %v6560 = vmul.f32 %v6544, %v6544
        %v6561 = vmul.f32 %v6545, %v6545
        %6562 = vadd.xlane.f32.xlu0 %v6546
        %v6563 = vpop.xlane.xlu0 %6562
        %6564 = vadd.xlane.f32.xlu0 %v6547
        %v6565 = vpop.xlane.xlu0 %6564
        %6566 = vadd.xlane.f32.xlu0 %v6548
        %v6567 = vpop.xlane.xlu0 %6566
        %6568 = vadd.xlane.f32.xlu0 %v6549
        %v6569 = vpop.xlane.xlu0 %6568
        %6570 = vadd.xlane.f32.xlu0 %v6550
        %v6571 = vpop.xlane.xlu0 %6570
        %6572 = vadd.xlane.f32.xlu0 %v6551
        %v6573 = vpop.xlane.xlu0 %6572
        %6574 = vadd.xlane.f32.xlu0 %v6552
        %v6575 = vpop.xlane.xlu0 %6574
        %6576 = vadd.xlane.f32.xlu0 %v6553
        %v6577 = vpop.xlane.xlu0 %6576
        %6578 = vadd.xlane.f32.xlu0 %v6554
        %v6579 = vpop.xlane.xlu0 %6578
        %6580 = vadd.xlane.f32.xlu0 %v6555
        %v6581 = vpop.xlane.xlu0 %6580
        %6582 = vadd.xlane.f32.xlu0 %v6556
        %v6583 = vpop.xlane.xlu0 %6582
        %6584 = vadd.xlane.f32.xlu0 %v6557
        %v6585 = vpop.xlane.xlu0 %6584
        %6586 = vadd.xlane.f32.xlu0 %v6558
        %v6587 = vpop.xlane.xlu0 %6586
        %6588 = vadd.xlane.f32.xlu0 %v6559
        %v6589 = vpop.xlane.xlu0 %6588
        %6590 = vadd.xlane.f32.xlu0 %v6560
        %v6591 = vpop.xlane.xlu0 %6590
        %6592 = vadd.xlane.f32.xlu0 %v6561
        %v6593 = vpop.xlane.xlu0 %6592
        %v6594 = vmul.f32 %v6563, %v4762
        %v6595 = vmul.f32 %v6565, %v4762
        %v6596 = vmul.f32 %v6567, %v4762
        %v6597 = vmul.f32 %v6569, %v4762
        %v6598 = vmul.f32 %v6571, %v4762
        %v6599 = vmul.f32 %v6573, %v4762
        %v6600 = vmul.f32 %v6575, %v4762
        %v6601 = vmul.f32 %v6577, %v4762
        %v6602 = vmul.f32 %v6579, %v4762
        %v6603 = vmul.f32 %v6581, %v4762
        %v6604 = vmul.f32 %v6583, %v4762
        %v6605 = vmul.f32 %v6585, %v4762
        %v6606 = vmul.f32 %v6587, %v4762
        %v6607 = vmul.f32 %v6589, %v4762
        %v6608 = vmul.f32 %v6591, %v4762
        %v6609 = vmul.f32 %v6593, %v4762
        %v6610 = vadd.f32 %v6594, 1e-12
        %v6611 = vadd.f32 %v6595, 1e-12
        %v6612 = vadd.f32 %v6596, 1e-12
        %v6613 = vadd.f32 %v6597, 1e-12
        %v6614 = vadd.f32 %v6598, 1e-12
        %v6615 = vadd.f32 %v6599, 1e-12
        %v6616 = vadd.f32 %v6600, 1e-12
        %v6617 = vadd.f32 %v6601, 1e-12
        %v6618 = vadd.f32 %v6602, 1e-12
        %v6619 = vadd.f32 %v6603, 1e-12
        %v6620 = vadd.f32 %v6604, 1e-12
        %v6621 = vadd.f32 %v6605, 1e-12
        %v6622 = vadd.f32 %v6606, 1e-12
        %v6623 = vadd.f32 %v6607, 1e-12
        %v6624 = vadd.f32 %v6608, 1e-12
        %v6625 = vadd.f32 %v6609, 1e-12
        %v6626 = vrsqrt.pop %v6610
        %v6627 = vrsqrt.pop %v6611
        %v6628 = vrsqrt.pop %v6612
        %v6629 = vrsqrt.pop %v6613
        %v6630 = vrsqrt.pop %v6614
        %v6631 = vrsqrt.pop %v6615
        %v6632 = vrsqrt.pop %v6616
        %v6633 = vrsqrt.pop %v6617
        %v6634 = vrsqrt.pop %v6618
        %v6635 = vrsqrt.pop %v6619
        %v6636 = vrsqrt.pop %v6620
        %v6637 = vrsqrt.pop %v6621
        %v6638 = vrsqrt.pop %v6622
        %v6639 = vrsqrt.pop %v6623
        %v6640 = vrsqrt.pop %v6624
        %v6641 = vrsqrt.pop %v6625
        %v6642 = vmul.f32 %v6530, %v6626
        %v6643 = vmul.f32 %v6531, %v6627
        %v6644 = vmul.f32 %v6532, %v6628
        %v6645 = vmul.f32 %v6533, %v6629
        %v6646 = vmul.f32 %v6534, %v6630
        %v6647 = vmul.f32 %v6535, %v6631
        %v6648 = vmul.f32 %v6536, %v6632
        %v6649 = vmul.f32 %v6537, %v6633
        %v6650 = vmul.f32 %v6538, %v6634
        %v6651 = vmul.f32 %v6539, %v6635
        %v6652 = vmul.f32 %v6540, %v6636
        %v6653 = vmul.f32 %v6541, %v6637
        %v6654 = vmul.f32 %v6542, %v6638
        %v6655 = vmul.f32 %v6543, %v6639
        %v6656 = vmul.f32 %v6544, %v6640
        %v6657 = vmul.f32 %v6545, %v6641
        %v6659 = vlaneseq
        %v6660 = vshrl.u32 %v6659, 7
        %v6661 = vsub.s32 0, %v6660
        %v6662 = vrot.slane %v6480, %v6661
        %v6664 = vmul.f32 %v6642, %v6662
        %v6665 = vmul.f32 %v6643, %v6662
        %v6666 = vmul.f32 %v6644, %v6662
        %v6667 = vmul.f32 %v6645, %v6662
        %v6668 = vmul.f32 %v6646, %v6662
        %v6669 = vmul.f32 %v6647, %v6662
        %v6670 = vmul.f32 %v6648, %v6662
        %v6671 = vmul.f32 %v6649, %v6662
        %v6672 = vmul.f32 %v6650, %v6662
        %v6673 = vmul.f32 %v6651, %v6662
        %v6674 = vmul.f32 %v6652, %v6662
        %v6675 = vmul.f32 %v6653, %v6662
        %v6676 = vmul.f32 %v6654, %v6662
        %v6677 = vmul.f32 %v6655, %v6662
        %v6678 = vmul.f32 %v6656, %v6662
        %v6679 = vmul.f32 %v6657, %v6662
        %v6681 = vlaneseq
        %v6682 = vshrl.u32 %v6681, 7
        %v6683 = vsub.s32 0, %v6682
        %v6684 = vrot.slane %v6481, %v6683
        %v6686 = vadd.f32 %v6664, %v6684
        %v6687 = vadd.f32 %v6665, %v6684
        %v6688 = vadd.f32 %v6666, %v6684
        %v6689 = vadd.f32 %v6667, %v6684
        %v6690 = vadd.f32 %v6668, %v6684
        %v6691 = vadd.f32 %v6669, %v6684
        %v6692 = vadd.f32 %v6670, %v6684
        %v6693 = vadd.f32 %v6671, %v6684
        %v6694 = vadd.f32 %v6672, %v6684
        %v6695 = vadd.f32 %v6673, %v6684
        %v6696 = vadd.f32 %v6674, %v6684
        %v6697 = vadd.f32 %v6675, %v6684
        %v6698 = vadd.f32 %v6676, %v6684
        %v6699 = vadd.f32 %v6677, %v6684
        %v6700 = vadd.f32 %v6678, %v6684
        %v6701 = vadd.f32 %v6679, %v6684
        %6702 = vst [vmem:[#allocation2] sm:$0xff] %v6686
        %6703 = vst [vmem:[#allocation2 + $0x8] sm:$0xff] %v6687
        %6704 = vst [vmem:[#allocation2 + $0x10] sm:$0xff] %v6688
        %6705 = vst [vmem:[#allocation2 + $0x18] sm:$0xff] %v6689
        %6706 = vst [vmem:[#allocation2 + $0x20] sm:$0xff] %v6690
        %6707 = vst [vmem:[#allocation2 + $0x28] sm:$0xff] %v6691
        %6708 = vst [vmem:[#allocation2 + $0x30] sm:$0xff] %v6692
        %6709 = vst [vmem:[#allocation2 + $0x38] sm:$0xff] %v6693
        %6710 = vst [vmem:[#allocation2 + $0x40] sm:$0xff] %v6694
        %6711 = vst [vmem:[#allocation2 + $0x48] sm:$0xff] %v6695
        %6712 = vst [vmem:[#allocation2 + $0x50] sm:$0xff] %v6696
        %6713 = vst [vmem:[#allocation2 + $0x58] sm:$0xff] %v6697
        %6714 = vst [vmem:[#allocation2 + $0x60] sm:$0xff] %v6698
        %6715 = vst [vmem:[#allocation2 + $0x68] sm:$0xff] %v6699
        %6716 = vst [vmem:[#allocation2 + $0x70] sm:$0xff] %v6700
        %6717 = vst [vmem:[#allocation2 + $0x78] sm:$0xff] %v6701
        %p6718 = scmp.eq.s32.totalorder %s32, 1
        // Predicated region
        $region105: #{forward.1} parent=99 // pred_check
          %p6719 = pneg %p6718
        $region106: #{forward.1} parent=99 // pred_check_branch
          %6721 = sbr.rel (%p6719) target = $region108
        $region107: #{forward.1} parent=99 // pred_region
          %v6722 = vld [vmem:[#allocation2] ss:$32 sm:$0x1]
          %v6723 = vld [vmem:[#allocation2] ss:$32 sm:$0x2]
          %v6724 = vor.u32 %v6722, %v6723
          %v6725 = vld [vmem:[#allocation2] ss:$32 sm:$0x4]
          %v6726 = vor.u32 %v6724, %v6725
          %v6727 = vld [vmem:[#allocation2] ss:$32 sm:$0x8]
          %v6728 = vor.u32 %v6726, %v6727
          %v6729 = vpack.c.bf16 %v6728, %v6728
          %v6730 = vld [vmem:[%s16] sm:$0xf]
          %v6731 = vld [vmem:[%s16 + $0x4] sm:$0xf]
          %v6732 = vld [vmem:[%s16 + $0x8] sm:$0xf]
          %v6733 = vld [vmem:[%s16 + $0xc] sm:$0xf]
          %v6734 = vld [vmem:[%s16 + $0x10] sm:$0xf]
          %v6735 = vld [vmem:[%s16 + $0x14] sm:$0xf]
          %v6736 = vld [vmem:[%s16 + $0x18] sm:$0xf]
          %v6737 = vld [vmem:[%s16 + $0x1c] sm:$0xf]
          %v6738 = vld [vmem:[%s16 + $0x20] sm:$0xf]
          %v6739 = vld [vmem:[%s16 + $0x24] sm:$0xf]
          %v6740 = vld [vmem:[%s16 + $0x28] sm:$0xf]
          %v6741 = vld [vmem:[%s16 + $0x2c] sm:$0xf]
          %v6742 = vld [vmem:[%s16 + $0x30] sm:$0xf]
          %v6743 = vld [vmem:[%s16 + $0x34] sm:$0xf]
          %v6744 = vld [vmem:[%s16 + $0x38] sm:$0xf]
          %v6745 = vld [vmem:[%s16 + $0x3c] sm:$0xf]
          %v6746 = vld [vmem:[%s17] sm:$0x1]
          %v6748 = vlaneseq
          %v6749 = vshrl.u32 %v6748, 7
          %v6750 = vsub.s32 0, %v6749
          %v6751 = vrot.slane %v6746, %v6750
          %v6769 = vunpack.c.l.b16 %v6730
          %v6770 = vunpack.c.l.b16 %v6731
          %v6771 = vunpack.c.l.b16 %v6732
          %v6772 = vunpack.c.l.b16 %v6733
          %v6773 = vunpack.c.l.b16 %v6734
          %v6774 = vunpack.c.l.b16 %v6735
          %v6775 = vunpack.c.l.b16 %v6736
          %v6776 = vunpack.c.l.b16 %v6737
          %v6777 = vunpack.c.l.b16 %v6738
          %v6778 = vunpack.c.l.b16 %v6739
          %v6779 = vunpack.c.l.b16 %v6740
          %v6780 = vunpack.c.l.b16 %v6741
          %v6781 = vunpack.c.l.b16 %v6742
          %v6782 = vunpack.c.l.b16 %v6743
          %v6783 = vunpack.c.l.b16 %v6744
          %v6784 = vunpack.c.l.b16 %v6745
          %v6785 = vpack.c.b16 %v6770, %v6769
          %v6786 = vpack.c.b16 %v6772, %v6771
          %v6787 = vpack.c.b16 %v6774, %v6773
          %v6788 = vpack.c.b16 %v6776, %v6775
          %v6789 = vpack.c.b16 %v6778, %v6777
          %v6790 = vpack.c.b16 %v6780, %v6779
          %v6791 = vpack.c.b16 %v6782, %v6781
          %v6792 = vpack.c.b16 %v6784, %v6783
          %6801 = vmatprep.subr.bf16.mxu0 0
          %6802 = vmatpush1.bf16.msra.mxu0 %v6792
          %6803 = vmatprep.subr.bf16.mxu0 0
          %6804 = vmatpush1.bf16.msra.mxu0 %v6791
          %6805 = vmatprep.subr.bf16.mxu0 0
          %6806 = vmatpush1.bf16.msra.mxu0 %v6790
          %6807 = vmatprep.subr.bf16.mxu0 0
          %6808 = vmatpush1.bf16.msra.mxu0 %v6789
          %6809 = vmatprep.subr.bf16.mxu0 0
          %6810 = vmatpush1.bf16.msra.mxu0 %v6788
          %6811 = vmatprep.subr.bf16.mxu0 0
          %6812 = vmatpush1.bf16.msra.mxu0 %v6787
          %6813 = vmatprep.subr.bf16.mxu0 0
          %6814 = vmatpush1.bf16.msra.mxu0 %v6786
          %6815 = vmatprep.subr.bf16.mxu0 0
          %6816 = vmatpush1.bf16.msra.mxu0 %v6785
          %6817 = vmatprep.subr.bf16.mxu0 0
          %6818 = vmatpush2.bf16.msra.mxu0 0
          %6819 = vmatprep.subr.bf16.mxu0 0
          %6820 = vmatpush2.bf16.msra.mxu0 0
          %6821 = vmatprep.subr.bf16.mxu0 0
          %6822 = vmatpush2.bf16.msra.mxu0 0
          %6823 = vmatprep.subr.bf16.mxu0 0
          %6824 = vmatpush2.bf16.msra.mxu0 0
          %6825 = vmatprep.subr.bf16.mxu0 0
          %6826 = vmatpush2.bf16.msra.mxu0 0
          %6827 = vmatprep.subr.bf16.mxu0 0
          %6828 = vmatpush2.bf16.msra.mxu0 0
          %6829 = vmatprep.subr.bf16.mxu0 0
          %6830 = vmatpush2.bf16.msra.mxu0 0
          %6831 = vmatprep.subr.bf16.mxu0 0
          %6832 = vmatpush2.bf16.msra.mxu0 0
          %6833 = vmatprep.mubr.bf16.mxu0 0
          %6834 = vmatmul.mubr.bf16.gmra.mxu0 %v6729
          %v6835 = vpop.f32.mrf.mxu0
          %v6836 = vadd.f32 %v6751, %v6835
          %v6837 = vpop.f32.mrf.mxu0
          %v6838 = vpop.f32.mrf.mxu0
          %v6839 = vpop.f32.mrf.mxu0
          %6840 = vdwg.mxu0
          %v6841 = vtanh.pop %v6836
          %v6842 = vpack.c.bf16 %v6841, %v6841
          %v6843 = vld [vmem:[%s18] sm:$0xf]
          %v6844 = vld [vmem:[%s18 + $0x4] sm:$0xf]
          %v6845 = vld [vmem:[%s18 + $0x8] sm:$0xf]
          %v6846 = vld [vmem:[%s18 + $0xc] sm:$0xf]
          %v6847 = vld [vmem:[%s18 + $0x10] sm:$0xf]
          %v6848 = vld [vmem:[%s18 + $0x14] sm:$0xf]
          %v6849 = vld [vmem:[%s18 + $0x18] sm:$0xf]
          %v6850 = vld [vmem:[%s18 + $0x1c] sm:$0xf]
          %v6851 = vld [vmem:[%s18 + $0x20] sm:$0xf]
          %v6852 = vld [vmem:[%s18 + $0x24] sm:$0xf]
          %v6853 = vld [vmem:[%s18 + $0x28] sm:$0xf]
          %v6854 = vld [vmem:[%s18 + $0x2c] sm:$0xf]
          %v6855 = vld [vmem:[%s18 + $0x30] sm:$0xf]
          %v6856 = vld [vmem:[%s18 + $0x34] sm:$0xf]
          %v6857 = vld [vmem:[%s18 + $0x38] sm:$0xf]
          %v6858 = vld [vmem:[%s18 + $0x3c] sm:$0xf]
          %v6859 = vld [vmem:[%s19] sm:$0x1]
          %v6861 = vlaneseq
          %v6862 = vshrl.u32 %v6861, 7
          %v6863 = vsub.s32 0, %v6862
          %v6864 = vrot.slane %v6859, %v6863
          %v6882 = vunpack.c.l.b16 %v6843
          %v6883 = vunpack.c.l.b16 %v6844
          %v6884 = vunpack.c.l.b16 %v6845
          %v6885 = vunpack.c.l.b16 %v6846
          %v6886 = vunpack.c.l.b16 %v6847
          %v6887 = vunpack.c.l.b16 %v6848
          %v6888 = vunpack.c.l.b16 %v6849
          %v6889 = vunpack.c.l.b16 %v6850
          %v6890 = vunpack.c.l.b16 %v6851
          %v6891 = vunpack.c.l.b16 %v6852
          %v6892 = vunpack.c.l.b16 %v6853
          %v6893 = vunpack.c.l.b16 %v6854
          %v6894 = vunpack.c.l.b16 %v6855
          %v6895 = vunpack.c.l.b16 %v6856
          %v6896 = vunpack.c.l.b16 %v6857
          %v6897 = vunpack.c.l.b16 %v6858
          %v6898 = vpack.c.b16 %v6883, %v6882
          %v6899 = vpack.c.b16 %v6885, %v6884
          %v6900 = vpack.c.b16 %v6887, %v6886
          %v6901 = vpack.c.b16 %v6889, %v6888
          %v6902 = vpack.c.b16 %v6891, %v6890
          %v6903 = vpack.c.b16 %v6893, %v6892
          %v6904 = vpack.c.b16 %v6895, %v6894
          %v6905 = vpack.c.b16 %v6897, %v6896
          %6914 = vmatprep.subr.bf16.mxu0 0
          %6915 = vmatpush1.bf16.msra.mxu0 %v6905
          %6916 = vmatprep.subr.bf16.mxu0 0
          %6917 = vmatpush1.bf16.msra.mxu0 %v6904
          %6918 = vmatprep.subr.bf16.mxu0 0
          %6919 = vmatpush1.bf16.msra.mxu0 %v6903
          %6920 = vmatprep.subr.bf16.mxu0 0
          %6921 = vmatpush1.bf16.msra.mxu0 %v6902
          %6922 = vmatprep.subr.bf16.mxu0 0
          %6923 = vmatpush1.bf16.msra.mxu0 %v6901
          %6924 = vmatprep.subr.bf16.mxu0 0
          %6925 = vmatpush1.bf16.msra.mxu0 %v6900
          %6926 = vmatprep.subr.bf16.mxu0 0
          %6927 = vmatpush1.bf16.msra.mxu0 %v6899
          %6928 = vmatprep.subr.bf16.mxu0 0
          %6929 = vmatpush1.bf16.msra.mxu0 %v6898
          %6930 = vmatprep.subr.bf16.mxu0 0
          %6931 = vmatpush2.bf16.msra.mxu0 0
          %6932 = vmatprep.subr.bf16.mxu0 0
          %6933 = vmatpush2.bf16.msra.mxu0 0
          %6934 = vmatprep.subr.bf16.mxu0 0
          %6935 = vmatpush2.bf16.msra.mxu0 0
          %6936 = vmatprep.subr.bf16.mxu0 0
          %6937 = vmatpush2.bf16.msra.mxu0 0
          %6938 = vmatprep.subr.bf16.mxu0 0
          %6939 = vmatpush2.bf16.msra.mxu0 0
          %6940 = vmatprep.subr.bf16.mxu0 0
          %6941 = vmatpush2.bf16.msra.mxu0 0
          %6942 = vmatprep.subr.bf16.mxu0 0
          %6943 = vmatpush2.bf16.msra.mxu0 0
          %6944 = vmatprep.subr.bf16.mxu0 0
          %6945 = vmatpush2.bf16.msra.mxu0 0
          %6946 = vmatprep.mubr.bf16.mxu0 0
          %6947 = vmatmul.mubr.bf16.gmra.mxu0 %v6842
          %v6948 = vpop.f32.mrf.mxu0
          %v6949 = vadd.f32 %v6864, %v6948
          %v6950 = vpop.f32.mrf.mxu0
          %v6951 = vpop.f32.mrf.mxu0
          %v6952 = vpop.f32.mrf.mxu0
          %6953 = vdwg.mxu0
          %v6954 = vmax.f32 %v6949, 0.0
          %6955 = vst [vmem:[#allocation3] sm:$0xf] %v6954
        $region108: #{forward.1} parent=99 // pred_fallthru
          _
        // Predicated region
        $region109: #{forward.1} parent=99 // pred_check
          %p6956 = pneg %p525
        $region110: #{forward.1} parent=99 // pred_check_branch
          %6958 = sbr.rel (%p6956) target = $region112
        $region111: #{forward.1} parent=99 // pred_region
          %s6960 = ssub.s32 64, 64
          %6961 = vsyncadd [#allocation4], %s6960
          %s6963 = sshll.u32 [#allocation3], 4
          %s6964 = int_to_ptr.vmem [resolvable:$true] %s6963
          %6966 = dma.vmem_to_hbm [thread:$0]  %s6964, 64, %s20, [#allocation4]
        $region112: #{forward.1} parent=99 // pred_fallthru
          _
        // Predicated region
        $region113: #{forward.1} parent=99 // pred_check
          %p6967 = pneg %p525
        $region114: #{forward.1} parent=99 // pred_check_branch
          %6969 = sbr.rel (%p6967) target = $region116
        $region115: #{forward.1} parent=99 // pred_region
          %6970 = dma.done [#allocation4], 64
        $region116: #{forward.1} parent=99 // pred_fallthru
          _
      $region100: #{forward.1} parent=5 // pred_fallthru
        _
      %p6971 = scmp.le.s32.totalorder 2, %s27
      // Predicated region
      $region117: #{forward.1} parent=5 // pred_check
        %p6972 = pneg %p6971
      $region118: #{forward.1} parent=5 // pred_check_branch
        %6974 = sbr.rel (%p6972) target = $region120
      $region119: #{forward.1} parent=5 // pred_region
        %s6975 = ssub.s32 %s27, 2
      $region120: #{forward.1} parent=5 // pred_fallthru
        _
    $region6: #{forward.1} parent=1 // loop_footer
      %s31 = sadd.s32 1, %s27
    $region7: #{forward.1} parent=1 // loop_footer_branch
      %26 = sbr.rel target = $region3
    $region8: #{forward.1} parent=1 // loop_exit
      _
    %6976 = vsyncpa [#allocation4], 1
    %s6977 = scalar_lea.sflag [#allocation4], 1
    %6978 = vsyncpa %s6977, 1

</llo_original>
